<compile_context>
chip_gen: v7x
topology: tpu7x:2x2x1
jax: 0.10.0
libtpu: 0.0.40
codegen_flags: <defaults>
</compile_context>

<pallas_src>
import math
import functools

import jax
import jax.numpy as jnp
from jax import lax
from jax.experimental import pallas as pl
from jax.experimental.pallas import tpu as pltpu


# ----------------------------------------------------------------------------
# in-kernel helpers (operate on loaded values)
# ----------------------------------------------------------------------------
def _mm_t(a, w):
    """a: (M, K), w: (N, K) -> (M, N) == a @ w.T without an in-kernel transpose."""
    return lax.dot_general(a, w, (((1,), (1,)), ((), ())),
                           preferred_element_type=jnp.float32)


def _layernorm(x, alpha, bias, eps):
    """SamLynnEvans Norm: alpha*(x-mean)/(std+eps)+bias, unbiased std (ddof=1)."""
    d = x.shape[-1]
    mean = jnp.mean(x, axis=-1, keepdims=True)
    var = jnp.sum((x - mean) ** 2, axis=-1, keepdims=True) * (1.0 / (d - 1))
    std = jnp.sqrt(var)
    inv = pl.reciprocal(std + eps, approx=False)
    return alpha * ((x - mean) * inv) + bias


def _mha_proj(q, k, v, mask_bias, wo, bo, *, heads, dk, scale):
    """Multi-head attention fused with the output projection.

    q: (Sq, D), k/v: (Sk, D), mask_bias: (Sq, Sk) additive (0 keep / -1e9 drop),
    wo: (D, D), bo: (1, D).
    concat_h(softmax(q_h k_h^T * scale + bias) v_h) @ Wo^T
        == sum_h (softmax(...) v_h) @ Wo[:, h*dk:(h+1)*dk]^T,
    so heads accumulate straight into the projected output.
    """
    Sq = q.shape[0]
    D = wo.shape[0]
    acc = jnp.zeros((Sq, D), jnp.float32)
    for h in range(heads):                       # static unroll (heads is small)
        sl = slice(h * dk, (h + 1) * dk)
        s = _mm_t(q[:, sl], k[:, sl]) * scale + mask_bias
        s = s - jnp.max(s, axis=-1, keepdims=True)
        p = jnp.exp(s)
        p = p * pl.reciprocal(jnp.sum(p, axis=-1, keepdims=True), approx=True)
        oh = lax.dot_general(p, v[:, sl], (((1,), (0,)), ((), ())),
                             preferred_element_type=jnp.float32)
        acc = acc + _mm_t(oh, wo[:, sl])
    return acc + bo


# ----------------------------------------------------------------------------
# fused Pallas kernels
# ----------------------------------------------------------------------------
def _encoder_layer_kernel(x_ref, mask_ref,
                          n1a_ref, n1b_ref, wqkv_ref, bqkv_ref, wo_ref, bo_ref,
                          n2a_ref, n2b_ref, w1_ref, b1_ref, w2_ref, b2_ref,
                          o_ref, *, heads, eps, scale):
    x = x_ref[0]                        # (S, D)
    mask = mask_ref[0]                  # (S, S) additive bias
    D = x.shape[-1]
    dk = D // heads

    # sublayer 1: pre-norm self-attention + residual
    x2 = _layernorm(x, n1a_ref[...], n1b_ref[...], eps)
    qkv = _mm_t(x2, wqkv_ref[...]) + bqkv_ref[...]       # (S, 3D)
    x = x + _mha_proj(qkv[:, :D], qkv[:, D:2 * D], qkv[:, 2 * D:], mask,
                      wo_ref[...], bo_ref[...], heads=heads, dk=dk, scale=scale)

    # sublayer 2: pre-norm FFN + residual
    x2 = _layernorm(x, n2a_ref[...], n2b_ref[...], eps)
    h = jnp.maximum(_mm_t(x2, w1_ref[...]) + b1_ref[...], 0.0)
    x = x + _mm_t(h, w2_ref[...]) + b2_ref[...]

    o_ref[0] = x


def _decoder_layer_kernel(y_ref, e_ref, tmask_ref, smask_ref,
                          n1a_ref, n1b_ref, wqkv1_ref, bqkv1_ref, wo1_ref, bo1_ref,
                          n2a_ref, n2b_ref, wq2_ref, bq2_ref, wkv2_ref, bkv2_ref,
                          wo2_ref, bo2_ref,
                          n3a_ref, n3b_ref, w1_ref, b1_ref, w2_ref, b2_ref,
                          o_ref, *, heads, eps, scale):
    y = y_ref[0]                        # (St, D)
    e = e_ref[0]                        # (Ss, D)
    tmask = tmask_ref[0]                # (St, St) additive bias
    smask = smask_ref[0]                # (St, Ss) additive bias
    D = y.shape[-1]
    dk = D // heads

    # sublayer 1: masked self-attention + residual
    y2 = _layernorm(y, n1a_ref[...], n1b_ref[...], eps)
    qkv = _mm_t(y2, wqkv1_ref[...]) + bqkv1_ref[...]
    y = y + _mha_proj(qkv[:, :D], qkv[:, D:2 * D], qkv[:, 2 * D:], tmask,
                      wo1_ref[...], bo1_ref[...], heads=heads, dk=dk, scale=scale)

    # sublayer 2: cross-attention on encoder outputs + residual
    y2 = _layernorm(y, n2a_ref[...], n2b_ref[...], eps)
    q = _mm_t(y2, wq2_ref[...]) + bq2_ref[...]
    kv = _mm_t(e, wkv2_ref[...]) + bkv2_ref[...]          # (Ss, 2D)
    y = y + _mha_proj(q, kv[:, :D], kv[:, D:], smask,
                      wo2_ref[...], bo2_ref[...], heads=heads, dk=dk, scale=scale)

    # sublayer 3: pre-norm FFN + residual
    y2 = _layernorm(y, n3a_ref[...], n3b_ref[...], eps)
    h = jnp.maximum(_mm_t(y2, w1_ref[...]) + b1_ref[...], 0.0)
    y = y + _mm_t(h, w2_ref[...]) + b2_ref[...]

    o_ref[0] = y


def _norm_kernel(x_ref, a_ref, b_ref, o_ref, *, eps):
    o_ref[0] = _layernorm(x_ref[0], a_ref[...], b_ref[...], eps)


def _norm_proj_kernel(y_ref, a_ref, b_ref, w_ref, bias_ref, o_ref, *, eps):
    # final decoder norm fused with the (lane-dense, vocab-padded) projection
    y2 = _layernorm(y_ref[0], a_ref[...], b_ref[...], eps)
    o_ref[0] = _mm_t(y2, w_ref[...]) + bias_ref[...]


# ----------------------------------------------------------------------------
# pallas_call wrappers
# ----------------------------------------------------------------------------
def _full_spec(*shape):
    """Whole-array block with a constant index_map (weights/biases: DMA'd once)."""
    return pl.BlockSpec(shape, lambda b: (0,) * len(shape))


def _parallel_params():
    # batch axis carries independent work -> lets v7x shard across its 2 TCs
    return pltpu.CompilerParams(dimension_semantics=("parallel",))


def encoder_layer_p(x, mask_bias, lyr, heads, eps=1e-6):
    B, S, D = x.shape
    F = lyr["ff"]["w1"].shape[0]
    scale = 1.0 / math.sqrt(D // heads)
    kernel = functools.partial(_encoder_layer_kernel, heads=heads, eps=eps, scale=scale)
    return pl.pallas_call(
        kernel,
        out_shape=jax.ShapeDtypeStruct((B, S, D), jnp.float32),
        grid=(B,),
        in_specs=[
            pl.BlockSpec((1, S, D), lambda b: (b, 0, 0)),
            pl.BlockSpec((1, S, S), lambda b: (b, 0, 0)),
            _full_spec(1, D), _full_spec(1, D),
            _full_spec(3 * D, D), _full_spec(1, 3 * D),
            _full_spec(D, D), _full_spec(1, D),
            _full_spec(1, D), _full_spec(1, D),
            _full_spec(F, D), _full_spec(1, F),
            _full_spec(D, F), _full_spec(1, D),
        ],
        out_specs=pl.BlockSpec((1, S, D), lambda b: (b, 0, 0)),
        compiler_params=_parallel_params(),
    )(x, mask_bias,
      lyr["n1"]["alpha"].reshape(1, D), lyr["n1"]["bias"].reshape(1, D),
      lyr["attn"]["wqkv"], lyr["attn"]["bqkv"].reshape(1, 3 * D),
      lyr["attn"]["wo"], lyr["attn"]["bo"].reshape(1, D),
      lyr["n2"]["alpha"].reshape(1, D), lyr["n2"]["bias"].reshape(1, D),
      lyr["ff"]["w1"], lyr["ff"]["b1"].reshape(1, F),
      lyr["ff"]["w2"], lyr["ff"]["b2"].reshape(1, D))


def decoder_layer_p(y, e_out, tmask_bias, smask_bias, lyr, heads, eps=1e-6):
    B, St, D = y.shape
    Ss = e_out.shape[1]
    F = lyr["ff"]["w1"].shape[0]
    scale = 1.0 / math.sqrt(D // heads)
    kernel = functools.partial(_decoder_layer_kernel, heads=heads, eps=eps, scale=scale)
    return pl.pallas_call(
        kernel,
        out_shape=jax.ShapeDtypeStruct((B, St, D), jnp.float32),
        grid=(B,),
        in_specs=[
            pl.BlockSpec((1, St, D), lambda b: (b, 0, 0)),
            pl.BlockSpec((1, Ss, D), lambda b: (b, 0, 0)),
            pl.BlockSpec((1, St, St), lambda b: (b, 0, 0)),
            pl.BlockSpec((1, St, Ss), lambda b: (b, 0, 0)),
            _full_spec(1, D), _full_spec(1, D),
            _full_spec(3 * D, D), _full_spec(1, 3 * D),
            _full_spec(D, D), _full_spec(1, D),
            _full_spec(1, D), _full_spec(1, D),
            _full_spec(D, D), _full_spec(1, D),
            _full_spec(2 * D, D), _full_spec(1, 2 * D),
            _full_spec(D, D), _full_spec(1, D),
            _full_spec(1, D), _full_spec(1, D),
            _full_spec(F, D), _full_spec(1, F),
            _full_spec(D, F), _full_spec(1, D),
        ],
        out_specs=pl.BlockSpec((1, St, D), lambda b: (b, 0, 0)),
        compiler_params=_parallel_params(),
    )(y, e_out, tmask_bias, smask_bias,
      lyr["n1"]["alpha"].reshape(1, D), lyr["n1"]["bias"].reshape(1, D),
      lyr["attn1"]["wqkv"], lyr["attn1"]["bqkv"].reshape(1, 3 * D),
      lyr["attn1"]["wo"], lyr["attn1"]["bo"].reshape(1, D),
      lyr["n2"]["alpha"].reshape(1, D), lyr["n2"]["bias"].reshape(1, D),
      lyr["attn2"]["wq"], lyr["attn2"]["bq"].reshape(1, D),
      lyr["attn2"]["wkv"], lyr["attn2"]["bkv"].reshape(1, 2 * D),
      lyr["attn2"]["wo"], lyr["attn2"]["bo"].reshape(1, D),
      lyr["n3"]["alpha"].reshape(1, D), lyr["n3"]["bias"].reshape(1, D),
      lyr["ff"]["w1"], lyr["ff"]["b1"].reshape(1, F),
      lyr["ff"]["w2"], lyr["ff"]["b2"].reshape(1, D))


def norm_p(x, alpha, bias, eps=1e-6):
    B, S, D = x.shape
    kernel = functools.partial(_norm_kernel, eps=eps)
    return pl.pallas_call(
        kernel,
        out_shape=jax.ShapeDtypeStruct((B, S, D), jnp.float32),
        grid=(B,),
        in_specs=[
            pl.BlockSpec((1, S, D), lambda b: (b, 0, 0)),
            _full_spec(1, D), _full_spec(1, D),
        ],
        out_specs=pl.BlockSpec((1, S, D), lambda b: (b, 0, 0)),
        compiler_params=_parallel_params(),
    )(x, alpha.reshape(1, D), bias.reshape(1, D))


def norm_out_p(y, alpha, bias, w, b, eps=1e-6):
    """Final decoder norm fused with the output projection; vocab dim padded to
    a multiple of 128 so the kernel's stores are lane-dense, sliced back after."""
    B, S, D = y.shape
    V = w.shape[0]
    Vp = ((V + 127) // 128) * 128
    w_p = jnp.zeros((Vp, D), jnp.float32).at[:V, :].set(w)
    b_p = jnp.zeros((1, Vp), jnp.float32).at[0, :V].set(b)
    kernel = functools.partial(_norm_proj_kernel, eps=eps)
    out = pl.pallas_call(
        kernel,
        out_shape=jax.ShapeDtypeStruct((B, S, Vp), jnp.float32),
        grid=(B,),
        in_specs=[
            pl.BlockSpec((1, S, D), lambda i: (i, 0, 0)),
            _full_spec(1, D), _full_spec(1, D),
            _full_spec(Vp, D), _full_spec(1, Vp),
        ],
        out_specs=pl.BlockSpec((1, S, Vp), lambda i: (i, 0, 0)),
        compiler_params=_parallel_params(),
    )(y, alpha.reshape(1, D), bias.reshape(1, D), w_p, b_p)
    return out[:, :, :V]


# ----------------------------------------------------------------------------
# Model glue (plain JAX): embeddings, positional encoding, mask prep, wiring
# ----------------------------------------------------------------------------
def make_pe(max_len, d_model):
    pe = jnp.zeros((max_len, d_model), jnp.float32)
    pos = jnp.arange(max_len, dtype=jnp.float32)[:, None]
    i = jnp.arange(0, d_model, 2, dtype=jnp.float32)[None, :]
    pe = pe.at[:, 0::2].set(jnp.sin(pos / (10000.0 ** ((2.0 * i) / d_model))))
    pe = pe.at[:, 1::2].set(jnp.cos(pos / (10000.0 ** ((2.0 * (i + 1.0)) / d_model))))
    return pe


def mask_to_additive_bias(mask, Sq, Sk):
    """(B, 1 or Sq, Sk) 0/1 mask -> (B, Sq, Sk) additive bias (0 keep, -1e9 drop)."""
    B = mask.shape[0]
    m = jnp.broadcast_to(mask, (B, Sq, Sk))
    return jnp.where(m == 0, -1e9, 0.0).astype(jnp.float32)


def transformer_forward(params, src, trg, src_mask, trg_mask, *, pe, d_model, heads):
    B, Ss = src.shape
    St = trg.shape[1]

    # precompute additive attention biases once, shared by every layer
    enc_bias = mask_to_additive_bias(src_mask, Ss, Ss)
    dec_self_bias = mask_to_additive_bias(trg_mask, St, St)
    dec_cross_bias = mask_to_additive_bias(src_mask, St, Ss)

    # encoder
    x = jnp.take(params["src_embed"], src, axis=0) * math.sqrt(d_model) + pe[:Ss][None]
    for lyr in params["enc_layers"]:
        x = encoder_layer_p(x, enc_bias, lyr, heads)
    e_out = norm_p(x, params["enc_norm"]["alpha"], params["enc_norm"]["bias"])

    # decoder
    y = jnp.take(params["trg_embed"], trg, axis=0) * math.sqrt(d_model) + pe[:St][None]
    for lyr in params["dec_layers"]:
        y = decoder_layer_p(y, e_out, dec_self_bias, dec_cross_bias, lyr, heads)

    # final norm fused with the lane-dense output projection
    return norm_out_p(y, params["dec_norm"]["alpha"], params["dec_norm"]["bias"],
                      params["out"]["w"], params["out"]["b"])


# ----------------------------------------------------------------------------
# Deterministic synthetic parameter initialization (QKV weights pre-stacked)
# ----------------------------------------------------------------------------
def init_params(key, src_vocab, trg_vocab, d_model, N, heads, d_ff):
    keys = iter(jax.random.split(key, 512))

    def rnd(shape, scale=0.02):
        return scale * jax.random.normal(next(keys), shape, dtype=jnp.float32)

    def norm():
        return {"alpha": jnp.ones((d_model,), jnp.float32),
                "bias": jnp.zeros((d_model,), jnp.float32)}

    def attn_self():
        # Wq/Wk/Wv stacked -> one QKV matmul inside the fused kernel
        return {"wqkv": rnd((3 * d_model, d_model)), "bqkv": rnd((3 * d_model,)),
                "wo": rnd((d_model, d_model)), "bo": rnd((d_model,))}

    def attn_cross():
        # Q from the decoder stream; K/V stacked, applied to encoder outputs
        return {"wq": rnd((d_model, d_model)), "bq": rnd((d_model,)),
                "wkv": rnd((2 * d_model, d_model)), "bkv": rnd((2 * d_model,)),
                "wo": rnd((d_model, d_model)), "bo": rnd((d_model,))}

    def ff():
        return {"w1": rnd((d_ff, d_model)), "b1": rnd((d_ff,)),
                "w2": rnd((d_model, d_ff)), "b2": rnd((d_model,))}

    return {
        "src_embed": rnd((src_vocab, d_model), 1.0),
        "trg_embed": rnd((trg_vocab, d_model), 1.0),
        "enc_layers": [{"n1": norm(), "attn": attn_self(), "n2": norm(), "ff": ff()}
                       for _ in range(N)],
        "enc_norm": norm(),
        "dec_layers": [{"n1": norm(), "attn1": attn_self(), "n2": norm(),
                        "attn2": attn_cross(), "n3": norm(), "ff": ff()}
                       for _ in range(N)],
        "dec_norm": norm(),
        "out": {"w": rnd((trg_vocab, d_model)), "b": rnd((trg_vocab,))},
    }


# ----------------------------------------------------------------------------
if __name__ == "__main__":
    src_vocab = 11
    trg_vocab = 11
    d_model = 32
    N = 2
    heads = 4
    dropout = 0.1  # eval-mode identity
    d_ff = 64
    B, S_src, S_trg = 2, 8, 8

    key = jax.random.PRNGKey(0)
    k_param, k_src, k_trg = jax.random.split(key, 3)

    params = init_params(k_param, src_vocab, trg_vocab, d_model, N, heads, d_ff)
    pe = make_pe(64, d_model)

    src = jax.random.randint(k_src, (B, S_src), 1, src_vocab, dtype=jnp.int32)
    trg = jax.random.randint(k_trg, (B, S_trg), 1, trg_vocab, dtype=jnp.int32)
    src_mask = jnp.ones((B, 1, S_src), jnp.float32)
    trg_mask = jnp.broadcast_to(
        jnp.tril(jnp.ones((S_trg, S_trg), jnp.float32))[None], (B, S_trg, S_trg))

    # TODO(synk): for large d_model/d_ff, switch activations/weights to bf16 on
    # v6e/v7x and tile M/N/K instead of whole-array blocks.
    fwd = jax.jit(functools.partial(transformer_forward,
                                    pe=pe, d_model=d_model, heads=heads))
    out = fwd(params, src, trg, src_mask, trg_mask)
    out = jax.block_until_ready(out)
    assert out.shape == (B, S_trg, trg_vocab), out.shape
    assert out.dtype == jnp.float32
    print("KERNEL_OK")
</pallas_src>

<mosaic_0001>
module attributes {stable_mosaic.version = 11 : i64} {
  func.func @_decoder_layer_kernel(%arg0: i32, %arg1: memref<1x8x32xf32, #tpu.memory_space<vmem>>, %arg2: memref<1x8x32xf32, #tpu.memory_space<vmem>>, %arg3: memref<1x8x8xf32, #tpu.memory_space<vmem>>, %arg4: memref<1x8x8xf32, #tpu.memory_space<vmem>>, %arg5: memref<1x32xf32, #tpu.memory_space<vmem>>, %arg6: memref<1x32xf32, #tpu.memory_space<vmem>>, %arg7: memref<96x32xf32, #tpu.memory_space<vmem>>, %arg8: memref<1x96xf32, #tpu.memory_space<vmem>>, %arg9: memref<32x32xf32, #tpu.memory_space<vmem>>, %arg10: memref<1x32xf32, #tpu.memory_space<vmem>>, %arg11: memref<1x32xf32, #tpu.memory_space<vmem>>, %arg12: memref<1x32xf32, #tpu.memory_space<vmem>>, %arg13: memref<32x32xf32, #tpu.memory_space<vmem>>, %arg14: memref<1x32xf32, #tpu.memory_space<vmem>>, %arg15: memref<64x32xf32, #tpu.memory_space<vmem>>, %arg16: memref<1x64xf32, #tpu.memory_space<vmem>>, %arg17: memref<32x32xf32, #tpu.memory_space<vmem>>, %arg18: memref<1x32xf32, #tpu.memory_space<vmem>>, %arg19: memref<1x32xf32, #tpu.memory_space<vmem>>, %arg20: memref<1x32xf32, #tpu.memory_space<vmem>>, %arg21: memref<64x32xf32, #tpu.memory_space<vmem>>, %arg22: memref<1x64xf32, #tpu.memory_space<vmem>>, %arg23: memref<32x64xf32, #tpu.memory_space<vmem>>, %arg24: memref<1x32xf32, #tpu.memory_space<vmem>>, %arg25: memref<1x8x32xf32, #tpu.memory_space<vmem>>) attributes {dimension_semantics = [#tpu.dimension_semantics<parallel>], iteration_bounds = array<i64: 2>, scalar_prefetch = 0 : i64, scratch_operands = 0 : i64, tpu.core_type = #tpu.core_type<tc>, window_params = [{transform_indices = @transform_0, window_bounds = array<i64: 1, 8, 32>}, {transform_indices = @transform_1, window_bounds = array<i64: 1, 8, 32>}, {transform_indices = @transform_2, window_bounds = array<i64: 1, 8, 8>}, {transform_indices = @transform_3, window_bounds = array<i64: 1, 8, 8>}, {pipeline_mode = #tpu.pipeline_mode<synchronous>, transform_indices = @transform_4, window_bounds = array<i64: 1, 32>}, {pipeline_mode = #tpu.pipeline_mode<synchronous>, transform_indices = @transform_5, window_bounds = array<i64: 1, 32>}, {pipeline_mode = #tpu.pipeline_mode<synchronous>, transform_indices = @transform_6, window_bounds = array<i64: 96, 32>}, {pipeline_mode = #tpu.pipeline_mode<synchronous>, transform_indices = @transform_7, window_bounds = array<i64: 1, 96>}, {pipeline_mode = #tpu.pipeline_mode<synchronous>, transform_indices = @transform_8, window_bounds = array<i64: 32, 32>}, {pipeline_mode = #tpu.pipeline_mode<synchronous>, transform_indices = @transform_9, window_bounds = array<i64: 1, 32>}, {pipeline_mode = #tpu.pipeline_mode<synchronous>, transform_indices = @transform_10, window_bounds = array<i64: 1, 32>}, {pipeline_mode = #tpu.pipeline_mode<synchronous>, transform_indices = @transform_11, window_bounds = array<i64: 1, 32>}, {pipeline_mode = #tpu.pipeline_mode<synchronous>, transform_indices = @transform_12, window_bounds = array<i64: 32, 32>}, {pipeline_mode = #tpu.pipeline_mode<synchronous>, transform_indices = @transform_13, window_bounds = array<i64: 1, 32>}, {pipeline_mode = #tpu.pipeline_mode<synchronous>, transform_indices = @transform_14, window_bounds = array<i64: 64, 32>}, {pipeline_mode = #tpu.pipeline_mode<synchronous>, transform_indices = @transform_15, window_bounds = array<i64: 1, 64>}, {pipeline_mode = #tpu.pipeline_mode<synchronous>, transform_indices = @transform_16, window_bounds = array<i64: 32, 32>}, {pipeline_mode = #tpu.pipeline_mode<synchronous>, transform_indices = @transform_17, window_bounds = array<i64: 1, 32>}, {pipeline_mode = #tpu.pipeline_mode<synchronous>, transform_indices = @transform_18, window_bounds = array<i64: 1, 32>}, {pipeline_mode = #tpu.pipeline_mode<synchronous>, transform_indices = @transform_19, window_bounds = array<i64: 1, 32>}, {pipeline_mode = #tpu.pipeline_mode<synchronous>, transform_indices = @transform_20, window_bounds = array<i64: 64, 32>}, {pipeline_mode = #tpu.pipeline_mode<synchronous>, transform_indices = @transform_21, window_bounds = array<i64: 1, 64>}, {pipeline_mode = #tpu.pipeline_mode<synchronous>, transform_indices = @transform_22, window_bounds = array<i64: 32, 64>}, {pipeline_mode = #tpu.pipeline_mode<synchronous>, transform_indices = @transform_23, window_bounds = array<i64: 1, 32>}, {transform_indices = @transform_24, window_bounds = array<i64: 1, 8, 32>}]} {
    %c0 = arith.constant 0 : index
    %c0_0 = arith.constant 0 : index
    %c0_1 = arith.constant 0 : index
    %0 = vector.load %arg1[%c0, %c0_0, %c0_1] : memref<1x8x32xf32, #tpu.memory_space<vmem>>, vector<1x8x32xf32>
    %1 = vector.shape_cast %0 : vector<1x8x32xf32> to vector<8x32xf32>
    %c0_2 = arith.constant 0 : index
    %c0_3 = arith.constant 0 : index
    %c0_4 = arith.constant 0 : index
    %2 = vector.load %arg2[%c0_2, %c0_3, %c0_4] : memref<1x8x32xf32, #tpu.memory_space<vmem>>, vector<1x8x32xf32>
    %3 = vector.shape_cast %2 : vector<1x8x32xf32> to vector<8x32xf32>
    %c0_5 = arith.constant 0 : index
    %c0_6 = arith.constant 0 : index
    %c0_7 = arith.constant 0 : index
    %4 = vector.load %arg3[%c0_5, %c0_6, %c0_7] : memref<1x8x8xf32, #tpu.memory_space<vmem>>, vector<1x8x8xf32>
    %5 = vector.shape_cast %4 : vector<1x8x8xf32> to vector<8x8xf32>
    %c0_8 = arith.constant 0 : index
    %c0_9 = arith.constant 0 : index
    %c0_10 = arith.constant 0 : index
    %6 = vector.load %arg4[%c0_8, %c0_9, %c0_10] : memref<1x8x8xf32, #tpu.memory_space<vmem>>, vector<1x8x8xf32>
    %7 = vector.shape_cast %6 : vector<1x8x8xf32> to vector<8x8xf32>
    %c0_11 = arith.constant 0 : index
    %c0_12 = arith.constant 0 : index
    %8 = vector.load %arg5[%c0_11, %c0_12] : memref<1x32xf32, #tpu.memory_space<vmem>>, vector<1x32xf32>
    %c0_13 = arith.constant 0 : index
    %c0_14 = arith.constant 0 : index
    %9 = vector.load %arg6[%c0_13, %c0_14] : memref<1x32xf32, #tpu.memory_space<vmem>>, vector<1x32xf32>
    %cst = arith.constant dense<0.000000e+00> : vector<8xf32>
    %10 = vector.multi_reduction <add>, %1, %cst [1] : vector<8x32xf32> to vector<8xf32>
    %11 = vector.shape_cast %10 : vector<8xf32> to vector<8x1xf32>
    %cst_15 = arith.constant 3.200000e+01 : f32
    %12 = vector.broadcast %cst_15 : f32 to vector<8x1xf32>
    %13 = arith.divf %11, %12 : vector<8x1xf32>
    %14 = vector.broadcast %13 : vector<8x1xf32> to vector<8x32xf32>
    %15 = arith.subf %1, %14 : vector<8x32xf32>
    %16 = arith.mulf %15, %15 : vector<8x32xf32>
    %cst_16 = arith.constant dense<0.000000e+00> : vector<8xf32>
    %17 = vector.multi_reduction <add>, %16, %cst_16 [1] : vector<8x32xf32> to vector<8xf32>
    %18 = vector.shape_cast %17 : vector<8xf32> to vector<8x1xf32>
    %cst_17 = arith.constant 0.0322580636 : f32
    %19 = vector.broadcast %cst_17 : f32 to vector<8x1xf32>
    %20 = arith.mulf %18, %19 : vector<8x1xf32>
    %21 = math.sqrt %20 : vector<8x1xf32>
    %cst_18 = arith.constant 9.99999997E-7 : f32
    %22 = vector.broadcast %cst_18 : f32 to vector<8x1xf32>
    %23 = arith.addf %21, %22 : vector<8x1xf32>
    %24 = tpu.reciprocal %23 : vector<8x1xf32> -> vector<8x1xf32>
    %25 = vector.broadcast %13 : vector<8x1xf32> to vector<8x32xf32>
    %26 = arith.subf %1, %25 : vector<8x32xf32>
    %27 = vector.broadcast %24 : vector<8x1xf32> to vector<8x32xf32>
    %28 = arith.mulf %26, %27 : vector<8x32xf32>
    %29 = vector.broadcast %8 : vector<1x32xf32> to vector<8x32xf32>
    %30 = arith.mulf %29, %28 : vector<8x32xf32>
    %31 = vector.broadcast %9 : vector<1x32xf32> to vector<8x32xf32>
    %32 = arith.addf %30, %31 : vector<8x32xf32>
    %c0_19 = arith.constant 0 : index
    %c0_20 = arith.constant 0 : index
    %33 = vector.load %arg7[%c0_19, %c0_20] : memref<96x32xf32, #tpu.memory_space<vmem>>, vector<96x32xf32>
    %cst_21 = arith.constant dense<0.000000e+00> : vector<8x96xf32>
    %34 = tpu.matmul %32, %33, %cst_21 {dimension_numbers = #tpu.dot_dimension_numbers<[1], [1], [0], [0], [0, 0, 1, 0], [], []>} : vector<8x32xf32>, vector<96x32xf32>, vector<8x96xf32> -> vector<8x96xf32>
    %c0_22 = arith.constant 0 : index
    %c0_23 = arith.constant 0 : index
    %35 = vector.load %arg8[%c0_22, %c0_23] : memref<1x96xf32, #tpu.memory_space<vmem>>, vector<1x96xf32>
    %36 = vector.broadcast %35 : vector<1x96xf32> to vector<8x96xf32>
    %37 = arith.addf %34, %36 : vector<8x96xf32>
    %38 = vector.extract_strided_slice %37 {offsets = [0, 0], sizes = [8, 32], strides = [1, 1]} : vector<8x96xf32> to vector<8x32xf32>
    %39 = vector.extract_strided_slice %37 {offsets = [0, 32], sizes = [8, 32], strides = [1, 1]} : vector<8x96xf32> to vector<8x32xf32>
    %40 = vector.extract_strided_slice %37 {offsets = [0, 64], sizes = [8, 32], strides = [1, 1]} : vector<8x96xf32> to vector<8x32xf32>
    %c0_24 = arith.constant 0 : index
    %c0_25 = arith.constant 0 : index
    %41 = vector.load %arg9[%c0_24, %c0_25] : memref<32x32xf32, #tpu.memory_space<vmem>>, vector<32x32xf32>
    %c0_26 = arith.constant 0 : index
    %c0_27 = arith.constant 0 : index
    %42 = vector.load %arg10[%c0_26, %c0_27] : memref<1x32xf32, #tpu.memory_space<vmem>>, vector<1x32xf32>
    %cst_28 = arith.constant 0.000000e+00 : f32
    %43 = vector.broadcast %cst_28 : f32 to vector<8x32xf32>
    %44 = vector.extract_strided_slice %38 {offsets = [0, 0], sizes = [8, 8], strides = [1, 1]} : vector<8x32xf32> to vector<8x8xf32>
    %45 = vector.extract_strided_slice %39 {offsets = [0, 0], sizes = [8, 8], strides = [1, 1]} : vector<8x32xf32> to vector<8x8xf32>
    %cst_29 = arith.constant dense<0.000000e+00> : vector<8x8xf32>
    %46 = tpu.matmul %44, %45, %cst_29 {dimension_numbers = #tpu.dot_dimension_numbers<[1], [1], [0], [0], [0, 0, 1, 0], [], []>} : vector<8x8xf32>, vector<8x8xf32>, vector<8x8xf32> -> vector<8x8xf32>
    %cst_30 = arith.constant 0.353553385 : f32
    %47 = vector.broadcast %cst_30 : f32 to vector<8x8xf32>
    %48 = arith.mulf %46, %47 : vector<8x8xf32>
    %49 = arith.addf %48, %5 : vector<8x8xf32>
    %cst_31 = arith.constant dense<0xFF800000> : vector<8xf32>
    %50 = vector.multi_reduction <maximumf>, %49, %cst_31 [1] : vector<8x8xf32> to vector<8xf32>
    %51 = vector.shape_cast %50 : vector<8xf32> to vector<8x1xf32>
    %52 = vector.broadcast %51 : vector<8x1xf32> to vector<8x8xf32>
    %53 = arith.subf %49, %52 : vector<8x8xf32>
    %54 = math.exp %53 : vector<8x8xf32>
    %cst_32 = arith.constant dense<0.000000e+00> : vector<8xf32>
    %55 = vector.multi_reduction <add>, %54, %cst_32 [1] : vector<8x8xf32> to vector<8xf32>
    %56 = vector.shape_cast %55 : vector<8xf32> to vector<8x1xf32>
    %57 = tpu.reciprocal %56 {approx = true} : vector<8x1xf32> -> vector<8x1xf32>
    %58 = vector.broadcast %57 : vector<8x1xf32> to vector<8x8xf32>
    %59 = arith.mulf %54, %58 : vector<8x8xf32>
    %60 = vector.extract_strided_slice %40 {offsets = [0, 0], sizes = [8, 8], strides = [1, 1]} : vector<8x32xf32> to vector<8x8xf32>
    %cst_33 = arith.constant dense<0.000000e+00> : vector<8x8xf32>
    %61 = tpu.matmul %59, %60, %cst_33 {dimension_numbers = #tpu.dot_dimension_numbers<[1], [0], [0], [1], [0, 0, 1, 1], [], []>} : vector<8x8xf32>, vector<8x8xf32>, vector<8x8xf32> -> vector<8x8xf32>
    %62 = vector.extract_strided_slice %41 {offsets = [0, 0], sizes = [32, 8], strides = [1, 1]} : vector<32x32xf32> to vector<32x8xf32>
    %cst_34 = arith.constant dense<0.000000e+00> : vector<8x32xf32>
    %63 = tpu.matmul %61, %62, %cst_34 {dimension_numbers = #tpu.dot_dimension_numbers<[1], [1], [0], [0], [0, 0, 1, 0], [], []>} : vector<8x8xf32>, vector<32x8xf32>, vector<8x32xf32> -> vector<8x32xf32>
    %64 = arith.addf %43, %63 : vector<8x32xf32>
    %65 = vector.extract_strided_slice %38 {offsets = [0, 8], sizes = [8, 8], strides = [1, 1]} : vector<8x32xf32> to vector<8x8xf32>
    %66 = vector.extract_strided_slice %39 {offsets = [0, 8], sizes = [8, 8], strides = [1, 1]} : vector<8x32xf32> to vector<8x8xf32>
    %cst_35 = arith.constant dense<0.000000e+00> : vector<8x8xf32>
    %67 = tpu.matmul %65, %66, %cst_35 {dimension_numbers = #tpu.dot_dimension_numbers<[1], [1], [0], [0], [0, 0, 1, 0], [], []>} : vector<8x8xf32>, vector<8x8xf32>, vector<8x8xf32> -> vector<8x8xf32>
    %cst_36 = arith.constant 0.353553385 : f32
    %68 = vector.broadcast %cst_36 : f32 to vector<8x8xf32>
    %69 = arith.mulf %67, %68 : vector<8x8xf32>
    %70 = arith.addf %69, %5 : vector<8x8xf32>
    %cst_37 = arith.constant dense<0xFF800000> : vector<8xf32>
    %71 = vector.multi_reduction <maximumf>, %70, %cst_37 [1] : vector<8x8xf32> to vector<8xf32>
    %72 = vector.shape_cast %71 : vector<8xf32> to vector<8x1xf32>
    %73 = vector.broadcast %72 : vector<8x1xf32> to vector<8x8xf32>
    %74 = arith.subf %70, %73 : vector<8x8xf32>
    %75 = math.exp %74 : vector<8x8xf32>
    %cst_38 = arith.constant dense<0.000000e+00> : vector<8xf32>
    %76 = vector.multi_reduction <add>, %75, %cst_38 [1] : vector<8x8xf32> to vector<8xf32>
    %77 = vector.shape_cast %76 : vector<8xf32> to vector<8x1xf32>
    %78 = tpu.reciprocal %77 {approx = true} : vector<8x1xf32> -> vector<8x1xf32>
    %79 = vector.broadcast %78 : vector<8x1xf32> to vector<8x8xf32>
    %80 = arith.mulf %75, %79 : vector<8x8xf32>
    %81 = vector.extract_strided_slice %40 {offsets = [0, 8], sizes = [8, 8], strides = [1, 1]} : vector<8x32xf32> to vector<8x8xf32>
    %cst_39 = arith.constant dense<0.000000e+00> : vector<8x8xf32>
    %82 = tpu.matmul %80, %81, %cst_39 {dimension_numbers = #tpu.dot_dimension_numbers<[1], [0], [0], [1], [0, 0, 1, 1], [], []>} : vector<8x8xf32>, vector<8x8xf32>, vector<8x8xf32> -> vector<8x8xf32>
    %83 = vector.extract_strided_slice %41 {offsets = [0, 8], sizes = [32, 8], strides = [1, 1]} : vector<32x32xf32> to vector<32x8xf32>
    %cst_40 = arith.constant dense<0.000000e+00> : vector<8x32xf32>
    %84 = tpu.matmul %82, %83, %cst_40 {dimension_numbers = #tpu.dot_dimension_numbers<[1], [1], [0], [0], [0, 0, 1, 0], [], []>} : vector<8x8xf32>, vector<32x8xf32>, vector<8x32xf32> -> vector<8x32xf32>
    %85 = arith.addf %64, %84 : vector<8x32xf32>
    %86 = vector.extract_strided_slice %38 {offsets = [0, 16], sizes = [8, 8], strides = [1, 1]} : vector<8x32xf32> to vector<8x8xf32>
    %87 = vector.extract_strided_slice %39 {offsets = [0, 16], sizes = [8, 8], strides = [1, 1]} : vector<8x32xf32> to vector<8x8xf32>
    %cst_41 = arith.constant dense<0.000000e+00> : vector<8x8xf32>
    %88 = tpu.matmul %86, %87, %cst_41 {dimension_numbers = #tpu.dot_dimension_numbers<[1], [1], [0], [0], [0, 0, 1, 0], [], []>} : vector<8x8xf32>, vector<8x8xf32>, vector<8x8xf32> -> vector<8x8xf32>
    %cst_42 = arith.constant 0.353553385 : f32
    %89 = vector.broadcast %cst_42 : f32 to vector<8x8xf32>
    %90 = arith.mulf %88, %89 : vector<8x8xf32>
    %91 = arith.addf %90, %5 : vector<8x8xf32>
    %cst_43 = arith.constant dense<0xFF800000> : vector<8xf32>
    %92 = vector.multi_reduction <maximumf>, %91, %cst_43 [1] : vector<8x8xf32> to vector<8xf32>
    %93 = vector.shape_cast %92 : vector<8xf32> to vector<8x1xf32>
    %94 = vector.broadcast %93 : vector<8x1xf32> to vector<8x8xf32>
    %95 = arith.subf %91, %94 : vector<8x8xf32>
    %96 = math.exp %95 : vector<8x8xf32>
    %cst_44 = arith.constant dense<0.000000e+00> : vector<8xf32>
    %97 = vector.multi_reduction <add>, %96, %cst_44 [1] : vector<8x8xf32> to vector<8xf32>
    %98 = vector.shape_cast %97 : vector<8xf32> to vector<8x1xf32>
    %99 = tpu.reciprocal %98 {approx = true} : vector<8x1xf32> -> vector<8x1xf32>
    %100 = vector.broadcast %99 : vector<8x1xf32> to vector<8x8xf32>
    %101 = arith.mulf %96, %100 : vector<8x8xf32>
    %102 = vector.extract_strided_slice %40 {offsets = [0, 16], sizes = [8, 8], strides = [1, 1]} : vector<8x32xf32> to vector<8x8xf32>
    %cst_45 = arith.constant dense<0.000000e+00> : vector<8x8xf32>
    %103 = tpu.matmul %101, %102, %cst_45 {dimension_numbers = #tpu.dot_dimension_numbers<[1], [0], [0], [1], [0, 0, 1, 1], [], []>} : vector<8x8xf32>, vector<8x8xf32>, vector<8x8xf32> -> vector<8x8xf32>
    %104 = vector.extract_strided_slice %41 {offsets = [0, 16], sizes = [32, 8], strides = [1, 1]} : vector<32x32xf32> to vector<32x8xf32>
    %cst_46 = arith.constant dense<0.000000e+00> : vector<8x32xf32>
    %105 = tpu.matmul %103, %104, %cst_46 {dimension_numbers = #tpu.dot_dimension_numbers<[1], [1], [0], [0], [0, 0, 1, 0], [], []>} : vector<8x8xf32>, vector<32x8xf32>, vector<8x32xf32> -> vector<8x32xf32>
    %106 = arith.addf %85, %105 : vector<8x32xf32>
    %107 = vector.extract_strided_slice %38 {offsets = [0, 24], sizes = [8, 8], strides = [1, 1]} : vector<8x32xf32> to vector<8x8xf32>
    %108 = vector.extract_strided_slice %39 {offsets = [0, 24], sizes = [8, 8], strides = [1, 1]} : vector<8x32xf32> to vector<8x8xf32>
    %cst_47 = arith.constant dense<0.000000e+00> : vector<8x8xf32>
    %109 = tpu.matmul %107, %108, %cst_47 {dimension_numbers = #tpu.dot_dimension_numbers<[1], [1], [0], [0], [0, 0, 1, 0], [], []>} : vector<8x8xf32>, vector<8x8xf32>, vector<8x8xf32> -> vector<8x8xf32>
    %cst_48 = arith.constant 0.353553385 : f32
    %110 = vector.broadcast %cst_48 : f32 to vector<8x8xf32>
    %111 = arith.mulf %109, %110 : vector<8x8xf32>
    %112 = arith.addf %111, %5 : vector<8x8xf32>
    %cst_49 = arith.constant dense<0xFF800000> : vector<8xf32>
    %113 = vector.multi_reduction <maximumf>, %112, %cst_49 [1] : vector<8x8xf32> to vector<8xf32>
    %114 = vector.shape_cast %113 : vector<8xf32> to vector<8x1xf32>
    %115 = vector.broadcast %114 : vector<8x1xf32> to vector<8x8xf32>
    %116 = arith.subf %112, %115 : vector<8x8xf32>
    %117 = math.exp %116 : vector<8x8xf32>
    %cst_50 = arith.constant dense<0.000000e+00> : vector<8xf32>
    %118 = vector.multi_reduction <add>, %117, %cst_50 [1] : vector<8x8xf32> to vector<8xf32>
    %119 = vector.shape_cast %118 : vector<8xf32> to vector<8x1xf32>
    %120 = tpu.reciprocal %119 {approx = true} : vector<8x1xf32> -> vector<8x1xf32>
    %121 = vector.broadcast %120 : vector<8x1xf32> to vector<8x8xf32>
    %122 = arith.mulf %117, %121 : vector<8x8xf32>
    %123 = vector.extract_strided_slice %40 {offsets = [0, 24], sizes = [8, 8], strides = [1, 1]} : vector<8x32xf32> to vector<8x8xf32>
    %cst_51 = arith.constant dense<0.000000e+00> : vector<8x8xf32>
    %124 = tpu.matmul %122, %123, %cst_51 {dimension_numbers = #tpu.dot_dimension_numbers<[1], [0], [0], [1], [0, 0, 1, 1], [], []>} : vector<8x8xf32>, vector<8x8xf32>, vector<8x8xf32> -> vector<8x8xf32>
    %125 = vector.extract_strided_slice %41 {offsets = [0, 24], sizes = [32, 8], strides = [1, 1]} : vector<32x32xf32> to vector<32x8xf32>
    %cst_52 = arith.constant dense<0.000000e+00> : vector<8x32xf32>
    %126 = tpu.matmul %124, %125, %cst_52 {dimension_numbers = #tpu.dot_dimension_numbers<[1], [1], [0], [0], [0, 0, 1, 0], [], []>} : vector<8x8xf32>, vector<32x8xf32>, vector<8x32xf32> -> vector<8x32xf32>
    %127 = arith.addf %106, %126 : vector<8x32xf32>
    %128 = vector.broadcast %42 : vector<1x32xf32> to vector<8x32xf32>
    %129 = arith.addf %127, %128 : vector<8x32xf32>
    %130 = arith.addf %1, %129 : vector<8x32xf32>
    %c0_53 = arith.constant 0 : index
    %c0_54 = arith.constant 0 : index
    %131 = vector.load %arg11[%c0_53, %c0_54] : memref<1x32xf32, #tpu.memory_space<vmem>>, vector<1x32xf32>
    %c0_55 = arith.constant 0 : index
    %c0_56 = arith.constant 0 : index
    %132 = vector.load %arg12[%c0_55, %c0_56] : memref<1x32xf32, #tpu.memory_space<vmem>>, vector<1x32xf32>
    %cst_57 = arith.constant dense<0.000000e+00> : vector<8xf32>
    %133 = vector.multi_reduction <add>, %130, %cst_57 [1] : vector<8x32xf32> to vector<8xf32>
    %134 = vector.shape_cast %133 : vector<8xf32> to vector<8x1xf32>
    %cst_58 = arith.constant 3.200000e+01 : f32
    %135 = vector.broadcast %cst_58 : f32 to vector<8x1xf32>
    %136 = arith.divf %134, %135 : vector<8x1xf32>
    %137 = vector.broadcast %136 : vector<8x1xf32> to vector<8x32xf32>
    %138 = arith.subf %130, %137 : vector<8x32xf32>
    %139 = arith.mulf %138, %138 : vector<8x32xf32>
    %cst_59 = arith.constant dense<0.000000e+00> : vector<8xf32>
    %140 = vector.multi_reduction <add>, %139, %cst_59 [1] : vector<8x32xf32> to vector<8xf32>
    %141 = vector.shape_cast %140 : vector<8xf32> to vector<8x1xf32>
    %cst_60 = arith.constant 0.0322580636 : f32
    %142 = vector.broadcast %cst_60 : f32 to vector<8x1xf32>
    %143 = arith.mulf %141, %142 : vector<8x1xf32>
    %144 = math.sqrt %143 : vector<8x1xf32>
    %cst_61 = arith.constant 9.99999997E-7 : f32
    %145 = vector.broadcast %cst_61 : f32 to vector<8x1xf32>
    %146 = arith.addf %144, %145 : vector<8x1xf32>
    %147 = tpu.reciprocal %146 : vector<8x1xf32> -> vector<8x1xf32>
    %148 = vector.broadcast %136 : vector<8x1xf32> to vector<8x32xf32>
    %149 = arith.subf %130, %148 : vector<8x32xf32>
    %150 = vector.broadcast %147 : vector<8x1xf32> to vector<8x32xf32>
    %151 = arith.mulf %149, %150 : vector<8x32xf32>
    %152 = vector.broadcast %131 : vector<1x32xf32> to vector<8x32xf32>
    %153 = arith.mulf %152, %151 : vector<8x32xf32>
    %154 = vector.broadcast %132 : vector<1x32xf32> to vector<8x32xf32>
    %155 = arith.addf %153, %154 : vector<8x32xf32>
    %c0_62 = arith.constant 0 : index
    %c0_63 = arith.constant 0 : index
    %156 = vector.load %arg13[%c0_62, %c0_63] : memref<32x32xf32, #tpu.memory_space<vmem>>, vector<32x32xf32>
    %cst_64 = arith.constant dense<0.000000e+00> : vector<8x32xf32>
    %157 = tpu.matmul %155, %156, %cst_64 {dimension_numbers = #tpu.dot_dimension_numbers<[1], [1], [0], [0], [0, 0, 1, 0], [], []>} : vector<8x32xf32>, vector<32x32xf32>, vector<8x32xf32> -> vector<8x32xf32>
    %c0_65 = arith.constant 0 : index
    %c0_66 = arith.constant 0 : index
    %158 = vector.load %arg14[%c0_65, %c0_66] : memref<1x32xf32, #tpu.memory_space<vmem>>, vector<1x32xf32>
    %159 = vector.broadcast %158 : vector<1x32xf32> to vector<8x32xf32>
    %160 = arith.addf %157, %159 : vector<8x32xf32>
    %c0_67 = arith.constant 0 : index
    %c0_68 = arith.constant 0 : index
    %161 = vector.load %arg15[%c0_67, %c0_68] : memref<64x32xf32, #tpu.memory_space<vmem>>, vector<64x32xf32>
    %cst_69 = arith.constant dense<0.000000e+00> : vector<8x64xf32>
    %162 = tpu.matmul %3, %161, %cst_69 {dimension_numbers = #tpu.dot_dimension_numbers<[1], [1], [0], [0], [0, 0, 1, 0], [], []>} : vector<8x32xf32>, vector<64x32xf32>, vector<8x64xf32> -> vector<8x64xf32>
    %c0_70 = arith.constant 0 : index
    %c0_71 = arith.constant 0 : index
    %163 = vector.load %arg16[%c0_70, %c0_71] : memref<1x64xf32, #tpu.memory_space<vmem>>, vector<1x64xf32>
    %164 = vector.broadcast %163 : vector<1x64xf32> to vector<8x64xf32>
    %165 = arith.addf %162, %164 : vector<8x64xf32>
    %166 = vector.extract_strided_slice %165 {offsets = [0, 0], sizes = [8, 32], strides = [1, 1]} : vector<8x64xf32> to vector<8x32xf32>
    %167 = vector.extract_strided_slice %165 {offsets = [0, 32], sizes = [8, 32], strides = [1, 1]} : vector<8x64xf32> to vector<8x32xf32>
    %c0_72 = arith.constant 0 : index
    %c0_73 = arith.constant 0 : index
    %168 = vector.load %arg17[%c0_72, %c0_73] : memref<32x32xf32, #tpu.memory_space<vmem>>, vector<32x32xf32>
    %c0_74 = arith.constant 0 : index
    %c0_75 = arith.constant 0 : index
    %169 = vector.load %arg18[%c0_74, %c0_75] : memref<1x32xf32, #tpu.memory_space<vmem>>, vector<1x32xf32>
    %cst_76 = arith.constant 0.000000e+00 : f32
    %170 = vector.broadcast %cst_76 : f32 to vector<8x32xf32>
    %171 = vector.extract_strided_slice %160 {offsets = [0, 0], sizes = [8, 8], strides = [1, 1]} : vector<8x32xf32> to vector<8x8xf32>
    %172 = vector.extract_strided_slice %166 {offsets = [0, 0], sizes = [8, 8], strides = [1, 1]} : vector<8x32xf32> to vector<8x8xf32>
    %cst_77 = arith.constant dense<0.000000e+00> : vector<8x8xf32>
    %173 = tpu.matmul %171, %172, %cst_77 {dimension_numbers = #tpu.dot_dimension_numbers<[1], [1], [0], [0], [0, 0, 1, 0], [], []>} : vector<8x8xf32>, vector<8x8xf32>, vector<8x8xf32> -> vector<8x8xf32>
    %cst_78 = arith.constant 0.353553385 : f32
    %174 = vector.broadcast %cst_78 : f32 to vector<8x8xf32>
    %175 = arith.mulf %173, %174 : vector<8x8xf32>
    %176 = arith.addf %175, %7 : vector<8x8xf32>
    %cst_79 = arith.constant dense<0xFF800000> : vector<8xf32>
    %177 = vector.multi_reduction <maximumf>, %176, %cst_79 [1] : vector<8x8xf32> to vector<8xf32>
    %178 = vector.shape_cast %177 : vector<8xf32> to vector<8x1xf32>
    %179 = vector.broadcast %178 : vector<8x1xf32> to vector<8x8xf32>
    %180 = arith.subf %176, %179 : vector<8x8xf32>
    %181 = math.exp %180 : vector<8x8xf32>
    %cst_80 = arith.constant dense<0.000000e+00> : vector<8xf32>
    %182 = vector.multi_reduction <add>, %181, %cst_80 [1] : vector<8x8xf32> to vector<8xf32>
    %183 = vector.shape_cast %182 : vector<8xf32> to vector<8x1xf32>
    %184 = tpu.reciprocal %183 {approx = true} : vector<8x1xf32> -> vector<8x1xf32>
    %185 = vector.broadcast %184 : vector<8x1xf32> to vector<8x8xf32>
    %186 = arith.mulf %181, %185 : vector<8x8xf32>
    %187 = vector.extract_strided_slice %167 {offsets = [0, 0], sizes = [8, 8], strides = [1, 1]} : vector<8x32xf32> to vector<8x8xf32>
    %cst_81 = arith.constant dense<0.000000e+00> : vector<8x8xf32>
    %188 = tpu.matmul %186, %187, %cst_81 {dimension_numbers = #tpu.dot_dimension_numbers<[1], [0], [0], [1], [0, 0, 1, 1], [], []>} : vector<8x8xf32>, vector<8x8xf32>, vector<8x8xf32> -> vector<8x8xf32>
    %189 = vector.extract_strided_slice %168 {offsets = [0, 0], sizes = [32, 8], strides = [1, 1]} : vector<32x32xf32> to vector<32x8xf32>
    %cst_82 = arith.constant dense<0.000000e+00> : vector<8x32xf32>
    %190 = tpu.matmul %188, %189, %cst_82 {dimension_numbers = #tpu.dot_dimension_numbers<[1], [1], [0], [0], [0, 0, 1, 0], [], []>} : vector<8x8xf32>, vector<32x8xf32>, vector<8x32xf32> -> vector<8x32xf32>
    %191 = arith.addf %170, %190 : vector<8x32xf32>
    %192 = vector.extract_strided_slice %160 {offsets = [0, 8], sizes = [8, 8], strides = [1, 1]} : vector<8x32xf32> to vector<8x8xf32>
    %193 = vector.extract_strided_slice %166 {offsets = [0, 8], sizes = [8, 8], strides = [1, 1]} : vector<8x32xf32> to vector<8x8xf32>
    %cst_83 = arith.constant dense<0.000000e+00> : vector<8x8xf32>
    %194 = tpu.matmul %192, %193, %cst_83 {dimension_numbers = #tpu.dot_dimension_numbers<[1], [1], [0], [0], [0, 0, 1, 0], [], []>} : vector<8x8xf32>, vector<8x8xf32>, vector<8x8xf32> -> vector<8x8xf32>
    %cst_84 = arith.constant 0.353553385 : f32
    %195 = vector.broadcast %cst_84 : f32 to vector<8x8xf32>
    %196 = arith.mulf %194, %195 : vector<8x8xf32>
    %197 = arith.addf %196, %7 : vector<8x8xf32>
    %cst_85 = arith.constant dense<0xFF800000> : vector<8xf32>
    %198 = vector.multi_reduction <maximumf>, %197, %cst_85 [1] : vector<8x8xf32> to vector<8xf32>
    %199 = vector.shape_cast %198 : vector<8xf32> to vector<8x1xf32>
    %200 = vector.broadcast %199 : vector<8x1xf32> to vector<8x8xf32>
    %201 = arith.subf %197, %200 : vector<8x8xf32>
    %202 = math.exp %201 : vector<8x8xf32>
    %cst_86 = arith.constant dense<0.000000e+00> : vector<8xf32>
    %203 = vector.multi_reduction <add>, %202, %cst_86 [1] : vector<8x8xf32> to vector<8xf32>
    %204 = vector.shape_cast %203 : vector<8xf32> to vector<8x1xf32>
    %205 = tpu.reciprocal %204 {approx = true} : vector<8x1xf32> -> vector<8x1xf32>
    %206 = vector.broadcast %205 : vector<8x1xf32> to vector<8x8xf32>
    %207 = arith.mulf %202, %206 : vector<8x8xf32>
    %208 = vector.extract_strided_slice %167 {offsets = [0, 8], sizes = [8, 8], strides = [1, 1]} : vector<8x32xf32> to vector<8x8xf32>
    %cst_87 = arith.constant dense<0.000000e+00> : vector<8x8xf32>
    %209 = tpu.matmul %207, %208, %cst_87 {dimension_numbers = #tpu.dot_dimension_numbers<[1], [0], [0], [1], [0, 0, 1, 1], [], []>} : vector<8x8xf32>, vector<8x8xf32>, vector<8x8xf32> -> vector<8x8xf32>
    %210 = vector.extract_strided_slice %168 {offsets = [0, 8], sizes = [32, 8], strides = [1, 1]} : vector<32x32xf32> to vector<32x8xf32>
    %cst_88 = arith.constant dense<0.000000e+00> : vector<8x32xf32>
    %211 = tpu.matmul %209, %210, %cst_88 {dimension_numbers = #tpu.dot_dimension_numbers<[1], [1], [0], [0], [0, 0, 1, 0], [], []>} : vector<8x8xf32>, vector<32x8xf32>, vector<8x32xf32> -> vector<8x32xf32>
    %212 = arith.addf %191, %211 : vector<8x32xf32>
    %213 = vector.extract_strided_slice %160 {offsets = [0, 16], sizes = [8, 8], strides = [1, 1]} : vector<8x32xf32> to vector<8x8xf32>
    %214 = vector.extract_strided_slice %166 {offsets = [0, 16], sizes = [8, 8], strides = [1, 1]} : vector<8x32xf32> to vector<8x8xf32>
    %cst_89 = arith.constant dense<0.000000e+00> : vector<8x8xf32>
    %215 = tpu.matmul %213, %214, %cst_89 {dimension_numbers = #tpu.dot_dimension_numbers<[1], [1], [0], [0], [0, 0, 1, 0], [], []>} : vector<8x8xf32>, vector<8x8xf32>, vector<8x8xf32> -> vector<8x8xf32>
    %cst_90 = arith.constant 0.353553385 : f32
    %216 = vector.broadcast %cst_90 : f32 to vector<8x8xf32>
    %217 = arith.mulf %215, %216 : vector<8x8xf32>
    %218 = arith.addf %217, %7 : vector<8x8xf32>
    %cst_91 = arith.constant dense<0xFF800000> : vector<8xf32>
    %219 = vector.multi_reduction <maximumf>, %218, %cst_91 [1] : vector<8x8xf32> to vector<8xf32>
    %220 = vector.shape_cast %219 : vector<8xf32> to vector<8x1xf32>
    %221 = vector.broadcast %220 : vector<8x1xf32> to vector<8x8xf32>
    %222 = arith.subf %218, %221 : vector<8x8xf32>
    %223 = math.exp %222 : vector<8x8xf32>
    %cst_92 = arith.constant dense<0.000000e+00> : vector<8xf32>
    %224 = vector.multi_reduction <add>, %223, %cst_92 [1] : vector<8x8xf32> to vector<8xf32>
    %225 = vector.shape_cast %224 : vector<8xf32> to vector<8x1xf32>
    %226 = tpu.reciprocal %225 {approx = true} : vector<8x1xf32> -> vector<8x1xf32>
    %227 = vector.broadcast %226 : vector<8x1xf32> to vector<8x8xf32>
    %228 = arith.mulf %223, %227 : vector<8x8xf32>
    %229 = vector.extract_strided_slice %167 {offsets = [0, 16], sizes = [8, 8], strides = [1, 1]} : vector<8x32xf32> to vector<8x8xf32>
    %cst_93 = arith.constant dense<0.000000e+00> : vector<8x8xf32>
    %230 = tpu.matmul %228, %229, %cst_93 {dimension_numbers = #tpu.dot_dimension_numbers<[1], [0], [0], [1], [0, 0, 1, 1], [], []>} : vector<8x8xf32>, vector<8x8xf32>, vector<8x8xf32> -> vector<8x8xf32>
    %231 = vector.extract_strided_slice %168 {offsets = [0, 16], sizes = [32, 8], strides = [1, 1]} : vector<32x32xf32> to vector<32x8xf32>
    %cst_94 = arith.constant dense<0.000000e+00> : vector<8x32xf32>
    %232 = tpu.matmul %230, %231, %cst_94 {dimension_numbers = #tpu.dot_dimension_numbers<[1], [1], [0], [0], [0, 0, 1, 0], [], []>} : vector<8x8xf32>, vector<32x8xf32>, vector<8x32xf32> -> vector<8x32xf32>
    %233 = arith.addf %212, %232 : vector<8x32xf32>
    %234 = vector.extract_strided_slice %160 {offsets = [0, 24], sizes = [8, 8], strides = [1, 1]} : vector<8x32xf32> to vector<8x8xf32>
    %235 = vector.extract_strided_slice %166 {offsets = [0, 24], sizes = [8, 8], strides = [1, 1]} : vector<8x32xf32> to vector<8x8xf32>
    %cst_95 = arith.constant dense<0.000000e+00> : vector<8x8xf32>
    %236 = tpu.matmul %234, %235, %cst_95 {dimension_numbers = #tpu.dot_dimension_numbers<[1], [1], [0], [0], [0, 0, 1, 0], [], []>} : vector<8x8xf32>, vector<8x8xf32>, vector<8x8xf32> -> vector<8x8xf32>
    %cst_96 = arith.constant 0.353553385 : f32
    %237 = vector.broadcast %cst_96 : f32 to vector<8x8xf32>
    %238 = arith.mulf %236, %237 : vector<8x8xf32>
    %239 = arith.addf %238, %7 : vector<8x8xf32>
    %cst_97 = arith.constant dense<0xFF800000> : vector<8xf32>
    %240 = vector.multi_reduction <maximumf>, %239, %cst_97 [1] : vector<8x8xf32> to vector<8xf32>
    %241 = vector.shape_cast %240 : vector<8xf32> to vector<8x1xf32>
    %242 = vector.broadcast %241 : vector<8x1xf32> to vector<8x8xf32>
    %243 = arith.subf %239, %242 : vector<8x8xf32>
    %244 = math.exp %243 : vector<8x8xf32>
    %cst_98 = arith.constant dense<0.000000e+00> : vector<8xf32>
    %245 = vector.multi_reduction <add>, %244, %cst_98 [1] : vector<8x8xf32> to vector<8xf32>
    %246 = vector.shape_cast %245 : vector<8xf32> to vector<8x1xf32>
    %247 = tpu.reciprocal %246 {approx = true} : vector<8x1xf32> -> vector<8x1xf32>
    %248 = vector.broadcast %247 : vector<8x1xf32> to vector<8x8xf32>
    %249 = arith.mulf %244, %248 : vector<8x8xf32>
    %250 = vector.extract_strided_slice %167 {offsets = [0, 24], sizes = [8, 8], strides = [1, 1]} : vector<8x32xf32> to vector<8x8xf32>
    %cst_99 = arith.constant dense<0.000000e+00> : vector<8x8xf32>
    %251 = tpu.matmul %249, %250, %cst_99 {dimension_numbers = #tpu.dot_dimension_numbers<[1], [0], [0], [1], [0, 0, 1, 1], [], []>} : vector<8x8xf32>, vector<8x8xf32>, vector<8x8xf32> -> vector<8x8xf32>
    %252 = vector.extract_strided_slice %168 {offsets = [0, 24], sizes = [32, 8], strides = [1, 1]} : vector<32x32xf32> to vector<32x8xf32>
    %cst_100 = arith.constant dense<0.000000e+00> : vector<8x32xf32>
    %253 = tpu.matmul %251, %252, %cst_100 {dimension_numbers = #tpu.dot_dimension_numbers<[1], [1], [0], [0], [0, 0, 1, 0], [], []>} : vector<8x8xf32>, vector<32x8xf32>, vector<8x32xf32> -> vector<8x32xf32>
    %254 = arith.addf %233, %253 : vector<8x32xf32>
    %255 = vector.broadcast %169 : vector<1x32xf32> to vector<8x32xf32>
    %256 = arith.addf %254, %255 : vector<8x32xf32>
    %257 = arith.addf %130, %256 : vector<8x32xf32>
    %c0_101 = arith.constant 0 : index
    %c0_102 = arith.constant 0 : index
    %258 = vector.load %arg19[%c0_101, %c0_102] : memref<1x32xf32, #tpu.memory_space<vmem>>, vector<1x32xf32>
    %c0_103 = arith.constant 0 : index
    %c0_104 = arith.constant 0 : index
    %259 = vector.load %arg20[%c0_103, %c0_104] : memref<1x32xf32, #tpu.memory_space<vmem>>, vector<1x32xf32>
    %cst_105 = arith.constant dense<0.000000e+00> : vector<8xf32>
    %260 = vector.multi_reduction <add>, %257, %cst_105 [1] : vector<8x32xf32> to vector<8xf32>
    %261 = vector.shape_cast %260 : vector<8xf32> to vector<8x1xf32>
    %cst_106 = arith.constant 3.200000e+01 : f32
    %262 = vector.broadcast %cst_106 : f32 to vector<8x1xf32>
    %263 = arith.divf %261, %262 : vector<8x1xf32>
    %264 = vector.broadcast %263 : vector<8x1xf32> to vector<8x32xf32>
    %265 = arith.subf %257, %264 : vector<8x32xf32>
    %266 = arith.mulf %265, %265 : vector<8x32xf32>
    %cst_107 = arith.constant dense<0.000000e+00> : vector<8xf32>
    %267 = vector.multi_reduction <add>, %266, %cst_107 [1] : vector<8x32xf32> to vector<8xf32>
    %268 = vector.shape_cast %267 : vector<8xf32> to vector<8x1xf32>
    %cst_108 = arith.constant 0.0322580636 : f32
    %269 = vector.broadcast %cst_108 : f32 to vector<8x1xf32>
    %270 = arith.mulf %268, %269 : vector<8x1xf32>
    %271 = math.sqrt %270 : vector<8x1xf32>
    %cst_109 = arith.constant 9.99999997E-7 : f32
    %272 = vector.broadcast %cst_109 : f32 to vector<8x1xf32>
    %273 = arith.addf %271, %272 : vector<8x1xf32>
    %274 = tpu.reciprocal %273 : vector<8x1xf32> -> vector<8x1xf32>
    %275 = vector.broadcast %263 : vector<8x1xf32> to vector<8x32xf32>
    %276 = arith.subf %257, %275 : vector<8x32xf32>
    %277 = vector.broadcast %274 : vector<8x1xf32> to vector<8x32xf32>
    %278 = arith.mulf %276, %277 : vector<8x32xf32>
    %279 = vector.broadcast %258 : vector<1x32xf32> to vector<8x32xf32>
    %280 = arith.mulf %279, %278 : vector<8x32xf32>
    %281 = vector.broadcast %259 : vector<1x32xf32> to vector<8x32xf32>
    %282 = arith.addf %280, %281 : vector<8x32xf32>
    %c0_110 = arith.constant 0 : index
    %c0_111 = arith.constant 0 : index
    %283 = vector.load %arg21[%c0_110, %c0_111] : memref<64x32xf32, #tpu.memory_space<vmem>>, vector<64x32xf32>
    %cst_112 = arith.constant dense<0.000000e+00> : vector<8x64xf32>
    %284 = tpu.matmul %282, %283, %cst_112 {dimension_numbers = #tpu.dot_dimension_numbers<[1], [1], [0], [0], [0, 0, 1, 0], [], []>} : vector<8x32xf32>, vector<64x32xf32>, vector<8x64xf32> -> vector<8x64xf32>
    %c0_113 = arith.constant 0 : index
    %c0_114 = arith.constant 0 : index
    %285 = vector.load %arg22[%c0_113, %c0_114] : memref<1x64xf32, #tpu.memory_space<vmem>>, vector<1x64xf32>
    %286 = vector.broadcast %285 : vector<1x64xf32> to vector<8x64xf32>
    %287 = arith.addf %284, %286 : vector<8x64xf32>
    %cst_115 = arith.constant 0.000000e+00 : f32
    %288 = vector.broadcast %cst_115 : f32 to vector<8x64xf32>
    %289 = arith.maximumf %287, %288 : vector<8x64xf32>
    %c0_116 = arith.constant 0 : index
    %c0_117 = arith.constant 0 : index
    %290 = vector.load %arg23[%c0_116, %c0_117] : memref<32x64xf32, #tpu.memory_space<vmem>>, vector<32x64xf32>
    %cst_118 = arith.constant dense<0.000000e+00> : vector<8x32xf32>
    %291 = tpu.matmul %289, %290, %cst_118 {dimension_numbers = #tpu.dot_dimension_numbers<[1], [1], [0], [0], [0, 0, 1, 0], [], []>} : vector<8x64xf32>, vector<32x64xf32>, vector<8x32xf32> -> vector<8x32xf32>
    %292 = arith.addf %257, %291 : vector<8x32xf32>
    %c0_119 = arith.constant 0 : index
    %c0_120 = arith.constant 0 : index
    %293 = vector.load %arg24[%c0_119, %c0_120] : memref<1x32xf32, #tpu.memory_space<vmem>>, vector<1x32xf32>
    %294 = vector.broadcast %293 : vector<1x32xf32> to vector<8x32xf32>
    %295 = arith.addf %292, %294 : vector<8x32xf32>
    %c0_121 = arith.constant 0 : index
    %c0_122 = arith.constant 0 : index
    %c0_123 = arith.constant 0 : index
    %296 = vector.load %arg25[%c0_121, %c0_122, %c0_123] : memref<1x8x32xf32, #tpu.memory_space<vmem>>, vector<1x8x32xf32>
    %297 = vector.shape_cast %296 : vector<1x8x32xf32> to vector<8x32xf32>
    %298 = vector.shape_cast %295 : vector<8x32xf32> to vector<1x8x32xf32>
    tpu.vector_store %arg25[%c0_121, %c0_122, %c0_123], %298 {strides = array<i32>} : memref<1x8x32xf32, #tpu.memory_space<vmem>>, vector<1x8x32xf32>,
    return
  }
  func.func @transform_0(%arg0: i32) -> (i32, i32, i32) {
    %c0_i32 = arith.constant 0 : i32
    %c0_i32_0 = arith.constant 0 : i32
    %c0_i32_1 = arith.constant 0 : i32
    return %arg0, %c0_i32, %c0_i32_0 : i32, i32, i32
  }
  func.func @transform_1(%arg0: i32) -> (i32, i32, i32) {
    %c0_i32 = arith.constant 0 : i32
    %c0_i32_0 = arith.constant 0 : i32
    %c0_i32_1 = arith.constant 0 : i32
    return %arg0, %c0_i32, %c0_i32_0 : i32, i32, i32
  }
  func.func @transform_2(%arg0: i32) -> (i32, i32, i32) {
    %c0_i32 = arith.constant 0 : i32
    %c0_i32_0 = arith.constant 0 : i32
    %c0_i32_1 = arith.constant 0 : i32
    return %arg0, %c0_i32, %c0_i32_0 : i32, i32, i32
  }
  func.func @transform_3(%arg0: i32) -> (i32, i32, i32) {
    %c0_i32 = arith.constant 0 : i32
    %c0_i32_0 = arith.constant 0 : i32
    %c0_i32_1 = arith.constant 0 : i32
    return %arg0, %c0_i32, %c0_i32_0 : i32, i32, i32
  }
  func.func @transform_4(%arg0: i32) -> (i32, i32) {
    %c0_i32 = arith.constant 0 : i32
    %c0_i32_0 = arith.constant 0 : i32
    %c0_i32_1 = arith.constant 0 : i32
    return %c0_i32, %c0_i32_0 : i32, i32
  }
  func.func @transform_5(%arg0: i32) -> (i32, i32) {
    %c0_i32 = arith.constant 0 : i32
    %c0_i32_0 = arith.constant 0 : i32
    %c0_i32_1 = arith.constant 0 : i32
    return %c0_i32, %c0_i32_0 : i32, i32
  }
  func.func @transform_6(%arg0: i32) -> (i32, i32) {
    %c0_i32 = arith.constant 0 : i32
    %c0_i32_0 = arith.constant 0 : i32
    %c0_i32_1 = arith.constant 0 : i32
    return %c0_i32, %c0_i32_0 : i32, i32
  }
  func.func @transform_7(%arg0: i32) -> (i32, i32) {
    %c0_i32 = arith.constant 0 : i32
    %c0_i32_0 = arith.constant 0 : i32
    %c0_i32_1 = arith.constant 0 : i32
    return %c0_i32, %c0_i32_0 : i32, i32
  }
  func.func @transform_8(%arg0: i32) -> (i32, i32) {
    %c0_i32 = arith.constant 0 : i32
    %c0_i32_0 = arith.constant 0 : i32
    %c0_i32_1 = arith.constant 0 : i32
    return %c0_i32, %c0_i32_0 : i32, i32
  }
  func.func @transform_9(%arg0: i32) -> (i32, i32) {
    %c0_i32 = arith.constant 0 : i32
    %c0_i32_0 = arith.constant 0 : i32
    %c0_i32_1 = arith.constant 0 : i32
    return %c0_i32, %c0_i32_0 : i32, i32
  }
  func.func @transform_10(%arg0: i32) -> (i32, i32) {
    %c0_i32 = arith.constant 0 : i32
    %c0_i32_0 = arith.constant 0 : i32
    %c0_i32_1 = arith.constant 0 : i32
    return %c0_i32, %c0_i32_0 : i32, i32
  }
  func.func @transform_11(%arg0: i32) -> (i32, i32) {
    %c0_i32 = arith.constant 0 : i32
    %c0_i32_0 = arith.constant 0 : i32
    %c0_i32_1 = arith.constant 0 : i32
    return %c0_i32, %c0_i32_0 : i32, i32
  }
  func.func @transform_12(%arg0: i32) -> (i32, i32) {
    %c0_i32 = arith.constant 0 : i32
    %c0_i32_0 = arith.constant 0 : i32
    %c0_i32_1 = arith.constant 0 : i32
    return %c0_i32, %c0_i32_0 : i32, i32
  }
  func.func @transform_13(%arg0: i32) -> (i32, i32) {
    %c0_i32 = arith.constant 0 : i32
    %c0_i32_0 = arith.constant 0 : i32
    %c0_i32_1 = arith.constant 0 : i32
    return %c0_i32, %c0_i32_0 : i32, i32
  }
  func.func @transform_14(%arg0: i32) -> (i32, i32) {
    %c0_i32 = arith.constant 0 : i32
    %c0_i32_0 = arith.constant 0 : i32
    %c0_i32_1 = arith.constant 0 : i32
    return %c0_i32, %c0_i32_0 : i32, i32
  }
  func.func @transform_15(%arg0: i32) -> (i32, i32) {
    %c0_i32 = arith.constant 0 : i32
    %c0_i32_0 = arith.constant 0 : i32
    %c0_i32_1 = arith.constant 0 : i32
    return %c0_i32, %c0_i32_0 : i32, i32
  }
  func.func @transform_16(%arg0: i32) -> (i32, i32) {
    %c0_i32 = arith.constant 0 : i32
    %c0_i32_0 = arith.constant 0 : i32
    %c0_i32_1 = arith.constant 0 : i32
    return %c0_i32, %c0_i32_0 : i32, i32
  }
  func.func @transform_17(%arg0: i32) -> (i32, i32) {
    %c0_i32 = arith.constant 0 : i32
    %c0_i32_0 = arith.constant 0 : i32
    %c0_i32_1 = arith.constant 0 : i32
    return %c0_i32, %c0_i32_0 : i32, i32
  }
  func.func @transform_18(%arg0: i32) -> (i32, i32) {
    %c0_i32 = arith.constant 0 : i32
    %c0_i32_0 = arith.constant 0 : i32
    %c0_i32_1 = arith.constant 0 : i32
    return %c0_i32, %c0_i32_0 : i32, i32
  }
  func.func @transform_19(%arg0: i32) -> (i32, i32) {
    %c0_i32 = arith.constant 0 : i32
    %c0_i32_0 = arith.constant 0 : i32
    %c0_i32_1 = arith.constant 0 : i32
    return %c0_i32, %c0_i32_0 : i32, i32
  }
  func.func @transform_20(%arg0: i32) -> (i32, i32) {
    %c0_i32 = arith.constant 0 : i32
    %c0_i32_0 = arith.constant 0 : i32
    %c0_i32_1 = arith.constant 0 : i32
    return %c0_i32, %c0_i32_0 : i32, i32
  }
  func.func @transform_21(%arg0: i32) -> (i32, i32) {
    %c0_i32 = arith.constant 0 : i32
    %c0_i32_0 = arith.constant 0 : i32
    %c0_i32_1 = arith.constant 0 : i32
    return %c0_i32, %c0_i32_0 : i32, i32
  }
  func.func @transform_22(%arg0: i32) -> (i32, i32) {
    %c0_i32 = arith.constant 0 : i32
    %c0_i32_0 = arith.constant 0 : i32
    %c0_i32_1 = arith.constant 0 : i32
    return %c0_i32, %c0_i32_0 : i32, i32
  }
  func.func @transform_23(%arg0: i32) -> (i32, i32) {
    %c0_i32 = arith.constant 0 : i32
    %c0_i32_0 = arith.constant 0 : i32
    %c0_i32_1 = arith.constant 0 : i32
    return %c0_i32, %c0_i32_0 : i32, i32
  }
  func.func @transform_24(%arg0: i32) -> (i32, i32, i32) {
    %c0_i32 = arith.constant 0 : i32
    %c0_i32_0 = arith.constant 0 : i32
    %c0_i32_1 = arith.constant 0 : i32
    return %arg0, %c0_i32, %c0_i32_0 : i32, i32, i32
  }
}

module attributes {stable_mosaic.version = 11 : i64} {
  func.func @_norm_kernel(%arg0: i32, %arg1: memref<1x8x32xf32, #tpu.memory_space<vmem>>, %arg2: memref<1x32xf32, #tpu.memory_space<vmem>>, %arg3: memref<1x32xf32, #tpu.memory_space<vmem>>, %arg4: memref<1x8x32xf32, #tpu.memory_space<vmem>>) attributes {dimension_semantics = [#tpu.dimension_semantics<parallel>], iteration_bounds = array<i64: 2>, scalar_prefetch = 0 : i64, scratch_operands = 0 : i64, tpu.core_type = #tpu.core_type<tc>, window_params = [{transform_indices = @transform_0, window_bounds = array<i64: 1, 8, 32>}, {pipeline_mode = #tpu.pipeline_mode<synchronous>, transform_indices = @transform_1, window_bounds = array<i64: 1, 32>}, {pipeline_mode = #tpu.pipeline_mode<synchronous>, transform_indices = @transform_2, window_bounds = array<i64: 1, 32>}, {transform_indices = @transform_3, window_bounds = array<i64: 1, 8, 32>}]} {
    %c0 = arith.constant 0 : index
    %c0_0 = arith.constant 0 : index
    %c0_1 = arith.constant 0 : index
    %0 = vector.load %arg1[%c0, %c0_0, %c0_1] : memref<1x8x32xf32, #tpu.memory_space<vmem>>, vector<1x8x32xf32>
    %1 = vector.shape_cast %0 : vector<1x8x32xf32> to vector<8x32xf32>
    %c0_2 = arith.constant 0 : index
    %c0_3 = arith.constant 0 : index
    %2 = vector.load %arg2[%c0_2, %c0_3] : memref<1x32xf32, #tpu.memory_space<vmem>>, vector<1x32xf32>
    %c0_4 = arith.constant 0 : index
    %c0_5 = arith.constant 0 : index
    %3 = vector.load %arg3[%c0_4, %c0_5] : memref<1x32xf32, #tpu.memory_space<vmem>>, vector<1x32xf32>
    %cst = arith.constant dense<0.000000e+00> : vector<8xf32>
    %4 = vector.multi_reduction <add>, %1, %cst [1] : vector<8x32xf32> to vector<8xf32>
    %5 = vector.shape_cast %4 : vector<8xf32> to vector<8x1xf32>
    %cst_6 = arith.constant 3.200000e+01 : f32
    %6 = vector.broadcast %cst_6 : f32 to vector<8x1xf32>
    %7 = arith.divf %5, %6 : vector<8x1xf32>
    %8 = vector.broadcast %7 : vector<8x1xf32> to vector<8x32xf32>
    %9 = arith.subf %1, %8 : vector<8x32xf32>
    %10 = arith.mulf %9, %9 : vector<8x32xf32>
    %cst_7 = arith.constant dense<0.000000e+00> : vector<8xf32>
    %11 = vector.multi_reduction <add>, %10, %cst_7 [1] : vector<8x32xf32> to vector<8xf32>
    %12 = vector.shape_cast %11 : vector<8xf32> to vector<8x1xf32>
    %cst_8 = arith.constant 0.0322580636 : f32
    %13 = vector.broadcast %cst_8 : f32 to vector<8x1xf32>
    %14 = arith.mulf %12, %13 : vector<8x1xf32>
    %15 = math.sqrt %14 : vector<8x1xf32>
    %cst_9 = arith.constant 9.99999997E-7 : f32
    %16 = vector.broadcast %cst_9 : f32 to vector<8x1xf32>
    %17 = arith.addf %15, %16 : vector<8x1xf32>
    %18 = tpu.reciprocal %17 : vector<8x1xf32> -> vector<8x1xf32>
    %19 = vector.broadcast %7 : vector<8x1xf32> to vector<8x32xf32>
    %20 = arith.subf %1, %19 : vector<8x32xf32>
    %21 = vector.broadcast %18 : vector<8x1xf32> to vector<8x32xf32>
    %22 = arith.mulf %20, %21 : vector<8x32xf32>
    %23 = vector.broadcast %2 : vector<1x32xf32> to vector<8x32xf32>
    %24 = arith.mulf %23, %22 : vector<8x32xf32>
    %25 = vector.broadcast %3 : vector<1x32xf32> to vector<8x32xf32>
    %26 = arith.addf %24, %25 : vector<8x32xf32>
    %c0_10 = arith.constant 0 : index
    %c0_11 = arith.constant 0 : index
    %c0_12 = arith.constant 0 : index
    %27 = vector.load %arg4[%c0_10, %c0_11, %c0_12] : memref<1x8x32xf32, #tpu.memory_space<vmem>>, vector<1x8x32xf32>
    %28 = vector.shape_cast %27 : vector<1x8x32xf32> to vector<8x32xf32>
    %29 = vector.shape_cast %26 : vector<8x32xf32> to vector<1x8x32xf32>
    tpu.vector_store %arg4[%c0_10, %c0_11, %c0_12], %29 {strides = array<i32>} : memref<1x8x32xf32, #tpu.memory_space<vmem>>, vector<1x8x32xf32>,
    return
  }
  func.func @transform_0(%arg0: i32) -> (i32, i32, i32) {
    %c0_i32 = arith.constant 0 : i32
    %c0_i32_0 = arith.constant 0 : i32
    %c0_i32_1 = arith.constant 0 : i32
    return %arg0, %c0_i32, %c0_i32_0 : i32, i32, i32
  }
  func.func @transform_1(%arg0: i32) -> (i32, i32) {
    %c0_i32 = arith.constant 0 : i32
    %c0_i32_0 = arith.constant 0 : i32
    %c0_i32_1 = arith.constant 0 : i32
    return %c0_i32, %c0_i32_0 : i32, i32
  }
  func.func @transform_2(%arg0: i32) -> (i32, i32) {
    %c0_i32 = arith.constant 0 : i32
    %c0_i32_0 = arith.constant 0 : i32
    %c0_i32_1 = arith.constant 0 : i32
    return %c0_i32, %c0_i32_0 : i32, i32
  }
  func.func @transform_3(%arg0: i32) -> (i32, i32, i32) {
    %c0_i32 = arith.constant 0 : i32
    %c0_i32_0 = arith.constant 0 : i32
    %c0_i32_1 = arith.constant 0 : i32
    return %arg0, %c0_i32, %c0_i32_0 : i32, i32, i32
  }
}

module attributes {stable_mosaic.version = 11 : i64} {
  func.func @_encoder_layer_kernel(%arg0: i32, %arg1: memref<1x8x32xf32, #tpu.memory_space<vmem>>, %arg2: memref<1x8x8xf32, #tpu.memory_space<vmem>>, %arg3: memref<1x32xf32, #tpu.memory_space<vmem>>, %arg4: memref<1x32xf32, #tpu.memory_space<vmem>>, %arg5: memref<96x32xf32, #tpu.memory_space<vmem>>, %arg6: memref<1x96xf32, #tpu.memory_space<vmem>>, %arg7: memref<32x32xf32, #tpu.memory_space<vmem>>, %arg8: memref<1x32xf32, #tpu.memory_space<vmem>>, %arg9: memref<1x32xf32, #tpu.memory_space<vmem>>, %arg10: memref<1x32xf32, #tpu.memory_space<vmem>>, %arg11: memref<64x32xf32, #tpu.memory_space<vmem>>, %arg12: memref<1x64xf32, #tpu.memory_space<vmem>>, %arg13: memref<32x64xf32, #tpu.memory_space<vmem>>, %arg14: memref<1x32xf32, #tpu.memory_space<vmem>>, %arg15: memref<1x8x32xf32, #tpu.memory_space<vmem>>) attributes {dimension_semantics = [#tpu.dimension_semantics<parallel>], iteration_bounds = array<i64: 2>, scalar_prefetch = 0 : i64, scratch_operands = 0 : i64, tpu.core_type = #tpu.core_type<tc>, window_params = [{transform_indices = @transform_0, window_bounds = array<i64: 1, 8, 32>}, {transform_indices = @transform_1, window_bounds = array<i64: 1, 8, 8>}, {pipeline_mode = #tpu.pipeline_mode<synchronous>, transform_indices = @transform_2, window_bounds = array<i64: 1, 32>}, {pipeline_mode = #tpu.pipeline_mode<synchronous>, transform_indices = @transform_3, window_bounds = array<i64: 1, 32>}, {pipeline_mode = #tpu.pipeline_mode<synchronous>, transform_indices = @transform_4, window_bounds = array<i64: 96, 32>}, {pipeline_mode = #tpu.pipeline_mode<synchronous>, transform_indices = @transform_5, window_bounds = array<i64: 1, 96>}, {pipeline_mode = #tpu.pipeline_mode<synchronous>, transform_indices = @transform_6, window_bounds = array<i64: 32, 32>}, {pipeline_mode = #tpu.pipeline_mode<synchronous>, transform_indices = @transform_7, window_bounds = array<i64: 1, 32>}, {pipeline_mode = #tpu.pipeline_mode<synchronous>, transform_indices = @transform_8, window_bounds = array<i64: 1, 32>}, {pipeline_mode = #tpu.pipeline_mode<synchronous>, transform_indices = @transform_9, window_bounds = array<i64: 1, 32>}, {pipeline_mode = #tpu.pipeline_mode<synchronous>, transform_indices = @transform_10, window_bounds = array<i64: 64, 32>}, {pipeline_mode = #tpu.pipeline_mode<synchronous>, transform_indices = @transform_11, window_bounds = array<i64: 1, 64>}, {pipeline_mode = #tpu.pipeline_mode<synchronous>, transform_indices = @transform_12, window_bounds = array<i64: 32, 64>}, {pipeline_mode = #tpu.pipeline_mode<synchronous>, transform_indices = @transform_13, window_bounds = array<i64: 1, 32>}, {transform_indices = @transform_14, window_bounds = array<i64: 1, 8, 32>}]} {
    %c0 = arith.constant 0 : index
    %c0_0 = arith.constant 0 : index
    %c0_1 = arith.constant 0 : index
    %0 = vector.load %arg1[%c0, %c0_0, %c0_1] : memref<1x8x32xf32, #tpu.memory_space<vmem>>, vector<1x8x32xf32>
    %1 = vector.shape_cast %0 : vector<1x8x32xf32> to vector<8x32xf32>
    %c0_2 = arith.constant 0 : index
    %c0_3 = arith.constant 0 : index
    %c0_4 = arith.constant 0 : index
    %2 = vector.load %arg2[%c0_2, %c0_3, %c0_4] : memref<1x8x8xf32, #tpu.memory_space<vmem>>, vector<1x8x8xf32>
    %3 = vector.shape_cast %2 : vector<1x8x8xf32> to vector<8x8xf32>
    %c0_5 = arith.constant 0 : index
    %c0_6 = arith.constant 0 : index
    %4 = vector.load %arg3[%c0_5, %c0_6] : memref<1x32xf32, #tpu.memory_space<vmem>>, vector<1x32xf32>
    %c0_7 = arith.constant 0 : index
    %c0_8 = arith.constant 0 : index
    %5 = vector.load %arg4[%c0_7, %c0_8] : memref<1x32xf32, #tpu.memory_space<vmem>>, vector<1x32xf32>
    %cst = arith.constant dense<0.000000e+00> : vector<8xf32>
    %6 = vector.multi_reduction <add>, %1, %cst [1] : vector<8x32xf32> to vector<8xf32>
    %7 = vector.shape_cast %6 : vector<8xf32> to vector<8x1xf32>
    %cst_9 = arith.constant 3.200000e+01 : f32
    %8 = vector.broadcast %cst_9 : f32 to vector<8x1xf32>
    %9 = arith.divf %7, %8 : vector<8x1xf32>
    %10 = vector.broadcast %9 : vector<8x1xf32> to vector<8x32xf32>
    %11 = arith.subf %1, %10 : vector<8x32xf32>
    %12 = arith.mulf %11, %11 : vector<8x32xf32>
    %cst_10 = arith.constant dense<0.000000e+00> : vector<8xf32>
    %13 = vector.multi_reduction <add>, %12, %cst_10 [1] : vector<8x32xf32> to vector<8xf32>
    %14 = vector.shape_cast %13 : vector<8xf32> to vector<8x1xf32>
    %cst_11 = arith.constant 0.0322580636 : f32
    %15 = vector.broadcast %cst_11 : f32 to vector<8x1xf32>
    %16 = arith.mulf %14, %15 : vector<8x1xf32>
    %17 = math.sqrt %16 : vector<8x1xf32>
    %cst_12 = arith.constant 9.99999997E-7 : f32
    %18 = vector.broadcast %cst_12 : f32 to vector<8x1xf32>
    %19 = arith.addf %17, %18 : vector<8x1xf32>
    %20 = tpu.reciprocal %19 : vector<8x1xf32> -> vector<8x1xf32>
    %21 = vector.broadcast %9 : vector<8x1xf32> to vector<8x32xf32>
    %22 = arith.subf %1, %21 : vector<8x32xf32>
    %23 = vector.broadcast %20 : vector<8x1xf32> to vector<8x32xf32>
    %24 = arith.mulf %22, %23 : vector<8x32xf32>
    %25 = vector.broadcast %4 : vector<1x32xf32> to vector<8x32xf32>
    %26 = arith.mulf %25, %24 : vector<8x32xf32>
    %27 = vector.broadcast %5 : vector<1x32xf32> to vector<8x32xf32>
    %28 = arith.addf %26, %27 : vector<8x32xf32>
    %c0_13 = arith.constant 0 : index
    %c0_14 = arith.constant 0 : index
    %29 = vector.load %arg5[%c0_13, %c0_14] : memref<96x32xf32, #tpu.memory_space<vmem>>, vector<96x32xf32>
    %cst_15 = arith.constant dense<0.000000e+00> : vector<8x96xf32>
    %30 = tpu.matmul %28, %29, %cst_15 {dimension_numbers = #tpu.dot_dimension_numbers<[1], [1], [0], [0], [0, 0, 1, 0], [], []>} : vector<8x32xf32>, vector<96x32xf32>, vector<8x96xf32> -> vector<8x96xf32>
    %c0_16 = arith.constant 0 : index
    %c0_17 = arith.constant 0 : index
    %31 = vector.load %arg6[%c0_16, %c0_17] : memref<1x96xf32, #tpu.memory_space<vmem>>, vector<1x96xf32>
    %32 = vector.broadcast %31 : vector<1x96xf32> to vector<8x96xf32>
    %33 = arith.addf %30, %32 : vector<8x96xf32>
    %34 = vector.extract_strided_slice %33 {offsets = [0, 0], sizes = [8, 32], strides = [1, 1]} : vector<8x96xf32> to vector<8x32xf32>
    %35 = vector.extract_strided_slice %33 {offsets = [0, 32], sizes = [8, 32], strides = [1, 1]} : vector<8x96xf32> to vector<8x32xf32>
    %36 = vector.extract_strided_slice %33 {offsets = [0, 64], sizes = [8, 32], strides = [1, 1]} : vector<8x96xf32> to vector<8x32xf32>
    %c0_18 = arith.constant 0 : index
    %c0_19 = arith.constant 0 : index
    %37 = vector.load %arg7[%c0_18, %c0_19] : memref<32x32xf32, #tpu.memory_space<vmem>>, vector<32x32xf32>
    %c0_20 = arith.constant 0 : index
    %c0_21 = arith.constant 0 : index
    %38 = vector.load %arg8[%c0_20, %c0_21] : memref<1x32xf32, #tpu.memory_space<vmem>>, vector<1x32xf32>
    %cst_22 = arith.constant 0.000000e+00 : f32
    %39 = vector.broadcast %cst_22 : f32 to vector<8x32xf32>
    %40 = vector.extract_strided_slice %34 {offsets = [0, 0], sizes = [8, 8], strides = [1, 1]} : vector<8x32xf32> to vector<8x8xf32>
    %41 = vector.extract_strided_slice %35 {offsets = [0, 0], sizes = [8, 8], strides = [1, 1]} : vector<8x32xf32> to vector<8x8xf32>
    %cst_23 = arith.constant dense<0.000000e+00> : vector<8x8xf32>
    %42 = tpu.matmul %40, %41, %cst_23 {dimension_numbers = #tpu.dot_dimension_numbers<[1], [1], [0], [0], [0, 0, 1, 0], [], []>} : vector<8x8xf32>, vector<8x8xf32>, vector<8x8xf32> -> vector<8x8xf32>
    %cst_24 = arith.constant 0.353553385 : f32
    %43 = vector.broadcast %cst_24 : f32 to vector<8x8xf32>
    %44 = arith.mulf %42, %43 : vector<8x8xf32>
    %45 = arith.addf %44, %3 : vector<8x8xf32>
    %cst_25 = arith.constant dense<0xFF800000> : vector<8xf32>
    %46 = vector.multi_reduction <maximumf>, %45, %cst_25 [1] : vector<8x8xf32> to vector<8xf32>
    %47 = vector.shape_cast %46 : vector<8xf32> to vector<8x1xf32>
    %48 = vector.broadcast %47 : vector<8x1xf32> to vector<8x8xf32>
    %49 = arith.subf %45, %48 : vector<8x8xf32>
    %50 = math.exp %49 : vector<8x8xf32>
    %cst_26 = arith.constant dense<0.000000e+00> : vector<8xf32>
    %51 = vector.multi_reduction <add>, %50, %cst_26 [1] : vector<8x8xf32> to vector<8xf32>
    %52 = vector.shape_cast %51 : vector<8xf32> to vector<8x1xf32>
    %53 = tpu.reciprocal %52 {approx = true} : vector<8x1xf32> -> vector<8x1xf32>
    %54 = vector.broadcast %53 : vector<8x1xf32> to vector<8x8xf32>
    %55 = arith.mulf %50, %54 : vector<8x8xf32>
    %56 = vector.extract_strided_slice %36 {offsets = [0, 0], sizes = [8, 8], strides = [1, 1]} : vector<8x32xf32> to vector<8x8xf32>
    %cst_27 = arith.constant dense<0.000000e+00> : vector<8x8xf32>
    %57 = tpu.matmul %55, %56, %cst_27 {dimension_numbers = #tpu.dot_dimension_numbers<[1], [0], [0], [1], [0, 0, 1, 1], [], []>} : vector<8x8xf32>, vector<8x8xf32>, vector<8x8xf32> -> vector<8x8xf32>
    %58 = vector.extract_strided_slice %37 {offsets = [0, 0], sizes = [32, 8], strides = [1, 1]} : vector<32x32xf32> to vector<32x8xf32>
    %cst_28 = arith.constant dense<0.000000e+00> : vector<8x32xf32>
    %59 = tpu.matmul %57, %58, %cst_28 {dimension_numbers = #tpu.dot_dimension_numbers<[1], [1], [0], [0], [0, 0, 1, 0], [], []>} : vector<8x8xf32>, vector<32x8xf32>, vector<8x32xf32> -> vector<8x32xf32>
    %60 = arith.addf %39, %59 : vector<8x32xf32>
    %61 = vector.extract_strided_slice %34 {offsets = [0, 8], sizes = [8, 8], strides = [1, 1]} : vector<8x32xf32> to vector<8x8xf32>
    %62 = vector.extract_strided_slice %35 {offsets = [0, 8], sizes = [8, 8], strides = [1, 1]} : vector<8x32xf32> to vector<8x8xf32>
    %cst_29 = arith.constant dense<0.000000e+00> : vector<8x8xf32>
    %63 = tpu.matmul %61, %62, %cst_29 {dimension_numbers = #tpu.dot_dimension_numbers<[1], [1], [0], [0], [0, 0, 1, 0], [], []>} : vector<8x8xf32>, vector<8x8xf32>, vector<8x8xf32> -> vector<8x8xf32>
    %cst_30 = arith.constant 0.353553385 : f32
    %64 = vector.broadcast %cst_30 : f32 to vector<8x8xf32>
    %65 = arith.mulf %63, %64 : vector<8x8xf32>
    %66 = arith.addf %65, %3 : vector<8x8xf32>
    %cst_31 = arith.constant dense<0xFF800000> : vector<8xf32>
    %67 = vector.multi_reduction <maximumf>, %66, %cst_31 [1] : vector<8x8xf32> to vector<8xf32>
    %68 = vector.shape_cast %67 : vector<8xf32> to vector<8x1xf32>
    %69 = vector.broadcast %68 : vector<8x1xf32> to vector<8x8xf32>
    %70 = arith.subf %66, %69 : vector<8x8xf32>
    %71 = math.exp %70 : vector<8x8xf32>
    %cst_32 = arith.constant dense<0.000000e+00> : vector<8xf32>
    %72 = vector.multi_reduction <add>, %71, %cst_32 [1] : vector<8x8xf32> to vector<8xf32>
    %73 = vector.shape_cast %72 : vector<8xf32> to vector<8x1xf32>
    %74 = tpu.reciprocal %73 {approx = true} : vector<8x1xf32> -> vector<8x1xf32>
    %75 = vector.broadcast %74 : vector<8x1xf32> to vector<8x8xf32>
    %76 = arith.mulf %71, %75 : vector<8x8xf32>
    %77 = vector.extract_strided_slice %36 {offsets = [0, 8], sizes = [8, 8], strides = [1, 1]} : vector<8x32xf32> to vector<8x8xf32>
    %cst_33 = arith.constant dense<0.000000e+00> : vector<8x8xf32>
    %78 = tpu.matmul %76, %77, %cst_33 {dimension_numbers = #tpu.dot_dimension_numbers<[1], [0], [0], [1], [0, 0, 1, 1], [], []>} : vector<8x8xf32>, vector<8x8xf32>, vector<8x8xf32> -> vector<8x8xf32>
    %79 = vector.extract_strided_slice %37 {offsets = [0, 8], sizes = [32, 8], strides = [1, 1]} : vector<32x32xf32> to vector<32x8xf32>
    %cst_34 = arith.constant dense<0.000000e+00> : vector<8x32xf32>
    %80 = tpu.matmul %78, %79, %cst_34 {dimension_numbers = #tpu.dot_dimension_numbers<[1], [1], [0], [0], [0, 0, 1, 0], [], []>} : vector<8x8xf32>, vector<32x8xf32>, vector<8x32xf32> -> vector<8x32xf32>
    %81 = arith.addf %60, %80 : vector<8x32xf32>
    %82 = vector.extract_strided_slice %34 {offsets = [0, 16], sizes = [8, 8], strides = [1, 1]} : vector<8x32xf32> to vector<8x8xf32>
    %83 = vector.extract_strided_slice %35 {offsets = [0, 16], sizes = [8, 8], strides = [1, 1]} : vector<8x32xf32> to vector<8x8xf32>
    %cst_35 = arith.constant dense<0.000000e+00> : vector<8x8xf32>
    %84 = tpu.matmul %82, %83, %cst_35 {dimension_numbers = #tpu.dot_dimension_numbers<[1], [1], [0], [0], [0, 0, 1, 0], [], []>} : vector<8x8xf32>, vector<8x8xf32>, vector<8x8xf32> -> vector<8x8xf32>
    %cst_36 = arith.constant 0.353553385 : f32
    %85 = vector.broadcast %cst_36 : f32 to vector<8x8xf32>
    %86 = arith.mulf %84, %85 : vector<8x8xf32>
    %87 = arith.addf %86, %3 : vector<8x8xf32>
    %cst_37 = arith.constant dense<0xFF800000> : vector<8xf32>
    %88 = vector.multi_reduction <maximumf>, %87, %cst_37 [1] : vector<8x8xf32> to vector<8xf32>
    %89 = vector.shape_cast %88 : vector<8xf32> to vector<8x1xf32>
    %90 = vector.broadcast %89 : vector<8x1xf32> to vector<8x8xf32>
    %91 = arith.subf %87, %90 : vector<8x8xf32>
    %92 = math.exp %91 : vector<8x8xf32>
    %cst_38 = arith.constant dense<0.000000e+00> : vector<8xf32>
    %93 = vector.multi_reduction <add>, %92, %cst_38 [1] : vector<8x8xf32> to vector<8xf32>
    %94 = vector.shape_cast %93 : vector<8xf32> to vector<8x1xf32>
    %95 = tpu.reciprocal %94 {approx = true} : vector<8x1xf32> -> vector<8x1xf32>
    %96 = vector.broadcast %95 : vector<8x1xf32> to vector<8x8xf32>
    %97 = arith.mulf %92, %96 : vector<8x8xf32>
    %98 = vector.extract_strided_slice %36 {offsets = [0, 16], sizes = [8, 8], strides = [1, 1]} : vector<8x32xf32> to vector<8x8xf32>
    %cst_39 = arith.constant dense<0.000000e+00> : vector<8x8xf32>
    %99 = tpu.matmul %97, %98, %cst_39 {dimension_numbers = #tpu.dot_dimension_numbers<[1], [0], [0], [1], [0, 0, 1, 1], [], []>} : vector<8x8xf32>, vector<8x8xf32>, vector<8x8xf32> -> vector<8x8xf32>
    %100 = vector.extract_strided_slice %37 {offsets = [0, 16], sizes = [32, 8], strides = [1, 1]} : vector<32x32xf32> to vector<32x8xf32>
    %cst_40 = arith.constant dense<0.000000e+00> : vector<8x32xf32>
    %101 = tpu.matmul %99, %100, %cst_40 {dimension_numbers = #tpu.dot_dimension_numbers<[1], [1], [0], [0], [0, 0, 1, 0], [], []>} : vector<8x8xf32>, vector<32x8xf32>, vector<8x32xf32> -> vector<8x32xf32>
    %102 = arith.addf %81, %101 : vector<8x32xf32>
    %103 = vector.extract_strided_slice %34 {offsets = [0, 24], sizes = [8, 8], strides = [1, 1]} : vector<8x32xf32> to vector<8x8xf32>
    %104 = vector.extract_strided_slice %35 {offsets = [0, 24], sizes = [8, 8], strides = [1, 1]} : vector<8x32xf32> to vector<8x8xf32>
    %cst_41 = arith.constant dense<0.000000e+00> : vector<8x8xf32>
    %105 = tpu.matmul %103, %104, %cst_41 {dimension_numbers = #tpu.dot_dimension_numbers<[1], [1], [0], [0], [0, 0, 1, 0], [], []>} : vector<8x8xf32>, vector<8x8xf32>, vector<8x8xf32> -> vector<8x8xf32>
    %cst_42 = arith.constant 0.353553385 : f32
    %106 = vector.broadcast %cst_42 : f32 to vector<8x8xf32>
    %107 = arith.mulf %105, %106 : vector<8x8xf32>
    %108 = arith.addf %107, %3 : vector<8x8xf32>
    %cst_43 = arith.constant dense<0xFF800000> : vector<8xf32>
    %109 = vector.multi_reduction <maximumf>, %108, %cst_43 [1] : vector<8x8xf32> to vector<8xf32>
    %110 = vector.shape_cast %109 : vector<8xf32> to vector<8x1xf32>
    %111 = vector.broadcast %110 : vector<8x1xf32> to vector<8x8xf32>
    %112 = arith.subf %108, %111 : vector<8x8xf32>
    %113 = math.exp %112 : vector<8x8xf32>
    %cst_44 = arith.constant dense<0.000000e+00> : vector<8xf32>
    %114 = vector.multi_reduction <add>, %113, %cst_44 [1] : vector<8x8xf32> to vector<8xf32>
    %115 = vector.shape_cast %114 : vector<8xf32> to vector<8x1xf32>
    %116 = tpu.reciprocal %115 {approx = true} : vector<8x1xf32> -> vector<8x1xf32>
    %117 = vector.broadcast %116 : vector<8x1xf32> to vector<8x8xf32>
    %118 = arith.mulf %113, %117 : vector<8x8xf32>
    %119 = vector.extract_strided_slice %36 {offsets = [0, 24], sizes = [8, 8], strides = [1, 1]} : vector<8x32xf32> to vector<8x8xf32>
    %cst_45 = arith.constant dense<0.000000e+00> : vector<8x8xf32>
    %120 = tpu.matmul %118, %119, %cst_45 {dimension_numbers = #tpu.dot_dimension_numbers<[1], [0], [0], [1], [0, 0, 1, 1], [], []>} : vector<8x8xf32>, vector<8x8xf32>, vector<8x8xf32> -> vector<8x8xf32>
    %121 = vector.extract_strided_slice %37 {offsets = [0, 24], sizes = [32, 8], strides = [1, 1]} : vector<32x32xf32> to vector<32x8xf32>
    %cst_46 = arith.constant dense<0.000000e+00> : vector<8x32xf32>
    %122 = tpu.matmul %120, %121, %cst_46 {dimension_numbers = #tpu.dot_dimension_numbers<[1], [1], [0], [0], [0, 0, 1, 0], [], []>} : vector<8x8xf32>, vector<32x8xf32>, vector<8x32xf32> -> vector<8x32xf32>
    %123 = arith.addf %102, %122 : vector<8x32xf32>
    %124 = vector.broadcast %38 : vector<1x32xf32> to vector<8x32xf32>
    %125 = arith.addf %123, %124 : vector<8x32xf32>
    %126 = arith.addf %1, %125 : vector<8x32xf32>
    %c0_47 = arith.constant 0 : index
    %c0_48 = arith.constant 0 : index
    %127 = vector.load %arg9[%c0_47, %c0_48] : memref<1x32xf32, #tpu.memory_space<vmem>>, vector<1x32xf32>
    %c0_49 = arith.constant 0 : index
    %c0_50 = arith.constant 0 : index
    %128 = vector.load %arg10[%c0_49, %c0_50] : memref<1x32xf32, #tpu.memory_space<vmem>>, vector<1x32xf32>
    %cst_51 = arith.constant dense<0.000000e+00> : vector<8xf32>
    %129 = vector.multi_reduction <add>, %126, %cst_51 [1] : vector<8x32xf32> to vector<8xf32>
    %130 = vector.shape_cast %129 : vector<8xf32> to vector<8x1xf32>
    %cst_52 = arith.constant 3.200000e+01 : f32
    %131 = vector.broadcast %cst_52 : f32 to vector<8x1xf32>
    %132 = arith.divf %130, %131 : vector<8x1xf32>
    %133 = vector.broadcast %132 : vector<8x1xf32> to vector<8x32xf32>
    %134 = arith.subf %126, %133 : vector<8x32xf32>
    %135 = arith.mulf %134, %134 : vector<8x32xf32>
    %cst_53 = arith.constant dense<0.000000e+00> : vector<8xf32>
    %136 = vector.multi_reduction <add>, %135, %cst_53 [1] : vector<8x32xf32> to vector<8xf32>
    %137 = vector.shape_cast %136 : vector<8xf32> to vector<8x1xf32>
    %cst_54 = arith.constant 0.0322580636 : f32
    %138 = vector.broadcast %cst_54 : f32 to vector<8x1xf32>
    %139 = arith.mulf %137, %138 : vector<8x1xf32>
    %140 = math.sqrt %139 : vector<8x1xf32>
    %cst_55 = arith.constant 9.99999997E-7 : f32
    %141 = vector.broadcast %cst_55 : f32 to vector<8x1xf32>
    %142 = arith.addf %140, %141 : vector<8x1xf32>
    %143 = tpu.reciprocal %142 : vector<8x1xf32> -> vector<8x1xf32>
    %144 = vector.broadcast %132 : vector<8x1xf32> to vector<8x32xf32>
    %145 = arith.subf %126, %144 : vector<8x32xf32>
    %146 = vector.broadcast %143 : vector<8x1xf32> to vector<8x32xf32>
    %147 = arith.mulf %145, %146 : vector<8x32xf32>
    %148 = vector.broadcast %127 : vector<1x32xf32> to vector<8x32xf32>
    %149 = arith.mulf %148, %147 : vector<8x32xf32>
    %150 = vector.broadcast %128 : vector<1x32xf32> to vector<8x32xf32>
    %151 = arith.addf %149, %150 : vector<8x32xf32>
    %c0_56 = arith.constant 0 : index
    %c0_57 = arith.constant 0 : index
    %152 = vector.load %arg11[%c0_56, %c0_57] : memref<64x32xf32, #tpu.memory_space<vmem>>, vector<64x32xf32>
    %cst_58 = arith.constant dense<0.000000e+00> : vector<8x64xf32>
    %153 = tpu.matmul %151, %152, %cst_58 {dimension_numbers = #tpu.dot_dimension_numbers<[1], [1], [0], [0], [0, 0, 1, 0], [], []>} : vector<8x32xf32>, vector<64x32xf32>, vector<8x64xf32> -> vector<8x64xf32>
    %c0_59 = arith.constant 0 : index
    %c0_60 = arith.constant 0 : index
    %154 = vector.load %arg12[%c0_59, %c0_60] : memref<1x64xf32, #tpu.memory_space<vmem>>, vector<1x64xf32>
    %155 = vector.broadcast %154 : vector<1x64xf32> to vector<8x64xf32>
    %156 = arith.addf %153, %155 : vector<8x64xf32>
    %cst_61 = arith.constant 0.000000e+00 : f32
    %157 = vector.broadcast %cst_61 : f32 to vector<8x64xf32>
    %158 = arith.maximumf %156, %157 : vector<8x64xf32>
    %c0_62 = arith.constant 0 : index
    %c0_63 = arith.constant 0 : index
    %159 = vector.load %arg13[%c0_62, %c0_63] : memref<32x64xf32, #tpu.memory_space<vmem>>, vector<32x64xf32>
    %cst_64 = arith.constant dense<0.000000e+00> : vector<8x32xf32>
    %160 = tpu.matmul %158, %159, %cst_64 {dimension_numbers = #tpu.dot_dimension_numbers<[1], [1], [0], [0], [0, 0, 1, 0], [], []>} : vector<8x64xf32>, vector<32x64xf32>, vector<8x32xf32> -> vector<8x32xf32>
    %161 = arith.addf %126, %160 : vector<8x32xf32>
    %c0_65 = arith.constant 0 : index
    %c0_66 = arith.constant 0 : index
    %162 = vector.load %arg14[%c0_65, %c0_66] : memref<1x32xf32, #tpu.memory_space<vmem>>, vector<1x32xf32>
    %163 = vector.broadcast %162 : vector<1x32xf32> to vector<8x32xf32>
    %164 = arith.addf %161, %163 : vector<8x32xf32>
    %c0_67 = arith.constant 0 : index
    %c0_68 = arith.constant 0 : index
    %c0_69 = arith.constant 0 : index
    %165 = vector.load %arg15[%c0_67, %c0_68, %c0_69] : memref<1x8x32xf32, #tpu.memory_space<vmem>>, vector<1x8x32xf32>
    %166 = vector.shape_cast %165 : vector<1x8x32xf32> to vector<8x32xf32>
    %167 = vector.shape_cast %164 : vector<8x32xf32> to vector<1x8x32xf32>
    tpu.vector_store %arg15[%c0_67, %c0_68, %c0_69], %167 {strides = array<i32>} : memref<1x8x32xf32, #tpu.memory_space<vmem>>, vector<1x8x32xf32>,
    return
  }
  func.func @transform_0(%arg0: i32) -> (i32, i32, i32) {
    %c0_i32 = arith.constant 0 : i32
    %c0_i32_0 = arith.constant 0 : i32
    %c0_i32_1 = arith.constant 0 : i32
    return %arg0, %c0_i32, %c0_i32_0 : i32, i32, i32
  }
  func.func @transform_1(%arg0: i32) -> (i32, i32, i32) {
    %c0_i32 = arith.constant 0 : i32
    %c0_i32_0 = arith.constant 0 : i32
    %c0_i32_1 = arith.constant 0 : i32
    return %arg0, %c0_i32, %c0_i32_0 : i32, i32, i32
  }
  func.func @transform_2(%arg0: i32) -> (i32, i32) {
    %c0_i32 = arith.constant 0 : i32
    %c0_i32_0 = arith.constant 0 : i32
    %c0_i32_1 = arith.constant 0 : i32
    return %c0_i32, %c0_i32_0 : i32, i32
  }
  func.func @transform_3(%arg0: i32) -> (i32, i32) {
    %c0_i32 = arith.constant 0 : i32
    %c0_i32_0 = arith.constant 0 : i32
    %c0_i32_1 = arith.constant 0 : i32
    return %c0_i32, %c0_i32_0 : i32, i32
  }
  func.func @transform_4(%arg0: i32) -> (i32, i32) {
    %c0_i32 = arith.constant 0 : i32
    %c0_i32_0 = arith.constant 0 : i32
    %c0_i32_1 = arith.constant 0 : i32
    return %c0_i32, %c0_i32_0 : i32, i32
  }
  func.func @transform_5(%arg0: i32) -> (i32, i32) {
    %c0_i32 = arith.constant 0 : i32
    %c0_i32_0 = arith.constant 0 : i32
    %c0_i32_1 = arith.constant 0 : i32
    return %c0_i32, %c0_i32_0 : i32, i32
  }
  func.func @transform_6(%arg0: i32) -> (i32, i32) {
    %c0_i32 = arith.constant 0 : i32
    %c0_i32_0 = arith.constant 0 : i32
    %c0_i32_1 = arith.constant 0 : i32
    return %c0_i32, %c0_i32_0 : i32, i32
  }
  func.func @transform_7(%arg0: i32) -> (i32, i32) {
    %c0_i32 = arith.constant 0 : i32
    %c0_i32_0 = arith.constant 0 : i32
    %c0_i32_1 = arith.constant 0 : i32
    return %c0_i32, %c0_i32_0 : i32, i32
  }
  func.func @transform_8(%arg0: i32) -> (i32, i32) {
    %c0_i32 = arith.constant 0 : i32
    %c0_i32_0 = arith.constant 0 : i32
    %c0_i32_1 = arith.constant 0 : i32
    return %c0_i32, %c0_i32_0 : i32, i32
  }
  func.func @transform_9(%arg0: i32) -> (i32, i32) {
    %c0_i32 = arith.constant 0 : i32
    %c0_i32_0 = arith.constant 0 : i32
    %c0_i32_1 = arith.constant 0 : i32
    return %c0_i32, %c0_i32_0 : i32, i32
  }
  func.func @transform_10(%arg0: i32) -> (i32, i32) {
    %c0_i32 = arith.constant 0 : i32
    %c0_i32_0 = arith.constant 0 : i32
    %c0_i32_1 = arith.constant 0 : i32
    return %c0_i32, %c0_i32_0 : i32, i32
  }
  func.func @transform_11(%arg0: i32) -> (i32, i32) {
    %c0_i32 = arith.constant 0 : i32
    %c0_i32_0 = arith.constant 0 : i32
    %c0_i32_1 = arith.constant 0 : i32
    return %c0_i32, %c0_i32_0 : i32, i32
  }
  func.func @transform_12(%arg0: i32) -> (i32, i32) {
    %c0_i32 = arith.constant 0 : i32
    %c0_i32_0 = arith.constant 0 : i32
    %c0_i32_1 = arith.constant 0 : i32
    return %c0_i32, %c0_i32_0 : i32, i32
  }
  func.func @transform_13(%arg0: i32) -> (i32, i32) {
    %c0_i32 = arith.constant 0 : i32
    %c0_i32_0 = arith.constant 0 : i32
    %c0_i32_1 = arith.constant 0 : i32
    return %c0_i32, %c0_i32_0 : i32, i32
  }
  func.func @transform_14(%arg0: i32) -> (i32, i32, i32) {
    %c0_i32 = arith.constant 0 : i32
    %c0_i32_0 = arith.constant 0 : i32
    %c0_i32_1 = arith.constant 0 : i32
    return %arg0, %c0_i32, %c0_i32_0 : i32, i32, i32
  }
}

module attributes {stable_mosaic.version = 11 : i64} {
  func.func @_norm_proj_kernel(%arg0: i32, %arg1: memref<1x8x32xf32, #tpu.memory_space<vmem>>, %arg2: memref<1x32xf32, #tpu.memory_space<vmem>>, %arg3: memref<1x32xf32, #tpu.memory_space<vmem>>, %arg4: memref<128x32xf32, #tpu.memory_space<vmem>>, %arg5: memref<1x128xf32, #tpu.memory_space<vmem>>, %arg6: memref<1x8x128xf32, #tpu.memory_space<vmem>>) attributes {dimension_semantics = [#tpu.dimension_semantics<parallel>], iteration_bounds = array<i64: 2>, scalar_prefetch = 0 : i64, scratch_operands = 0 : i64, tpu.core_type = #tpu.core_type<tc>, window_params = [{transform_indices = @transform_0, window_bounds = array<i64: 1, 8, 32>}, {pipeline_mode = #tpu.pipeline_mode<synchronous>, transform_indices = @transform_1, window_bounds = array<i64: 1, 32>}, {pipeline_mode = #tpu.pipeline_mode<synchronous>, transform_indices = @transform_2, window_bounds = array<i64: 1, 32>}, {pipeline_mode = #tpu.pipeline_mode<synchronous>, transform_indices = @transform_3, window_bounds = array<i64: 128, 32>}, {pipeline_mode = #tpu.pipeline_mode<synchronous>, transform_indices = @transform_4, window_bounds = array<i64: 1, 128>}, {transform_indices = @transform_5, window_bounds = array<i64: 1, 8, 128>}]} {
    %c0 = arith.constant 0 : index
    %c0_0 = arith.constant 0 : index
    %c0_1 = arith.constant 0 : index
    %0 = vector.load %arg1[%c0, %c0_0, %c0_1] : memref<1x8x32xf32, #tpu.memory_space<vmem>>, vector<1x8x32xf32>
    %1 = vector.shape_cast %0 : vector<1x8x32xf32> to vector<8x32xf32>
    %c0_2 = arith.constant 0 : index
    %c0_3 = arith.constant 0 : index
    %2 = vector.load %arg2[%c0_2, %c0_3] : memref<1x32xf32, #tpu.memory_space<vmem>>, vector<1x32xf32>
    %c0_4 = arith.constant 0 : index
    %c0_5 = arith.constant 0 : index
    %3 = vector.load %arg3[%c0_4, %c0_5] : memref<1x32xf32, #tpu.memory_space<vmem>>, vector<1x32xf32>
    %cst = arith.constant dense<0.000000e+00> : vector<8xf32>
    %4 = vector.multi_reduction <add>, %1, %cst [1] : vector<8x32xf32> to vector<8xf32>
    %5 = vector.shape_cast %4 : vector<8xf32> to vector<8x1xf32>
    %cst_6 = arith.constant 3.200000e+01 : f32
    %6 = vector.broadcast %cst_6 : f32 to vector<8x1xf32>
    %7 = arith.divf %5, %6 : vector<8x1xf32>
    %8 = vector.broadcast %7 : vector<8x1xf32> to vector<8x32xf32>
    %9 = arith.subf %1, %8 : vector<8x32xf32>
    %10 = arith.mulf %9, %9 : vector<8x32xf32>
    %cst_7 = arith.constant dense<0.000000e+00> : vector<8xf32>
    %11 = vector.multi_reduction <add>, %10, %cst_7 [1] : vector<8x32xf32> to vector<8xf32>
    %12 = vector.shape_cast %11 : vector<8xf32> to vector<8x1xf32>
    %cst_8 = arith.constant 0.0322580636 : f32
    %13 = vector.broadcast %cst_8 : f32 to vector<8x1xf32>
    %14 = arith.mulf %12, %13 : vector<8x1xf32>
    %15 = math.sqrt %14 : vector<8x1xf32>
    %cst_9 = arith.constant 9.99999997E-7 : f32
    %16 = vector.broadcast %cst_9 : f32 to vector<8x1xf32>
    %17 = arith.addf %15, %16 : vector<8x1xf32>
    %18 = tpu.reciprocal %17 : vector<8x1xf32> -> vector<8x1xf32>
    %19 = vector.broadcast %7 : vector<8x1xf32> to vector<8x32xf32>
    %20 = arith.subf %1, %19 : vector<8x32xf32>
    %21 = vector.broadcast %18 : vector<8x1xf32> to vector<8x32xf32>
    %22 = arith.mulf %20, %21 : vector<8x32xf32>
    %23 = vector.broadcast %2 : vector<1x32xf32> to vector<8x32xf32>
    %24 = arith.mulf %23, %22 : vector<8x32xf32>
    %25 = vector.broadcast %3 : vector<1x32xf32> to vector<8x32xf32>
    %26 = arith.addf %24, %25 : vector<8x32xf32>
    %c0_10 = arith.constant 0 : index
    %c0_11 = arith.constant 0 : index
    %27 = vector.load %arg4[%c0_10, %c0_11] : memref<128x32xf32, #tpu.memory_space<vmem>>, vector<128x32xf32>
    %cst_12 = arith.constant dense<0.000000e+00> : vector<8x128xf32>
    %28 = tpu.matmul %26, %27, %cst_12 {dimension_numbers = #tpu.dot_dimension_numbers<[1], [1], [0], [0], [0, 0, 1, 0], [], []>} : vector<8x32xf32>, vector<128x32xf32>, vector<8x128xf32> -> vector<8x128xf32>
    %c0_13 = arith.constant 0 : index
    %c0_14 = arith.constant 0 : index
    %29 = vector.load %arg5[%c0_13, %c0_14] : memref<1x128xf32, #tpu.memory_space<vmem>>, vector<1x128xf32>
    %30 = vector.broadcast %29 : vector<1x128xf32> to vector<8x128xf32>
    %31 = arith.addf %28, %30 : vector<8x128xf32>
    %c0_15 = arith.constant 0 : index
    %c0_16 = arith.constant 0 : index
    %c0_17 = arith.constant 0 : index
    %32 = vector.load %arg6[%c0_15, %c0_16, %c0_17] : memref<1x8x128xf32, #tpu.memory_space<vmem>>, vector<1x8x128xf32>
    %33 = vector.shape_cast %32 : vector<1x8x128xf32> to vector<8x128xf32>
    %34 = vector.shape_cast %31 : vector<8x128xf32> to vector<1x8x128xf32>
    tpu.vector_store %arg6[%c0_15, %c0_16, %c0_17], %34 {strides = array<i32>} : memref<1x8x128xf32, #tpu.memory_space<vmem>>, vector<1x8x128xf32>,
    return
  }
  func.func @transform_0(%arg0: i32) -> (i32, i32, i32) {
    %c0_i32 = arith.constant 0 : i32
    %c0_i32_0 = arith.constant 0 : i32
    %c0_i32_1 = arith.constant 0 : i32
    return %arg0, %c0_i32, %c0_i32_0 : i32, i32, i32
  }
  func.func @transform_1(%arg0: i32) -> (i32, i32) {
    %c0_i32 = arith.constant 0 : i32
    %c0_i32_0 = arith.constant 0 : i32
    %c0_i32_1 = arith.constant 0 : i32
    return %c0_i32, %c0_i32_0 : i32, i32
  }
  func.func @transform_2(%arg0: i32) -> (i32, i32) {
    %c0_i32 = arith.constant 0 : i32
    %c0_i32_0 = arith.constant 0 : i32
    %c0_i32_1 = arith.constant 0 : i32
    return %c0_i32, %c0_i32_0 : i32, i32
  }
  func.func @transform_3(%arg0: i32) -> (i32, i32) {
    %c0_i32 = arith.constant 0 : i32
    %c0_i32_0 = arith.constant 0 : i32
    %c0_i32_1 = arith.constant 0 : i32
    return %c0_i32, %c0_i32_0 : i32, i32
  }
  func.func @transform_4(%arg0: i32) -> (i32, i32) {
    %c0_i32 = arith.constant 0 : i32
    %c0_i32_0 = arith.constant 0 : i32
    %c0_i32_1 = arith.constant 0 : i32
    return %c0_i32, %c0_i32_0 : i32, i32
  }
  func.func @transform_5(%arg0: i32) -> (i32, i32, i32) {
    %c0_i32 = arith.constant 0 : i32
    %c0_i32_0 = arith.constant 0 : i32
    %c0_i32_1 = arith.constant 0 : i32
    return %arg0, %c0_i32, %c0_i32_0 : i32, i32, i32
  }
}

</mosaic_0001>

<llo_original>
// kernel: transformer_forward.8
$region0: #{transformer_forward.8}
  #allocation0 [shape = 'u32[]', space=smem, size = 0x4, offset = 0x4, fixed_abs, tag = 'smem constant byte address 0x4 - core index']
  #allocation1 [shape = 'u32[144,128]{1,0:T(1,128)}', space=vmem, size = 0x12000, scoped, tag = 'internal scratch']
  %s0 = inlined_call_operand.vmem [shape: f32[2,8,32], index: 0, kind: input, shape index: {}]
  %s1 = inlined_call_operand.vmem [shape: f32[1,32], index: 1, kind: input, shape index: {}]
  %s2 = inlined_call_operand.vmem [shape: f32[1,32], index: 2, kind: input, shape index: {}]
  %s3 = inlined_call_operand.vmem [shape: f32[2,8,32], index: 3, kind: output, shape index: {}]
  %s4 = sld [smem:[#allocation0]]
  $region45: #{transformer_forward.8} parent=0
    _
  %s6 = ssub.s32 1, %s4
  %s7 = scalar_select 0, %s6, %s4
  loop: start=0, step=1, limit=4
  $region2: #{transformer_forward.8} parent=0 // loop_pre_header
    _
  $region3: #{transformer_forward.8} parent=0 // loop_header
    %s9 = sphi 0, %s13
    %p10 = scmp.ge.s32.totalorder %s9, 4
    %s19 = sphi 0, %s21
    %s22 = sphi 0, %s19
    %s23 = sphi 0, %s22
    %s39 = sphi 0, %s23
    %s43 = sphi 0, %s43
    %s45 = sphi 0, %s43
    %s46 = sphi 0, %s45
    %s60 = sphi 0, %s46
    %s64 = sphi 0, %s64
    %s66 = sphi 0, %s64
    %s67 = sphi 0, %s66
    %s81 = sphi 0, %s67
    %s87 = sphi 0, %s89
    %s90 = sphi 0, %s87
    %s91 = sphi 0, %s90
    %s107 = sphi 0, %s91
  $region4: #{transformer_forward.8} parent=0 // loop_header_branch
    %12 = sbr.rel (%p10) target = $region8
  $region5: #{transformer_forward.8} parent=0 // loop_body
    %s14 = ssub.s32 %s9, 1
    %s15 = ssub.s32 %s9, 2
    %s16 = sadd.s32 %s9, 1
    %s17 = ssub.s32 %s9, %s16
    %p18 = scmp.eq.s32.totalorder %s17, 0
    %s20 = sadd.s32 %s19, 1
    %s21 = scalar_select %p18, %s19, %s20
    %p24 = pneg %p18
    %p25 = scmp.eq.s32.totalorder %s9, 1
    %p26 = por %p24, %p25
    %p27 = scmp.ne.s32.totalorder %s19, %s22
    %p28 = scmp.eq.s32.totalorder %s9, 0
    %p29 = por %p27, %p28
    %p30 = scmp.ne.s32.totalorder %s19, %s22
    %p31 = scmp.eq.s32.totalorder %s14, 1
    %p32 = por %p30, %p31
    %p33 = scmp.ne.s32.totalorder %s22, %s23
    %p34 = scmp.eq.s32.totalorder %s14, 0
    %p35 = por %p33, %p34
    %p36 = scmp.ne.s32.totalorder %s22, %s23
    %p37 = scmp.eq.s32.totalorder %s15, 1
    %p38 = por %p36, %p37
    %p40 = scmp.ne.s32.totalorder %s23, %s39
    %p41 = scmp.eq.s32.totalorder %s15, 0
    %p42 = por %p40, %p41
    %s44 = sadd.s32 %s43, 1
    %p47 = scmp.eq.s32.totalorder %s9, 1
    %p48 = scmp.ne.s32.totalorder %s43, %s45
    %p49 = scmp.eq.s32.totalorder %s9, 0
    %p50 = por %p48, %p49
    %p51 = scmp.ne.s32.totalorder %s43, %s45
    %p52 = scmp.eq.s32.totalorder %s14, 1
    %p53 = por %p51, %p52
    %p54 = scmp.ne.s32.totalorder %s45, %s46
    %p55 = scmp.eq.s32.totalorder %s14, 0
    %p56 = por %p54, %p55
    %p57 = scmp.ne.s32.totalorder %s45, %s46
    %p58 = scmp.eq.s32.totalorder %s15, 1
    %p59 = por %p57, %p58
    %p61 = scmp.ne.s32.totalorder %s46, %s60
    %p62 = scmp.eq.s32.totalorder %s15, 0
    %p63 = por %p61, %p62
    %s65 = sadd.s32 %s64, 1
    %p68 = scmp.eq.s32.totalorder %s9, 1
    %p69 = scmp.ne.s32.totalorder %s64, %s66
    %p70 = scmp.eq.s32.totalorder %s9, 0
    %p71 = por %p69, %p70
    %p72 = scmp.ne.s32.totalorder %s64, %s66
    %p73 = scmp.eq.s32.totalorder %s14, 1
    %p74 = por %p72, %p73
    %p75 = scmp.ne.s32.totalorder %s66, %s67
    %p76 = scmp.eq.s32.totalorder %s14, 0
    %p77 = por %p75, %p76
    %p78 = scmp.ne.s32.totalorder %s66, %s67
    %p79 = scmp.eq.s32.totalorder %s15, 1
    %p80 = por %p78, %p79
    %p82 = scmp.ne.s32.totalorder %s67, %s81
    %p83 = scmp.eq.s32.totalorder %s15, 0
    %p84 = por %p82, %p83
    %s85 = ssub.s32 %s9, %s16
    %p86 = scmp.eq.s32.totalorder %s85, 0
    %s88 = sadd.s32 %s87, 1
    %s89 = scalar_select %p86, %s87, %s88
    %p92 = pneg %p86
    %p93 = scmp.eq.s32.totalorder %s9, 1
    %p94 = por %p92, %p93
    %p95 = scmp.ne.s32.totalorder %s87, %s90
    %p96 = scmp.eq.s32.totalorder %s9, 0
    %p97 = por %p95, %p96
    %p98 = scmp.ne.s32.totalorder %s87, %s90
    %p99 = scmp.eq.s32.totalorder %s14, 1
    %p100 = por %p98, %p99
    %p101 = scmp.ne.s32.totalorder %s90, %s91
    %p102 = scmp.eq.s32.totalorder %s14, 0
    %p103 = por %p101, %p102
    %p104 = scmp.ne.s32.totalorder %s90, %s91
    %p105 = scmp.eq.s32.totalorder %s15, 1
    %p106 = por %p104, %p105
    %p108 = scmp.ne.s32.totalorder %s91, %s107
    %p109 = scmp.eq.s32.totalorder %s15, 0
    %p110 = por %p108, %p109
    %p111 = scmp.le.s32.totalorder 1, %s9
    %p112 = scmp.lt.s32.totalorder %s9, 3
    %p113 = pnand %p111, %p112
    %p114 = pneg %p113
    // Predicated region
    $region9: #{transformer_forward.8} parent=5 // pred_check
      _
    $region10: #{transformer_forward.8} parent=5 // pred_check_branch
      %116 = sbr.rel (%p113) target = $region12
    $region11: #{transformer_forward.8} parent=5 // pred_region
      %s117 = ssub.s32 %s9, 1
      // Predicated region
      $region13: #{transformer_forward.8} parent=11 // pred_check
        %p118 = pneg %p56
      $region14: #{transformer_forward.8} parent=11 // pred_check_branch
        %120 = sbr.rel (%p118) target = $region16
      $region15: #{transformer_forward.8} parent=11 // pred_region
        _
      $region16: #{transformer_forward.8} parent=11 // pred_fallthru
        _
      // Predicated region
      $region17: #{transformer_forward.8} parent=11 // pred_check
        %p121 = pneg %p77
      $region18: #{transformer_forward.8} parent=11 // pred_check_branch
        %123 = sbr.rel (%p121) target = $region20
      $region19: #{transformer_forward.8} parent=11 // pred_region
        _
      $region20: #{transformer_forward.8} parent=11 // pred_fallthru
        _
    $region12: #{transformer_forward.8} parent=5 // pred_fallthru
      _
    %p124 = scmp.lt.s32.totalorder %s9, 2
    // Predicated region
    $region21: #{transformer_forward.8} parent=5 // pred_check
      %p125 = pneg %p124
    $region22: #{transformer_forward.8} parent=5 // pred_check_branch
      %127 = sbr.rel (%p125) target = $region24
    $region23: #{transformer_forward.8} parent=5 // pred_region
      // Predicated region
      $region25: #{transformer_forward.8} parent=23 // pred_check
        %p128 = pneg %p29
      $region26: #{transformer_forward.8} parent=23 // pred_check_branch
        %130 = sbr.rel (%p128) target = $region28
      $region27: #{transformer_forward.8} parent=23 // pred_region
        %p131 = scmp.lt.s32.totalorder %s9, 1
        %s132 = scalar_select %p131, %s9, 1
        %s133 = smul.addr %s132, 8
        %s134 = scalar_lea.vmem %s0, %s133
      $region28: #{transformer_forward.8} parent=23 // pred_fallthru
        _
    $region24: #{transformer_forward.8} parent=5 // pred_fallthru
      _
    %p135 = scmp.le.s32.totalorder 1, %s9
    %p136 = scmp.lt.s32.totalorder %s9, 3
    %p137 = pnand %p135, %p136
    %p138 = pneg %p137
    // Predicated region
    $region29: #{transformer_forward.8} parent=5 // pred_check
      _
    $region30: #{transformer_forward.8} parent=5 // pred_check_branch
      %140 = sbr.rel (%p137) target = $region32
    $region31: #{transformer_forward.8} parent=5 // pred_region
      %s141 = ssub.s32 %s9, 1
      %p142 = scmp.lt.s32.totalorder %s14, 1
      %s143 = scalar_select %p142, %s14, 1
      %s144 = smul.addr %s143, 8
      %s145 = scalar_lea.vmem %s0, %s144
      %p146 = pneg %p35
      %p147 = pneg %p32
      %p148 = pneg %p56
      %p149 = pneg %p53
      %p150 = pneg %p77
      %p151 = pneg %p74
      %p152 = pneg %p103
      %p153 = pneg %p100
      %p154 = scmp.lt.s32.totalorder %s14, 1
      %s155 = scalar_select %p154, %s14, 1
      %s156 = smul.addr %s155, 8
      %s157 = scalar_lea.vmem %s3, %s156
      %p158 = scmp.lt.s32.totalorder %s14, 1
      %s159 = scalar_select %p158, %s14, 1
      %s160 = smul.addr %s159, 8
      %s161 = scalar_lea.vmem %s0, %s160
      %p162 = scmp.lt.s32.totalorder %s14, 1
      %s163 = scalar_select %p162, %s14, 1
      %s164 = smul.addr %s163, 8
      %s165 = scalar_lea.vmem %s3, %s164
      %v166 = vld [vmem:[%s161] sm:$0xff]
      %v167 = vld [vmem:[%s1] sm:$0x1]
      %v168 = vld [vmem:[%s2] sm:$0x1]
      %vm169 = vcmask 261120
      %v170 = vsel %vm169, %v166, 0.0
      %171 = vadd.xlane.f32.xlu0 %v170
      %v172 = vpop.xlane.xlu0 %171
      %v173 = vrcp.pop 32.0
      %v174 = vmul.f32 %v172, %v173
      %v175 = vsub.f32 %v166, %v174
      %v176 = vmul.f32 %v175, %v175
      %v177 = vsel %vm169, %v176, 0.0
      %178 = vadd.xlane.f32.xlu0 %v177
      %v179 = vpop.xlane.xlu0 %178
      %v180 = vmul.f32 %v179, 0.032258064
      %v181 = vrsqrt.pop %v180
      %v182 = vmul.f32 %v180, %v181
      %vm183 = vcmp.eq.f32.partialorder %v180, inf
      %v184 = vsel %vm183, %v180, %v182
      %vm185 = vcmp.eq.f32.partialorder %v180, 0.0
      %v186 = vand.u32 %v180, 2147483648
      %v187 = vsel %vm185, %v186, %v184
      %v188 = vadd.f32 %v187, 1e-06
      %v189 = vrcp.pop %v188
      %v190 = vmul.f32 %v175, %v189
      %v192 = vlaneseq
      %v193 = vshrl.u32 %v192, 7
      %v194 = vsub.s32 0, %v193
      %v195 = vrot.slane %v167, %v194
      %v197 = vmul.f32 %v195, %v190
      %v199 = vlaneseq
      %v200 = vshrl.u32 %v199, 7
      %v201 = vsub.s32 0, %v200
      %v202 = vrot.slane %v168, %v201
      %v204 = vadd.f32 %v197, %v202
      %205 = vst.msk [vmem:[%s165] sm:$0xff] %vm169, %v204
      %p206 = scmp.lt.s32.totalorder %s14, 1
      %s207 = scalar_select %p206, %s14, 1
      %s208 = smul.addr %s207, 8
      %s209 = scalar_lea.vmem %s3, %s208
      // Predicated region
      $region33: #{transformer_forward.8} parent=31 // pred_check
        %p210 = pneg %p100
      $region34: #{transformer_forward.8} parent=31 // pred_check_branch
        %212 = sbr.rel (%p210) target = $region36
      $region35: #{transformer_forward.8} parent=31 // pred_region
        _
      $region36: #{transformer_forward.8} parent=31 // pred_fallthru
        _
    $region32: #{transformer_forward.8} parent=5 // pred_fallthru
      _
    %p213 = scmp.le.s32.totalorder 2, %s9
    // Predicated region
    $region37: #{transformer_forward.8} parent=5 // pred_check
      %p214 = pneg %p213
    $region38: #{transformer_forward.8} parent=5 // pred_check_branch
      %216 = sbr.rel (%p214) target = $region40
    $region39: #{transformer_forward.8} parent=5 // pred_region
      %s217 = ssub.s32 %s9, 2
      // Predicated region
      $region41: #{transformer_forward.8} parent=39 // pred_check
        %p218 = pneg %p106
      $region42: #{transformer_forward.8} parent=39 // pred_check_branch
        %220 = sbr.rel (%p218) target = $region44
      $region43: #{transformer_forward.8} parent=39 // pred_region
        %p221 = scmp.lt.s32.totalorder %s15, 1
        %s222 = scalar_select %p221, %s15, 1
        %s223 = smul.addr %s222, 8
        %s224 = scalar_lea.vmem %s3, %s223
      $region44: #{transformer_forward.8} parent=39 // pred_fallthru
        _
    $region40: #{transformer_forward.8} parent=5 // pred_fallthru
      _
  $region6: #{transformer_forward.8} parent=0 // loop_footer
    %s13 = sadd.s32 1, %s9
  $region7: #{transformer_forward.8} parent=0 // loop_footer_branch
    %8 = sbr.rel target = $region3
  $region8: #{transformer_forward.8} parent=0 // loop_exit
    _

// kernel: transformer_forward.11
$region0: #{transformer_forward.11}
  #allocation0 [shape = 'u32[]', space=smem, size = 0x4, offset = 0x4, fixed_abs, tag = 'smem constant byte address 0x4 - core index']
  #allocation1 [shape = 'u32[144,128]{1,0:T(1,128)}', space=vmem, size = 0x12000, scoped, tag = 'internal scratch']
  %s0 = inlined_call_operand.vmem [shape: f32[2,8,32], index: 0, kind: input, shape index: {}]
  %s1 = inlined_call_operand.vmem [shape: f32[1,32], index: 1, kind: input, shape index: {}]
  %s2 = inlined_call_operand.vmem [shape: f32[1,32], index: 2, kind: input, shape index: {}]
  %s3 = inlined_call_operand.vmem [shape: f32[128,32], index: 3, kind: input, shape index: {}]
  %s4 = inlined_call_operand.vmem [shape: f32[1,128], index: 4, kind: input, shape index: {}]
  %s5 = inlined_call_operand.hbm [shape: f32[2,8,128], index: 5, kind: output, shape index: {}]
  %s6 = sld [smem:[#allocation0]]
  $region53: #{transformer_forward.11} parent=0
    _
  %s8 = ssub.s32 1, %s6
  %s9 = scalar_select 0, %s8, %s6
  $region1: #{transformer_forward.11} parent=0
    #allocation2 [shape = 'u8[8192]{0}', space=vmem, size = 0x2000, scoped, tag = 'output window, operand 0']
    #allocation3 [shape = 's32[2]{0}', space=sflag, size = 0x8, scoped, tag = 'scoped memory for transformer_forward.11']
    %10 = vsyncpa [#allocation3], 0
    %s11 = scalar_lea.sflag [#allocation3], 1
    %12 = vsyncpa %s11, 0
    loop: start=0, step=1, limit=4
    $region2: #{transformer_forward.11} parent=1 // loop_pre_header
      _
    $region3: #{transformer_forward.11} parent=1 // loop_header
      %s14 = sphi 0, %s18
      %p15 = scmp.ge.s32.totalorder %s14, 4
      %s24 = sphi 0, %s26
      %s27 = sphi 0, %s24
      %s28 = sphi 0, %s27
      %s44 = sphi 0, %s28
      %s48 = sphi 0, %s48
      %s50 = sphi 0, %s48
      %s51 = sphi 0, %s50
      %s65 = sphi 0, %s51
      %s69 = sphi 0, %s69
      %s71 = sphi 0, %s69
      %s72 = sphi 0, %s71
      %s86 = sphi 0, %s72
      %s90 = sphi 0, %s90
      %s92 = sphi 0, %s90
      %s93 = sphi 0, %s92
      %s107 = sphi 0, %s93
      %s111 = sphi 0, %s111
      %s113 = sphi 0, %s111
      %s114 = sphi 0, %s113
      %s128 = sphi 0, %s114
      %s134 = sphi 0, %s136
      %s137 = sphi 0, %s134
      %s138 = sphi 0, %s137
      %s154 = sphi 0, %s138
    $region4: #{transformer_forward.11} parent=1 // loop_header_branch
      %17 = sbr.rel (%p15) target = $region8
    $region5: #{transformer_forward.11} parent=1 // loop_body
      %s19 = ssub.s32 %s14, 1
      %s20 = ssub.s32 %s14, 2
      %s21 = sadd.s32 %s14, 1
      %s22 = ssub.s32 %s14, %s21
      %p23 = scmp.eq.s32.totalorder %s22, 0
      %s25 = sadd.s32 %s24, 1
      %s26 = scalar_select %p23, %s24, %s25
      %p29 = pneg %p23
      %p30 = scmp.eq.s32.totalorder %s14, 1
      %p31 = por %p29, %p30
      %p32 = scmp.ne.s32.totalorder %s24, %s27
      %p33 = scmp.eq.s32.totalorder %s14, 0
      %p34 = por %p32, %p33
      %p35 = scmp.ne.s32.totalorder %s24, %s27
      %p36 = scmp.eq.s32.totalorder %s19, 1
      %p37 = por %p35, %p36
      %p38 = scmp.ne.s32.totalorder %s27, %s28
      %p39 = scmp.eq.s32.totalorder %s19, 0
      %p40 = por %p38, %p39
      %p41 = scmp.ne.s32.totalorder %s27, %s28
      %p42 = scmp.eq.s32.totalorder %s20, 1
      %p43 = por %p41, %p42
      %p45 = scmp.ne.s32.totalorder %s28, %s44
      %p46 = scmp.eq.s32.totalorder %s20, 0
      %p47 = por %p45, %p46
      %s49 = sadd.s32 %s48, 1
      %p52 = scmp.eq.s32.totalorder %s14, 1
      %p53 = scmp.ne.s32.totalorder %s48, %s50
      %p54 = scmp.eq.s32.totalorder %s14, 0
      %p55 = por %p53, %p54
      %p56 = scmp.ne.s32.totalorder %s48, %s50
      %p57 = scmp.eq.s32.totalorder %s19, 1
      %p58 = por %p56, %p57
      %p59 = scmp.ne.s32.totalorder %s50, %s51
      %p60 = scmp.eq.s32.totalorder %s19, 0
      %p61 = por %p59, %p60
      %p62 = scmp.ne.s32.totalorder %s50, %s51
      %p63 = scmp.eq.s32.totalorder %s20, 1
      %p64 = por %p62, %p63
      %p66 = scmp.ne.s32.totalorder %s51, %s65
      %p67 = scmp.eq.s32.totalorder %s20, 0
      %p68 = por %p66, %p67
      %s70 = sadd.s32 %s69, 1
      %p73 = scmp.eq.s32.totalorder %s14, 1
      %p74 = scmp.ne.s32.totalorder %s69, %s71
      %p75 = scmp.eq.s32.totalorder %s14, 0
      %p76 = por %p74, %p75
      %p77 = scmp.ne.s32.totalorder %s69, %s71
      %p78 = scmp.eq.s32.totalorder %s19, 1
      %p79 = por %p77, %p78
      %p80 = scmp.ne.s32.totalorder %s71, %s72
      %p81 = scmp.eq.s32.totalorder %s19, 0
      %p82 = por %p80, %p81
      %p83 = scmp.ne.s32.totalorder %s71, %s72
      %p84 = scmp.eq.s32.totalorder %s20, 1
      %p85 = por %p83, %p84
      %p87 = scmp.ne.s32.totalorder %s72, %s86
      %p88 = scmp.eq.s32.totalorder %s20, 0
      %p89 = por %p87, %p88
      %s91 = sadd.s32 %s90, 1
      %p94 = scmp.eq.s32.totalorder %s14, 1
      %p95 = scmp.ne.s32.totalorder %s90, %s92
      %p96 = scmp.eq.s32.totalorder %s14, 0
      %p97 = por %p95, %p96
      %p98 = scmp.ne.s32.totalorder %s90, %s92
      %p99 = scmp.eq.s32.totalorder %s19, 1
      %p100 = por %p98, %p99
      %p101 = scmp.ne.s32.totalorder %s92, %s93
      %p102 = scmp.eq.s32.totalorder %s19, 0
      %p103 = por %p101, %p102
      %p104 = scmp.ne.s32.totalorder %s92, %s93
      %p105 = scmp.eq.s32.totalorder %s20, 1
      %p106 = por %p104, %p105
      %p108 = scmp.ne.s32.totalorder %s93, %s107
      %p109 = scmp.eq.s32.totalorder %s20, 0
      %p110 = por %p108, %p109
      %s112 = sadd.s32 %s111, 1
      %p115 = scmp.eq.s32.totalorder %s14, 1
      %p116 = scmp.ne.s32.totalorder %s111, %s113
      %p117 = scmp.eq.s32.totalorder %s14, 0
      %p118 = por %p116, %p117
      %p119 = scmp.ne.s32.totalorder %s111, %s113
      %p120 = scmp.eq.s32.totalorder %s19, 1
      %p121 = por %p119, %p120
      %p122 = scmp.ne.s32.totalorder %s113, %s114
      %p123 = scmp.eq.s32.totalorder %s19, 0
      %p124 = por %p122, %p123
      %p125 = scmp.ne.s32.totalorder %s113, %s114
      %p126 = scmp.eq.s32.totalorder %s20, 1
      %p127 = por %p125, %p126
      %p129 = scmp.ne.s32.totalorder %s114, %s128
      %p130 = scmp.eq.s32.totalorder %s20, 0
      %p131 = por %p129, %p130
      %s132 = ssub.s32 %s14, %s21
      %p133 = scmp.eq.s32.totalorder %s132, 0
      %s135 = sadd.s32 %s134, 1
      %s136 = scalar_select %p133, %s134, %s135
      %p139 = pneg %p133
      %p140 = scmp.eq.s32.totalorder %s14, 1
      %p141 = por %p139, %p140
      %p142 = scmp.ne.s32.totalorder %s134, %s137
      %p143 = scmp.eq.s32.totalorder %s14, 0
      %p144 = por %p142, %p143
      %p145 = scmp.ne.s32.totalorder %s134, %s137
      %p146 = scmp.eq.s32.totalorder %s19, 1
      %p147 = por %p145, %p146
      %p148 = scmp.ne.s32.totalorder %s137, %s138
      %p149 = scmp.eq.s32.totalorder %s19, 0
      %p150 = por %p148, %p149
      %p151 = scmp.ne.s32.totalorder %s137, %s138
      %p152 = scmp.eq.s32.totalorder %s20, 1
      %p153 = por %p151, %p152
      %p155 = scmp.ne.s32.totalorder %s138, %s154
      %p156 = scmp.eq.s32.totalorder %s20, 0
      %p157 = por %p155, %p156
      %p158 = scmp.le.s32.totalorder 1, %s14
      %p159 = scmp.lt.s32.totalorder %s14, 3
      %p160 = pnand %p158, %p159
      %p161 = pneg %p160
      // Predicated region
      $region9: #{transformer_forward.11} parent=5 // pred_check
        _
      $region10: #{transformer_forward.11} parent=5 // pred_check_branch
        %163 = sbr.rel (%p160) target = $region12
      $region11: #{transformer_forward.11} parent=5 // pred_region
        %s164 = ssub.s32 %s14, 1
        // Predicated region
        $region13: #{transformer_forward.11} parent=11 // pred_check
          %p165 = pneg %p61
        $region14: #{transformer_forward.11} parent=11 // pred_check_branch
          %167 = sbr.rel (%p165) target = $region16
        $region15: #{transformer_forward.11} parent=11 // pred_region
          _
        $region16: #{transformer_forward.11} parent=11 // pred_fallthru
          _
        // Predicated region
        $region17: #{transformer_forward.11} parent=11 // pred_check
          %p168 = pneg %p82
        $region18: #{transformer_forward.11} parent=11 // pred_check_branch
          %170 = sbr.rel (%p168) target = $region20
        $region19: #{transformer_forward.11} parent=11 // pred_region
          _
        $region20: #{transformer_forward.11} parent=11 // pred_fallthru
          _
        // Predicated region
        $region21: #{transformer_forward.11} parent=11 // pred_check
          %p171 = pneg %p103
        $region22: #{transformer_forward.11} parent=11 // pred_check_branch
          %173 = sbr.rel (%p171) target = $region24
        $region23: #{transformer_forward.11} parent=11 // pred_region
          _
        $region24: #{transformer_forward.11} parent=11 // pred_fallthru
          _
        // Predicated region
        $region25: #{transformer_forward.11} parent=11 // pred_check
          %p174 = pneg %p124
        $region26: #{transformer_forward.11} parent=11 // pred_check_branch
          %176 = sbr.rel (%p174) target = $region28
        $region27: #{transformer_forward.11} parent=11 // pred_region
          _
        $region28: #{transformer_forward.11} parent=11 // pred_fallthru
          _
      $region12: #{transformer_forward.11} parent=5 // pred_fallthru
        _
      %p177 = scmp.lt.s32.totalorder %s14, 2
      // Predicated region
      $region29: #{transformer_forward.11} parent=5 // pred_check
        %p178 = pneg %p177
      $region30: #{transformer_forward.11} parent=5 // pred_check_branch
        %180 = sbr.rel (%p178) target = $region32
      $region31: #{transformer_forward.11} parent=5 // pred_region
        // Predicated region
        $region33: #{transformer_forward.11} parent=31 // pred_check
          %p181 = pneg %p34
        $region34: #{transformer_forward.11} parent=31 // pred_check_branch
          %183 = sbr.rel (%p181) target = $region36
        $region35: #{transformer_forward.11} parent=31 // pred_region
          %p184 = scmp.lt.s32.totalorder %s14, 1
          %s185 = scalar_select %p184, %s14, 1
          %s186 = smul.addr %s185, 8
          %s187 = scalar_lea.vmem %s0, %s186
        $region36: #{transformer_forward.11} parent=31 // pred_fallthru
          _
      $region32: #{transformer_forward.11} parent=5 // pred_fallthru
        _
      %p188 = scmp.le.s32.totalorder 1, %s14
      %p189 = scmp.lt.s32.totalorder %s14, 3
      %p190 = pnand %p188, %p189
      %p191 = pneg %p190
      // Predicated region
      $region37: #{transformer_forward.11} parent=5 // pred_check
        _
      $region38: #{transformer_forward.11} parent=5 // pred_check_branch
        %193 = sbr.rel (%p190) target = $region40
      $region39: #{transformer_forward.11} parent=5 // pred_region
        %s194 = ssub.s32 %s14, 1
        %p195 = scmp.lt.s32.totalorder %s19, 1
        %s196 = scalar_select %p195, %s19, 1
        %s197 = smul.addr %s196, 8
        %s198 = scalar_lea.vmem %s0, %s197
        %p199 = pneg %p40
        %p200 = pneg %p37
        %p201 = pneg %p61
        %p202 = pneg %p58
        %p203 = pneg %p82
        %p204 = pneg %p79
        %p205 = pneg %p103
        %p206 = pneg %p100
        %p207 = pneg %p124
        %p208 = pneg %p121
        %p209 = pneg %p150
        %p210 = pneg %p147
        %s211 = sand.u32 %s137, 1
        %s212 = scalar_lea.sflag [#allocation3], %s211
        %s213 = sand.u32 %s137, 1
        %s214 = smul.addr %s213, 8
        %s215 = scalar_lea.vmem [#allocation2], %s214
        %p216 = scmp.lt.s32.totalorder %s19, 1
        %s217 = scalar_select %p216, %s19, 1
        %s218 = smul.addr %s217, 8
        %s219 = scalar_lea.vmem %s0, %s218
        %v220 = vld [vmem:[%s219] sm:$0xff]
        %v221 = vld [vmem:[%s1] sm:$0x1]
        %v222 = vld [vmem:[%s2] sm:$0x1]
        %vm223 = vcmask 261120
        %v224 = vsel %vm223, %v220, 0.0
        %225 = vadd.xlane.f32.xlu0 %v224
        %v226 = vpop.xlane.xlu0 %225
        %v227 = vrcp.pop 32.0
        %v228 = vmul.f32 %v226, %v227
        %v229 = vsub.f32 %v220, %v228
        %v230 = vmul.f32 %v229, %v229
        %v231 = vsel %vm223, %v230, 0.0
        %232 = vadd.xlane.f32.xlu0 %v231
        %v233 = vpop.xlane.xlu0 %232
        %v234 = vmul.f32 %v233, 0.032258064
        %v235 = vrsqrt.pop %v234
        %v236 = vmul.f32 %v234, %v235
        %vm237 = vcmp.eq.f32.partialorder %v234, inf
        %v238 = vsel %vm237, %v234, %v236
        %vm239 = vcmp.eq.f32.partialorder %v234, 0.0
        %v240 = vand.u32 %v234, 2147483648
        %v241 = vsel %vm239, %v240, %v238
        %v242 = vadd.f32 %v241, 1e-06
        %v243 = vrcp.pop %v242
        %v244 = vmul.f32 %v229, %v243
        %v246 = vlaneseq
        %v247 = vshrl.u32 %v246, 7
        %v248 = vsub.s32 0, %v247
        %v249 = vrot.slane %v221, %v248
        %v251 = vmul.f32 %v249, %v244
        %v253 = vlaneseq
        %v254 = vshrl.u32 %v253, 7
        %v255 = vsub.s32 0, %v254
        %v256 = vrot.slane %v222, %v255
        %v258 = vadd.f32 %v251, %v256
        %v259 = vld [vmem:[%s3] sm:$0xff]
        %v260 = vld [vmem:[%s3 + $0x8] sm:$0xff]
        %v261 = vld [vmem:[%s3 + $0x10] sm:$0xff]
        %v262 = vld [vmem:[%s3 + $0x18] sm:$0xff]
        %v263 = vld [vmem:[%s3 + $0x20] sm:$0xff]
        %v264 = vld [vmem:[%s3 + $0x28] sm:$0xff]
        %v265 = vld [vmem:[%s3 + $0x30] sm:$0xff]
        %v266 = vld [vmem:[%s3 + $0x38] sm:$0xff]
        %v267 = vld [vmem:[%s3 + $0x40] sm:$0xff]
        %v268 = vld [vmem:[%s3 + $0x48] sm:$0xff]
        %v269 = vld [vmem:[%s3 + $0x50] sm:$0xff]
        %v270 = vld [vmem:[%s3 + $0x58] sm:$0xff]
        %v271 = vld [vmem:[%s3 + $0x60] sm:$0xff]
        %v272 = vld [vmem:[%s3 + $0x68] sm:$0xff]
        %v273 = vld [vmem:[%s3 + $0x70] sm:$0xff]
        %v274 = vld [vmem:[%s3 + $0x78] sm:$0xff]
        %v275 = vld [vmem:[%s4] sm:$0x1]
        %v277 = vlaneseq
        %v278 = vshrl.u32 %v277, 7
        %v279 = vsub.s32 0, %v278
        %v280 = vrot.slane %v275, %v279
        %v283 = vsel %vm223, %v258, 0
        %v286 = vsel %vm223, %v259, 0
        %v289 = vsel %vm223, %v260, 0
        %v292 = vsel %vm223, %v261, 0
        %v295 = vsel %vm223, %v262, 0
        %v298 = vsel %vm223, %v263, 0
        %v301 = vsel %vm223, %v264, 0
        %v304 = vsel %vm223, %v265, 0
        %v307 = vsel %vm223, %v266, 0
        %v310 = vsel %vm223, %v267, 0
        %v313 = vsel %vm223, %v268, 0
        %v316 = vsel %vm223, %v269, 0
        %v319 = vsel %vm223, %v270, 0
        %v322 = vsel %vm223, %v271, 0
        %v325 = vsel %vm223, %v272, 0
        %v328 = vsel %vm223, %v273, 0
        %v331 = vsel %vm223, %v274, 0
        %333 = vmatprep.subr.mxu0 0.0
        %334 = vmatpush1.xpose.msra.mxu0 %v286
        %335 = vmatprep.subr.mxu0 0.0
        %336 = vmatpush1.xpose.msra.mxu0 %v289
        %337 = vmatprep.subr.mxu0 0.0
        %338 = vmatpush1.xpose.msra.mxu0 %v292
        %339 = vmatprep.subr.mxu0 0.0
        %340 = vmatpush1.xpose.msra.mxu0 %v295
        %341 = vmatprep.subr.mxu0 0.0
        %342 = vmatpush1.xpose.msra.mxu0 %v298
        %343 = vmatprep.subr.mxu0 0.0
        %344 = vmatpush1.xpose.msra.mxu0 %v301
        %345 = vmatprep.subr.mxu0 0.0
        %346 = vmatpush1.xpose.msra.mxu0 %v304
        %347 = vmatprep.subr.mxu0 0.0
        %348 = vmatpush1.xpose.msra.mxu0 %v307
        %349 = vmatprep.subr.mxu0 0.0
        %350 = vmatpush1.xpose.msra.mxu0 %v310
        %351 = vmatprep.subr.mxu0 0.0
        %352 = vmatpush1.xpose.msra.mxu0 %v313
        %353 = vmatprep.subr.mxu0 0.0
        %354 = vmatpush1.xpose.msra.mxu0 %v316
        %355 = vmatprep.subr.mxu0 0.0
        %356 = vmatpush1.xpose.msra.mxu0 %v319
        %357 = vmatprep.subr.mxu0 0.0
        %358 = vmatpush1.xpose.msra.mxu0 %v322
        %359 = vmatprep.subr.mxu0 0.0
        %360 = vmatpush1.xpose.msra.mxu0 %v325
        %361 = vmatprep.subr.mxu0 0.0
        %362 = vmatpush1.xpose.msra.mxu0 %v328
        %363 = vmatprep.subr.mxu0 0.0
        %364 = vmatpush1.xpose.msra.mxu0 %v331
        %365 = vmatprep.subr.mxu0 0.0
        %366 = vmatpush1.xpose.msra.mxu0 0.0
        %367 = vmatprep.subr.mxu0 0.0
        %368 = vmatpush1.xpose.msra.mxu0 0.0
        %369 = vmatprep.subr.mxu0 0.0
        %370 = vmatpush1.xpose.msra.mxu0 0.0
        %371 = vmatprep.subr.mxu0 0.0
        %372 = vmatpush1.xpose.msra.mxu0 0.0
        %373 = vmatprep.subr.mxu0 0.0
        %374 = vmatpush1.xpose.msra.mxu0 0.0
        %375 = vmatprep.subr.mxu0 0.0
        %376 = vmatpush1.xpose.msra.mxu0 0.0
        %377 = vmatprep.subr.mxu0 0.0
        %378 = vmatpush1.xpose.msra.mxu0 0.0
        %379 = vmatprep.subr.mxu0 0.0
        %380 = vmatpush1.xpose.msra.mxu0 0.0
        %381 = vmatprep.subr.mxu0 0.0
        %382 = vmatpush1.xpose.msra.mxu0 0.0
        %383 = vmatprep.subr.mxu0 0.0
        %384 = vmatpush1.xpose.msra.mxu0 0.0
        %385 = vmatprep.subr.mxu0 0.0
        %386 = vmatpush1.xpose.msra.mxu0 0.0
        %387 = vmatprep.subr.mxu0 0.0
        %388 = vmatpush1.xpose.msra.mxu0 0.0
        %389 = vmatprep.subr.mxu0 0.0
        %390 = vmatpush1.xpose.msra.mxu0 0.0
        %391 = vmatprep.subr.mxu0 0.0
        %392 = vmatpush1.xpose.msra.mxu0 0.0
        %393 = vmatprep.subr.mxu0 0.0
        %394 = vmatpush1.xpose.msra.mxu0 0.0
        %395 = vmatprep.subr.mxu0 0.0
        %396 = vmatpush1.xpose.msra.mxu0 0.0
        %397 = vmatprep.mubr.f32.mxu0 0.0
        %398 = vmatmul.mubr.f32.gmra.mrb[0].mxu0 %v283
        %v399 = vpop.f32.mrb[0].mxu0
        %v400 = vadd.f32 %v280, %v399
        %v401 = vpop.f32.mrb[0].mxu0
        %402 = vdwg.mxu0
        %403 = vst [vmem:[%s215] sm:$0xff] %v400
        %s404 = sand.u32 %s137, 1
        %s405 = scalar_lea.sflag [#allocation3], %s404
        %s406 = sand.u32 %s137, 1
        %s407 = smul.addr %s406, 8
        %s408 = scalar_lea.vmem [#allocation2], %s407
        // Predicated region
        $region41: #{transformer_forward.11} parent=39 // pred_check
          %p409 = pneg %p147
        $region42: #{transformer_forward.11} parent=39 // pred_check_branch
          %411 = sbr.rel (%p409) target = $region44
        $region43: #{transformer_forward.11} parent=39 // pred_region
          %s413 = ssub.s32 128, 128
          %414 = vsyncadd %s405, %s413
          %s415 = smul.addr %s19, 128
          %s416 = scalar_lea.hbm %s5, %s415
          %s418 = sshll.u32 %s408, 4
          %s419 = int_to_ptr.vmem [resolvable:$true] %s418
          %421 = dma.vmem_to_hbm [thread:$0]  %s419, 128, %s416, %s405
        $region44: #{transformer_forward.11} parent=39 // pred_fallthru
          _
      $region40: #{transformer_forward.11} parent=5 // pred_fallthru
        _
      %p422 = scmp.le.s32.totalorder 2, %s14
      // Predicated region
      $region45: #{transformer_forward.11} parent=5 // pred_check
        %p423 = pneg %p422
      $region46: #{transformer_forward.11} parent=5 // pred_check_branch
        %425 = sbr.rel (%p423) target = $region48
      $region47: #{transformer_forward.11} parent=5 // pred_region
        %s426 = ssub.s32 %s14, 2
        // Predicated region
        $region49: #{transformer_forward.11} parent=47 // pred_check
          %p427 = pneg %p153
        $region50: #{transformer_forward.11} parent=47 // pred_check_branch
          %429 = sbr.rel (%p427) target = $region52
        $region51: #{transformer_forward.11} parent=47 // pred_region
          %s430 = sand.u32 %s138, 1
          %s431 = scalar_lea.sflag [#allocation3], %s430
          %s432 = sand.u32 %s138, 1
          %s433 = smul.addr %s432, 8
          %s434 = scalar_lea.vmem [#allocation2], %s433
          %435 = dma.done %s431, 128
        $region52: #{transformer_forward.11} parent=47 // pred_fallthru
          _
      $region48: #{transformer_forward.11} parent=5 // pred_fallthru
        _
    $region6: #{transformer_forward.11} parent=1 // loop_footer
      %s18 = sadd.s32 1, %s14
    $region7: #{transformer_forward.11} parent=1 // loop_footer_branch
      %13 = sbr.rel target = $region3
    $region8: #{transformer_forward.11} parent=1 // loop_exit
      _
    %436 = vsyncpa [#allocation3], 1
    %s437 = scalar_lea.sflag [#allocation3], 1
    %438 = vsyncpa %s437, 1

// kernel: transformer_forward.9
$region0: #{transformer_forward.9}
  #allocation0 [shape = 'u32[]', space=smem, size = 0x4, offset = 0x4, fixed_abs, tag = 'smem constant byte address 0x4 - core index']
  #allocation1 [shape = 'u32[144,128]{1,0:T(1,128)}', space=vmem, size = 0x12000, scoped, tag = 'internal scratch']
  %s0 = inlined_call_operand.vmem [shape: f32[2,8,32], index: 0, kind: input, shape index: {}]
  %s1 = inlined_call_operand.vmem [shape: f32[2,8,32], index: 1, kind: input, shape index: {}]
  %s2 = inlined_call_operand.vmem [shape: f32[2,8,8], index: 2, kind: input, shape index: {}]
  %s3 = inlined_call_operand.vmem [shape: f32[2,8,8], index: 3, kind: input, shape index: {}]
  %s4 = inlined_call_operand.vmem [shape: f32[1,32], index: 4, kind: input, shape index: {}]
  %s5 = inlined_call_operand.vmem [shape: f32[1,32], index: 5, kind: input, shape index: {}]
  %s6 = inlined_call_operand.vmem [shape: f32[96,32], index: 6, kind: input, shape index: {}]
  %s7 = inlined_call_operand.vmem [shape: f32[1,96], index: 7, kind: input, shape index: {}]
  %s8 = inlined_call_operand.vmem [shape: f32[32,32], index: 8, kind: input, shape index: {}]
  %s9 = inlined_call_operand.vmem [shape: f32[1,32], index: 9, kind: input, shape index: {}]
  %s10 = inlined_call_operand.vmem [shape: f32[1,32], index: 10, kind: input, shape index: {}]
  %s11 = inlined_call_operand.vmem [shape: f32[1,32], index: 11, kind: input, shape index: {}]
  %s12 = inlined_call_operand.vmem [shape: f32[32,32], index: 12, kind: input, shape index: {}]
  %s13 = inlined_call_operand.vmem [shape: f32[1,32], index: 13, kind: input, shape index: {}]
  %s14 = inlined_call_operand.vmem [shape: f32[64,32], index: 14, kind: input, shape index: {}]
  %s15 = inlined_call_operand.vmem [shape: f32[1,64], index: 15, kind: input, shape index: {}]
  %s16 = inlined_call_operand.vmem [shape: f32[32,32], index: 16, kind: input, shape index: {}]
  %s17 = inlined_call_operand.vmem [shape: f32[1,32], index: 17, kind: input, shape index: {}]
  %s18 = inlined_call_operand.vmem [shape: f32[1,32], index: 18, kind: input, shape index: {}]
  %s19 = inlined_call_operand.vmem [shape: f32[1,32], index: 19, kind: input, shape index: {}]
  %s20 = inlined_call_operand.vmem [shape: f32[64,32], index: 20, kind: input, shape index: {}]
  %s21 = inlined_call_operand.vmem [shape: f32[1,64], index: 21, kind: input, shape index: {}]
  %s22 = inlined_call_operand.vmem [shape: f32[32,64], index: 22, kind: input, shape index: {}]
  %s23 = inlined_call_operand.vmem [shape: f32[1,32], index: 23, kind: input, shape index: {}]
  %s24 = inlined_call_operand.vmem [shape: f32[2,8,32], index: 24, kind: output, shape index: {}]
  %s25 = sld [smem:[#allocation0]]
  $region129: #{transformer_forward.9} parent=0
    _
  %s27 = ssub.s32 1, %s25
  %s28 = scalar_select 0, %s27, %s25
  loop: start=0, step=1, limit=4
  $region2: #{transformer_forward.9} parent=0 // loop_pre_header
    _
  $region3: #{transformer_forward.9} parent=0 // loop_header
    %s30 = sphi 0, %s34
    %p31 = scmp.ge.s32.totalorder %s30, 4
    %s40 = sphi 0, %s42
    %s43 = sphi 0, %s40
    %s44 = sphi 0, %s43
    %s60 = sphi 0, %s44
    %s66 = sphi 0, %s68
    %s69 = sphi 0, %s66
    %s70 = sphi 0, %s69
    %s86 = sphi 0, %s70
    %s92 = sphi 0, %s94
    %s95 = sphi 0, %s92
    %s96 = sphi 0, %s95
    %s112 = sphi 0, %s96
    %s118 = sphi 0, %s120
    %s121 = sphi 0, %s118
    %s122 = sphi 0, %s121
    %s138 = sphi 0, %s122
    %s142 = sphi 0, %s142
    %s144 = sphi 0, %s142
    %s145 = sphi 0, %s144
    %s159 = sphi 0, %s145
    %s163 = sphi 0, %s163
    %s165 = sphi 0, %s163
    %s166 = sphi 0, %s165
    %s180 = sphi 0, %s166
    %s184 = sphi 0, %s184
    %s186 = sphi 0, %s184
    %s187 = sphi 0, %s186
    %s201 = sphi 0, %s187
    %s205 = sphi 0, %s205
    %s207 = sphi 0, %s205
    %s208 = sphi 0, %s207
    %s222 = sphi 0, %s208
    %s226 = sphi 0, %s226
    %s228 = sphi 0, %s226
    %s229 = sphi 0, %s228
    %s243 = sphi 0, %s229
    %s247 = sphi 0, %s247
    %s249 = sphi 0, %s247
    %s250 = sphi 0, %s249
    %s264 = sphi 0, %s250
    %s268 = sphi 0, %s268
    %s270 = sphi 0, %s268
    %s271 = sphi 0, %s270
    %s285 = sphi 0, %s271
    %s289 = sphi 0, %s289
    %s291 = sphi 0, %s289
    %s292 = sphi 0, %s291
    %s306 = sphi 0, %s292
    %s310 = sphi 0, %s310
    %s312 = sphi 0, %s310
    %s313 = sphi 0, %s312
    %s327 = sphi 0, %s313
    %s331 = sphi 0, %s331
    %s333 = sphi 0, %s331
    %s334 = sphi 0, %s333
    %s348 = sphi 0, %s334
    %s352 = sphi 0, %s352
    %s354 = sphi 0, %s352
    %s355 = sphi 0, %s354
    %s369 = sphi 0, %s355
    %s373 = sphi 0, %s373
    %s375 = sphi 0, %s373
    %s376 = sphi 0, %s375
    %s390 = sphi 0, %s376
    %s394 = sphi 0, %s394
    %s396 = sphi 0, %s394
    %s397 = sphi 0, %s396
    %s411 = sphi 0, %s397
    %s415 = sphi 0, %s415
    %s417 = sphi 0, %s415
    %s418 = sphi 0, %s417
    %s432 = sphi 0, %s418
    %s436 = sphi 0, %s436
    %s438 = sphi 0, %s436
    %s439 = sphi 0, %s438
    %s453 = sphi 0, %s439
    %s457 = sphi 0, %s457
    %s459 = sphi 0, %s457
    %s460 = sphi 0, %s459
    %s474 = sphi 0, %s460
    %s478 = sphi 0, %s478
    %s480 = sphi 0, %s478
    %s481 = sphi 0, %s480
    %s495 = sphi 0, %s481
    %s499 = sphi 0, %s499
    %s501 = sphi 0, %s499
    %s502 = sphi 0, %s501
    %s516 = sphi 0, %s502
    %s520 = sphi 0, %s520
    %s522 = sphi 0, %s520
    %s523 = sphi 0, %s522
    %s537 = sphi 0, %s523
    %s541 = sphi 0, %s541
    %s543 = sphi 0, %s541
    %s544 = sphi 0, %s543
    %s558 = sphi 0, %s544
    %s564 = sphi 0, %s566
    %s567 = sphi 0, %s564
    %s568 = sphi 0, %s567
    %s584 = sphi 0, %s568
  $region4: #{transformer_forward.9} parent=0 // loop_header_branch
    %33 = sbr.rel (%p31) target = $region8
  $region5: #{transformer_forward.9} parent=0 // loop_body
    %s35 = ssub.s32 %s30, 1
    %s36 = ssub.s32 %s30, 2
    %s37 = sadd.s32 %s30, 1
    %s38 = ssub.s32 %s30, %s37
    %p39 = scmp.eq.s32.totalorder %s38, 0
    %s41 = sadd.s32 %s40, 1
    %s42 = scalar_select %p39, %s40, %s41
    %p45 = pneg %p39
    %p46 = scmp.eq.s32.totalorder %s30, 1
    %p47 = por %p45, %p46
    %p48 = scmp.ne.s32.totalorder %s40, %s43
    %p49 = scmp.eq.s32.totalorder %s30, 0
    %p50 = por %p48, %p49
    %p51 = scmp.ne.s32.totalorder %s40, %s43
    %p52 = scmp.eq.s32.totalorder %s35, 1
    %p53 = por %p51, %p52
    %p54 = scmp.ne.s32.totalorder %s43, %s44
    %p55 = scmp.eq.s32.totalorder %s35, 0
    %p56 = por %p54, %p55
    %p57 = scmp.ne.s32.totalorder %s43, %s44
    %p58 = scmp.eq.s32.totalorder %s36, 1
    %p59 = por %p57, %p58
    %p61 = scmp.ne.s32.totalorder %s44, %s60
    %p62 = scmp.eq.s32.totalorder %s36, 0
    %p63 = por %p61, %p62
    %s64 = ssub.s32 %s30, %s37
    %p65 = scmp.eq.s32.totalorder %s64, 0
    %s67 = sadd.s32 %s66, 1
    %s68 = scalar_select %p65, %s66, %s67
    %p71 = pneg %p65
    %p72 = scmp.eq.s32.totalorder %s30, 1
    %p73 = por %p71, %p72
    %p74 = scmp.ne.s32.totalorder %s66, %s69
    %p75 = scmp.eq.s32.totalorder %s30, 0
    %p76 = por %p74, %p75
    %p77 = scmp.ne.s32.totalorder %s66, %s69
    %p78 = scmp.eq.s32.totalorder %s35, 1
    %p79 = por %p77, %p78
    %p80 = scmp.ne.s32.totalorder %s69, %s70
    %p81 = scmp.eq.s32.totalorder %s35, 0
    %p82 = por %p80, %p81
    %p83 = scmp.ne.s32.totalorder %s69, %s70
    %p84 = scmp.eq.s32.totalorder %s36, 1
    %p85 = por %p83, %p84
    %p87 = scmp.ne.s32.totalorder %s70, %s86
    %p88 = scmp.eq.s32.totalorder %s36, 0
    %p89 = por %p87, %p88
    %s90 = ssub.s32 %s30, %s37
    %p91 = scmp.eq.s32.totalorder %s90, 0
    %s93 = sadd.s32 %s92, 1
    %s94 = scalar_select %p91, %s92, %s93
    %p97 = pneg %p91
    %p98 = scmp.eq.s32.totalorder %s30, 1
    %p99 = por %p97, %p98
    %p100 = scmp.ne.s32.totalorder %s92, %s95
    %p101 = scmp.eq.s32.totalorder %s30, 0
    %p102 = por %p100, %p101
    %p103 = scmp.ne.s32.totalorder %s92, %s95
    %p104 = scmp.eq.s32.totalorder %s35, 1
    %p105 = por %p103, %p104
    %p106 = scmp.ne.s32.totalorder %s95, %s96
    %p107 = scmp.eq.s32.totalorder %s35, 0
    %p108 = por %p106, %p107
    %p109 = scmp.ne.s32.totalorder %s95, %s96
    %p110 = scmp.eq.s32.totalorder %s36, 1
    %p111 = por %p109, %p110
    %p113 = scmp.ne.s32.totalorder %s96, %s112
    %p114 = scmp.eq.s32.totalorder %s36, 0
    %p115 = por %p113, %p114
    %s116 = ssub.s32 %s30, %s37
    %p117 = scmp.eq.s32.totalorder %s116, 0
    %s119 = sadd.s32 %s118, 1
    %s120 = scalar_select %p117, %s118, %s119
    %p123 = pneg %p117
    %p124 = scmp.eq.s32.totalorder %s30, 1
    %p125 = por %p123, %p124
    %p126 = scmp.ne.s32.totalorder %s118, %s121
    %p127 = scmp.eq.s32.totalorder %s30, 0
    %p128 = por %p126, %p127
    %p129 = scmp.ne.s32.totalorder %s118, %s121
    %p130 = scmp.eq.s32.totalorder %s35, 1
    %p131 = por %p129, %p130
    %p132 = scmp.ne.s32.totalorder %s121, %s122
    %p133 = scmp.eq.s32.totalorder %s35, 0
    %p134 = por %p132, %p133
    %p135 = scmp.ne.s32.totalorder %s121, %s122
    %p136 = scmp.eq.s32.totalorder %s36, 1
    %p137 = por %p135, %p136
    %p139 = scmp.ne.s32.totalorder %s122, %s138
    %p140 = scmp.eq.s32.totalorder %s36, 0
    %p141 = por %p139, %p140
    %s143 = sadd.s32 %s142, 1
    %p146 = scmp.eq.s32.totalorder %s30, 1
    %p147 = scmp.ne.s32.totalorder %s142, %s144
    %p148 = scmp.eq.s32.totalorder %s30, 0
    %p149 = por %p147, %p148
    %p150 = scmp.ne.s32.totalorder %s142, %s144
    %p151 = scmp.eq.s32.totalorder %s35, 1
    %p152 = por %p150, %p151
    %p153 = scmp.ne.s32.totalorder %s144, %s145
    %p154 = scmp.eq.s32.totalorder %s35, 0
    %p155 = por %p153, %p154
    %p156 = scmp.ne.s32.totalorder %s144, %s145
    %p157 = scmp.eq.s32.totalorder %s36, 1
    %p158 = por %p156, %p157
    %p160 = scmp.ne.s32.totalorder %s145, %s159
    %p161 = scmp.eq.s32.totalorder %s36, 0
    %p162 = por %p160, %p161
    %s164 = sadd.s32 %s163, 1
    %p167 = scmp.eq.s32.totalorder %s30, 1
    %p168 = scmp.ne.s32.totalorder %s163, %s165
    %p169 = scmp.eq.s32.totalorder %s30, 0
    %p170 = por %p168, %p169
    %p171 = scmp.ne.s32.totalorder %s163, %s165
    %p172 = scmp.eq.s32.totalorder %s35, 1
    %p173 = por %p171, %p172
    %p174 = scmp.ne.s32.totalorder %s165, %s166
    %p175 = scmp.eq.s32.totalorder %s35, 0
    %p176 = por %p174, %p175
    %p177 = scmp.ne.s32.totalorder %s165, %s166
    %p178 = scmp.eq.s32.totalorder %s36, 1
    %p179 = por %p177, %p178
    %p181 = scmp.ne.s32.totalorder %s166, %s180
    %p182 = scmp.eq.s32.totalorder %s36, 0
    %p183 = por %p181, %p182
    %s185 = sadd.s32 %s184, 1
    %p188 = scmp.eq.s32.totalorder %s30, 1
    %p189 = scmp.ne.s32.totalorder %s184, %s186
    %p190 = scmp.eq.s32.totalorder %s30, 0
    %p191 = por %p189, %p190
    %p192 = scmp.ne.s32.totalorder %s184, %s186
    %p193 = scmp.eq.s32.totalorder %s35, 1
    %p194 = por %p192, %p193
    %p195 = scmp.ne.s32.totalorder %s186, %s187
    %p196 = scmp.eq.s32.totalorder %s35, 0
    %p197 = por %p195, %p196
    %p198 = scmp.ne.s32.totalorder %s186, %s187
    %p199 = scmp.eq.s32.totalorder %s36, 1
    %p200 = por %p198, %p199
    %p202 = scmp.ne.s32.totalorder %s187, %s201
    %p203 = scmp.eq.s32.totalorder %s36, 0
    %p204 = por %p202, %p203
    %s206 = sadd.s32 %s205, 1
    %p209 = scmp.eq.s32.totalorder %s30, 1
    %p210 = scmp.ne.s32.totalorder %s205, %s207
    %p211 = scmp.eq.s32.totalorder %s30, 0
    %p212 = por %p210, %p211
    %p213 = scmp.ne.s32.totalorder %s205, %s207
    %p214 = scmp.eq.s32.totalorder %s35, 1
    %p215 = por %p213, %p214
    %p216 = scmp.ne.s32.totalorder %s207, %s208
    %p217 = scmp.eq.s32.totalorder %s35, 0
    %p218 = por %p216, %p217
    %p219 = scmp.ne.s32.totalorder %s207, %s208
    %p220 = scmp.eq.s32.totalorder %s36, 1
    %p221 = por %p219, %p220
    %p223 = scmp.ne.s32.totalorder %s208, %s222
    %p224 = scmp.eq.s32.totalorder %s36, 0
    %p225 = por %p223, %p224
    %s227 = sadd.s32 %s226, 1
    %p230 = scmp.eq.s32.totalorder %s30, 1
    %p231 = scmp.ne.s32.totalorder %s226, %s228
    %p232 = scmp.eq.s32.totalorder %s30, 0
    %p233 = por %p231, %p232
    %p234 = scmp.ne.s32.totalorder %s226, %s228
    %p235 = scmp.eq.s32.totalorder %s35, 1
    %p236 = por %p234, %p235
    %p237 = scmp.ne.s32.totalorder %s228, %s229
    %p238 = scmp.eq.s32.totalorder %s35, 0
    %p239 = por %p237, %p238
    %p240 = scmp.ne.s32.totalorder %s228, %s229
    %p241 = scmp.eq.s32.totalorder %s36, 1
    %p242 = por %p240, %p241
    %p244 = scmp.ne.s32.totalorder %s229, %s243
    %p245 = scmp.eq.s32.totalorder %s36, 0
    %p246 = por %p244, %p245
    %s248 = sadd.s32 %s247, 1
    %p251 = scmp.eq.s32.totalorder %s30, 1
    %p252 = scmp.ne.s32.totalorder %s247, %s249
    %p253 = scmp.eq.s32.totalorder %s30, 0
    %p254 = por %p252, %p253
    %p255 = scmp.ne.s32.totalorder %s247, %s249
    %p256 = scmp.eq.s32.totalorder %s35, 1
    %p257 = por %p255, %p256
    %p258 = scmp.ne.s32.totalorder %s249, %s250
    %p259 = scmp.eq.s32.totalorder %s35, 0
    %p260 = por %p258, %p259
    %p261 = scmp.ne.s32.totalorder %s249, %s250
    %p262 = scmp.eq.s32.totalorder %s36, 1
    %p263 = por %p261, %p262
    %p265 = scmp.ne.s32.totalorder %s250, %s264
    %p266 = scmp.eq.s32.totalorder %s36, 0
    %p267 = por %p265, %p266
    %s269 = sadd.s32 %s268, 1
    %p272 = scmp.eq.s32.totalorder %s30, 1
    %p273 = scmp.ne.s32.totalorder %s268, %s270
    %p274 = scmp.eq.s32.totalorder %s30, 0
    %p275 = por %p273, %p274
    %p276 = scmp.ne.s32.totalorder %s268, %s270
    %p277 = scmp.eq.s32.totalorder %s35, 1
    %p278 = por %p276, %p277
    %p279 = scmp.ne.s32.totalorder %s270, %s271
    %p280 = scmp.eq.s32.totalorder %s35, 0
    %p281 = por %p279, %p280
    %p282 = scmp.ne.s32.totalorder %s270, %s271
    %p283 = scmp.eq.s32.totalorder %s36, 1
    %p284 = por %p282, %p283
    %p286 = scmp.ne.s32.totalorder %s271, %s285
    %p287 = scmp.eq.s32.totalorder %s36, 0
    %p288 = por %p286, %p287
    %s290 = sadd.s32 %s289, 1
    %p293 = scmp.eq.s32.totalorder %s30, 1
    %p294 = scmp.ne.s32.totalorder %s289, %s291
    %p295 = scmp.eq.s32.totalorder %s30, 0
    %p296 = por %p294, %p295
    %p297 = scmp.ne.s32.totalorder %s289, %s291
    %p298 = scmp.eq.s32.totalorder %s35, 1
    %p299 = por %p297, %p298
    %p300 = scmp.ne.s32.totalorder %s291, %s292
    %p301 = scmp.eq.s32.totalorder %s35, 0
    %p302 = por %p300, %p301
    %p303 = scmp.ne.s32.totalorder %s291, %s292
    %p304 = scmp.eq.s32.totalorder %s36, 1
    %p305 = por %p303, %p304
    %p307 = scmp.ne.s32.totalorder %s292, %s306
    %p308 = scmp.eq.s32.totalorder %s36, 0
    %p309 = por %p307, %p308
    %s311 = sadd.s32 %s310, 1
    %p314 = scmp.eq.s32.totalorder %s30, 1
    %p315 = scmp.ne.s32.totalorder %s310, %s312
    %p316 = scmp.eq.s32.totalorder %s30, 0
    %p317 = por %p315, %p316
    %p318 = scmp.ne.s32.totalorder %s310, %s312
    %p319 = scmp.eq.s32.totalorder %s35, 1
    %p320 = por %p318, %p319
    %p321 = scmp.ne.s32.totalorder %s312, %s313
    %p322 = scmp.eq.s32.totalorder %s35, 0
    %p323 = por %p321, %p322
    %p324 = scmp.ne.s32.totalorder %s312, %s313
    %p325 = scmp.eq.s32.totalorder %s36, 1
    %p326 = por %p324, %p325
    %p328 = scmp.ne.s32.totalorder %s313, %s327
    %p329 = scmp.eq.s32.totalorder %s36, 0
    %p330 = por %p328, %p329
    %s332 = sadd.s32 %s331, 1
    %p335 = scmp.eq.s32.totalorder %s30, 1
    %p336 = scmp.ne.s32.totalorder %s331, %s333
    %p337 = scmp.eq.s32.totalorder %s30, 0
    %p338 = por %p336, %p337
    %p339 = scmp.ne.s32.totalorder %s331, %s333
    %p340 = scmp.eq.s32.totalorder %s35, 1
    %p341 = por %p339, %p340
    %p342 = scmp.ne.s32.totalorder %s333, %s334
    %p343 = scmp.eq.s32.totalorder %s35, 0
    %p344 = por %p342, %p343
    %p345 = scmp.ne.s32.totalorder %s333, %s334
    %p346 = scmp.eq.s32.totalorder %s36, 1
    %p347 = por %p345, %p346
    %p349 = scmp.ne.s32.totalorder %s334, %s348
    %p350 = scmp.eq.s32.totalorder %s36, 0
    %p351 = por %p349, %p350
    %s353 = sadd.s32 %s352, 1
    %p356 = scmp.eq.s32.totalorder %s30, 1
    %p357 = scmp.ne.s32.totalorder %s352, %s354
    %p358 = scmp.eq.s32.totalorder %s30, 0
    %p359 = por %p357, %p358
    %p360 = scmp.ne.s32.totalorder %s352, %s354
    %p361 = scmp.eq.s32.totalorder %s35, 1
    %p362 = por %p360, %p361
    %p363 = scmp.ne.s32.totalorder %s354, %s355
    %p364 = scmp.eq.s32.totalorder %s35, 0
    %p365 = por %p363, %p364
    %p366 = scmp.ne.s32.totalorder %s354, %s355
    %p367 = scmp.eq.s32.totalorder %s36, 1
    %p368 = por %p366, %p367
    %p370 = scmp.ne.s32.totalorder %s355, %s369
    %p371 = scmp.eq.s32.totalorder %s36, 0
    %p372 = por %p370, %p371
    %s374 = sadd.s32 %s373, 1
    %p377 = scmp.eq.s32.totalorder %s30, 1
    %p378 = scmp.ne.s32.totalorder %s373, %s375
    %p379 = scmp.eq.s32.totalorder %s30, 0
    %p380 = por %p378, %p379
    %p381 = scmp.ne.s32.totalorder %s373, %s375
    %p382 = scmp.eq.s32.totalorder %s35, 1
    %p383 = por %p381, %p382
    %p384 = scmp.ne.s32.totalorder %s375, %s376
    %p385 = scmp.eq.s32.totalorder %s35, 0
    %p386 = por %p384, %p385
    %p387 = scmp.ne.s32.totalorder %s375, %s376
    %p388 = scmp.eq.s32.totalorder %s36, 1
    %p389 = por %p387, %p388
    %p391 = scmp.ne.s32.totalorder %s376, %s390
    %p392 = scmp.eq.s32.totalorder %s36, 0
    %p393 = por %p391, %p392
    %s395 = sadd.s32 %s394, 1
    %p398 = scmp.eq.s32.totalorder %s30, 1
    %p399 = scmp.ne.s32.totalorder %s394, %s396
    %p400 = scmp.eq.s32.totalorder %s30, 0
    %p401 = por %p399, %p400
    %p402 = scmp.ne.s32.totalorder %s394, %s396
    %p403 = scmp.eq.s32.totalorder %s35, 1
    %p404 = por %p402, %p403
    %p405 = scmp.ne.s32.totalorder %s396, %s397
    %p406 = scmp.eq.s32.totalorder %s35, 0
    %p407 = por %p405, %p406
    %p408 = scmp.ne.s32.totalorder %s396, %s397
    %p409 = scmp.eq.s32.totalorder %s36, 1
    %p410 = por %p408, %p409
    %p412 = scmp.ne.s32.totalorder %s397, %s411
    %p413 = scmp.eq.s32.totalorder %s36, 0
    %p414 = por %p412, %p413
    %s416 = sadd.s32 %s415, 1
    %p419 = scmp.eq.s32.totalorder %s30, 1
    %p420 = scmp.ne.s32.totalorder %s415, %s417
    %p421 = scmp.eq.s32.totalorder %s30, 0
    %p422 = por %p420, %p421
    %p423 = scmp.ne.s32.totalorder %s415, %s417
    %p424 = scmp.eq.s32.totalorder %s35, 1
    %p425 = por %p423, %p424
    %p426 = scmp.ne.s32.totalorder %s417, %s418
    %p427 = scmp.eq.s32.totalorder %s35, 0
    %p428 = por %p426, %p427
    %p429 = scmp.ne.s32.totalorder %s417, %s418
    %p430 = scmp.eq.s32.totalorder %s36, 1
    %p431 = por %p429, %p430
    %p433 = scmp.ne.s32.totalorder %s418, %s432
    %p434 = scmp.eq.s32.totalorder %s36, 0
    %p435 = por %p433, %p434
    %s437 = sadd.s32 %s436, 1
    %p440 = scmp.eq.s32.totalorder %s30, 1
    %p441 = scmp.ne.s32.totalorder %s436, %s438
    %p442 = scmp.eq.s32.totalorder %s30, 0
    %p443 = por %p441, %p442
    %p444 = scmp.ne.s32.totalorder %s436, %s438
    %p445 = scmp.eq.s32.totalorder %s35, 1
    %p446 = por %p444, %p445
    %p447 = scmp.ne.s32.totalorder %s438, %s439
    %p448 = scmp.eq.s32.totalorder %s35, 0
    %p449 = por %p447, %p448
    %p450 = scmp.ne.s32.totalorder %s438, %s439
    %p451 = scmp.eq.s32.totalorder %s36, 1
    %p452 = por %p450, %p451
    %p454 = scmp.ne.s32.totalorder %s439, %s453
    %p455 = scmp.eq.s32.totalorder %s36, 0
    %p456 = por %p454, %p455
    %s458 = sadd.s32 %s457, 1
    %p461 = scmp.eq.s32.totalorder %s30, 1
    %p462 = scmp.ne.s32.totalorder %s457, %s459
    %p463 = scmp.eq.s32.totalorder %s30, 0
    %p464 = por %p462, %p463
    %p465 = scmp.ne.s32.totalorder %s457, %s459
    %p466 = scmp.eq.s32.totalorder %s35, 1
    %p467 = por %p465, %p466
    %p468 = scmp.ne.s32.totalorder %s459, %s460
    %p469 = scmp.eq.s32.totalorder %s35, 0
    %p470 = por %p468, %p469
    %p471 = scmp.ne.s32.totalorder %s459, %s460
    %p472 = scmp.eq.s32.totalorder %s36, 1
    %p473 = por %p471, %p472
    %p475 = scmp.ne.s32.totalorder %s460, %s474
    %p476 = scmp.eq.s32.totalorder %s36, 0
    %p477 = por %p475, %p476
    %s479 = sadd.s32 %s478, 1
    %p482 = scmp.eq.s32.totalorder %s30, 1
    %p483 = scmp.ne.s32.totalorder %s478, %s480
    %p484 = scmp.eq.s32.totalorder %s30, 0
    %p485 = por %p483, %p484
    %p486 = scmp.ne.s32.totalorder %s478, %s480
    %p487 = scmp.eq.s32.totalorder %s35, 1
    %p488 = por %p486, %p487
    %p489 = scmp.ne.s32.totalorder %s480, %s481
    %p490 = scmp.eq.s32.totalorder %s35, 0
    %p491 = por %p489, %p490
    %p492 = scmp.ne.s32.totalorder %s480, %s481
    %p493 = scmp.eq.s32.totalorder %s36, 1
    %p494 = por %p492, %p493
    %p496 = scmp.ne.s32.totalorder %s481, %s495
    %p497 = scmp.eq.s32.totalorder %s36, 0
    %p498 = por %p496, %p497
    %s500 = sadd.s32 %s499, 1
    %p503 = scmp.eq.s32.totalorder %s30, 1
    %p504 = scmp.ne.s32.totalorder %s499, %s501
    %p505 = scmp.eq.s32.totalorder %s30, 0
    %p506 = por %p504, %p505
    %p507 = scmp.ne.s32.totalorder %s499, %s501
    %p508 = scmp.eq.s32.totalorder %s35, 1
    %p509 = por %p507, %p508
    %p510 = scmp.ne.s32.totalorder %s501, %s502
    %p511 = scmp.eq.s32.totalorder %s35, 0
    %p512 = por %p510, %p511
    %p513 = scmp.ne.s32.totalorder %s501, %s502
    %p514 = scmp.eq.s32.totalorder %s36, 1
    %p515 = por %p513, %p514
    %p517 = scmp.ne.s32.totalorder %s502, %s516
    %p518 = scmp.eq.s32.totalorder %s36, 0
    %p519 = por %p517, %p518
    %s521 = sadd.s32 %s520, 1
    %p524 = scmp.eq.s32.totalorder %s30, 1
    %p525 = scmp.ne.s32.totalorder %s520, %s522
    %p526 = scmp.eq.s32.totalorder %s30, 0
    %p527 = por %p525, %p526
    %p528 = scmp.ne.s32.totalorder %s520, %s522
    %p529 = scmp.eq.s32.totalorder %s35, 1
    %p530 = por %p528, %p529
    %p531 = scmp.ne.s32.totalorder %s522, %s523
    %p532 = scmp.eq.s32.totalorder %s35, 0
    %p533 = por %p531, %p532
    %p534 = scmp.ne.s32.totalorder %s522, %s523
    %p535 = scmp.eq.s32.totalorder %s36, 1
    %p536 = por %p534, %p535
    %p538 = scmp.ne.s32.totalorder %s523, %s537
    %p539 = scmp.eq.s32.totalorder %s36, 0
    %p540 = por %p538, %p539
    %s542 = sadd.s32 %s541, 1
    %p545 = scmp.eq.s32.totalorder %s30, 1
    %p546 = scmp.ne.s32.totalorder %s541, %s543
    %p547 = scmp.eq.s32.totalorder %s30, 0
    %p548 = por %p546, %p547
    %p549 = scmp.ne.s32.totalorder %s541, %s543
    %p550 = scmp.eq.s32.totalorder %s35, 1
    %p551 = por %p549, %p550
    %p552 = scmp.ne.s32.totalorder %s543, %s544
    %p553 = scmp.eq.s32.totalorder %s35, 0
    %p554 = por %p552, %p553
    %p555 = scmp.ne.s32.totalorder %s543, %s544
    %p556 = scmp.eq.s32.totalorder %s36, 1
    %p557 = por %p555, %p556
    %p559 = scmp.ne.s32.totalorder %s544, %s558
    %p560 = scmp.eq.s32.totalorder %s36, 0
    %p561 = por %p559, %p560
    %s562 = ssub.s32 %s30, %s37
    %p563 = scmp.eq.s32.totalorder %s562, 0
    %s565 = sadd.s32 %s564, 1
    %s566 = scalar_select %p563, %s564, %s565
    %p569 = pneg %p563
    %p570 = scmp.eq.s32.totalorder %s30, 1
    %p571 = por %p569, %p570
    %p572 = scmp.ne.s32.totalorder %s564, %s567
    %p573 = scmp.eq.s32.totalorder %s30, 0
    %p574 = por %p572, %p573
    %p575 = scmp.ne.s32.totalorder %s564, %s567
    %p576 = scmp.eq.s32.totalorder %s35, 1
    %p577 = por %p575, %p576
    %p578 = scmp.ne.s32.totalorder %s567, %s568
    %p579 = scmp.eq.s32.totalorder %s35, 0
    %p580 = por %p578, %p579
    %p581 = scmp.ne.s32.totalorder %s567, %s568
    %p582 = scmp.eq.s32.totalorder %s36, 1
    %p583 = por %p581, %p582
    %p585 = scmp.ne.s32.totalorder %s568, %s584
    %p586 = scmp.eq.s32.totalorder %s36, 0
    %p587 = por %p585, %p586
    %p588 = scmp.le.s32.totalorder 1, %s30
    %p589 = scmp.lt.s32.totalorder %s30, 3
    %p590 = pnand %p588, %p589
    %p591 = pneg %p590
    // Predicated region
    $region9: #{transformer_forward.9} parent=5 // pred_check
      _
    $region10: #{transformer_forward.9} parent=5 // pred_check_branch
      %593 = sbr.rel (%p590) target = $region12
    $region11: #{transformer_forward.9} parent=5 // pred_region
      %s594 = ssub.s32 %s30, 1
      // Predicated region
      $region13: #{transformer_forward.9} parent=11 // pred_check
        %p595 = pneg %p155
      $region14: #{transformer_forward.9} parent=11 // pred_check_branch
        %597 = sbr.rel (%p595) target = $region16
      $region15: #{transformer_forward.9} parent=11 // pred_region
        _
      $region16: #{transformer_forward.9} parent=11 // pred_fallthru
        _
      // Predicated region
      $region17: #{transformer_forward.9} parent=11 // pred_check
        %p598 = pneg %p176
      $region18: #{transformer_forward.9} parent=11 // pred_check_branch
        %600 = sbr.rel (%p598) target = $region20
      $region19: #{transformer_forward.9} parent=11 // pred_region
        _
      $region20: #{transformer_forward.9} parent=11 // pred_fallthru
        _
      // Predicated region
      $region21: #{transformer_forward.9} parent=11 // pred_check
        %p601 = pneg %p197
      $region22: #{transformer_forward.9} parent=11 // pred_check_branch
        %603 = sbr.rel (%p601) target = $region24
      $region23: #{transformer_forward.9} parent=11 // pred_region
        _
      $region24: #{transformer_forward.9} parent=11 // pred_fallthru
        _
      // Predicated region
      $region25: #{transformer_forward.9} parent=11 // pred_check
        %p604 = pneg %p218
      $region26: #{transformer_forward.9} parent=11 // pred_check_branch
        %606 = sbr.rel (%p604) target = $region28
      $region27: #{transformer_forward.9} parent=11 // pred_region
        _
      $region28: #{transformer_forward.9} parent=11 // pred_fallthru
        _
      // Predicated region
      $region29: #{transformer_forward.9} parent=11 // pred_check
        %p607 = pneg %p239
      $region30: #{transformer_forward.9} parent=11 // pred_check_branch
        %609 = sbr.rel (%p607) target = $region32
      $region31: #{transformer_forward.9} parent=11 // pred_region
        _
      $region32: #{transformer_forward.9} parent=11 // pred_fallthru
        _
      // Predicated region
      $region33: #{transformer_forward.9} parent=11 // pred_check
        %p610 = pneg %p260
      $region34: #{transformer_forward.9} parent=11 // pred_check_branch
        %612 = sbr.rel (%p610) target = $region36
      $region35: #{transformer_forward.9} parent=11 // pred_region
        _
      $region36: #{transformer_forward.9} parent=11 // pred_fallthru
        _
      // Predicated region
      $region37: #{transformer_forward.9} parent=11 // pred_check
        %p613 = pneg %p281
      $region38: #{transformer_forward.9} parent=11 // pred_check_branch
        %615 = sbr.rel (%p613) target = $region40
      $region39: #{transformer_forward.9} parent=11 // pred_region
        _
      $region40: #{transformer_forward.9} parent=11 // pred_fallthru
        _
      // Predicated region
      $region41: #{transformer_forward.9} parent=11 // pred_check
        %p616 = pneg %p302
      $region42: #{transformer_forward.9} parent=11 // pred_check_branch
        %618 = sbr.rel (%p616) target = $region44
      $region43: #{transformer_forward.9} parent=11 // pred_region
        _
      $region44: #{transformer_forward.9} parent=11 // pred_fallthru
        _
      // Predicated region
      $region45: #{transformer_forward.9} parent=11 // pred_check
        %p619 = pneg %p323
      $region46: #{transformer_forward.9} parent=11 // pred_check_branch
        %621 = sbr.rel (%p619) target = $region48
      $region47: #{transformer_forward.9} parent=11 // pred_region
        _
      $region48: #{transformer_forward.9} parent=11 // pred_fallthru
        _
      // Predicated region
      $region49: #{transformer_forward.9} parent=11 // pred_check
        %p622 = pneg %p344
      $region50: #{transformer_forward.9} parent=11 // pred_check_branch
        %624 = sbr.rel (%p622) target = $region52
      $region51: #{transformer_forward.9} parent=11 // pred_region
        _
      $region52: #{transformer_forward.9} parent=11 // pred_fallthru
        _
      // Predicated region
      $region53: #{transformer_forward.9} parent=11 // pred_check
        %p625 = pneg %p365
      $region54: #{transformer_forward.9} parent=11 // pred_check_branch
        %627 = sbr.rel (%p625) target = $region56
      $region55: #{transformer_forward.9} parent=11 // pred_region
        _
      $region56: #{transformer_forward.9} parent=11 // pred_fallthru
        _
      // Predicated region
      $region57: #{transformer_forward.9} parent=11 // pred_check
        %p628 = pneg %p386
      $region58: #{transformer_forward.9} parent=11 // pred_check_branch
        %630 = sbr.rel (%p628) target = $region60
      $region59: #{transformer_forward.9} parent=11 // pred_region
        _
      $region60: #{transformer_forward.9} parent=11 // pred_fallthru
        _
      // Predicated region
      $region61: #{transformer_forward.9} parent=11 // pred_check
        %p631 = pneg %p407
      $region62: #{transformer_forward.9} parent=11 // pred_check_branch
        %633 = sbr.rel (%p631) target = $region64
      $region63: #{transformer_forward.9} parent=11 // pred_region
        _
      $region64: #{transformer_forward.9} parent=11 // pred_fallthru
        _
      // Predicated region
      $region65: #{transformer_forward.9} parent=11 // pred_check
        %p634 = pneg %p428
      $region66: #{transformer_forward.9} parent=11 // pred_check_branch
        %636 = sbr.rel (%p634) target = $region68
      $region67: #{transformer_forward.9} parent=11 // pred_region
        _
      $region68: #{transformer_forward.9} parent=11 // pred_fallthru
        _
      // Predicated region
      $region69: #{transformer_forward.9} parent=11 // pred_check
        %p637 = pneg %p449
      $region70: #{transformer_forward.9} parent=11 // pred_check_branch
        %639 = sbr.rel (%p637) target = $region72
      $region71: #{transformer_forward.9} parent=11 // pred_region
        _
      $region72: #{transformer_forward.9} parent=11 // pred_fallthru
        _
      // Predicated region
      $region73: #{transformer_forward.9} parent=11 // pred_check
        %p640 = pneg %p470
      $region74: #{transformer_forward.9} parent=11 // pred_check_branch
        %642 = sbr.rel (%p640) target = $region76
      $region75: #{transformer_forward.9} parent=11 // pred_region
        _
      $region76: #{transformer_forward.9} parent=11 // pred_fallthru
        _
      // Predicated region
      $region77: #{transformer_forward.9} parent=11 // pred_check
        %p643 = pneg %p491
      $region78: #{transformer_forward.9} parent=11 // pred_check_branch
        %645 = sbr.rel (%p643) target = $region80
      $region79: #{transformer_forward.9} parent=11 // pred_region
        _
      $region80: #{transformer_forward.9} parent=11 // pred_fallthru
        _
      // Predicated region
      $region81: #{transformer_forward.9} parent=11 // pred_check
        %p646 = pneg %p512
      $region82: #{transformer_forward.9} parent=11 // pred_check_branch
        %648 = sbr.rel (%p646) target = $region84
      $region83: #{transformer_forward.9} parent=11 // pred_region
        _
      $region84: #{transformer_forward.9} parent=11 // pred_fallthru
        _
      // Predicated region
      $region85: #{transformer_forward.9} parent=11 // pred_check
        %p649 = pneg %p533
      $region86: #{transformer_forward.9} parent=11 // pred_check_branch
        %651 = sbr.rel (%p649) target = $region88
      $region87: #{transformer_forward.9} parent=11 // pred_region
        _
      $region88: #{transformer_forward.9} parent=11 // pred_fallthru
        _
      // Predicated region
      $region89: #{transformer_forward.9} parent=11 // pred_check
        %p652 = pneg %p554
      $region90: #{transformer_forward.9} parent=11 // pred_check_branch
        %654 = sbr.rel (%p652) target = $region92
      $region91: #{transformer_forward.9} parent=11 // pred_region
        _
      $region92: #{transformer_forward.9} parent=11 // pred_fallthru
        _
    $region12: #{transformer_forward.9} parent=5 // pred_fallthru
      _
    %p655 = scmp.lt.s32.totalorder %s30, 2
    // Predicated region
    $region93: #{transformer_forward.9} parent=5 // pred_check
      %p656 = pneg %p655
    $region94: #{transformer_forward.9} parent=5 // pred_check_branch
      %658 = sbr.rel (%p656) target = $region96
    $region95: #{transformer_forward.9} parent=5 // pred_region
      // Predicated region
      $region97: #{transformer_forward.9} parent=95 // pred_check
        %p659 = pneg %p50
      $region98: #{transformer_forward.9} parent=95 // pred_check_branch
        %661 = sbr.rel (%p659) target = $region100
      $region99: #{transformer_forward.9} parent=95 // pred_region
        %p662 = scmp.lt.s32.totalorder %s30, 1
        %s663 = scalar_select %p662, %s30, 1
        %s664 = smul.addr %s663, 8
        %s665 = scalar_lea.vmem %s0, %s664
      $region100: #{transformer_forward.9} parent=95 // pred_fallthru
        _
      // Predicated region
      $region101: #{transformer_forward.9} parent=95 // pred_check
        %p666 = pneg %p76
      $region102: #{transformer_forward.9} parent=95 // pred_check_branch
        %668 = sbr.rel (%p666) target = $region104
      $region103: #{transformer_forward.9} parent=95 // pred_region
        %p669 = scmp.lt.s32.totalorder %s30, 1
        %s670 = scalar_select %p669, %s30, 1
        %s671 = smul.addr %s670, 8
        %s672 = scalar_lea.vmem %s1, %s671
      $region104: #{transformer_forward.9} parent=95 // pred_fallthru
        _
      // Predicated region
      $region105: #{transformer_forward.9} parent=95 // pred_check
        %p673 = pneg %p102
      $region106: #{transformer_forward.9} parent=95 // pred_check_branch
        %675 = sbr.rel (%p673) target = $region108
      $region107: #{transformer_forward.9} parent=95 // pred_region
        %p676 = scmp.lt.s32.totalorder %s30, 1
        %s677 = scalar_select %p676, %s30, 1
        %s678 = smul.addr %s677, 8
        %s679 = scalar_lea.vmem %s2, %s678
      $region108: #{transformer_forward.9} parent=95 // pred_fallthru
        _
      // Predicated region
      $region109: #{transformer_forward.9} parent=95 // pred_check
        %p680 = pneg %p128
      $region110: #{transformer_forward.9} parent=95 // pred_check_branch
        %682 = sbr.rel (%p680) target = $region112
      $region111: #{transformer_forward.9} parent=95 // pred_region
        %p683 = scmp.lt.s32.totalorder %s30, 1
        %s684 = scalar_select %p683, %s30, 1
        %s685 = smul.addr %s684, 8
        %s686 = scalar_lea.vmem %s3, %s685
      $region112: #{transformer_forward.9} parent=95 // pred_fallthru
        _
    $region96: #{transformer_forward.9} parent=5 // pred_fallthru
      _
    %p687 = scmp.le.s32.totalorder 1, %s30
    %p688 = scmp.lt.s32.totalorder %s30, 3
    %p689 = pnand %p687, %p688
    %p690 = pneg %p689
    // Predicated region
    $region113: #{transformer_forward.9} parent=5 // pred_check
      _
    $region114: #{transformer_forward.9} parent=5 // pred_check_branch
      %692 = sbr.rel (%p689) target = $region116
    $region115: #{transformer_forward.9} parent=5 // pred_region
      %s693 = ssub.s32 %s30, 1
      %p694 = scmp.lt.s32.totalorder %s35, 1
      %s695 = scalar_select %p694, %s35, 1
      %s696 = smul.addr %s695, 8
      %s697 = scalar_lea.vmem %s0, %s696
      %p698 = pneg %p56
      %p699 = pneg %p53
      %p700 = scmp.lt.s32.totalorder %s35, 1
      %s701 = scalar_select %p700, %s35, 1
      %s702 = smul.addr %s701, 8
      %s703 = scalar_lea.vmem %s1, %s702
      %p704 = pneg %p82
      %p705 = pneg %p79
      %p706 = scmp.lt.s32.totalorder %s35, 1
      %s707 = scalar_select %p706, %s35, 1
      %s708 = smul.addr %s707, 8
      %s709 = scalar_lea.vmem %s2, %s708
      %p710 = pneg %p108
      %p711 = pneg %p105
      %p712 = scmp.lt.s32.totalorder %s35, 1
      %s713 = scalar_select %p712, %s35, 1
      %s714 = smul.addr %s713, 8
      %s715 = scalar_lea.vmem %s3, %s714
      %p716 = pneg %p134
      %p717 = pneg %p131
      %p718 = pneg %p155
      %p719 = pneg %p152
      %p720 = pneg %p176
      %p721 = pneg %p173
      %p722 = pneg %p197
      %p723 = pneg %p194
      %p724 = pneg %p218
      %p725 = pneg %p215
      %p726 = pneg %p239
      %p727 = pneg %p236
      %p728 = pneg %p260
      %p729 = pneg %p257
      %p730 = pneg %p281
      %p731 = pneg %p278
      %p732 = pneg %p302
      %p733 = pneg %p299
      %p734 = pneg %p323
      %p735 = pneg %p320
      %p736 = pneg %p344
      %p737 = pneg %p341
      %p738 = pneg %p365
      %p739 = pneg %p362
      %p740 = pneg %p386
      %p741 = pneg %p383
      %p742 = pneg %p407
      %p743 = pneg %p404
      %p744 = pneg %p428
      %p745 = pneg %p425
      %p746 = pneg %p449
      %p747 = pneg %p446
      %p748 = pneg %p470
      %p749 = pneg %p467
      %p750 = pneg %p491
      %p751 = pneg %p488
      %p752 = pneg %p512
      %p753 = pneg %p509
      %p754 = pneg %p533
      %p755 = pneg %p530
      %p756 = pneg %p554
      %p757 = pneg %p551
      %p758 = pneg %p580
      %p759 = pneg %p577
      %p760 = scmp.lt.s32.totalorder %s35, 1
      %s761 = scalar_select %p760, %s35, 1
      %s762 = smul.addr %s761, 8
      %s763 = scalar_lea.vmem %s24, %s762
      %p764 = scmp.lt.s32.totalorder %s35, 1
      %s765 = scalar_select %p764, %s35, 1
      %s766 = smul.addr %s765, 8
      %s767 = scalar_lea.vmem %s0, %s766
      %p768 = scmp.lt.s32.totalorder %s35, 1
      %s769 = scalar_select %p768, %s35, 1
      %s770 = smul.addr %s769, 8
      %s771 = scalar_lea.vmem %s1, %s770
      %p772 = scmp.lt.s32.totalorder %s35, 1
      %s773 = scalar_select %p772, %s35, 1
      %s774 = smul.addr %s773, 8
      %s775 = scalar_lea.vmem %s2, %s774
      %p776 = scmp.lt.s32.totalorder %s35, 1
      %s777 = scalar_select %p776, %s35, 1
      %s778 = smul.addr %s777, 8
      %s779 = scalar_lea.vmem %s3, %s778
      %p780 = scmp.lt.s32.totalorder %s35, 1
      %s781 = scalar_select %p780, %s35, 1
      %s782 = smul.addr %s781, 8
      %s783 = scalar_lea.vmem %s24, %s782
      %v784 = vld [vmem:[%s767] sm:$0xff]
      %v785 = vld [vmem:[%s771] sm:$0xff]
      %v786 = vld [vmem:[%s775] sm:$0xff]
      %v787 = vld [vmem:[%s779] sm:$0xff]
      %v788 = vld [vmem:[%s4] sm:$0x1]
      %v789 = vld [vmem:[%s5] sm:$0x1]
      %vm790 = vcmask 261120
      %v791 = vsel %vm790, %v784, 0.0
      %792 = vadd.xlane.f32.xlu0 %v791
      %v793 = vpop.xlane.xlu0 %792
      %v794 = vrcp.pop 32.0
      %v795 = vmul.f32 %v793, %v794
      %v796 = vsub.f32 %v784, %v795
      %v797 = vmul.f32 %v796, %v796
      %v798 = vsel %vm790, %v797, 0.0
      %799 = vadd.xlane.f32.xlu0 %v798
      %v800 = vpop.xlane.xlu0 %799
      %v801 = vmul.f32 %v800, 0.032258064
      %v802 = vrsqrt.pop %v801
      %v803 = vmul.f32 %v801, %v802
      %vm804 = vcmp.eq.f32.partialorder %v801, inf
      %v805 = vsel %vm804, %v801, %v803
      %vm806 = vcmp.eq.f32.partialorder %v801, 0.0
      %v807 = vand.u32 %v801, 2147483648
      %v808 = vsel %vm806, %v807, %v805
      %v809 = vadd.f32 %v808, 1e-06
      %v810 = vrcp.pop %v809
      %v811 = vmul.f32 %v796, %v810
      %v813 = vlaneseq
      %v814 = vshrl.u32 %v813, 7
      %v815 = vsub.s32 0, %v814
      %v816 = vrot.slane %v788, %v815
      %v818 = vmul.f32 %v816, %v811
      %v820 = vlaneseq
      %v821 = vshrl.u32 %v820, 7
      %v822 = vsub.s32 0, %v821
      %v823 = vrot.slane %v789, %v822
      %v825 = vadd.f32 %v818, %v823
      %v826 = vld [vmem:[%s6] sm:$0xff]
      %v827 = vld [vmem:[%s6 + $0x8] sm:$0xff]
      %v828 = vld [vmem:[%s6 + $0x10] sm:$0xff]
      %v829 = vld [vmem:[%s6 + $0x18] sm:$0xff]
      %v830 = vld [vmem:[%s6 + $0x20] sm:$0xff]
      %v831 = vld [vmem:[%s6 + $0x28] sm:$0xff]
      %v832 = vld [vmem:[%s6 + $0x30] sm:$0xff]
      %v833 = vld [vmem:[%s6 + $0x38] sm:$0xff]
      %v834 = vld [vmem:[%s6 + $0x40] sm:$0xff]
      %v835 = vld [vmem:[%s6 + $0x48] sm:$0xff]
      %v836 = vld [vmem:[%s6 + $0x50] sm:$0xff]
      %v837 = vld [vmem:[%s6 + $0x58] sm:$0xff]
      %v838 = vld [vmem:[%s7] sm:$0x1]
      %v840 = vlaneseq
      %v841 = vshrl.u32 %v840, 7
      %v842 = vsub.s32 0, %v841
      %v843 = vrot.slane %v838, %v842
      %v846 = vsel %vm790, %v825, 0
      %v849 = vsel %vm790, %v826, 0
      %v852 = vsel %vm790, %v827, 0
      %v855 = vsel %vm790, %v828, 0
      %v858 = vsel %vm790, %v829, 0
      %v861 = vsel %vm790, %v830, 0
      %v864 = vsel %vm790, %v831, 0
      %v867 = vsel %vm790, %v832, 0
      %v870 = vsel %vm790, %v833, 0
      %v873 = vsel %vm790, %v834, 0
      %v876 = vsel %vm790, %v835, 0
      %v879 = vsel %vm790, %v836, 0
      %v882 = vsel %vm790, %v837, 0
      %884 = vmatprep.subr.mxu0 0.0
      %885 = vmatpush1.xpose.msra.mxu0 %v849
      %886 = vmatprep.subr.mxu0 0.0
      %887 = vmatpush1.xpose.msra.mxu0 %v852
      %888 = vmatprep.subr.mxu0 0.0
      %889 = vmatpush1.xpose.msra.mxu0 %v855
      %890 = vmatprep.subr.mxu0 0.0
      %891 = vmatpush1.xpose.msra.mxu0 %v858
      %892 = vmatprep.subr.mxu0 0.0
      %893 = vmatpush1.xpose.msra.mxu0 %v861
      %894 = vmatprep.subr.mxu0 0.0
      %895 = vmatpush1.xpose.msra.mxu0 %v864
      %896 = vmatprep.subr.mxu0 0.0
      %897 = vmatpush1.xpose.msra.mxu0 %v867
      %898 = vmatprep.subr.mxu0 0.0
      %899 = vmatpush1.xpose.msra.mxu0 %v870
      %900 = vmatprep.subr.mxu0 0.0
      %901 = vmatpush1.xpose.msra.mxu0 %v873
      %902 = vmatprep.subr.mxu0 0.0
      %903 = vmatpush1.xpose.msra.mxu0 %v876
      %904 = vmatprep.subr.mxu0 0.0
      %905 = vmatpush1.xpose.msra.mxu0 %v879
      %906 = vmatprep.subr.mxu0 0.0
      %907 = vmatpush1.xpose.msra.mxu0 %v882
      %908 = vmatprep.subr.mxu0 0.0
      %909 = vmatpush1.xpose.msra.mxu0 0.0
      %910 = vmatprep.subr.mxu0 0.0
      %911 = vmatpush1.xpose.msra.mxu0 0.0
      %912 = vmatprep.subr.mxu0 0.0
      %913 = vmatpush1.xpose.msra.mxu0 0.0
      %914 = vmatprep.subr.mxu0 0.0
      %915 = vmatpush1.xpose.msra.mxu0 0.0
      %916 = vmatprep.subr.mxu0 0.0
      %917 = vmatpush1.xpose.msra.mxu0 0.0
      %918 = vmatprep.subr.mxu0 0.0
      %919 = vmatpush1.xpose.msra.mxu0 0.0
      %920 = vmatprep.subr.mxu0 0.0
      %921 = vmatpush1.xpose.msra.mxu0 0.0
      %922 = vmatprep.subr.mxu0 0.0
      %923 = vmatpush1.xpose.msra.mxu0 0.0
      %924 = vmatprep.subr.mxu0 0.0
      %925 = vmatpush1.xpose.msra.mxu0 0.0
      %926 = vmatprep.subr.mxu0 0.0
      %927 = vmatpush1.xpose.msra.mxu0 0.0
      %928 = vmatprep.subr.mxu0 0.0
      %929 = vmatpush1.xpose.msra.mxu0 0.0
      %930 = vmatprep.subr.mxu0 0.0
      %931 = vmatpush1.xpose.msra.mxu0 0.0
      %932 = vmatprep.subr.mxu0 0.0
      %933 = vmatpush1.xpose.msra.mxu0 0.0
      %934 = vmatprep.subr.mxu0 0.0
      %935 = vmatpush1.xpose.msra.mxu0 0.0
      %936 = vmatprep.subr.mxu0 0.0
      %937 = vmatpush1.xpose.msra.mxu0 0.0
      %938 = vmatprep.subr.mxu0 0.0
      %939 = vmatpush1.xpose.msra.mxu0 0.0
      %940 = vmatprep.subr.mxu0 0.0
      %941 = vmatpush1.xpose.msra.mxu0 0.0
      %942 = vmatprep.subr.mxu0 0.0
      %943 = vmatpush1.xpose.msra.mxu0 0.0
      %944 = vmatprep.subr.mxu0 0.0
      %945 = vmatpush1.xpose.msra.mxu0 0.0
      %946 = vmatprep.subr.mxu0 0.0
      %947 = vmatpush1.xpose.msra.mxu0 0.0
      %948 = vmatprep.mubr.f32.mxu0 0.0
      %949 = vmatmul.mubr.f32.gmra.mrb[0].mxu0 %v846
      %v950 = vpop.f32.mrb[0].mxu0
      %v951 = vadd.f32 %v843, %v950
      %v952 = vpop.f32.mrb[0].mxu0
      %953 = vdwg.mxu0
      %v954 = vld [vmem:[%s8] sm:$0xff]
      %v955 = vld [vmem:[%s8 + $0x8] sm:$0xff]
      %v956 = vld [vmem:[%s8 + $0x10] sm:$0xff]
      %v957 = vld [vmem:[%s8 + $0x18] sm:$0xff]
      %v958 = vld [vmem:[%s9] sm:$0x1]
      %960 = vrot.lane.b32.xlu0 %v951, 96
      %v961 = vpop.permute.xlu0 %960
      %vm962 = vcmask 64512
      %v963 = vsel %vm962, %v951, 0
      %v965 = vsel %vm962, %v961, 0
      %967 = vmatprep.subr.mxu0 0.0
      %968 = vmatpush1.xpose.msra.mxu0 %v965
      %969 = vmatprep.subr.mxu0 0.0
      %970 = vmatpush1.xpose.msra.mxu0 0.0
      %971 = vmatprep.subr.mxu0 0.0
      %972 = vmatpush1.xpose.msra.mxu0 0.0
      %973 = vmatprep.subr.mxu0 0.0
      %974 = vmatpush1.xpose.msra.mxu0 0.0
      %975 = vmatprep.subr.mxu0 0.0
      %976 = vmatpush1.xpose.msra.mxu0 0.0
      %977 = vmatprep.subr.mxu0 0.0
      %978 = vmatpush1.xpose.msra.mxu0 0.0
      %979 = vmatprep.subr.mxu0 0.0
      %980 = vmatpush1.xpose.msra.mxu0 0.0
      %981 = vmatprep.subr.mxu0 0.0
      %982 = vmatpush1.xpose.msra.mxu0 0.0
      %983 = vmatprep.subr.mxu0 0.0
      %984 = vmatpush1.xpose.msra.mxu0 0.0
      %985 = vmatprep.subr.mxu0 0.0
      %986 = vmatpush1.xpose.msra.mxu0 0.0
      %987 = vmatprep.subr.mxu0 0.0
      %988 = vmatpush1.xpose.msra.mxu0 0.0
      %989 = vmatprep.subr.mxu0 0.0
      %990 = vmatpush1.xpose.msra.mxu0 0.0
      %991 = vmatprep.subr.mxu0 0.0
      %992 = vmatpush1.xpose.msra.mxu0 0.0
      %993 = vmatprep.subr.mxu0 0.0
      %994 = vmatpush1.xpose.msra.mxu0 0.0
      %995 = vmatprep.subr.mxu0 0.0
      %996 = vmatpush1.xpose.msra.mxu0 0.0
      %997 = vmatprep.subr.mxu0 0.0
      %998 = vmatpush1.xpose.msra.mxu0 0.0
      %999 = vmatprep.subr.mxu0 0.0
      %1000 = vmatpush1.xpose.msra.mxu0 0.0
      %1001 = vmatprep.subr.mxu0 0.0
      %1002 = vmatpush1.xpose.msra.mxu0 0.0
      %1003 = vmatprep.subr.mxu0 0.0
      %1004 = vmatpush1.xpose.msra.mxu0 0.0
      %1005 = vmatprep.subr.mxu0 0.0
      %1006 = vmatpush1.xpose.msra.mxu0 0.0
      %1007 = vmatprep.subr.mxu0 0.0
      %1008 = vmatpush1.xpose.msra.mxu0 0.0
      %1009 = vmatprep.subr.mxu0 0.0
      %1010 = vmatpush1.xpose.msra.mxu0 0.0
      %1011 = vmatprep.subr.mxu0 0.0
      %1012 = vmatpush1.xpose.msra.mxu0 0.0
      %1013 = vmatprep.subr.mxu0 0.0
      %1014 = vmatpush1.xpose.msra.mxu0 0.0
      %1015 = vmatprep.subr.mxu0 0.0
      %1016 = vmatpush1.xpose.msra.mxu0 0.0
      %1017 = vmatprep.subr.mxu0 0.0
      %1018 = vmatpush1.xpose.msra.mxu0 0.0
      %1019 = vmatprep.subr.mxu0 0.0
      %1020 = vmatpush1.xpose.msra.mxu0 0.0
      %1021 = vmatprep.subr.mxu0 0.0
      %1022 = vmatpush1.xpose.msra.mxu0 0.0
      %1023 = vmatprep.subr.mxu0 0.0
      %1024 = vmatpush1.xpose.msra.mxu0 0.0
      %1025 = vmatprep.subr.mxu0 0.0
      %1026 = vmatpush1.xpose.msra.mxu0 0.0
      %1027 = vmatprep.subr.mxu0 0.0
      %1028 = vmatpush1.xpose.msra.mxu0 0.0
      %1029 = vmatprep.subr.mxu0 0.0
      %1030 = vmatpush1.xpose.msra.mxu0 0.0
      %1031 = vmatprep.mubr.f32.mxu0 0.0
      %1032 = vmatmul.mubr.f32.gmra.mrb[0].mxu0 %v963
      %v1033 = vpop.f32.mrb[0].mxu0
      %v1034 = vadd.f32 0.0, %v1033
      %v1035 = vpop.f32.mrb[0].mxu0
      %1036 = vdwg.mxu0
      %v1037 = vmul.f32 %v1034, 0.35355338
      %v1038 = vadd.f32 %v1037, %v786
      %v1039 = vsel %vm962, %v1038, -inf
      %1040 = vmax.xlane.f32.xlu0 %v1039
      %v1041 = vpop.xlane.xlu0 %1040
      %v1042 = vsub.f32 %v1038, %v1041
      %v1043 = vmul.f32 %v1042, 1.442695
      %v1044 = vpow.pop %v1043
      %v1045 = vsel %vm962, %v1044, 0.0
      %1046 = vadd.xlane.f32.xlu0 %v1045
      %v1047 = vpop.xlane.xlu0 %1046
      %v1048 = vrcp.pop %v1047
      %v1049 = vmul.f32 %v1044, %v1048
      %1050 = vrot.lane.b32.xlu0 %v951, 64
      %v1051 = vpop.permute.xlu0 %1050
      %v1054 = vsel %vm962, %v1049, 0
      %1056 = vmatprep.subr.mxu0 0.0
      %1057 = vmatpush1.msra.mxu0 %v1051
      %1058 = vmatprep.subr.mxu0 0.0
      %1059 = vmatpush1.msra.mxu0 0.0
      %1060 = vmatprep.subr.mxu0 0.0
      %1061 = vmatpush1.msra.mxu0 0.0
      %1062 = vmatprep.subr.mxu0 0.0
      %1063 = vmatpush1.msra.mxu0 0.0
      %1064 = vmatprep.subr.mxu0 0.0
      %1065 = vmatpush1.msra.mxu0 0.0
      %1066 = vmatprep.subr.mxu0 0.0
      %1067 = vmatpush1.msra.mxu0 0.0
      %1068 = vmatprep.subr.mxu0 0.0
      %1069 = vmatpush1.msra.mxu0 0.0
      %1070 = vmatprep.subr.mxu0 0.0
      %1071 = vmatpush1.msra.mxu0 0.0
      %1072 = vmatprep.subr.mxu0 0.0
      %1073 = vmatpush1.msra.mxu0 0.0
      %1074 = vmatprep.subr.mxu0 0.0
      %1075 = vmatpush1.msra.mxu0 0.0
      %1076 = vmatprep.subr.mxu0 0.0
      %1077 = vmatpush1.msra.mxu0 0.0
      %1078 = vmatprep.subr.mxu0 0.0
      %1079 = vmatpush1.msra.mxu0 0.0
      %1080 = vmatprep.subr.mxu0 0.0
      %1081 = vmatpush1.msra.mxu0 0.0
      %1082 = vmatprep.subr.mxu0 0.0
      %1083 = vmatpush1.msra.mxu0 0.0
      %1084 = vmatprep.subr.mxu0 0.0
      %1085 = vmatpush1.msra.mxu0 0.0
      %1086 = vmatprep.subr.mxu0 0.0
      %1087 = vmatpush1.msra.mxu0 0.0
      %1088 = vmatprep.subr.mxu0 0.0
      %1089 = vmatpush1.msra.mxu0 0.0
      %1090 = vmatprep.subr.mxu0 0.0
      %1091 = vmatpush1.msra.mxu0 0.0
      %1092 = vmatprep.subr.mxu0 0.0
      %1093 = vmatpush1.msra.mxu0 0.0
      %1094 = vmatprep.subr.mxu0 0.0
      %1095 = vmatpush1.msra.mxu0 0.0
      %1096 = vmatprep.subr.mxu0 0.0
      %1097 = vmatpush1.msra.mxu0 0.0
      %1098 = vmatprep.subr.mxu0 0.0
      %1099 = vmatpush1.msra.mxu0 0.0
      %1100 = vmatprep.subr.mxu0 0.0
      %1101 = vmatpush1.msra.mxu0 0.0
      %1102 = vmatprep.subr.mxu0 0.0
      %1103 = vmatpush1.msra.mxu0 0.0
      %1104 = vmatprep.subr.mxu0 0.0
      %1105 = vmatpush1.msra.mxu0 0.0
      %1106 = vmatprep.subr.mxu0 0.0
      %1107 = vmatpush1.msra.mxu0 0.0
      %1108 = vmatprep.subr.mxu0 0.0
      %1109 = vmatpush1.msra.mxu0 0.0
      %1110 = vmatprep.subr.mxu0 0.0
      %1111 = vmatpush1.msra.mxu0 0.0
      %1112 = vmatprep.subr.mxu0 0.0
      %1113 = vmatpush1.msra.mxu0 0.0
      %1114 = vmatprep.subr.mxu0 0.0
      %1115 = vmatpush1.msra.mxu0 0.0
      %1116 = vmatprep.subr.mxu0 0.0
      %1117 = vmatpush1.msra.mxu0 0.0
      %1118 = vmatprep.subr.mxu0 0.0
      %1119 = vmatpush1.msra.mxu0 0.0
      %1120 = vmatprep.mubr.f32.mxu0 0.0
      %1121 = vmatmul.mubr.f32.gmra.mrb[0].mxu0 %v1054
      %v1122 = vpop.f32.mrb[0].mxu0
      %v1123 = vadd.f32 0.0, %v1122
      %v1124 = vpop.f32.mrb[0].mxu0
      %1125 = vdwg.mxu0
      %1126 = vrot.lane.b32.xlu0 %v951, 120
      %v1127 = vpop.permute.xlu0 %1126
      %1128 = vrot.lane.b32.xlu0 %v951, 88
      %v1129 = vpop.permute.xlu0 %1128
      %v1130 = vsel %vm962, %v1127, 0
      %v1132 = vsel %vm962, %v1129, 0
      %1134 = vmatprep.subr.mxu0 0.0
      %1135 = vmatpush1.xpose.msra.mxu0 %v1132
      %1136 = vmatprep.subr.mxu0 0.0
      %1137 = vmatpush1.xpose.msra.mxu0 0.0
      %1138 = vmatprep.subr.mxu0 0.0
      %1139 = vmatpush1.xpose.msra.mxu0 0.0
      %1140 = vmatprep.subr.mxu0 0.0
      %1141 = vmatpush1.xpose.msra.mxu0 0.0
      %1142 = vmatprep.subr.mxu0 0.0
      %1143 = vmatpush1.xpose.msra.mxu0 0.0
      %1144 = vmatprep.subr.mxu0 0.0
      %1145 = vmatpush1.xpose.msra.mxu0 0.0
      %1146 = vmatprep.subr.mxu0 0.0
      %1147 = vmatpush1.xpose.msra.mxu0 0.0
      %1148 = vmatprep.subr.mxu0 0.0
      %1149 = vmatpush1.xpose.msra.mxu0 0.0
      %1150 = vmatprep.subr.mxu0 0.0
      %1151 = vmatpush1.xpose.msra.mxu0 0.0
      %1152 = vmatprep.subr.mxu0 0.0
      %1153 = vmatpush1.xpose.msra.mxu0 0.0
      %1154 = vmatprep.subr.mxu0 0.0
      %1155 = vmatpush1.xpose.msra.mxu0 0.0
      %1156 = vmatprep.subr.mxu0 0.0
      %1157 = vmatpush1.xpose.msra.mxu0 0.0
      %1158 = vmatprep.subr.mxu0 0.0
      %1159 = vmatpush1.xpose.msra.mxu0 0.0
      %1160 = vmatprep.subr.mxu0 0.0
      %1161 = vmatpush1.xpose.msra.mxu0 0.0
      %1162 = vmatprep.subr.mxu0 0.0
      %1163 = vmatpush1.xpose.msra.mxu0 0.0
      %1164 = vmatprep.subr.mxu0 0.0
      %1165 = vmatpush1.xpose.msra.mxu0 0.0
      %1166 = vmatprep.subr.mxu0 0.0
      %1167 = vmatpush1.xpose.msra.mxu0 0.0
      %1168 = vmatprep.subr.mxu0 0.0
      %1169 = vmatpush1.xpose.msra.mxu0 0.0
      %1170 = vmatprep.subr.mxu0 0.0
      %1171 = vmatpush1.xpose.msra.mxu0 0.0
      %1172 = vmatprep.subr.mxu0 0.0
      %1173 = vmatpush1.xpose.msra.mxu0 0.0
      %1174 = vmatprep.subr.mxu0 0.0
      %1175 = vmatpush1.xpose.msra.mxu0 0.0
      %1176 = vmatprep.subr.mxu0 0.0
      %1177 = vmatpush1.xpose.msra.mxu0 0.0
      %1178 = vmatprep.subr.mxu0 0.0
      %1179 = vmatpush1.xpose.msra.mxu0 0.0
      %1180 = vmatprep.subr.mxu0 0.0
      %1181 = vmatpush1.xpose.msra.mxu0 0.0
      %1182 = vmatprep.subr.mxu0 0.0
      %1183 = vmatpush1.xpose.msra.mxu0 0.0
      %1184 = vmatprep.subr.mxu0 0.0
      %1185 = vmatpush1.xpose.msra.mxu0 0.0
      %1186 = vmatprep.subr.mxu0 0.0
      %1187 = vmatpush1.xpose.msra.mxu0 0.0
      %1188 = vmatprep.subr.mxu0 0.0
      %1189 = vmatpush1.xpose.msra.mxu0 0.0
      %1190 = vmatprep.subr.mxu0 0.0
      %1191 = vmatpush1.xpose.msra.mxu0 0.0
      %1192 = vmatprep.subr.mxu0 0.0
      %1193 = vmatpush1.xpose.msra.mxu0 0.0
      %1194 = vmatprep.subr.mxu0 0.0
      %1195 = vmatpush1.xpose.msra.mxu0 0.0
      %1196 = vmatprep.subr.mxu0 0.0
      %1197 = vmatpush1.xpose.msra.mxu0 0.0
      %1198 = vmatprep.mubr.f32.mxu0 0.0
      %1199 = vmatmul.mubr.f32.gmra.mrb[0].mxu0 %v1130
      %v1200 = vpop.f32.mrb[0].mxu0
      %v1201 = vadd.f32 0.0, %v1200
      %v1202 = vpop.f32.mrb[0].mxu0
      %1203 = vdwg.mxu0
      %v1204 = vmul.f32 %v1201, 0.35355338
      %v1205 = vadd.f32 %v1204, %v786
      %v1206 = vsel %vm962, %v1205, -inf
      %1207 = vmax.xlane.f32.xlu0 %v1206
      %v1208 = vpop.xlane.xlu0 %1207
      %v1209 = vsub.f32 %v1205, %v1208
      %v1210 = vmul.f32 %v1209, 1.442695
      %v1211 = vpow.pop %v1210
      %v1212 = vsel %vm962, %v1211, 0.0
      %1213 = vadd.xlane.f32.xlu0 %v1212
      %v1214 = vpop.xlane.xlu0 %1213
      %v1215 = vrcp.pop %v1214
      %v1216 = vmul.f32 %v1211, %v1215
      %1217 = vrot.lane.b32.xlu0 %v951, 56
      %v1218 = vpop.permute.xlu0 %1217
      %v1221 = vsel %vm962, %v1216, 0
      %1223 = vmatprep.subr.mxu0 0.0
      %1224 = vmatpush1.msra.mxu0 %v1218
      %1225 = vmatprep.subr.mxu0 0.0
      %1226 = vmatpush1.msra.mxu0 0.0
      %1227 = vmatprep.subr.mxu0 0.0
      %1228 = vmatpush1.msra.mxu0 0.0
      %1229 = vmatprep.subr.mxu0 0.0
      %1230 = vmatpush1.msra.mxu0 0.0
      %1231 = vmatprep.subr.mxu0 0.0
      %1232 = vmatpush1.msra.mxu0 0.0
      %1233 = vmatprep.subr.mxu0 0.0
      %1234 = vmatpush1.msra.mxu0 0.0
      %1235 = vmatprep.subr.mxu0 0.0
      %1236 = vmatpush1.msra.mxu0 0.0
      %1237 = vmatprep.subr.mxu0 0.0
      %1238 = vmatpush1.msra.mxu0 0.0
      %1239 = vmatprep.subr.mxu0 0.0
      %1240 = vmatpush1.msra.mxu0 0.0
      %1241 = vmatprep.subr.mxu0 0.0
      %1242 = vmatpush1.msra.mxu0 0.0
      %1243 = vmatprep.subr.mxu0 0.0
      %1244 = vmatpush1.msra.mxu0 0.0
      %1245 = vmatprep.subr.mxu0 0.0
      %1246 = vmatpush1.msra.mxu0 0.0
      %1247 = vmatprep.subr.mxu0 0.0
      %1248 = vmatpush1.msra.mxu0 0.0
      %1249 = vmatprep.subr.mxu0 0.0
      %1250 = vmatpush1.msra.mxu0 0.0
      %1251 = vmatprep.subr.mxu0 0.0
      %1252 = vmatpush1.msra.mxu0 0.0
      %1253 = vmatprep.subr.mxu0 0.0
      %1254 = vmatpush1.msra.mxu0 0.0
      %1255 = vmatprep.subr.mxu0 0.0
      %1256 = vmatpush1.msra.mxu0 0.0
      %1257 = vmatprep.subr.mxu0 0.0
      %1258 = vmatpush1.msra.mxu0 0.0
      %1259 = vmatprep.subr.mxu0 0.0
      %1260 = vmatpush1.msra.mxu0 0.0
      %1261 = vmatprep.subr.mxu0 0.0
      %1262 = vmatpush1.msra.mxu0 0.0
      %1263 = vmatprep.subr.mxu0 0.0
      %1264 = vmatpush1.msra.mxu0 0.0
      %1265 = vmatprep.subr.mxu0 0.0
      %1266 = vmatpush1.msra.mxu0 0.0
      %1267 = vmatprep.subr.mxu0 0.0
      %1268 = vmatpush1.msra.mxu0 0.0
      %1269 = vmatprep.subr.mxu0 0.0
      %1270 = vmatpush1.msra.mxu0 0.0
      %1271 = vmatprep.subr.mxu0 0.0
      %1272 = vmatpush1.msra.mxu0 0.0
      %1273 = vmatprep.subr.mxu0 0.0
      %1274 = vmatpush1.msra.mxu0 0.0
      %1275 = vmatprep.subr.mxu0 0.0
      %1276 = vmatpush1.msra.mxu0 0.0
      %1277 = vmatprep.subr.mxu0 0.0
      %1278 = vmatpush1.msra.mxu0 0.0
      %1279 = vmatprep.subr.mxu0 0.0
      %1280 = vmatpush1.msra.mxu0 0.0
      %1281 = vmatprep.subr.mxu0 0.0
      %1282 = vmatpush1.msra.mxu0 0.0
      %1283 = vmatprep.subr.mxu0 0.0
      %1284 = vmatpush1.msra.mxu0 0.0
      %1285 = vmatprep.subr.mxu0 0.0
      %1286 = vmatpush1.msra.mxu0 0.0
      %1287 = vmatprep.mubr.f32.mxu0 0.0
      %1288 = vmatmul.mubr.f32.gmra.mrb[0].mxu0 %v1221
      %v1289 = vpop.f32.mrb[0].mxu0
      %v1290 = vadd.f32 0.0, %v1289
      %v1291 = vpop.f32.mrb[0].mxu0
      %1292 = vdwg.mxu0
      %1297 = vrot.lane.b32.xlu0 %v954, 120
      %v1298 = vpop.permute.xlu0 %1297
      %1299 = vrot.lane.b32.xlu0 %v955, 120
      %v1300 = vpop.permute.xlu0 %1299
      %1301 = vrot.lane.b32.xlu0 %v956, 120
      %v1302 = vpop.permute.xlu0 %1301
      %1303 = vrot.lane.b32.xlu0 %v957, 120
      %v1304 = vpop.permute.xlu0 %1303
      %v1306 = vsel %vm962, %v1290, 0
      %v1308 = vsel %vm962, %v1298, 0
      %v1310 = vsel %vm962, %v1300, 0
      %v1312 = vsel %vm962, %v1302, 0
      %v1314 = vsel %vm962, %v1304, 0
      %1316 = vmatprep.subr.mxu0 0.0
      %1317 = vmatpush1.xpose.msra.mxu0 %v1308
      %1318 = vmatprep.subr.mxu0 0.0
      %1319 = vmatpush1.xpose.msra.mxu0 %v1310
      %1320 = vmatprep.subr.mxu0 0.0
      %1321 = vmatpush1.xpose.msra.mxu0 %v1312
      %1322 = vmatprep.subr.mxu0 0.0
      %1323 = vmatpush1.xpose.msra.mxu0 %v1314
      %1324 = vmatprep.subr.mxu0 0.0
      %1325 = vmatpush1.xpose.msra.mxu0 0.0
      %1326 = vmatprep.subr.mxu0 0.0
      %1327 = vmatpush1.xpose.msra.mxu0 0.0
      %1328 = vmatprep.subr.mxu0 0.0
      %1329 = vmatpush1.xpose.msra.mxu0 0.0
      %1330 = vmatprep.subr.mxu0 0.0
      %1331 = vmatpush1.xpose.msra.mxu0 0.0
      %1332 = vmatprep.subr.mxu0 0.0
      %1333 = vmatpush1.xpose.msra.mxu0 0.0
      %1334 = vmatprep.subr.mxu0 0.0
      %1335 = vmatpush1.xpose.msra.mxu0 0.0
      %1336 = vmatprep.subr.mxu0 0.0
      %1337 = vmatpush1.xpose.msra.mxu0 0.0
      %1338 = vmatprep.subr.mxu0 0.0
      %1339 = vmatpush1.xpose.msra.mxu0 0.0
      %1340 = vmatprep.subr.mxu0 0.0
      %1341 = vmatpush1.xpose.msra.mxu0 0.0
      %1342 = vmatprep.subr.mxu0 0.0
      %1343 = vmatpush1.xpose.msra.mxu0 0.0
      %1344 = vmatprep.subr.mxu0 0.0
      %1345 = vmatpush1.xpose.msra.mxu0 0.0
      %1346 = vmatprep.subr.mxu0 0.0
      %1347 = vmatpush1.xpose.msra.mxu0 0.0
      %1348 = vmatprep.subr.mxu0 0.0
      %1349 = vmatpush1.xpose.msra.mxu0 0.0
      %1350 = vmatprep.subr.mxu0 0.0
      %1351 = vmatpush1.xpose.msra.mxu0 0.0
      %1352 = vmatprep.subr.mxu0 0.0
      %1353 = vmatpush1.xpose.msra.mxu0 0.0
      %1354 = vmatprep.subr.mxu0 0.0
      %1355 = vmatpush1.xpose.msra.mxu0 0.0
      %1356 = vmatprep.subr.mxu0 0.0
      %1357 = vmatpush1.xpose.msra.mxu0 0.0
      %1358 = vmatprep.subr.mxu0 0.0
      %1359 = vmatpush1.xpose.msra.mxu0 0.0
      %1360 = vmatprep.subr.mxu0 0.0
      %1361 = vmatpush1.xpose.msra.mxu0 0.0
      %1362 = vmatprep.subr.mxu0 0.0
      %1363 = vmatpush1.xpose.msra.mxu0 0.0
      %1364 = vmatprep.subr.mxu0 0.0
      %1365 = vmatpush1.xpose.msra.mxu0 0.0
      %1366 = vmatprep.subr.mxu0 0.0
      %1367 = vmatpush1.xpose.msra.mxu0 0.0
      %1368 = vmatprep.subr.mxu0 0.0
      %1369 = vmatpush1.xpose.msra.mxu0 0.0
      %1370 = vmatprep.subr.mxu0 0.0
      %1371 = vmatpush1.xpose.msra.mxu0 0.0
      %1372 = vmatprep.subr.mxu0 0.0
      %1373 = vmatpush1.xpose.msra.mxu0 0.0
      %1374 = vmatprep.subr.mxu0 0.0
      %1375 = vmatpush1.xpose.msra.mxu0 0.0
      %1376 = vmatprep.subr.mxu0 0.0
      %1377 = vmatpush1.xpose.msra.mxu0 0.0
      %1378 = vmatprep.subr.mxu0 0.0
      %1379 = vmatpush1.xpose.msra.mxu0 0.0
      %1380 = vmatprep.mubr.f32.mxu0 0.0
      %1381 = vmatmul.mubr.f32.gmra.mrb[0].mxu0 %v1306
      %v1382 = vpop.f32.mrb[0].mxu0
      %v1383 = vadd.f32 0.0, %v1382
      %v1384 = vpop.f32.mrb[0].mxu0
      %1385 = vdwg.mxu0
      %v1387 = vsel %vm962, %v1123, 0
      %v1389 = vsel %vm962, %v954, 0
      %v1391 = vsel %vm962, %v955, 0
      %v1393 = vsel %vm962, %v956, 0
      %v1395 = vsel %vm962, %v957, 0
      %1397 = vmatprep.subr.mxu0 0.0
      %1398 = vmatpush1.xpose.msra.mxu0 %v1389
      %1399 = vmatprep.subr.mxu0 0.0
      %1400 = vmatpush1.xpose.msra.mxu0 %v1391
      %1401 = vmatprep.subr.mxu0 0.0
      %1402 = vmatpush1.xpose.msra.mxu0 %v1393
      %1403 = vmatprep.subr.mxu0 0.0
      %1404 = vmatpush1.xpose.msra.mxu0 %v1395
      %1405 = vmatprep.subr.mxu0 0.0
      %1406 = vmatpush1.xpose.msra.mxu0 0.0
      %1407 = vmatprep.subr.mxu0 0.0
      %1408 = vmatpush1.xpose.msra.mxu0 0.0
      %1409 = vmatprep.subr.mxu0 0.0
      %1410 = vmatpush1.xpose.msra.mxu0 0.0
      %1411 = vmatprep.subr.mxu0 0.0
      %1412 = vmatpush1.xpose.msra.mxu0 0.0
      %1413 = vmatprep.subr.mxu0 0.0
      %1414 = vmatpush1.xpose.msra.mxu0 0.0
      %1415 = vmatprep.subr.mxu0 0.0
      %1416 = vmatpush1.xpose.msra.mxu0 0.0
      %1417 = vmatprep.subr.mxu0 0.0
      %1418 = vmatpush1.xpose.msra.mxu0 0.0
      %1419 = vmatprep.subr.mxu0 0.0
      %1420 = vmatpush1.xpose.msra.mxu0 0.0
      %1421 = vmatprep.subr.mxu0 0.0
      %1422 = vmatpush1.xpose.msra.mxu0 0.0
      %1423 = vmatprep.subr.mxu0 0.0
      %1424 = vmatpush1.xpose.msra.mxu0 0.0
      %1425 = vmatprep.subr.mxu0 0.0
      %1426 = vmatpush1.xpose.msra.mxu0 0.0
      %1427 = vmatprep.subr.mxu0 0.0
      %1428 = vmatpush1.xpose.msra.mxu0 0.0
      %1429 = vmatprep.subr.mxu0 0.0
      %1430 = vmatpush1.xpose.msra.mxu0 0.0
      %1431 = vmatprep.subr.mxu0 0.0
      %1432 = vmatpush1.xpose.msra.mxu0 0.0
      %1433 = vmatprep.subr.mxu0 0.0
      %1434 = vmatpush1.xpose.msra.mxu0 0.0
      %1435 = vmatprep.subr.mxu0 0.0
      %1436 = vmatpush1.xpose.msra.mxu0 0.0
      %1437 = vmatprep.subr.mxu0 0.0
      %1438 = vmatpush1.xpose.msra.mxu0 0.0
      %1439 = vmatprep.subr.mxu0 0.0
      %1440 = vmatpush1.xpose.msra.mxu0 0.0
      %1441 = vmatprep.subr.mxu0 0.0
      %1442 = vmatpush1.xpose.msra.mxu0 0.0
      %1443 = vmatprep.subr.mxu0 0.0
      %1444 = vmatpush1.xpose.msra.mxu0 0.0
      %1445 = vmatprep.subr.mxu0 0.0
      %1446 = vmatpush1.xpose.msra.mxu0 0.0
      %1447 = vmatprep.subr.mxu0 0.0
      %1448 = vmatpush1.xpose.msra.mxu0 0.0
      %1449 = vmatprep.subr.mxu0 0.0
      %1450 = vmatpush1.xpose.msra.mxu0 0.0
      %1451 = vmatprep.subr.mxu0 0.0
      %1452 = vmatpush1.xpose.msra.mxu0 0.0
      %1453 = vmatprep.subr.mxu0 0.0
      %1454 = vmatpush1.xpose.msra.mxu0 0.0
      %1455 = vmatprep.subr.mxu0 0.0
      %1456 = vmatpush1.xpose.msra.mxu0 0.0
      %1457 = vmatprep.subr.mxu0 0.0
      %1458 = vmatpush1.xpose.msra.mxu0 0.0
      %1459 = vmatprep.subr.mxu0 0.0
      %1460 = vmatpush1.xpose.msra.mxu0 0.0
      %1461 = vmatprep.mubr.f32.mxu0 0.0
      %1462 = vmatmul.mubr.f32.gmra.mrb[0].mxu0 %v1387
      %v1463 = vpop.f32.mrb[0].mxu0
      %v1464 = vadd.f32 %v1383, %v1463
      %v1465 = vpop.f32.mrb[0].mxu0
      %1466 = vdwg.mxu0
      %1467 = vrot.lane.b32.xlu0 %v951, 112
      %v1468 = vpop.permute.xlu0 %1467
      %1469 = vrot.lane.b32.xlu0 %v951, 80
      %v1470 = vpop.permute.xlu0 %1469
      %v1471 = vsel %vm962, %v1468, 0
      %v1473 = vsel %vm962, %v1470, 0
      %1475 = vmatprep.subr.mxu0 0.0
      %1476 = vmatpush1.xpose.msra.mxu0 %v1473
      %1477 = vmatprep.subr.mxu0 0.0
      %1478 = vmatpush1.xpose.msra.mxu0 0.0
      %1479 = vmatprep.subr.mxu0 0.0
      %1480 = vmatpush1.xpose.msra.mxu0 0.0
      %1481 = vmatprep.subr.mxu0 0.0
      %1482 = vmatpush1.xpose.msra.mxu0 0.0
      %1483 = vmatprep.subr.mxu0 0.0
      %1484 = vmatpush1.xpose.msra.mxu0 0.0
      %1485 = vmatprep.subr.mxu0 0.0
      %1486 = vmatpush1.xpose.msra.mxu0 0.0
      %1487 = vmatprep.subr.mxu0 0.0
      %1488 = vmatpush1.xpose.msra.mxu0 0.0
      %1489 = vmatprep.subr.mxu0 0.0
      %1490 = vmatpush1.xpose.msra.mxu0 0.0
      %1491 = vmatprep.subr.mxu0 0.0
      %1492 = vmatpush1.xpose.msra.mxu0 0.0
      %1493 = vmatprep.subr.mxu0 0.0
      %1494 = vmatpush1.xpose.msra.mxu0 0.0
      %1495 = vmatprep.subr.mxu0 0.0
      %1496 = vmatpush1.xpose.msra.mxu0 0.0
      %1497 = vmatprep.subr.mxu0 0.0
      %1498 = vmatpush1.xpose.msra.mxu0 0.0
      %1499 = vmatprep.subr.mxu0 0.0
      %1500 = vmatpush1.xpose.msra.mxu0 0.0
      %1501 = vmatprep.subr.mxu0 0.0
      %1502 = vmatpush1.xpose.msra.mxu0 0.0
      %1503 = vmatprep.subr.mxu0 0.0
      %1504 = vmatpush1.xpose.msra.mxu0 0.0
      %1505 = vmatprep.subr.mxu0 0.0
      %1506 = vmatpush1.xpose.msra.mxu0 0.0
      %1507 = vmatprep.subr.mxu0 0.0
      %1508 = vmatpush1.xpose.msra.mxu0 0.0
      %1509 = vmatprep.subr.mxu0 0.0
      %1510 = vmatpush1.xpose.msra.mxu0 0.0
      %1511 = vmatprep.subr.mxu0 0.0
      %1512 = vmatpush1.xpose.msra.mxu0 0.0
      %1513 = vmatprep.subr.mxu0 0.0
      %1514 = vmatpush1.xpose.msra.mxu0 0.0
      %1515 = vmatprep.subr.mxu0 0.0
      %1516 = vmatpush1.xpose.msra.mxu0 0.0
      %1517 = vmatprep.subr.mxu0 0.0
      %1518 = vmatpush1.xpose.msra.mxu0 0.0
      %1519 = vmatprep.subr.mxu0 0.0
      %1520 = vmatpush1.xpose.msra.mxu0 0.0
      %1521 = vmatprep.subr.mxu0 0.0
      %1522 = vmatpush1.xpose.msra.mxu0 0.0
      %1523 = vmatprep.subr.mxu0 0.0
      %1524 = vmatpush1.xpose.msra.mxu0 0.0
      %1525 = vmatprep.subr.mxu0 0.0
      %1526 = vmatpush1.xpose.msra.mxu0 0.0
      %1527 = vmatprep.subr.mxu0 0.0
      %1528 = vmatpush1.xpose.msra.mxu0 0.0
      %1529 = vmatprep.subr.mxu0 0.0
      %1530 = vmatpush1.xpose.msra.mxu0 0.0
      %1531 = vmatprep.subr.mxu0 0.0
      %1532 = vmatpush1.xpose.msra.mxu0 0.0
      %1533 = vmatprep.subr.mxu0 0.0
      %1534 = vmatpush1.xpose.msra.mxu0 0.0
      %1535 = vmatprep.subr.mxu0 0.0
      %1536 = vmatpush1.xpose.msra.mxu0 0.0
      %1537 = vmatprep.subr.mxu0 0.0
      %1538 = vmatpush1.xpose.msra.mxu0 0.0
      %1539 = vmatprep.mubr.f32.mxu0 0.0
      %1540 = vmatmul.mubr.f32.gmra.mrb[0].mxu0 %v1471
      %v1541 = vpop.f32.mrb[0].mxu0
      %v1542 = vadd.f32 0.0, %v1541
      %v1543 = vpop.f32.mrb[0].mxu0
      %1544 = vdwg.mxu0
      %v1545 = vmul.f32 %v1542, 0.35355338
      %v1546 = vadd.f32 %v1545, %v786
      %v1547 = vsel %vm962, %v1546, -inf
      %1548 = vmax.xlane.f32.xlu0 %v1547
      %v1549 = vpop.xlane.xlu0 %1548
      %v1550 = vsub.f32 %v1546, %v1549
      %v1551 = vmul.f32 %v1550, 1.442695
      %v1552 = vpow.pop %v1551
      %v1553 = vsel %vm962, %v1552, 0.0
      %1554 = vadd.xlane.f32.xlu0 %v1553
      %v1555 = vpop.xlane.xlu0 %1554
      %v1556 = vrcp.pop %v1555
      %v1557 = vmul.f32 %v1552, %v1556
      %1558 = vrot.lane.b32.xlu0 %v951, 48
      %v1559 = vpop.permute.xlu0 %1558
      %v1562 = vsel %vm962, %v1557, 0
      %1564 = vmatprep.subr.mxu0 0.0
      %1565 = vmatpush1.msra.mxu0 %v1559
      %1566 = vmatprep.subr.mxu0 0.0
      %1567 = vmatpush1.msra.mxu0 0.0
      %1568 = vmatprep.subr.mxu0 0.0
      %1569 = vmatpush1.msra.mxu0 0.0
      %1570 = vmatprep.subr.mxu0 0.0
      %1571 = vmatpush1.msra.mxu0 0.0
      %1572 = vmatprep.subr.mxu0 0.0
      %1573 = vmatpush1.msra.mxu0 0.0
      %1574 = vmatprep.subr.mxu0 0.0
      %1575 = vmatpush1.msra.mxu0 0.0
      %1576 = vmatprep.subr.mxu0 0.0
      %1577 = vmatpush1.msra.mxu0 0.0
      %1578 = vmatprep.subr.mxu0 0.0
      %1579 = vmatpush1.msra.mxu0 0.0
      %1580 = vmatprep.subr.mxu0 0.0
      %1581 = vmatpush1.msra.mxu0 0.0
      %1582 = vmatprep.subr.mxu0 0.0
      %1583 = vmatpush1.msra.mxu0 0.0
      %1584 = vmatprep.subr.mxu0 0.0
      %1585 = vmatpush1.msra.mxu0 0.0
      %1586 = vmatprep.subr.mxu0 0.0
      %1587 = vmatpush1.msra.mxu0 0.0
      %1588 = vmatprep.subr.mxu0 0.0
      %1589 = vmatpush1.msra.mxu0 0.0
      %1590 = vmatprep.subr.mxu0 0.0
      %1591 = vmatpush1.msra.mxu0 0.0
      %1592 = vmatprep.subr.mxu0 0.0
      %1593 = vmatpush1.msra.mxu0 0.0
      %1594 = vmatprep.subr.mxu0 0.0
      %1595 = vmatpush1.msra.mxu0 0.0
      %1596 = vmatprep.subr.mxu0 0.0
      %1597 = vmatpush1.msra.mxu0 0.0
      %1598 = vmatprep.subr.mxu0 0.0
      %1599 = vmatpush1.msra.mxu0 0.0
      %1600 = vmatprep.subr.mxu0 0.0
      %1601 = vmatpush1.msra.mxu0 0.0
      %1602 = vmatprep.subr.mxu0 0.0
      %1603 = vmatpush1.msra.mxu0 0.0
      %1604 = vmatprep.subr.mxu0 0.0
      %1605 = vmatpush1.msra.mxu0 0.0
      %1606 = vmatprep.subr.mxu0 0.0
      %1607 = vmatpush1.msra.mxu0 0.0
      %1608 = vmatprep.subr.mxu0 0.0
      %1609 = vmatpush1.msra.mxu0 0.0
      %1610 = vmatprep.subr.mxu0 0.0
      %1611 = vmatpush1.msra.mxu0 0.0
      %1612 = vmatprep.subr.mxu0 0.0
      %1613 = vmatpush1.msra.mxu0 0.0
      %1614 = vmatprep.subr.mxu0 0.0
      %1615 = vmatpush1.msra.mxu0 0.0
      %1616 = vmatprep.subr.mxu0 0.0
      %1617 = vmatpush1.msra.mxu0 0.0
      %1618 = vmatprep.subr.mxu0 0.0
      %1619 = vmatpush1.msra.mxu0 0.0
      %1620 = vmatprep.subr.mxu0 0.0
      %1621 = vmatpush1.msra.mxu0 0.0
      %1622 = vmatprep.subr.mxu0 0.0
      %1623 = vmatpush1.msra.mxu0 0.0
      %1624 = vmatprep.subr.mxu0 0.0
      %1625 = vmatpush1.msra.mxu0 0.0
      %1626 = vmatprep.subr.mxu0 0.0
      %1627 = vmatpush1.msra.mxu0 0.0
      %1628 = vmatprep.mubr.f32.mxu0 0.0
      %1629 = vmatmul.mubr.f32.gmra.mrb[0].mxu0 %v1562
      %v1630 = vpop.f32.mrb[0].mxu0
      %v1631 = vadd.f32 0.0, %v1630
      %v1632 = vpop.f32.mrb[0].mxu0
      %1633 = vdwg.mxu0
      %1634 = vrot.lane.b32.xlu0 %v954, 112
      %v1635 = vpop.permute.xlu0 %1634
      %1636 = vrot.lane.b32.xlu0 %v955, 112
      %v1637 = vpop.permute.xlu0 %1636
      %1638 = vrot.lane.b32.xlu0 %v956, 112
      %v1639 = vpop.permute.xlu0 %1638
      %1640 = vrot.lane.b32.xlu0 %v957, 112
      %v1641 = vpop.permute.xlu0 %1640
      %v1643 = vsel %vm962, %v1631, 0
      %v1645 = vsel %vm962, %v1635, 0
      %v1647 = vsel %vm962, %v1637, 0
      %v1649 = vsel %vm962, %v1639, 0
      %v1651 = vsel %vm962, %v1641, 0
      %1653 = vmatprep.subr.mxu0 0.0
      %1654 = vmatpush1.xpose.msra.mxu0 %v1645
      %1655 = vmatprep.subr.mxu0 0.0
      %1656 = vmatpush1.xpose.msra.mxu0 %v1647
      %1657 = vmatprep.subr.mxu0 0.0
      %1658 = vmatpush1.xpose.msra.mxu0 %v1649
      %1659 = vmatprep.subr.mxu0 0.0
      %1660 = vmatpush1.xpose.msra.mxu0 %v1651
      %1661 = vmatprep.subr.mxu0 0.0
      %1662 = vmatpush1.xpose.msra.mxu0 0.0
      %1663 = vmatprep.subr.mxu0 0.0
      %1664 = vmatpush1.xpose.msra.mxu0 0.0
      %1665 = vmatprep.subr.mxu0 0.0
      %1666 = vmatpush1.xpose.msra.mxu0 0.0
      %1667 = vmatprep.subr.mxu0 0.0
      %1668 = vmatpush1.xpose.msra.mxu0 0.0
      %1669 = vmatprep.subr.mxu0 0.0
      %1670 = vmatpush1.xpose.msra.mxu0 0.0
      %1671 = vmatprep.subr.mxu0 0.0
      %1672 = vmatpush1.xpose.msra.mxu0 0.0
      %1673 = vmatprep.subr.mxu0 0.0
      %1674 = vmatpush1.xpose.msra.mxu0 0.0
      %1675 = vmatprep.subr.mxu0 0.0
      %1676 = vmatpush1.xpose.msra.mxu0 0.0
      %1677 = vmatprep.subr.mxu0 0.0
      %1678 = vmatpush1.xpose.msra.mxu0 0.0
      %1679 = vmatprep.subr.mxu0 0.0
      %1680 = vmatpush1.xpose.msra.mxu0 0.0
      %1681 = vmatprep.subr.mxu0 0.0
      %1682 = vmatpush1.xpose.msra.mxu0 0.0
      %1683 = vmatprep.subr.mxu0 0.0
      %1684 = vmatpush1.xpose.msra.mxu0 0.0
      %1685 = vmatprep.subr.mxu0 0.0
      %1686 = vmatpush1.xpose.msra.mxu0 0.0
      %1687 = vmatprep.subr.mxu0 0.0
      %1688 = vmatpush1.xpose.msra.mxu0 0.0
      %1689 = vmatprep.subr.mxu0 0.0
      %1690 = vmatpush1.xpose.msra.mxu0 0.0
      %1691 = vmatprep.subr.mxu0 0.0
      %1692 = vmatpush1.xpose.msra.mxu0 0.0
      %1693 = vmatprep.subr.mxu0 0.0
      %1694 = vmatpush1.xpose.msra.mxu0 0.0
      %1695 = vmatprep.subr.mxu0 0.0
      %1696 = vmatpush1.xpose.msra.mxu0 0.0
      %1697 = vmatprep.subr.mxu0 0.0
      %1698 = vmatpush1.xpose.msra.mxu0 0.0
      %1699 = vmatprep.subr.mxu0 0.0
      %1700 = vmatpush1.xpose.msra.mxu0 0.0
      %1701 = vmatprep.subr.mxu0 0.0
      %1702 = vmatpush1.xpose.msra.mxu0 0.0
      %1703 = vmatprep.subr.mxu0 0.0
      %1704 = vmatpush1.xpose.msra.mxu0 0.0
      %1705 = vmatprep.subr.mxu0 0.0
      %1706 = vmatpush1.xpose.msra.mxu0 0.0
      %1707 = vmatprep.subr.mxu0 0.0
      %1708 = vmatpush1.xpose.msra.mxu0 0.0
      %1709 = vmatprep.subr.mxu0 0.0
      %1710 = vmatpush1.xpose.msra.mxu0 0.0
      %1711 = vmatprep.subr.mxu0 0.0
      %1712 = vmatpush1.xpose.msra.mxu0 0.0
      %1713 = vmatprep.subr.mxu0 0.0
      %1714 = vmatpush1.xpose.msra.mxu0 0.0
      %1715 = vmatprep.subr.mxu0 0.0
      %1716 = vmatpush1.xpose.msra.mxu0 0.0
      %1717 = vmatprep.mubr.f32.mxu0 0.0
      %1718 = vmatmul.mubr.f32.gmra.mrb[0].mxu0 %v1643
      %v1719 = vpop.f32.mrb[0].mxu0
      %v1720 = vadd.f32 0.0, %v1719
      %v1721 = vpop.f32.mrb[0].mxu0
      %1722 = vdwg.mxu0
      %v1723 = vadd.f32 %v1464, %v1720
      %1724 = vrot.lane.b32.xlu0 %v951, 104
      %v1725 = vpop.permute.xlu0 %1724
      %1726 = vrot.lane.b32.xlu0 %v951, 72
      %v1727 = vpop.permute.xlu0 %1726
      %v1728 = vsel %vm962, %v1725, 0
      %v1730 = vsel %vm962, %v1727, 0
      %1732 = vmatprep.subr.mxu0 0.0
      %1733 = vmatpush1.xpose.msra.mxu0 %v1730
      %1734 = vmatprep.subr.mxu0 0.0
      %1735 = vmatpush1.xpose.msra.mxu0 0.0
      %1736 = vmatprep.subr.mxu0 0.0
      %1737 = vmatpush1.xpose.msra.mxu0 0.0
      %1738 = vmatprep.subr.mxu0 0.0
      %1739 = vmatpush1.xpose.msra.mxu0 0.0
      %1740 = vmatprep.subr.mxu0 0.0
      %1741 = vmatpush1.xpose.msra.mxu0 0.0
      %1742 = vmatprep.subr.mxu0 0.0
      %1743 = vmatpush1.xpose.msra.mxu0 0.0
      %1744 = vmatprep.subr.mxu0 0.0
      %1745 = vmatpush1.xpose.msra.mxu0 0.0
      %1746 = vmatprep.subr.mxu0 0.0
      %1747 = vmatpush1.xpose.msra.mxu0 0.0
      %1748 = vmatprep.subr.mxu0 0.0
      %1749 = vmatpush1.xpose.msra.mxu0 0.0
      %1750 = vmatprep.subr.mxu0 0.0
      %1751 = vmatpush1.xpose.msra.mxu0 0.0
      %1752 = vmatprep.subr.mxu0 0.0
      %1753 = vmatpush1.xpose.msra.mxu0 0.0
      %1754 = vmatprep.subr.mxu0 0.0
      %1755 = vmatpush1.xpose.msra.mxu0 0.0
      %1756 = vmatprep.subr.mxu0 0.0
      %1757 = vmatpush1.xpose.msra.mxu0 0.0
      %1758 = vmatprep.subr.mxu0 0.0
      %1759 = vmatpush1.xpose.msra.mxu0 0.0
      %1760 = vmatprep.subr.mxu0 0.0
      %1761 = vmatpush1.xpose.msra.mxu0 0.0
      %1762 = vmatprep.subr.mxu0 0.0
      %1763 = vmatpush1.xpose.msra.mxu0 0.0
      %1764 = vmatprep.subr.mxu0 0.0
      %1765 = vmatpush1.xpose.msra.mxu0 0.0
      %1766 = vmatprep.subr.mxu0 0.0
      %1767 = vmatpush1.xpose.msra.mxu0 0.0
      %1768 = vmatprep.subr.mxu0 0.0
      %1769 = vmatpush1.xpose.msra.mxu0 0.0
      %1770 = vmatprep.subr.mxu0 0.0
      %1771 = vmatpush1.xpose.msra.mxu0 0.0
      %1772 = vmatprep.subr.mxu0 0.0
      %1773 = vmatpush1.xpose.msra.mxu0 0.0
      %1774 = vmatprep.subr.mxu0 0.0
      %1775 = vmatpush1.xpose.msra.mxu0 0.0
      %1776 = vmatprep.subr.mxu0 0.0
      %1777 = vmatpush1.xpose.msra.mxu0 0.0
      %1778 = vmatprep.subr.mxu0 0.0
      %1779 = vmatpush1.xpose.msra.mxu0 0.0
      %1780 = vmatprep.subr.mxu0 0.0
      %1781 = vmatpush1.xpose.msra.mxu0 0.0
      %1782 = vmatprep.subr.mxu0 0.0
      %1783 = vmatpush1.xpose.msra.mxu0 0.0
      %1784 = vmatprep.subr.mxu0 0.0
      %1785 = vmatpush1.xpose.msra.mxu0 0.0
      %1786 = vmatprep.subr.mxu0 0.0
      %1787 = vmatpush1.xpose.msra.mxu0 0.0
      %1788 = vmatprep.subr.mxu0 0.0
      %1789 = vmatpush1.xpose.msra.mxu0 0.0
      %1790 = vmatprep.subr.mxu0 0.0
      %1791 = vmatpush1.xpose.msra.mxu0 0.0
      %1792 = vmatprep.subr.mxu0 0.0
      %1793 = vmatpush1.xpose.msra.mxu0 0.0
      %1794 = vmatprep.subr.mxu0 0.0
      %1795 = vmatpush1.xpose.msra.mxu0 0.0
      %1796 = vmatprep.mubr.f32.mxu0 0.0
      %1797 = vmatmul.mubr.f32.gmra.mrb[0].mxu0 %v1728
      %v1798 = vpop.f32.mrb[0].mxu0
      %v1799 = vadd.f32 0.0, %v1798
      %v1800 = vpop.f32.mrb[0].mxu0
      %1801 = vdwg.mxu0
      %v1802 = vmul.f32 %v1799, 0.35355338
      %v1803 = vadd.f32 %v1802, %v786
      %v1804 = vsel %vm962, %v1803, -inf
      %1805 = vmax.xlane.f32.xlu0 %v1804
      %v1806 = vpop.xlane.xlu0 %1805
      %v1807 = vsub.f32 %v1803, %v1806
      %v1808 = vmul.f32 %v1807, 1.442695
      %v1809 = vpow.pop %v1808
      %v1810 = vsel %vm962, %v1809, 0.0
      %1811 = vadd.xlane.f32.xlu0 %v1810
      %v1812 = vpop.xlane.xlu0 %1811
      %v1813 = vrcp.pop %v1812
      %v1814 = vmul.f32 %v1809, %v1813
      %1815 = vrot.lane.b32.xlu0 %v951, 40
      %v1816 = vpop.permute.xlu0 %1815
      %v1819 = vsel %vm962, %v1814, 0
      %1821 = vmatprep.subr.mxu0 0.0
      %1822 = vmatpush1.msra.mxu0 %v1816
      %1823 = vmatprep.subr.mxu0 0.0
      %1824 = vmatpush1.msra.mxu0 0.0
      %1825 = vmatprep.subr.mxu0 0.0
      %1826 = vmatpush1.msra.mxu0 0.0
      %1827 = vmatprep.subr.mxu0 0.0
      %1828 = vmatpush1.msra.mxu0 0.0
      %1829 = vmatprep.subr.mxu0 0.0
      %1830 = vmatpush1.msra.mxu0 0.0
      %1831 = vmatprep.subr.mxu0 0.0
      %1832 = vmatpush1.msra.mxu0 0.0
      %1833 = vmatprep.subr.mxu0 0.0
      %1834 = vmatpush1.msra.mxu0 0.0
      %1835 = vmatprep.subr.mxu0 0.0
      %1836 = vmatpush1.msra.mxu0 0.0
      %1837 = vmatprep.subr.mxu0 0.0
      %1838 = vmatpush1.msra.mxu0 0.0
      %1839 = vmatprep.subr.mxu0 0.0
      %1840 = vmatpush1.msra.mxu0 0.0
      %1841 = vmatprep.subr.mxu0 0.0
      %1842 = vmatpush1.msra.mxu0 0.0
      %1843 = vmatprep.subr.mxu0 0.0
      %1844 = vmatpush1.msra.mxu0 0.0
      %1845 = vmatprep.subr.mxu0 0.0
      %1846 = vmatpush1.msra.mxu0 0.0
      %1847 = vmatprep.subr.mxu0 0.0
      %1848 = vmatpush1.msra.mxu0 0.0
      %1849 = vmatprep.subr.mxu0 0.0
      %1850 = vmatpush1.msra.mxu0 0.0
      %1851 = vmatprep.subr.mxu0 0.0
      %1852 = vmatpush1.msra.mxu0 0.0
      %1853 = vmatprep.subr.mxu0 0.0
      %1854 = vmatpush1.msra.mxu0 0.0
      %1855 = vmatprep.subr.mxu0 0.0
      %1856 = vmatpush1.msra.mxu0 0.0
      %1857 = vmatprep.subr.mxu0 0.0
      %1858 = vmatpush1.msra.mxu0 0.0
      %1859 = vmatprep.subr.mxu0 0.0
      %1860 = vmatpush1.msra.mxu0 0.0
      %1861 = vmatprep.subr.mxu0 0.0
      %1862 = vmatpush1.msra.mxu0 0.0
      %1863 = vmatprep.subr.mxu0 0.0
      %1864 = vmatpush1.msra.mxu0 0.0
      %1865 = vmatprep.subr.mxu0 0.0
      %1866 = vmatpush1.msra.mxu0 0.0
      %1867 = vmatprep.subr.mxu0 0.0
      %1868 = vmatpush1.msra.mxu0 0.0
      %1869 = vmatprep.subr.mxu0 0.0
      %1870 = vmatpush1.msra.mxu0 0.0
      %1871 = vmatprep.subr.mxu0 0.0
      %1872 = vmatpush1.msra.mxu0 0.0
      %1873 = vmatprep.subr.mxu0 0.0
      %1874 = vmatpush1.msra.mxu0 0.0
      %1875 = vmatprep.subr.mxu0 0.0
      %1876 = vmatpush1.msra.mxu0 0.0
      %1877 = vmatprep.subr.mxu0 0.0
      %1878 = vmatpush1.msra.mxu0 0.0
      %1879 = vmatprep.subr.mxu0 0.0
      %1880 = vmatpush1.msra.mxu0 0.0
      %1881 = vmatprep.subr.mxu0 0.0
      %1882 = vmatpush1.msra.mxu0 0.0
      %1883 = vmatprep.subr.mxu0 0.0
      %1884 = vmatpush1.msra.mxu0 0.0
      %1885 = vmatprep.mubr.f32.mxu0 0.0
      %1886 = vmatmul.mubr.f32.gmra.mrb[0].mxu0 %v1819
      %v1887 = vpop.f32.mrb[0].mxu0
      %v1888 = vadd.f32 0.0, %v1887
      %v1889 = vpop.f32.mrb[0].mxu0
      %1890 = vdwg.mxu0
      %1891 = vrot.lane.b32.xlu0 %v954, 104
      %v1892 = vpop.permute.xlu0 %1891
      %1893 = vrot.lane.b32.xlu0 %v955, 104
      %v1894 = vpop.permute.xlu0 %1893
      %1895 = vrot.lane.b32.xlu0 %v956, 104
      %v1896 = vpop.permute.xlu0 %1895
      %1897 = vrot.lane.b32.xlu0 %v957, 104
      %v1898 = vpop.permute.xlu0 %1897
      %v1900 = vsel %vm962, %v1888, 0
      %v1902 = vsel %vm962, %v1892, 0
      %v1904 = vsel %vm962, %v1894, 0
      %v1906 = vsel %vm962, %v1896, 0
      %v1908 = vsel %vm962, %v1898, 0
      %1910 = vmatprep.subr.mxu0 0.0
      %1911 = vmatpush1.xpose.msra.mxu0 %v1902
      %1912 = vmatprep.subr.mxu0 0.0
      %1913 = vmatpush1.xpose.msra.mxu0 %v1904
      %1914 = vmatprep.subr.mxu0 0.0
      %1915 = vmatpush1.xpose.msra.mxu0 %v1906
      %1916 = vmatprep.subr.mxu0 0.0
      %1917 = vmatpush1.xpose.msra.mxu0 %v1908
      %1918 = vmatprep.subr.mxu0 0.0
      %1919 = vmatpush1.xpose.msra.mxu0 0.0
      %1920 = vmatprep.subr.mxu0 0.0
      %1921 = vmatpush1.xpose.msra.mxu0 0.0
      %1922 = vmatprep.subr.mxu0 0.0
      %1923 = vmatpush1.xpose.msra.mxu0 0.0
      %1924 = vmatprep.subr.mxu0 0.0
      %1925 = vmatpush1.xpose.msra.mxu0 0.0
      %1926 = vmatprep.subr.mxu0 0.0
      %1927 = vmatpush1.xpose.msra.mxu0 0.0
      %1928 = vmatprep.subr.mxu0 0.0
      %1929 = vmatpush1.xpose.msra.mxu0 0.0
      %1930 = vmatprep.subr.mxu0 0.0
      %1931 = vmatpush1.xpose.msra.mxu0 0.0
      %1932 = vmatprep.subr.mxu0 0.0
      %1933 = vmatpush1.xpose.msra.mxu0 0.0
      %1934 = vmatprep.subr.mxu0 0.0
      %1935 = vmatpush1.xpose.msra.mxu0 0.0
      %1936 = vmatprep.subr.mxu0 0.0
      %1937 = vmatpush1.xpose.msra.mxu0 0.0
      %1938 = vmatprep.subr.mxu0 0.0
      %1939 = vmatpush1.xpose.msra.mxu0 0.0
      %1940 = vmatprep.subr.mxu0 0.0
      %1941 = vmatpush1.xpose.msra.mxu0 0.0
      %1942 = vmatprep.subr.mxu0 0.0
      %1943 = vmatpush1.xpose.msra.mxu0 0.0
      %1944 = vmatprep.subr.mxu0 0.0
      %1945 = vmatpush1.xpose.msra.mxu0 0.0
      %1946 = vmatprep.subr.mxu0 0.0
      %1947 = vmatpush1.xpose.msra.mxu0 0.0
      %1948 = vmatprep.subr.mxu0 0.0
      %1949 = vmatpush1.xpose.msra.mxu0 0.0
      %1950 = vmatprep.subr.mxu0 0.0
      %1951 = vmatpush1.xpose.msra.mxu0 0.0
      %1952 = vmatprep.subr.mxu0 0.0
      %1953 = vmatpush1.xpose.msra.mxu0 0.0
      %1954 = vmatprep.subr.mxu0 0.0
      %1955 = vmatpush1.xpose.msra.mxu0 0.0
      %1956 = vmatprep.subr.mxu0 0.0
      %1957 = vmatpush1.xpose.msra.mxu0 0.0
      %1958 = vmatprep.subr.mxu0 0.0
      %1959 = vmatpush1.xpose.msra.mxu0 0.0
      %1960 = vmatprep.subr.mxu0 0.0
      %1961 = vmatpush1.xpose.msra.mxu0 0.0
      %1962 = vmatprep.subr.mxu0 0.0
      %1963 = vmatpush1.xpose.msra.mxu0 0.0
      %1964 = vmatprep.subr.mxu0 0.0
      %1965 = vmatpush1.xpose.msra.mxu0 0.0
      %1966 = vmatprep.subr.mxu0 0.0
      %1967 = vmatpush1.xpose.msra.mxu0 0.0
      %1968 = vmatprep.subr.mxu0 0.0
      %1969 = vmatpush1.xpose.msra.mxu0 0.0
      %1970 = vmatprep.subr.mxu0 0.0
      %1971 = vmatpush1.xpose.msra.mxu0 0.0
      %1972 = vmatprep.subr.mxu0 0.0
      %1973 = vmatpush1.xpose.msra.mxu0 0.0
      %1974 = vmatprep.mubr.f32.mxu0 0.0
      %1975 = vmatmul.mubr.f32.gmra.mrb[0].mxu0 %v1900
      %v1976 = vpop.f32.mrb[0].mxu0
      %v1977 = vadd.f32 0.0, %v1976
      %v1978 = vpop.f32.mrb[0].mxu0
      %1979 = vdwg.mxu0
      %v1980 = vadd.f32 %v1723, %v1977
      %v1982 = vlaneseq
      %v1983 = vshrl.u32 %v1982, 7
      %v1984 = vsub.s32 0, %v1983
      %v1985 = vrot.slane %v958, %v1984
      %v1987 = vadd.f32 %v1980, %v1985
      %v1988 = vadd.f32 %v784, %v1987
      %v1989 = vld [vmem:[%s10] sm:$0x1]
      %v1990 = vld [vmem:[%s11] sm:$0x1]
      %v1991 = vsel %vm790, %v1988, 0.0
      %1992 = vadd.xlane.f32.xlu0 %v1991
      %v1993 = vpop.xlane.xlu0 %1992
      %v1994 = vmul.f32 %v1993, %v794
      %v1995 = vsub.f32 %v1988, %v1994
      %v1996 = vmul.f32 %v1995, %v1995
      %v1997 = vsel %vm790, %v1996, 0.0
      %1998 = vadd.xlane.f32.xlu0 %v1997
      %v1999 = vpop.xlane.xlu0 %1998
      %v2000 = vmul.f32 %v1999, 0.032258064
      %v2001 = vrsqrt.pop %v2000
      %v2002 = vmul.f32 %v2000, %v2001
      %vm2003 = vcmp.eq.f32.partialorder %v2000, inf
      %v2004 = vsel %vm2003, %v2000, %v2002
      %vm2005 = vcmp.eq.f32.partialorder %v2000, 0.0
      %v2006 = vand.u32 %v2000, 2147483648
      %v2007 = vsel %vm2005, %v2006, %v2004
      %v2008 = vadd.f32 %v2007, 1e-06
      %v2009 = vrcp.pop %v2008
      %v2010 = vmul.f32 %v1995, %v2009
      %v2012 = vlaneseq
      %v2013 = vshrl.u32 %v2012, 7
      %v2014 = vsub.s32 0, %v2013
      %v2015 = vrot.slane %v1989, %v2014
      %v2017 = vmul.f32 %v2015, %v2010
      %v2019 = vlaneseq
      %v2020 = vshrl.u32 %v2019, 7
      %v2021 = vsub.s32 0, %v2020
      %v2022 = vrot.slane %v1990, %v2021
      %v2024 = vadd.f32 %v2017, %v2022
      %v2025 = vld [vmem:[%s12] sm:$0xff]
      %v2026 = vld [vmem:[%s12 + $0x8] sm:$0xff]
      %v2027 = vld [vmem:[%s12 + $0x10] sm:$0xff]
      %v2028 = vld [vmem:[%s12 + $0x18] sm:$0xff]
      %v2029 = vld [vmem:[%s13] sm:$0x1]
      %v2031 = vlaneseq
      %v2032 = vshrl.u32 %v2031, 7
      %v2033 = vsub.s32 0, %v2032
      %v2034 = vrot.slane %v2029, %v2033
      %v2037 = vsel %vm790, %v2024, 0
      %v2040 = vsel %vm790, %v2025, 0
      %v2043 = vsel %vm790, %v2026, 0
      %v2046 = vsel %vm790, %v2027, 0
      %v2049 = vsel %vm790, %v2028, 0
      %2051 = vmatprep.subr.mxu0 0.0
      %2052 = vmatpush1.xpose.msra.mxu0 %v2040
      %2053 = vmatprep.subr.mxu0 0.0
      %2054 = vmatpush1.xpose.msra.mxu0 %v2043
      %2055 = vmatprep.subr.mxu0 0.0
      %2056 = vmatpush1.xpose.msra.mxu0 %v2046
      %2057 = vmatprep.subr.mxu0 0.0
      %2058 = vmatpush1.xpose.msra.mxu0 %v2049
      %2059 = vmatprep.subr.mxu0 0.0
      %2060 = vmatpush1.xpose.msra.mxu0 0.0
      %2061 = vmatprep.subr.mxu0 0.0
      %2062 = vmatpush1.xpose.msra.mxu0 0.0
      %2063 = vmatprep.subr.mxu0 0.0
      %2064 = vmatpush1.xpose.msra.mxu0 0.0
      %2065 = vmatprep.subr.mxu0 0.0
      %2066 = vmatpush1.xpose.msra.mxu0 0.0
      %2067 = vmatprep.subr.mxu0 0.0
      %2068 = vmatpush1.xpose.msra.mxu0 0.0
      %2069 = vmatprep.subr.mxu0 0.0
      %2070 = vmatpush1.xpose.msra.mxu0 0.0
      %2071 = vmatprep.subr.mxu0 0.0
      %2072 = vmatpush1.xpose.msra.mxu0 0.0
      %2073 = vmatprep.subr.mxu0 0.0
      %2074 = vmatpush1.xpose.msra.mxu0 0.0
      %2075 = vmatprep.subr.mxu0 0.0
      %2076 = vmatpush1.xpose.msra.mxu0 0.0
      %2077 = vmatprep.subr.mxu0 0.0
      %2078 = vmatpush1.xpose.msra.mxu0 0.0
      %2079 = vmatprep.subr.mxu0 0.0
      %2080 = vmatpush1.xpose.msra.mxu0 0.0
      %2081 = vmatprep.subr.mxu0 0.0
      %2082 = vmatpush1.xpose.msra.mxu0 0.0
      %2083 = vmatprep.subr.mxu0 0.0
      %2084 = vmatpush1.xpose.msra.mxu0 0.0
      %2085 = vmatprep.subr.mxu0 0.0
      %2086 = vmatpush1.xpose.msra.mxu0 0.0
      %2087 = vmatprep.subr.mxu0 0.0
      %2088 = vmatpush1.xpose.msra.mxu0 0.0
      %2089 = vmatprep.subr.mxu0 0.0
      %2090 = vmatpush1.xpose.msra.mxu0 0.0
      %2091 = vmatprep.subr.mxu0 0.0
      %2092 = vmatpush1.xpose.msra.mxu0 0.0
      %2093 = vmatprep.subr.mxu0 0.0
      %2094 = vmatpush1.xpose.msra.mxu0 0.0
      %2095 = vmatprep.subr.mxu0 0.0
      %2096 = vmatpush1.xpose.msra.mxu0 0.0
      %2097 = vmatprep.subr.mxu0 0.0
      %2098 = vmatpush1.xpose.msra.mxu0 0.0
      %2099 = vmatprep.subr.mxu0 0.0
      %2100 = vmatpush1.xpose.msra.mxu0 0.0
      %2101 = vmatprep.subr.mxu0 0.0
      %2102 = vmatpush1.xpose.msra.mxu0 0.0
      %2103 = vmatprep.subr.mxu0 0.0
      %2104 = vmatpush1.xpose.msra.mxu0 0.0
      %2105 = vmatprep.subr.mxu0 0.0
      %2106 = vmatpush1.xpose.msra.mxu0 0.0
      %2107 = vmatprep.subr.mxu0 0.0
      %2108 = vmatpush1.xpose.msra.mxu0 0.0
      %2109 = vmatprep.subr.mxu0 0.0
      %2110 = vmatpush1.xpose.msra.mxu0 0.0
      %2111 = vmatprep.subr.mxu0 0.0
      %2112 = vmatpush1.xpose.msra.mxu0 0.0
      %2113 = vmatprep.subr.mxu0 0.0
      %2114 = vmatpush1.xpose.msra.mxu0 0.0
      %2115 = vmatprep.mubr.f32.mxu0 0.0
      %2116 = vmatmul.mubr.f32.gmra.mrb[0].mxu0 %v2037
      %v2117 = vpop.f32.mrb[0].mxu0
      %v2118 = vadd.f32 %v2034, %v2117
      %v2119 = vpop.f32.mrb[0].mxu0
      %2120 = vdwg.mxu0
      %v2121 = vld [vmem:[%s14] sm:$0xff]
      %v2122 = vld [vmem:[%s14 + $0x8] sm:$0xff]
      %v2123 = vld [vmem:[%s14 + $0x10] sm:$0xff]
      %v2124 = vld [vmem:[%s14 + $0x18] sm:$0xff]
      %v2125 = vld [vmem:[%s14 + $0x20] sm:$0xff]
      %v2126 = vld [vmem:[%s14 + $0x28] sm:$0xff]
      %v2127 = vld [vmem:[%s14 + $0x30] sm:$0xff]
      %v2128 = vld [vmem:[%s14 + $0x38] sm:$0xff]
      %v2129 = vld [vmem:[%s15] sm:$0x1]
      %v2131 = vlaneseq
      %v2132 = vshrl.u32 %v2131, 7
      %v2133 = vsub.s32 0, %v2132
      %v2134 = vrot.slane %v2129, %v2133
      %v2137 = vsel %vm790, %v785, 0
      %v2140 = vsel %vm790, %v2121, 0
      %v2143 = vsel %vm790, %v2122, 0
      %v2146 = vsel %vm790, %v2123, 0
      %v2149 = vsel %vm790, %v2124, 0
      %v2152 = vsel %vm790, %v2125, 0
      %v2155 = vsel %vm790, %v2126, 0
      %v2158 = vsel %vm790, %v2127, 0
      %v2161 = vsel %vm790, %v2128, 0
      %2163 = vmatprep.subr.mxu0 0.0
      %2164 = vmatpush1.xpose.msra.mxu0 %v2140
      %2165 = vmatprep.subr.mxu0 0.0
      %2166 = vmatpush1.xpose.msra.mxu0 %v2143
      %2167 = vmatprep.subr.mxu0 0.0
      %2168 = vmatpush1.xpose.msra.mxu0 %v2146
      %2169 = vmatprep.subr.mxu0 0.0
      %2170 = vmatpush1.xpose.msra.mxu0 %v2149
      %2171 = vmatprep.subr.mxu0 0.0
      %2172 = vmatpush1.xpose.msra.mxu0 %v2152
      %2173 = vmatprep.subr.mxu0 0.0
      %2174 = vmatpush1.xpose.msra.mxu0 %v2155
      %2175 = vmatprep.subr.mxu0 0.0
      %2176 = vmatpush1.xpose.msra.mxu0 %v2158
      %2177 = vmatprep.subr.mxu0 0.0
      %2178 = vmatpush1.xpose.msra.mxu0 %v2161
      %2179 = vmatprep.subr.mxu0 0.0
      %2180 = vmatpush1.xpose.msra.mxu0 0.0
      %2181 = vmatprep.subr.mxu0 0.0
      %2182 = vmatpush1.xpose.msra.mxu0 0.0
      %2183 = vmatprep.subr.mxu0 0.0
      %2184 = vmatpush1.xpose.msra.mxu0 0.0
      %2185 = vmatprep.subr.mxu0 0.0
      %2186 = vmatpush1.xpose.msra.mxu0 0.0
      %2187 = vmatprep.subr.mxu0 0.0
      %2188 = vmatpush1.xpose.msra.mxu0 0.0
      %2189 = vmatprep.subr.mxu0 0.0
      %2190 = vmatpush1.xpose.msra.mxu0 0.0
      %2191 = vmatprep.subr.mxu0 0.0
      %2192 = vmatpush1.xpose.msra.mxu0 0.0
      %2193 = vmatprep.subr.mxu0 0.0
      %2194 = vmatpush1.xpose.msra.mxu0 0.0
      %2195 = vmatprep.subr.mxu0 0.0
      %2196 = vmatpush1.xpose.msra.mxu0 0.0
      %2197 = vmatprep.subr.mxu0 0.0
      %2198 = vmatpush1.xpose.msra.mxu0 0.0
      %2199 = vmatprep.subr.mxu0 0.0
      %2200 = vmatpush1.xpose.msra.mxu0 0.0
      %2201 = vmatprep.subr.mxu0 0.0
      %2202 = vmatpush1.xpose.msra.mxu0 0.0
      %2203 = vmatprep.subr.mxu0 0.0
      %2204 = vmatpush1.xpose.msra.mxu0 0.0
      %2205 = vmatprep.subr.mxu0 0.0
      %2206 = vmatpush1.xpose.msra.mxu0 0.0
      %2207 = vmatprep.subr.mxu0 0.0
      %2208 = vmatpush1.xpose.msra.mxu0 0.0
      %2209 = vmatprep.subr.mxu0 0.0
      %2210 = vmatpush1.xpose.msra.mxu0 0.0
      %2211 = vmatprep.subr.mxu0 0.0
      %2212 = vmatpush1.xpose.msra.mxu0 0.0
      %2213 = vmatprep.subr.mxu0 0.0
      %2214 = vmatpush1.xpose.msra.mxu0 0.0
      %2215 = vmatprep.subr.mxu0 0.0
      %2216 = vmatpush1.xpose.msra.mxu0 0.0
      %2217 = vmatprep.subr.mxu0 0.0
      %2218 = vmatpush1.xpose.msra.mxu0 0.0
      %2219 = vmatprep.subr.mxu0 0.0
      %2220 = vmatpush1.xpose.msra.mxu0 0.0
      %2221 = vmatprep.subr.mxu0 0.0
      %2222 = vmatpush1.xpose.msra.mxu0 0.0
      %2223 = vmatprep.subr.mxu0 0.0
      %2224 = vmatpush1.xpose.msra.mxu0 0.0
      %2225 = vmatprep.subr.mxu0 0.0
      %2226 = vmatpush1.xpose.msra.mxu0 0.0
      %2227 = vmatprep.mubr.f32.mxu0 0.0
      %2228 = vmatmul.mubr.f32.gmra.mrb[0].mxu0 %v2137
      %v2229 = vpop.f32.mrb[0].mxu0
      %v2230 = vadd.f32 %v2134, %v2229
      %v2231 = vpop.f32.mrb[0].mxu0
      %2232 = vdwg.mxu0
      %v2233 = vld [vmem:[%s16] sm:$0xff]
      %v2234 = vld [vmem:[%s16 + $0x8] sm:$0xff]
      %v2235 = vld [vmem:[%s16 + $0x10] sm:$0xff]
      %v2236 = vld [vmem:[%s16 + $0x18] sm:$0xff]
      %v2237 = vld [vmem:[%s17] sm:$0x1]
      %v2239 = vsel %vm962, %v2118, 0
      %v2242 = vsel %vm962, %v2230, 0
      %2244 = vmatprep.subr.mxu0 0.0
      %2245 = vmatpush1.xpose.msra.mxu0 %v2242
      %2246 = vmatprep.subr.mxu0 0.0
      %2247 = vmatpush1.xpose.msra.mxu0 0.0
      %2248 = vmatprep.subr.mxu0 0.0
      %2249 = vmatpush1.xpose.msra.mxu0 0.0
      %2250 = vmatprep.subr.mxu0 0.0
      %2251 = vmatpush1.xpose.msra.mxu0 0.0
      %2252 = vmatprep.subr.mxu0 0.0
      %2253 = vmatpush1.xpose.msra.mxu0 0.0
      %2254 = vmatprep.subr.mxu0 0.0
      %2255 = vmatpush1.xpose.msra.mxu0 0.0
      %2256 = vmatprep.subr.mxu0 0.0
      %2257 = vmatpush1.xpose.msra.mxu0 0.0
      %2258 = vmatprep.subr.mxu0 0.0
      %2259 = vmatpush1.xpose.msra.mxu0 0.0
      %2260 = vmatprep.subr.mxu0 0.0
      %2261 = vmatpush1.xpose.msra.mxu0 0.0
      %2262 = vmatprep.subr.mxu0 0.0
      %2263 = vmatpush1.xpose.msra.mxu0 0.0
      %2264 = vmatprep.subr.mxu0 0.0
      %2265 = vmatpush1.xpose.msra.mxu0 0.0
      %2266 = vmatprep.subr.mxu0 0.0
      %2267 = vmatpush1.xpose.msra.mxu0 0.0
      %2268 = vmatprep.subr.mxu0 0.0
      %2269 = vmatpush1.xpose.msra.mxu0 0.0
      %2270 = vmatprep.subr.mxu0 0.0
      %2271 = vmatpush1.xpose.msra.mxu0 0.0
      %2272 = vmatprep.subr.mxu0 0.0
      %2273 = vmatpush1.xpose.msra.mxu0 0.0
      %2274 = vmatprep.subr.mxu0 0.0
      %2275 = vmatpush1.xpose.msra.mxu0 0.0
      %2276 = vmatprep.subr.mxu0 0.0
      %2277 = vmatpush1.xpose.msra.mxu0 0.0
      %2278 = vmatprep.subr.mxu0 0.0
      %2279 = vmatpush1.xpose.msra.mxu0 0.0
      %2280 = vmatprep.subr.mxu0 0.0
      %2281 = vmatpush1.xpose.msra.mxu0 0.0
      %2282 = vmatprep.subr.mxu0 0.0
      %2283 = vmatpush1.xpose.msra.mxu0 0.0
      %2284 = vmatprep.subr.mxu0 0.0
      %2285 = vmatpush1.xpose.msra.mxu0 0.0
      %2286 = vmatprep.subr.mxu0 0.0
      %2287 = vmatpush1.xpose.msra.mxu0 0.0
      %2288 = vmatprep.subr.mxu0 0.0
      %2289 = vmatpush1.xpose.msra.mxu0 0.0
      %2290 = vmatprep.subr.mxu0 0.0
      %2291 = vmatpush1.xpose.msra.mxu0 0.0
      %2292 = vmatprep.subr.mxu0 0.0
      %2293 = vmatpush1.xpose.msra.mxu0 0.0
      %2294 = vmatprep.subr.mxu0 0.0
      %2295 = vmatpush1.xpose.msra.mxu0 0.0
      %2296 = vmatprep.subr.mxu0 0.0
      %2297 = vmatpush1.xpose.msra.mxu0 0.0
      %2298 = vmatprep.subr.mxu0 0.0
      %2299 = vmatpush1.xpose.msra.mxu0 0.0
      %2300 = vmatprep.subr.mxu0 0.0
      %2301 = vmatpush1.xpose.msra.mxu0 0.0
      %2302 = vmatprep.subr.mxu0 0.0
      %2303 = vmatpush1.xpose.msra.mxu0 0.0
      %2304 = vmatprep.subr.mxu0 0.0
      %2305 = vmatpush1.xpose.msra.mxu0 0.0
      %2306 = vmatprep.subr.mxu0 0.0
      %2307 = vmatpush1.xpose.msra.mxu0 0.0
      %2308 = vmatprep.mubr.f32.mxu0 0.0
      %2309 = vmatmul.mubr.f32.gmra.mrb[0].mxu0 %v2239
      %v2310 = vpop.f32.mrb[0].mxu0
      %v2311 = vadd.f32 0.0, %v2310
      %v2312 = vpop.f32.mrb[0].mxu0
      %2313 = vdwg.mxu0
      %v2314 = vmul.f32 %v2311, 0.35355338
      %v2315 = vadd.f32 %v2314, %v787
      %v2316 = vsel %vm962, %v2315, -inf
      %2317 = vmax.xlane.f32.xlu0 %v2316
      %v2318 = vpop.xlane.xlu0 %2317
      %v2319 = vsub.f32 %v2315, %v2318
      %v2320 = vmul.f32 %v2319, 1.442695
      %v2321 = vpow.pop %v2320
      %v2322 = vsel %vm962, %v2321, 0.0
      %2323 = vadd.xlane.f32.xlu0 %v2322
      %v2324 = vpop.xlane.xlu0 %2323
      %v2325 = vrcp.pop %v2324
      %v2326 = vmul.f32 %v2321, %v2325
      %2327 = vrot.lane.b32.xlu0 %v2230, 96
      %v2328 = vpop.permute.xlu0 %2327
      %v2331 = vsel %vm962, %v2326, 0
      %2333 = vmatprep.subr.mxu0 0.0
      %2334 = vmatpush1.msra.mxu0 %v2328
      %2335 = vmatprep.subr.mxu0 0.0
      %2336 = vmatpush1.msra.mxu0 0.0
      %2337 = vmatprep.subr.mxu0 0.0
      %2338 = vmatpush1.msra.mxu0 0.0
      %2339 = vmatprep.subr.mxu0 0.0
      %2340 = vmatpush1.msra.mxu0 0.0
      %2341 = vmatprep.subr.mxu0 0.0
      %2342 = vmatpush1.msra.mxu0 0.0
      %2343 = vmatprep.subr.mxu0 0.0
      %2344 = vmatpush1.msra.mxu0 0.0
      %2345 = vmatprep.subr.mxu0 0.0
      %2346 = vmatpush1.msra.mxu0 0.0
      %2347 = vmatprep.subr.mxu0 0.0
      %2348 = vmatpush1.msra.mxu0 0.0
      %2349 = vmatprep.subr.mxu0 0.0
      %2350 = vmatpush1.msra.mxu0 0.0
      %2351 = vmatprep.subr.mxu0 0.0
      %2352 = vmatpush1.msra.mxu0 0.0
      %2353 = vmatprep.subr.mxu0 0.0
      %2354 = vmatpush1.msra.mxu0 0.0
      %2355 = vmatprep.subr.mxu0 0.0
      %2356 = vmatpush1.msra.mxu0 0.0
      %2357 = vmatprep.subr.mxu0 0.0
      %2358 = vmatpush1.msra.mxu0 0.0
      %2359 = vmatprep.subr.mxu0 0.0
      %2360 = vmatpush1.msra.mxu0 0.0
      %2361 = vmatprep.subr.mxu0 0.0
      %2362 = vmatpush1.msra.mxu0 0.0
      %2363 = vmatprep.subr.mxu0 0.0
      %2364 = vmatpush1.msra.mxu0 0.0
      %2365 = vmatprep.subr.mxu0 0.0
      %2366 = vmatpush1.msra.mxu0 0.0
      %2367 = vmatprep.subr.mxu0 0.0
      %2368 = vmatpush1.msra.mxu0 0.0
      %2369 = vmatprep.subr.mxu0 0.0
      %2370 = vmatpush1.msra.mxu0 0.0
      %2371 = vmatprep.subr.mxu0 0.0
      %2372 = vmatpush1.msra.mxu0 0.0
      %2373 = vmatprep.subr.mxu0 0.0
      %2374 = vmatpush1.msra.mxu0 0.0
      %2375 = vmatprep.subr.mxu0 0.0
      %2376 = vmatpush1.msra.mxu0 0.0
      %2377 = vmatprep.subr.mxu0 0.0
      %2378 = vmatpush1.msra.mxu0 0.0
      %2379 = vmatprep.subr.mxu0 0.0
      %2380 = vmatpush1.msra.mxu0 0.0
      %2381 = vmatprep.subr.mxu0 0.0
      %2382 = vmatpush1.msra.mxu0 0.0
      %2383 = vmatprep.subr.mxu0 0.0
      %2384 = vmatpush1.msra.mxu0 0.0
      %2385 = vmatprep.subr.mxu0 0.0
      %2386 = vmatpush1.msra.mxu0 0.0
      %2387 = vmatprep.subr.mxu0 0.0
      %2388 = vmatpush1.msra.mxu0 0.0
      %2389 = vmatprep.subr.mxu0 0.0
      %2390 = vmatpush1.msra.mxu0 0.0
      %2391 = vmatprep.subr.mxu0 0.0
      %2392 = vmatpush1.msra.mxu0 0.0
      %2393 = vmatprep.subr.mxu0 0.0
      %2394 = vmatpush1.msra.mxu0 0.0
      %2395 = vmatprep.subr.mxu0 0.0
      %2396 = vmatpush1.msra.mxu0 0.0
      %2397 = vmatprep.mubr.f32.mxu0 0.0
      %2398 = vmatmul.mubr.f32.gmra.mrb[0].mxu0 %v2331
      %v2399 = vpop.f32.mrb[0].mxu0
      %v2400 = vadd.f32 0.0, %v2399
      %v2401 = vpop.f32.mrb[0].mxu0
      %2402 = vdwg.mxu0
      %2403 = vrot.lane.b32.xlu0 %v2118, 120
      %v2404 = vpop.permute.xlu0 %2403
      %2405 = vrot.lane.b32.xlu0 %v2230, 120
      %v2406 = vpop.permute.xlu0 %2405
      %v2407 = vsel %vm962, %v2404, 0
      %v2409 = vsel %vm962, %v2406, 0
      %2411 = vmatprep.subr.mxu0 0.0
      %2412 = vmatpush1.xpose.msra.mxu0 %v2409
      %2413 = vmatprep.subr.mxu0 0.0
      %2414 = vmatpush1.xpose.msra.mxu0 0.0
      %2415 = vmatprep.subr.mxu0 0.0
      %2416 = vmatpush1.xpose.msra.mxu0 0.0
      %2417 = vmatprep.subr.mxu0 0.0
      %2418 = vmatpush1.xpose.msra.mxu0 0.0
      %2419 = vmatprep.subr.mxu0 0.0
      %2420 = vmatpush1.xpose.msra.mxu0 0.0
      %2421 = vmatprep.subr.mxu0 0.0
      %2422 = vmatpush1.xpose.msra.mxu0 0.0
      %2423 = vmatprep.subr.mxu0 0.0
      %2424 = vmatpush1.xpose.msra.mxu0 0.0
      %2425 = vmatprep.subr.mxu0 0.0
      %2426 = vmatpush1.xpose.msra.mxu0 0.0
      %2427 = vmatprep.subr.mxu0 0.0
      %2428 = vmatpush1.xpose.msra.mxu0 0.0
      %2429 = vmatprep.subr.mxu0 0.0
      %2430 = vmatpush1.xpose.msra.mxu0 0.0
      %2431 = vmatprep.subr.mxu0 0.0
      %2432 = vmatpush1.xpose.msra.mxu0 0.0
      %2433 = vmatprep.subr.mxu0 0.0
      %2434 = vmatpush1.xpose.msra.mxu0 0.0
      %2435 = vmatprep.subr.mxu0 0.0
      %2436 = vmatpush1.xpose.msra.mxu0 0.0
      %2437 = vmatprep.subr.mxu0 0.0
      %2438 = vmatpush1.xpose.msra.mxu0 0.0
      %2439 = vmatprep.subr.mxu0 0.0
      %2440 = vmatpush1.xpose.msra.mxu0 0.0
      %2441 = vmatprep.subr.mxu0 0.0
      %2442 = vmatpush1.xpose.msra.mxu0 0.0
      %2443 = vmatprep.subr.mxu0 0.0
      %2444 = vmatpush1.xpose.msra.mxu0 0.0
      %2445 = vmatprep.subr.mxu0 0.0
      %2446 = vmatpush1.xpose.msra.mxu0 0.0
      %2447 = vmatprep.subr.mxu0 0.0
      %2448 = vmatpush1.xpose.msra.mxu0 0.0
      %2449 = vmatprep.subr.mxu0 0.0
      %2450 = vmatpush1.xpose.msra.mxu0 0.0
      %2451 = vmatprep.subr.mxu0 0.0
      %2452 = vmatpush1.xpose.msra.mxu0 0.0
      %2453 = vmatprep.subr.mxu0 0.0
      %2454 = vmatpush1.xpose.msra.mxu0 0.0
      %2455 = vmatprep.subr.mxu0 0.0
      %2456 = vmatpush1.xpose.msra.mxu0 0.0
      %2457 = vmatprep.subr.mxu0 0.0
      %2458 = vmatpush1.xpose.msra.mxu0 0.0
      %2459 = vmatprep.subr.mxu0 0.0
      %2460 = vmatpush1.xpose.msra.mxu0 0.0
      %2461 = vmatprep.subr.mxu0 0.0
      %2462 = vmatpush1.xpose.msra.mxu0 0.0
      %2463 = vmatprep.subr.mxu0 0.0
      %2464 = vmatpush1.xpose.msra.mxu0 0.0
      %2465 = vmatprep.subr.mxu0 0.0
      %2466 = vmatpush1.xpose.msra.mxu0 0.0
      %2467 = vmatprep.subr.mxu0 0.0
      %2468 = vmatpush1.xpose.msra.mxu0 0.0
      %2469 = vmatprep.subr.mxu0 0.0
      %2470 = vmatpush1.xpose.msra.mxu0 0.0
      %2471 = vmatprep.subr.mxu0 0.0
      %2472 = vmatpush1.xpose.msra.mxu0 0.0
      %2473 = vmatprep.subr.mxu0 0.0
      %2474 = vmatpush1.xpose.msra.mxu0 0.0
      %2475 = vmatprep.mubr.f32.mxu0 0.0
      %2476 = vmatmul.mubr.f32.gmra.mrb[0].mxu0 %v2407
      %v2477 = vpop.f32.mrb[0].mxu0
      %v2478 = vadd.f32 0.0, %v2477
      %v2479 = vpop.f32.mrb[0].mxu0
      %2480 = vdwg.mxu0
      %v2481 = vmul.f32 %v2478, 0.35355338
      %v2482 = vadd.f32 %v2481, %v787
      %v2483 = vsel %vm962, %v2482, -inf
      %2484 = vmax.xlane.f32.xlu0 %v2483
      %v2485 = vpop.xlane.xlu0 %2484
      %v2486 = vsub.f32 %v2482, %v2485
      %v2487 = vmul.f32 %v2486, 1.442695
      %v2488 = vpow.pop %v2487
      %v2489 = vsel %vm962, %v2488, 0.0
      %2490 = vadd.xlane.f32.xlu0 %v2489
      %v2491 = vpop.xlane.xlu0 %2490
      %v2492 = vrcp.pop %v2491
      %v2493 = vmul.f32 %v2488, %v2492
      %2494 = vrot.lane.b32.xlu0 %v2230, 88
      %v2495 = vpop.permute.xlu0 %2494
      %v2498 = vsel %vm962, %v2493, 0
      %2500 = vmatprep.subr.mxu0 0.0
      %2501 = vmatpush1.msra.mxu0 %v2495
      %2502 = vmatprep.subr.mxu0 0.0
      %2503 = vmatpush1.msra.mxu0 0.0
      %2504 = vmatprep.subr.mxu0 0.0
      %2505 = vmatpush1.msra.mxu0 0.0
      %2506 = vmatprep.subr.mxu0 0.0
      %2507 = vmatpush1.msra.mxu0 0.0
      %2508 = vmatprep.subr.mxu0 0.0
      %2509 = vmatpush1.msra.mxu0 0.0
      %2510 = vmatprep.subr.mxu0 0.0
      %2511 = vmatpush1.msra.mxu0 0.0
      %2512 = vmatprep.subr.mxu0 0.0
      %2513 = vmatpush1.msra.mxu0 0.0
      %2514 = vmatprep.subr.mxu0 0.0
      %2515 = vmatpush1.msra.mxu0 0.0
      %2516 = vmatprep.subr.mxu0 0.0
      %2517 = vmatpush1.msra.mxu0 0.0
      %2518 = vmatprep.subr.mxu0 0.0
      %2519 = vmatpush1.msra.mxu0 0.0
      %2520 = vmatprep.subr.mxu0 0.0
      %2521 = vmatpush1.msra.mxu0 0.0
      %2522 = vmatprep.subr.mxu0 0.0
      %2523 = vmatpush1.msra.mxu0 0.0
      %2524 = vmatprep.subr.mxu0 0.0
      %2525 = vmatpush1.msra.mxu0 0.0
      %2526 = vmatprep.subr.mxu0 0.0
      %2527 = vmatpush1.msra.mxu0 0.0
      %2528 = vmatprep.subr.mxu0 0.0
      %2529 = vmatpush1.msra.mxu0 0.0
      %2530 = vmatprep.subr.mxu0 0.0
      %2531 = vmatpush1.msra.mxu0 0.0
      %2532 = vmatprep.subr.mxu0 0.0
      %2533 = vmatpush1.msra.mxu0 0.0
      %2534 = vmatprep.subr.mxu0 0.0
      %2535 = vmatpush1.msra.mxu0 0.0
      %2536 = vmatprep.subr.mxu0 0.0
      %2537 = vmatpush1.msra.mxu0 0.0
      %2538 = vmatprep.subr.mxu0 0.0
      %2539 = vmatpush1.msra.mxu0 0.0
      %2540 = vmatprep.subr.mxu0 0.0
      %2541 = vmatpush1.msra.mxu0 0.0
      %2542 = vmatprep.subr.mxu0 0.0
      %2543 = vmatpush1.msra.mxu0 0.0
      %2544 = vmatprep.subr.mxu0 0.0
      %2545 = vmatpush1.msra.mxu0 0.0
      %2546 = vmatprep.subr.mxu0 0.0
      %2547 = vmatpush1.msra.mxu0 0.0
      %2548 = vmatprep.subr.mxu0 0.0
      %2549 = vmatpush1.msra.mxu0 0.0
      %2550 = vmatprep.subr.mxu0 0.0
      %2551 = vmatpush1.msra.mxu0 0.0
      %2552 = vmatprep.subr.mxu0 0.0
      %2553 = vmatpush1.msra.mxu0 0.0
      %2554 = vmatprep.subr.mxu0 0.0
      %2555 = vmatpush1.msra.mxu0 0.0
      %2556 = vmatprep.subr.mxu0 0.0
      %2557 = vmatpush1.msra.mxu0 0.0
      %2558 = vmatprep.subr.mxu0 0.0
      %2559 = vmatpush1.msra.mxu0 0.0
      %2560 = vmatprep.subr.mxu0 0.0
      %2561 = vmatpush1.msra.mxu0 0.0
      %2562 = vmatprep.subr.mxu0 0.0
      %2563 = vmatpush1.msra.mxu0 0.0
      %2564 = vmatprep.mubr.f32.mxu0 0.0
      %2565 = vmatmul.mubr.f32.gmra.mrb[0].mxu0 %v2498
      %v2566 = vpop.f32.mrb[0].mxu0
      %v2567 = vadd.f32 0.0, %v2566
      %v2568 = vpop.f32.mrb[0].mxu0
      %2569 = vdwg.mxu0
      %2574 = vrot.lane.b32.xlu0 %v2233, 120
      %v2575 = vpop.permute.xlu0 %2574
      %2576 = vrot.lane.b32.xlu0 %v2234, 120
      %v2577 = vpop.permute.xlu0 %2576
      %2578 = vrot.lane.b32.xlu0 %v2235, 120
      %v2579 = vpop.permute.xlu0 %2578
      %2580 = vrot.lane.b32.xlu0 %v2236, 120
      %v2581 = vpop.permute.xlu0 %2580
      %v2583 = vsel %vm962, %v2567, 0
      %v2585 = vsel %vm962, %v2575, 0
      %v2587 = vsel %vm962, %v2577, 0
      %v2589 = vsel %vm962, %v2579, 0
      %v2591 = vsel %vm962, %v2581, 0
      %2593 = vmatprep.subr.mxu0 0.0
      %2594 = vmatpush1.xpose.msra.mxu0 %v2585
      %2595 = vmatprep.subr.mxu0 0.0
      %2596 = vmatpush1.xpose.msra.mxu0 %v2587
      %2597 = vmatprep.subr.mxu0 0.0
      %2598 = vmatpush1.xpose.msra.mxu0 %v2589
      %2599 = vmatprep.subr.mxu0 0.0
      %2600 = vmatpush1.xpose.msra.mxu0 %v2591
      %2601 = vmatprep.subr.mxu0 0.0
      %2602 = vmatpush1.xpose.msra.mxu0 0.0
      %2603 = vmatprep.subr.mxu0 0.0
      %2604 = vmatpush1.xpose.msra.mxu0 0.0
      %2605 = vmatprep.subr.mxu0 0.0
      %2606 = vmatpush1.xpose.msra.mxu0 0.0
      %2607 = vmatprep.subr.mxu0 0.0
      %2608 = vmatpush1.xpose.msra.mxu0 0.0
      %2609 = vmatprep.subr.mxu0 0.0
      %2610 = vmatpush1.xpose.msra.mxu0 0.0
      %2611 = vmatprep.subr.mxu0 0.0
      %2612 = vmatpush1.xpose.msra.mxu0 0.0
      %2613 = vmatprep.subr.mxu0 0.0
      %2614 = vmatpush1.xpose.msra.mxu0 0.0
      %2615 = vmatprep.subr.mxu0 0.0
      %2616 = vmatpush1.xpose.msra.mxu0 0.0
      %2617 = vmatprep.subr.mxu0 0.0
      %2618 = vmatpush1.xpose.msra.mxu0 0.0
      %2619 = vmatprep.subr.mxu0 0.0
      %2620 = vmatpush1.xpose.msra.mxu0 0.0
      %2621 = vmatprep.subr.mxu0 0.0
      %2622 = vmatpush1.xpose.msra.mxu0 0.0
      %2623 = vmatprep.subr.mxu0 0.0
      %2624 = vmatpush1.xpose.msra.mxu0 0.0
      %2625 = vmatprep.subr.mxu0 0.0
      %2626 = vmatpush1.xpose.msra.mxu0 0.0
      %2627 = vmatprep.subr.mxu0 0.0
      %2628 = vmatpush1.xpose.msra.mxu0 0.0
      %2629 = vmatprep.subr.mxu0 0.0
      %2630 = vmatpush1.xpose.msra.mxu0 0.0
      %2631 = vmatprep.subr.mxu0 0.0
      %2632 = vmatpush1.xpose.msra.mxu0 0.0
      %2633 = vmatprep.subr.mxu0 0.0
      %2634 = vmatpush1.xpose.msra.mxu0 0.0
      %2635 = vmatprep.subr.mxu0 0.0
      %2636 = vmatpush1.xpose.msra.mxu0 0.0
      %2637 = vmatprep.subr.mxu0 0.0
      %2638 = vmatpush1.xpose.msra.mxu0 0.0
      %2639 = vmatprep.subr.mxu0 0.0
      %2640 = vmatpush1.xpose.msra.mxu0 0.0
      %2641 = vmatprep.subr.mxu0 0.0
      %2642 = vmatpush1.xpose.msra.mxu0 0.0
      %2643 = vmatprep.subr.mxu0 0.0
      %2644 = vmatpush1.xpose.msra.mxu0 0.0
      %2645 = vmatprep.subr.mxu0 0.0
      %2646 = vmatpush1.xpose.msra.mxu0 0.0
      %2647 = vmatprep.subr.mxu0 0.0
      %2648 = vmatpush1.xpose.msra.mxu0 0.0
      %2649 = vmatprep.subr.mxu0 0.0
      %2650 = vmatpush1.xpose.msra.mxu0 0.0
      %2651 = vmatprep.subr.mxu0 0.0
      %2652 = vmatpush1.xpose.msra.mxu0 0.0
      %2653 = vmatprep.subr.mxu0 0.0
      %2654 = vmatpush1.xpose.msra.mxu0 0.0
      %2655 = vmatprep.subr.mxu0 0.0
      %2656 = vmatpush1.xpose.msra.mxu0 0.0
      %2657 = vmatprep.mubr.f32.mxu0 0.0
      %2658 = vmatmul.mubr.f32.gmra.mrb[0].mxu0 %v2583
      %v2659 = vpop.f32.mrb[0].mxu0
      %v2660 = vadd.f32 0.0, %v2659
      %v2661 = vpop.f32.mrb[0].mxu0
      %2662 = vdwg.mxu0
      %v2664 = vsel %vm962, %v2400, 0
      %v2666 = vsel %vm962, %v2233, 0
      %v2668 = vsel %vm962, %v2234, 0
      %v2670 = vsel %vm962, %v2235, 0
      %v2672 = vsel %vm962, %v2236, 0
      %2674 = vmatprep.subr.mxu0 0.0
      %2675 = vmatpush1.xpose.msra.mxu0 %v2666
      %2676 = vmatprep.subr.mxu0 0.0
      %2677 = vmatpush1.xpose.msra.mxu0 %v2668
      %2678 = vmatprep.subr.mxu0 0.0
      %2679 = vmatpush1.xpose.msra.mxu0 %v2670
      %2680 = vmatprep.subr.mxu0 0.0
      %2681 = vmatpush1.xpose.msra.mxu0 %v2672
      %2682 = vmatprep.subr.mxu0 0.0
      %2683 = vmatpush1.xpose.msra.mxu0 0.0
      %2684 = vmatprep.subr.mxu0 0.0
      %2685 = vmatpush1.xpose.msra.mxu0 0.0
      %2686 = vmatprep.subr.mxu0 0.0
      %2687 = vmatpush1.xpose.msra.mxu0 0.0
      %2688 = vmatprep.subr.mxu0 0.0
      %2689 = vmatpush1.xpose.msra.mxu0 0.0
      %2690 = vmatprep.subr.mxu0 0.0
      %2691 = vmatpush1.xpose.msra.mxu0 0.0
      %2692 = vmatprep.subr.mxu0 0.0
      %2693 = vmatpush1.xpose.msra.mxu0 0.0
      %2694 = vmatprep.subr.mxu0 0.0
      %2695 = vmatpush1.xpose.msra.mxu0 0.0
      %2696 = vmatprep.subr.mxu0 0.0
      %2697 = vmatpush1.xpose.msra.mxu0 0.0
      %2698 = vmatprep.subr.mxu0 0.0
      %2699 = vmatpush1.xpose.msra.mxu0 0.0
      %2700 = vmatprep.subr.mxu0 0.0
      %2701 = vmatpush1.xpose.msra.mxu0 0.0
      %2702 = vmatprep.subr.mxu0 0.0
      %2703 = vmatpush1.xpose.msra.mxu0 0.0
      %2704 = vmatprep.subr.mxu0 0.0
      %2705 = vmatpush1.xpose.msra.mxu0 0.0
      %2706 = vmatprep.subr.mxu0 0.0
      %2707 = vmatpush1.xpose.msra.mxu0 0.0
      %2708 = vmatprep.subr.mxu0 0.0
      %2709 = vmatpush1.xpose.msra.mxu0 0.0
      %2710 = vmatprep.subr.mxu0 0.0
      %2711 = vmatpush1.xpose.msra.mxu0 0.0
      %2712 = vmatprep.subr.mxu0 0.0
      %2713 = vmatpush1.xpose.msra.mxu0 0.0
      %2714 = vmatprep.subr.mxu0 0.0
      %2715 = vmatpush1.xpose.msra.mxu0 0.0
      %2716 = vmatprep.subr.mxu0 0.0
      %2717 = vmatpush1.xpose.msra.mxu0 0.0
      %2718 = vmatprep.subr.mxu0 0.0
      %2719 = vmatpush1.xpose.msra.mxu0 0.0
      %2720 = vmatprep.subr.mxu0 0.0
      %2721 = vmatpush1.xpose.msra.mxu0 0.0
      %2722 = vmatprep.subr.mxu0 0.0
      %2723 = vmatpush1.xpose.msra.mxu0 0.0
      %2724 = vmatprep.subr.mxu0 0.0
      %2725 = vmatpush1.xpose.msra.mxu0 0.0
      %2726 = vmatprep.subr.mxu0 0.0
      %2727 = vmatpush1.xpose.msra.mxu0 0.0
      %2728 = vmatprep.subr.mxu0 0.0
      %2729 = vmatpush1.xpose.msra.mxu0 0.0
      %2730 = vmatprep.subr.mxu0 0.0
      %2731 = vmatpush1.xpose.msra.mxu0 0.0
      %2732 = vmatprep.subr.mxu0 0.0
      %2733 = vmatpush1.xpose.msra.mxu0 0.0
      %2734 = vmatprep.subr.mxu0 0.0
      %2735 = vmatpush1.xpose.msra.mxu0 0.0
      %2736 = vmatprep.subr.mxu0 0.0
      %2737 = vmatpush1.xpose.msra.mxu0 0.0
      %2738 = vmatprep.mubr.f32.mxu0 0.0
      %2739 = vmatmul.mubr.f32.gmra.mrb[0].mxu0 %v2664
      %v2740 = vpop.f32.mrb[0].mxu0
      %v2741 = vadd.f32 %v2660, %v2740
      %v2742 = vpop.f32.mrb[0].mxu0
      %2743 = vdwg.mxu0
      %2744 = vrot.lane.b32.xlu0 %v2118, 112
      %v2745 = vpop.permute.xlu0 %2744
      %2746 = vrot.lane.b32.xlu0 %v2230, 112
      %v2747 = vpop.permute.xlu0 %2746
      %v2748 = vsel %vm962, %v2745, 0
      %v2750 = vsel %vm962, %v2747, 0
      %2752 = vmatprep.subr.mxu0 0.0
      %2753 = vmatpush1.xpose.msra.mxu0 %v2750
      %2754 = vmatprep.subr.mxu0 0.0
      %2755 = vmatpush1.xpose.msra.mxu0 0.0
      %2756 = vmatprep.subr.mxu0 0.0
      %2757 = vmatpush1.xpose.msra.mxu0 0.0
      %2758 = vmatprep.subr.mxu0 0.0
      %2759 = vmatpush1.xpose.msra.mxu0 0.0
      %2760 = vmatprep.subr.mxu0 0.0
      %2761 = vmatpush1.xpose.msra.mxu0 0.0
      %2762 = vmatprep.subr.mxu0 0.0
      %2763 = vmatpush1.xpose.msra.mxu0 0.0
      %2764 = vmatprep.subr.mxu0 0.0
      %2765 = vmatpush1.xpose.msra.mxu0 0.0
      %2766 = vmatprep.subr.mxu0 0.0
      %2767 = vmatpush1.xpose.msra.mxu0 0.0
      %2768 = vmatprep.subr.mxu0 0.0
      %2769 = vmatpush1.xpose.msra.mxu0 0.0
      %2770 = vmatprep.subr.mxu0 0.0
      %2771 = vmatpush1.xpose.msra.mxu0 0.0
      %2772 = vmatprep.subr.mxu0 0.0
      %2773 = vmatpush1.xpose.msra.mxu0 0.0
      %2774 = vmatprep.subr.mxu0 0.0
      %2775 = vmatpush1.xpose.msra.mxu0 0.0
      %2776 = vmatprep.subr.mxu0 0.0
      %2777 = vmatpush1.xpose.msra.mxu0 0.0
      %2778 = vmatprep.subr.mxu0 0.0
      %2779 = vmatpush1.xpose.msra.mxu0 0.0
      %2780 = vmatprep.subr.mxu0 0.0
      %2781 = vmatpush1.xpose.msra.mxu0 0.0
      %2782 = vmatprep.subr.mxu0 0.0
      %2783 = vmatpush1.xpose.msra.mxu0 0.0
      %2784 = vmatprep.subr.mxu0 0.0
      %2785 = vmatpush1.xpose.msra.mxu0 0.0
      %2786 = vmatprep.subr.mxu0 0.0
      %2787 = vmatpush1.xpose.msra.mxu0 0.0
      %2788 = vmatprep.subr.mxu0 0.0
      %2789 = vmatpush1.xpose.msra.mxu0 0.0
      %2790 = vmatprep.subr.mxu0 0.0
      %2791 = vmatpush1.xpose.msra.mxu0 0.0
      %2792 = vmatprep.subr.mxu0 0.0
      %2793 = vmatpush1.xpose.msra.mxu0 0.0
      %2794 = vmatprep.subr.mxu0 0.0
      %2795 = vmatpush1.xpose.msra.mxu0 0.0
      %2796 = vmatprep.subr.mxu0 0.0
      %2797 = vmatpush1.xpose.msra.mxu0 0.0
      %2798 = vmatprep.subr.mxu0 0.0
      %2799 = vmatpush1.xpose.msra.mxu0 0.0
      %2800 = vmatprep.subr.mxu0 0.0
      %2801 = vmatpush1.xpose.msra.mxu0 0.0
      %2802 = vmatprep.subr.mxu0 0.0
      %2803 = vmatpush1.xpose.msra.mxu0 0.0
      %2804 = vmatprep.subr.mxu0 0.0
      %2805 = vmatpush1.xpose.msra.mxu0 0.0
      %2806 = vmatprep.subr.mxu0 0.0
      %2807 = vmatpush1.xpose.msra.mxu0 0.0
      %2808 = vmatprep.subr.mxu0 0.0
      %2809 = vmatpush1.xpose.msra.mxu0 0.0
      %2810 = vmatprep.subr.mxu0 0.0
      %2811 = vmatpush1.xpose.msra.mxu0 0.0
      %2812 = vmatprep.subr.mxu0 0.0
      %2813 = vmatpush1.xpose.msra.mxu0 0.0
      %2814 = vmatprep.subr.mxu0 0.0
      %2815 = vmatpush1.xpose.msra.mxu0 0.0
      %2816 = vmatprep.mubr.f32.mxu0 0.0
      %2817 = vmatmul.mubr.f32.gmra.mrb[0].mxu0 %v2748
      %v2818 = vpop.f32.mrb[0].mxu0
      %v2819 = vadd.f32 0.0, %v2818
      %v2820 = vpop.f32.mrb[0].mxu0
      %2821 = vdwg.mxu0
      %v2822 = vmul.f32 %v2819, 0.35355338
      %v2823 = vadd.f32 %v2822, %v787
      %v2824 = vsel %vm962, %v2823, -inf
      %2825 = vmax.xlane.f32.xlu0 %v2824
      %v2826 = vpop.xlane.xlu0 %2825
      %v2827 = vsub.f32 %v2823, %v2826
      %v2828 = vmul.f32 %v2827, 1.442695
      %v2829 = vpow.pop %v2828
      %v2830 = vsel %vm962, %v2829, 0.0
      %2831 = vadd.xlane.f32.xlu0 %v2830
      %v2832 = vpop.xlane.xlu0 %2831
      %v2833 = vrcp.pop %v2832
      %v2834 = vmul.f32 %v2829, %v2833
      %2835 = vrot.lane.b32.xlu0 %v2230, 80
      %v2836 = vpop.permute.xlu0 %2835
      %v2839 = vsel %vm962, %v2834, 0
      %2841 = vmatprep.subr.mxu0 0.0
      %2842 = vmatpush1.msra.mxu0 %v2836
      %2843 = vmatprep.subr.mxu0 0.0
      %2844 = vmatpush1.msra.mxu0 0.0
      %2845 = vmatprep.subr.mxu0 0.0
      %2846 = vmatpush1.msra.mxu0 0.0
      %2847 = vmatprep.subr.mxu0 0.0
      %2848 = vmatpush1.msra.mxu0 0.0
      %2849 = vmatprep.subr.mxu0 0.0
      %2850 = vmatpush1.msra.mxu0 0.0
      %2851 = vmatprep.subr.mxu0 0.0
      %2852 = vmatpush1.msra.mxu0 0.0
      %2853 = vmatprep.subr.mxu0 0.0
      %2854 = vmatpush1.msra.mxu0 0.0
      %2855 = vmatprep.subr.mxu0 0.0
      %2856 = vmatpush1.msra.mxu0 0.0
      %2857 = vmatprep.subr.mxu0 0.0
      %2858 = vmatpush1.msra.mxu0 0.0
      %2859 = vmatprep.subr.mxu0 0.0
      %2860 = vmatpush1.msra.mxu0 0.0
      %2861 = vmatprep.subr.mxu0 0.0
      %2862 = vmatpush1.msra.mxu0 0.0
      %2863 = vmatprep.subr.mxu0 0.0
      %2864 = vmatpush1.msra.mxu0 0.0
      %2865 = vmatprep.subr.mxu0 0.0
      %2866 = vmatpush1.msra.mxu0 0.0
      %2867 = vmatprep.subr.mxu0 0.0
      %2868 = vmatpush1.msra.mxu0 0.0
      %2869 = vmatprep.subr.mxu0 0.0
      %2870 = vmatpush1.msra.mxu0 0.0
      %2871 = vmatprep.subr.mxu0 0.0
      %2872 = vmatpush1.msra.mxu0 0.0
      %2873 = vmatprep.subr.mxu0 0.0
      %2874 = vmatpush1.msra.mxu0 0.0
      %2875 = vmatprep.subr.mxu0 0.0
      %2876 = vmatpush1.msra.mxu0 0.0
      %2877 = vmatprep.subr.mxu0 0.0
      %2878 = vmatpush1.msra.mxu0 0.0
      %2879 = vmatprep.subr.mxu0 0.0
      %2880 = vmatpush1.msra.mxu0 0.0
      %2881 = vmatprep.subr.mxu0 0.0
      %2882 = vmatpush1.msra.mxu0 0.0
      %2883 = vmatprep.subr.mxu0 0.0
      %2884 = vmatpush1.msra.mxu0 0.0
      %2885 = vmatprep.subr.mxu0 0.0
      %2886 = vmatpush1.msra.mxu0 0.0
      %2887 = vmatprep.subr.mxu0 0.0
      %2888 = vmatpush1.msra.mxu0 0.0
      %2889 = vmatprep.subr.mxu0 0.0
      %2890 = vmatpush1.msra.mxu0 0.0
      %2891 = vmatprep.subr.mxu0 0.0
      %2892 = vmatpush1.msra.mxu0 0.0
      %2893 = vmatprep.subr.mxu0 0.0
      %2894 = vmatpush1.msra.mxu0 0.0
      %2895 = vmatprep.subr.mxu0 0.0
      %2896 = vmatpush1.msra.mxu0 0.0
      %2897 = vmatprep.subr.mxu0 0.0
      %2898 = vmatpush1.msra.mxu0 0.0
      %2899 = vmatprep.subr.mxu0 0.0
      %2900 = vmatpush1.msra.mxu0 0.0
      %2901 = vmatprep.subr.mxu0 0.0
      %2902 = vmatpush1.msra.mxu0 0.0
      %2903 = vmatprep.subr.mxu0 0.0
      %2904 = vmatpush1.msra.mxu0 0.0
      %2905 = vmatprep.mubr.f32.mxu0 0.0
      %2906 = vmatmul.mubr.f32.gmra.mrb[0].mxu0 %v2839
      %v2907 = vpop.f32.mrb[0].mxu0
      %v2908 = vadd.f32 0.0, %v2907
      %v2909 = vpop.f32.mrb[0].mxu0
      %2910 = vdwg.mxu0
      %2911 = vrot.lane.b32.xlu0 %v2233, 112
      %v2912 = vpop.permute.xlu0 %2911
      %2913 = vrot.lane.b32.xlu0 %v2234, 112
      %v2914 = vpop.permute.xlu0 %2913
      %2915 = vrot.lane.b32.xlu0 %v2235, 112
      %v2916 = vpop.permute.xlu0 %2915
      %2917 = vrot.lane.b32.xlu0 %v2236, 112
      %v2918 = vpop.permute.xlu0 %2917
      %v2920 = vsel %vm962, %v2908, 0
      %v2922 = vsel %vm962, %v2912, 0
      %v2924 = vsel %vm962, %v2914, 0
      %v2926 = vsel %vm962, %v2916, 0
      %v2928 = vsel %vm962, %v2918, 0
      %2930 = vmatprep.subr.mxu0 0.0
      %2931 = vmatpush1.xpose.msra.mxu0 %v2922
      %2932 = vmatprep.subr.mxu0 0.0
      %2933 = vmatpush1.xpose.msra.mxu0 %v2924
      %2934 = vmatprep.subr.mxu0 0.0
      %2935 = vmatpush1.xpose.msra.mxu0 %v2926
      %2936 = vmatprep.subr.mxu0 0.0
      %2937 = vmatpush1.xpose.msra.mxu0 %v2928
      %2938 = vmatprep.subr.mxu0 0.0
      %2939 = vmatpush1.xpose.msra.mxu0 0.0
      %2940 = vmatprep.subr.mxu0 0.0
      %2941 = vmatpush1.xpose.msra.mxu0 0.0
      %2942 = vmatprep.subr.mxu0 0.0
      %2943 = vmatpush1.xpose.msra.mxu0 0.0
      %2944 = vmatprep.subr.mxu0 0.0
      %2945 = vmatpush1.xpose.msra.mxu0 0.0
      %2946 = vmatprep.subr.mxu0 0.0
      %2947 = vmatpush1.xpose.msra.mxu0 0.0
      %2948 = vmatprep.subr.mxu0 0.0
      %2949 = vmatpush1.xpose.msra.mxu0 0.0
      %2950 = vmatprep.subr.mxu0 0.0
      %2951 = vmatpush1.xpose.msra.mxu0 0.0
      %2952 = vmatprep.subr.mxu0 0.0
      %2953 = vmatpush1.xpose.msra.mxu0 0.0
      %2954 = vmatprep.subr.mxu0 0.0
      %2955 = vmatpush1.xpose.msra.mxu0 0.0
      %2956 = vmatprep.subr.mxu0 0.0
      %2957 = vmatpush1.xpose.msra.mxu0 0.0
      %2958 = vmatprep.subr.mxu0 0.0
      %2959 = vmatpush1.xpose.msra.mxu0 0.0
      %2960 = vmatprep.subr.mxu0 0.0
      %2961 = vmatpush1.xpose.msra.mxu0 0.0
      %2962 = vmatprep.subr.mxu0 0.0
      %2963 = vmatpush1.xpose.msra.mxu0 0.0
      %2964 = vmatprep.subr.mxu0 0.0
      %2965 = vmatpush1.xpose.msra.mxu0 0.0
      %2966 = vmatprep.subr.mxu0 0.0
      %2967 = vmatpush1.xpose.msra.mxu0 0.0
      %2968 = vmatprep.subr.mxu0 0.0
      %2969 = vmatpush1.xpose.msra.mxu0 0.0
      %2970 = vmatprep.subr.mxu0 0.0
      %2971 = vmatpush1.xpose.msra.mxu0 0.0
      %2972 = vmatprep.subr.mxu0 0.0
      %2973 = vmatpush1.xpose.msra.mxu0 0.0
      %2974 = vmatprep.subr.mxu0 0.0
      %2975 = vmatpush1.xpose.msra.mxu0 0.0
      %2976 = vmatprep.subr.mxu0 0.0
      %2977 = vmatpush1.xpose.msra.mxu0 0.0
      %2978 = vmatprep.subr.mxu0 0.0
      %2979 = vmatpush1.xpose.msra.mxu0 0.0
      %2980 = vmatprep.subr.mxu0 0.0
      %2981 = vmatpush1.xpose.msra.mxu0 0.0
      %2982 = vmatprep.subr.mxu0 0.0
      %2983 = vmatpush1.xpose.msra.mxu0 0.0
      %2984 = vmatprep.subr.mxu0 0.0
      %2985 = vmatpush1.xpose.msra.mxu0 0.0
      %2986 = vmatprep.subr.mxu0 0.0
      %2987 = vmatpush1.xpose.msra.mxu0 0.0
      %2988 = vmatprep.subr.mxu0 0.0
      %2989 = vmatpush1.xpose.msra.mxu0 0.0
      %2990 = vmatprep.subr.mxu0 0.0
      %2991 = vmatpush1.xpose.msra.mxu0 0.0
      %2992 = vmatprep.subr.mxu0 0.0
      %2993 = vmatpush1.xpose.msra.mxu0 0.0
      %2994 = vmatprep.mubr.f32.mxu0 0.0
      %2995 = vmatmul.mubr.f32.gmra.mrb[0].mxu0 %v2920
      %v2996 = vpop.f32.mrb[0].mxu0
      %v2997 = vadd.f32 0.0, %v2996
      %v2998 = vpop.f32.mrb[0].mxu0
      %2999 = vdwg.mxu0
      %v3000 = vadd.f32 %v2741, %v2997
      %3001 = vrot.lane.b32.xlu0 %v2118, 104
      %v3002 = vpop.permute.xlu0 %3001
      %3003 = vrot.lane.b32.xlu0 %v2230, 104
      %v3004 = vpop.permute.xlu0 %3003
      %v3005 = vsel %vm962, %v3002, 0
      %v3007 = vsel %vm962, %v3004, 0
      %3009 = vmatprep.subr.mxu0 0.0
      %3010 = vmatpush1.xpose.msra.mxu0 %v3007
      %3011 = vmatprep.subr.mxu0 0.0
      %3012 = vmatpush1.xpose.msra.mxu0 0.0
      %3013 = vmatprep.subr.mxu0 0.0
      %3014 = vmatpush1.xpose.msra.mxu0 0.0
      %3015 = vmatprep.subr.mxu0 0.0
      %3016 = vmatpush1.xpose.msra.mxu0 0.0
      %3017 = vmatprep.subr.mxu0 0.0
      %3018 = vmatpush1.xpose.msra.mxu0 0.0
      %3019 = vmatprep.subr.mxu0 0.0
      %3020 = vmatpush1.xpose.msra.mxu0 0.0
      %3021 = vmatprep.subr.mxu0 0.0
      %3022 = vmatpush1.xpose.msra.mxu0 0.0
      %3023 = vmatprep.subr.mxu0 0.0
      %3024 = vmatpush1.xpose.msra.mxu0 0.0
      %3025 = vmatprep.subr.mxu0 0.0
      %3026 = vmatpush1.xpose.msra.mxu0 0.0
      %3027 = vmatprep.subr.mxu0 0.0
      %3028 = vmatpush1.xpose.msra.mxu0 0.0
      %3029 = vmatprep.subr.mxu0 0.0
      %3030 = vmatpush1.xpose.msra.mxu0 0.0
      %3031 = vmatprep.subr.mxu0 0.0
      %3032 = vmatpush1.xpose.msra.mxu0 0.0
      %3033 = vmatprep.subr.mxu0 0.0
      %3034 = vmatpush1.xpose.msra.mxu0 0.0
      %3035 = vmatprep.subr.mxu0 0.0
      %3036 = vmatpush1.xpose.msra.mxu0 0.0
      %3037 = vmatprep.subr.mxu0 0.0
      %3038 = vmatpush1.xpose.msra.mxu0 0.0
      %3039 = vmatprep.subr.mxu0 0.0
      %3040 = vmatpush1.xpose.msra.mxu0 0.0
      %3041 = vmatprep.subr.mxu0 0.0
      %3042 = vmatpush1.xpose.msra.mxu0 0.0
      %3043 = vmatprep.subr.mxu0 0.0
      %3044 = vmatpush1.xpose.msra.mxu0 0.0
      %3045 = vmatprep.subr.mxu0 0.0
      %3046 = vmatpush1.xpose.msra.mxu0 0.0
      %3047 = vmatprep.subr.mxu0 0.0
      %3048 = vmatpush1.xpose.msra.mxu0 0.0
      %3049 = vmatprep.subr.mxu0 0.0
      %3050 = vmatpush1.xpose.msra.mxu0 0.0
      %3051 = vmatprep.subr.mxu0 0.0
      %3052 = vmatpush1.xpose.msra.mxu0 0.0
      %3053 = vmatprep.subr.mxu0 0.0
      %3054 = vmatpush1.xpose.msra.mxu0 0.0
      %3055 = vmatprep.subr.mxu0 0.0
      %3056 = vmatpush1.xpose.msra.mxu0 0.0
      %3057 = vmatprep.subr.mxu0 0.0
      %3058 = vmatpush1.xpose.msra.mxu0 0.0
      %3059 = vmatprep.subr.mxu0 0.0
      %3060 = vmatpush1.xpose.msra.mxu0 0.0
      %3061 = vmatprep.subr.mxu0 0.0
      %3062 = vmatpush1.xpose.msra.mxu0 0.0
      %3063 = vmatprep.subr.mxu0 0.0
      %3064 = vmatpush1.xpose.msra.mxu0 0.0
      %3065 = vmatprep.subr.mxu0 0.0
      %3066 = vmatpush1.xpose.msra.mxu0 0.0
      %3067 = vmatprep.subr.mxu0 0.0
      %3068 = vmatpush1.xpose.msra.mxu0 0.0
      %3069 = vmatprep.subr.mxu0 0.0
      %3070 = vmatpush1.xpose.msra.mxu0 0.0
      %3071 = vmatprep.subr.mxu0 0.0
      %3072 = vmatpush1.xpose.msra.mxu0 0.0
      %3073 = vmatprep.mubr.f32.mxu0 0.0
      %3074 = vmatmul.mubr.f32.gmra.mrb[0].mxu0 %v3005
      %v3075 = vpop.f32.mrb[0].mxu0
      %v3076 = vadd.f32 0.0, %v3075
      %v3077 = vpop.f32.mrb[0].mxu0
      %3078 = vdwg.mxu0
      %v3079 = vmul.f32 %v3076, 0.35355338
      %v3080 = vadd.f32 %v3079, %v787
      %v3081 = vsel %vm962, %v3080, -inf
      %3082 = vmax.xlane.f32.xlu0 %v3081
      %v3083 = vpop.xlane.xlu0 %3082
      %v3084 = vsub.f32 %v3080, %v3083
      %v3085 = vmul.f32 %v3084, 1.442695
      %v3086 = vpow.pop %v3085
      %v3087 = vsel %vm962, %v3086, 0.0
      %3088 = vadd.xlane.f32.xlu0 %v3087
      %v3089 = vpop.xlane.xlu0 %3088
      %v3090 = vrcp.pop %v3089
      %v3091 = vmul.f32 %v3086, %v3090
      %3092 = vrot.lane.b32.xlu0 %v2230, 72
      %v3093 = vpop.permute.xlu0 %3092
      %v3096 = vsel %vm962, %v3091, 0
      %3098 = vmatprep.subr.mxu0 0.0
      %3099 = vmatpush1.msra.mxu0 %v3093
      %3100 = vmatprep.subr.mxu0 0.0
      %3101 = vmatpush1.msra.mxu0 0.0
      %3102 = vmatprep.subr.mxu0 0.0
      %3103 = vmatpush1.msra.mxu0 0.0
      %3104 = vmatprep.subr.mxu0 0.0
      %3105 = vmatpush1.msra.mxu0 0.0
      %3106 = vmatprep.subr.mxu0 0.0
      %3107 = vmatpush1.msra.mxu0 0.0
      %3108 = vmatprep.subr.mxu0 0.0
      %3109 = vmatpush1.msra.mxu0 0.0
      %3110 = vmatprep.subr.mxu0 0.0
      %3111 = vmatpush1.msra.mxu0 0.0
      %3112 = vmatprep.subr.mxu0 0.0
      %3113 = vmatpush1.msra.mxu0 0.0
      %3114 = vmatprep.subr.mxu0 0.0
      %3115 = vmatpush1.msra.mxu0 0.0
      %3116 = vmatprep.subr.mxu0 0.0
      %3117 = vmatpush1.msra.mxu0 0.0
      %3118 = vmatprep.subr.mxu0 0.0
      %3119 = vmatpush1.msra.mxu0 0.0
      %3120 = vmatprep.subr.mxu0 0.0
      %3121 = vmatpush1.msra.mxu0 0.0
      %3122 = vmatprep.subr.mxu0 0.0
      %3123 = vmatpush1.msra.mxu0 0.0
      %3124 = vmatprep.subr.mxu0 0.0
      %3125 = vmatpush1.msra.mxu0 0.0
      %3126 = vmatprep.subr.mxu0 0.0
      %3127 = vmatpush1.msra.mxu0 0.0
      %3128 = vmatprep.subr.mxu0 0.0
      %3129 = vmatpush1.msra.mxu0 0.0
      %3130 = vmatprep.subr.mxu0 0.0
      %3131 = vmatpush1.msra.mxu0 0.0
      %3132 = vmatprep.subr.mxu0 0.0
      %3133 = vmatpush1.msra.mxu0 0.0
      %3134 = vmatprep.subr.mxu0 0.0
      %3135 = vmatpush1.msra.mxu0 0.0
      %3136 = vmatprep.subr.mxu0 0.0
      %3137 = vmatpush1.msra.mxu0 0.0
      %3138 = vmatprep.subr.mxu0 0.0
      %3139 = vmatpush1.msra.mxu0 0.0
      %3140 = vmatprep.subr.mxu0 0.0
      %3141 = vmatpush1.msra.mxu0 0.0
      %3142 = vmatprep.subr.mxu0 0.0
      %3143 = vmatpush1.msra.mxu0 0.0
      %3144 = vmatprep.subr.mxu0 0.0
      %3145 = vmatpush1.msra.mxu0 0.0
      %3146 = vmatprep.subr.mxu0 0.0
      %3147 = vmatpush1.msra.mxu0 0.0
      %3148 = vmatprep.subr.mxu0 0.0
      %3149 = vmatpush1.msra.mxu0 0.0
      %3150 = vmatprep.subr.mxu0 0.0
      %3151 = vmatpush1.msra.mxu0 0.0
      %3152 = vmatprep.subr.mxu0 0.0
      %3153 = vmatpush1.msra.mxu0 0.0
      %3154 = vmatprep.subr.mxu0 0.0
      %3155 = vmatpush1.msra.mxu0 0.0
      %3156 = vmatprep.subr.mxu0 0.0
      %3157 = vmatpush1.msra.mxu0 0.0
      %3158 = vmatprep.subr.mxu0 0.0
      %3159 = vmatpush1.msra.mxu0 0.0
      %3160 = vmatprep.subr.mxu0 0.0
      %3161 = vmatpush1.msra.mxu0 0.0
      %3162 = vmatprep.mubr.f32.mxu0 0.0
      %3163 = vmatmul.mubr.f32.gmra.mrb[0].mxu0 %v3096
      %v3164 = vpop.f32.mrb[0].mxu0
      %v3165 = vadd.f32 0.0, %v3164
      %v3166 = vpop.f32.mrb[0].mxu0
      %3167 = vdwg.mxu0
      %3168 = vrot.lane.b32.xlu0 %v2233, 104
      %v3169 = vpop.permute.xlu0 %3168
      %3170 = vrot.lane.b32.xlu0 %v2234, 104
      %v3171 = vpop.permute.xlu0 %3170
      %3172 = vrot.lane.b32.xlu0 %v2235, 104
      %v3173 = vpop.permute.xlu0 %3172
      %3174 = vrot.lane.b32.xlu0 %v2236, 104
      %v3175 = vpop.permute.xlu0 %3174
      %v3177 = vsel %vm962, %v3165, 0
      %v3179 = vsel %vm962, %v3169, 0
      %v3181 = vsel %vm962, %v3171, 0
      %v3183 = vsel %vm962, %v3173, 0
      %v3185 = vsel %vm962, %v3175, 0
      %3187 = vmatprep.subr.mxu0 0.0
      %3188 = vmatpush1.xpose.msra.mxu0 %v3179
      %3189 = vmatprep.subr.mxu0 0.0
      %3190 = vmatpush1.xpose.msra.mxu0 %v3181
      %3191 = vmatprep.subr.mxu0 0.0
      %3192 = vmatpush1.xpose.msra.mxu0 %v3183
      %3193 = vmatprep.subr.mxu0 0.0
      %3194 = vmatpush1.xpose.msra.mxu0 %v3185
      %3195 = vmatprep.subr.mxu0 0.0
      %3196 = vmatpush1.xpose.msra.mxu0 0.0
      %3197 = vmatprep.subr.mxu0 0.0
      %3198 = vmatpush1.xpose.msra.mxu0 0.0
      %3199 = vmatprep.subr.mxu0 0.0
      %3200 = vmatpush1.xpose.msra.mxu0 0.0
      %3201 = vmatprep.subr.mxu0 0.0
      %3202 = vmatpush1.xpose.msra.mxu0 0.0
      %3203 = vmatprep.subr.mxu0 0.0
      %3204 = vmatpush1.xpose.msra.mxu0 0.0
      %3205 = vmatprep.subr.mxu0 0.0
      %3206 = vmatpush1.xpose.msra.mxu0 0.0
      %3207 = vmatprep.subr.mxu0 0.0
      %3208 = vmatpush1.xpose.msra.mxu0 0.0
      %3209 = vmatprep.subr.mxu0 0.0
      %3210 = vmatpush1.xpose.msra.mxu0 0.0
      %3211 = vmatprep.subr.mxu0 0.0
      %3212 = vmatpush1.xpose.msra.mxu0 0.0
      %3213 = vmatprep.subr.mxu0 0.0
      %3214 = vmatpush1.xpose.msra.mxu0 0.0
      %3215 = vmatprep.subr.mxu0 0.0
      %3216 = vmatpush1.xpose.msra.mxu0 0.0
      %3217 = vmatprep.subr.mxu0 0.0
      %3218 = vmatpush1.xpose.msra.mxu0 0.0
      %3219 = vmatprep.subr.mxu0 0.0
      %3220 = vmatpush1.xpose.msra.mxu0 0.0
      %3221 = vmatprep.subr.mxu0 0.0
      %3222 = vmatpush1.xpose.msra.mxu0 0.0
      %3223 = vmatprep.subr.mxu0 0.0
      %3224 = vmatpush1.xpose.msra.mxu0 0.0
      %3225 = vmatprep.subr.mxu0 0.0
      %3226 = vmatpush1.xpose.msra.mxu0 0.0
      %3227 = vmatprep.subr.mxu0 0.0
      %3228 = vmatpush1.xpose.msra.mxu0 0.0
      %3229 = vmatprep.subr.mxu0 0.0
      %3230 = vmatpush1.xpose.msra.mxu0 0.0
      %3231 = vmatprep.subr.mxu0 0.0
      %3232 = vmatpush1.xpose.msra.mxu0 0.0
      %3233 = vmatprep.subr.mxu0 0.0
      %3234 = vmatpush1.xpose.msra.mxu0 0.0
      %3235 = vmatprep.subr.mxu0 0.0
      %3236 = vmatpush1.xpose.msra.mxu0 0.0
      %3237 = vmatprep.subr.mxu0 0.0
      %3238 = vmatpush1.xpose.msra.mxu0 0.0
      %3239 = vmatprep.subr.mxu0 0.0
      %3240 = vmatpush1.xpose.msra.mxu0 0.0
      %3241 = vmatprep.subr.mxu0 0.0
      %3242 = vmatpush1.xpose.msra.mxu0 0.0
      %3243 = vmatprep.subr.mxu0 0.0
      %3244 = vmatpush1.xpose.msra.mxu0 0.0
      %3245 = vmatprep.subr.mxu0 0.0
      %3246 = vmatpush1.xpose.msra.mxu0 0.0
      %3247 = vmatprep.subr.mxu0 0.0
      %3248 = vmatpush1.xpose.msra.mxu0 0.0
      %3249 = vmatprep.subr.mxu0 0.0
      %3250 = vmatpush1.xpose.msra.mxu0 0.0
      %3251 = vmatprep.mubr.f32.mxu0 0.0
      %3252 = vmatmul.mubr.f32.gmra.mrb[0].mxu0 %v3177
      %v3253 = vpop.f32.mrb[0].mxu0
      %v3254 = vadd.f32 0.0, %v3253
      %v3255 = vpop.f32.mrb[0].mxu0
      %3256 = vdwg.mxu0
      %v3257 = vadd.f32 %v3000, %v3254
      %v3259 = vlaneseq
      %v3260 = vshrl.u32 %v3259, 7
      %v3261 = vsub.s32 0, %v3260
      %v3262 = vrot.slane %v2237, %v3261
      %v3264 = vadd.f32 %v3257, %v3262
      %v3265 = vadd.f32 %v1988, %v3264
      %v3266 = vld [vmem:[%s18] sm:$0x1]
      %v3267 = vld [vmem:[%s19] sm:$0x1]
      %v3268 = vsel %vm790, %v3265, 0.0
      %3269 = vadd.xlane.f32.xlu0 %v3268
      %v3270 = vpop.xlane.xlu0 %3269
      %v3271 = vmul.f32 %v3270, %v794
      %v3272 = vsub.f32 %v3265, %v3271
      %v3273 = vmul.f32 %v3272, %v3272
      %v3274 = vsel %vm790, %v3273, 0.0
      %3275 = vadd.xlane.f32.xlu0 %v3274
      %v3276 = vpop.xlane.xlu0 %3275
      %v3277 = vmul.f32 %v3276, 0.032258064
      %v3278 = vrsqrt.pop %v3277
      %v3279 = vmul.f32 %v3277, %v3278
      %vm3280 = vcmp.eq.f32.partialorder %v3277, inf
      %v3281 = vsel %vm3280, %v3277, %v3279
      %vm3282 = vcmp.eq.f32.partialorder %v3277, 0.0
      %v3283 = vand.u32 %v3277, 2147483648
      %v3284 = vsel %vm3282, %v3283, %v3281
      %v3285 = vadd.f32 %v3284, 1e-06
      %v3286 = vrcp.pop %v3285
      %v3287 = vmul.f32 %v3272, %v3286
      %v3289 = vlaneseq
      %v3290 = vshrl.u32 %v3289, 7
      %v3291 = vsub.s32 0, %v3290
      %v3292 = vrot.slane %v3266, %v3291
      %v3294 = vmul.f32 %v3292, %v3287
      %v3296 = vlaneseq
      %v3297 = vshrl.u32 %v3296, 7
      %v3298 = vsub.s32 0, %v3297
      %v3299 = vrot.slane %v3267, %v3298
      %v3301 = vadd.f32 %v3294, %v3299
      %v3302 = vld [vmem:[%s20] sm:$0xff]
      %v3303 = vld [vmem:[%s20 + $0x8] sm:$0xff]
      %v3304 = vld [vmem:[%s20 + $0x10] sm:$0xff]
      %v3305 = vld [vmem:[%s20 + $0x18] sm:$0xff]
      %v3306 = vld [vmem:[%s20 + $0x20] sm:$0xff]
      %v3307 = vld [vmem:[%s20 + $0x28] sm:$0xff]
      %v3308 = vld [vmem:[%s20 + $0x30] sm:$0xff]
      %v3309 = vld [vmem:[%s20 + $0x38] sm:$0xff]
      %v3310 = vld [vmem:[%s21] sm:$0x1]
      %v3312 = vlaneseq
      %v3313 = vshrl.u32 %v3312, 7
      %v3314 = vsub.s32 0, %v3313
      %v3315 = vrot.slane %v3310, %v3314
      %v3318 = vsel %vm790, %v3301, 0
      %v3321 = vsel %vm790, %v3302, 0
      %v3324 = vsel %vm790, %v3303, 0
      %v3327 = vsel %vm790, %v3304, 0
      %v3330 = vsel %vm790, %v3305, 0
      %v3333 = vsel %vm790, %v3306, 0
      %v3336 = vsel %vm790, %v3307, 0
      %v3339 = vsel %vm790, %v3308, 0
      %v3342 = vsel %vm790, %v3309, 0
      %3344 = vmatprep.subr.mxu0 0.0
      %3345 = vmatpush1.xpose.msra.mxu0 %v3321
      %3346 = vmatprep.subr.mxu0 0.0
      %3347 = vmatpush1.xpose.msra.mxu0 %v3324
      %3348 = vmatprep.subr.mxu0 0.0
      %3349 = vmatpush1.xpose.msra.mxu0 %v3327
      %3350 = vmatprep.subr.mxu0 0.0
      %3351 = vmatpush1.xpose.msra.mxu0 %v3330
      %3352 = vmatprep.subr.mxu0 0.0
      %3353 = vmatpush1.xpose.msra.mxu0 %v3333
      %3354 = vmatprep.subr.mxu0 0.0
      %3355 = vmatpush1.xpose.msra.mxu0 %v3336
      %3356 = vmatprep.subr.mxu0 0.0
      %3357 = vmatpush1.xpose.msra.mxu0 %v3339
      %3358 = vmatprep.subr.mxu0 0.0
      %3359 = vmatpush1.xpose.msra.mxu0 %v3342
      %3360 = vmatprep.subr.mxu0 0.0
      %3361 = vmatpush1.xpose.msra.mxu0 0.0
      %3362 = vmatprep.subr.mxu0 0.0
      %3363 = vmatpush1.xpose.msra.mxu0 0.0
      %3364 = vmatprep.subr.mxu0 0.0
      %3365 = vmatpush1.xpose.msra.mxu0 0.0
      %3366 = vmatprep.subr.mxu0 0.0
      %3367 = vmatpush1.xpose.msra.mxu0 0.0
      %3368 = vmatprep.subr.mxu0 0.0
      %3369 = vmatpush1.xpose.msra.mxu0 0.0
      %3370 = vmatprep.subr.mxu0 0.0
      %3371 = vmatpush1.xpose.msra.mxu0 0.0
      %3372 = vmatprep.subr.mxu0 0.0
      %3373 = vmatpush1.xpose.msra.mxu0 0.0
      %3374 = vmatprep.subr.mxu0 0.0
      %3375 = vmatpush1.xpose.msra.mxu0 0.0
      %3376 = vmatprep.subr.mxu0 0.0
      %3377 = vmatpush1.xpose.msra.mxu0 0.0
      %3378 = vmatprep.subr.mxu0 0.0
      %3379 = vmatpush1.xpose.msra.mxu0 0.0
      %3380 = vmatprep.subr.mxu0 0.0
      %3381 = vmatpush1.xpose.msra.mxu0 0.0
      %3382 = vmatprep.subr.mxu0 0.0
      %3383 = vmatpush1.xpose.msra.mxu0 0.0
      %3384 = vmatprep.subr.mxu0 0.0
      %3385 = vmatpush1.xpose.msra.mxu0 0.0
      %3386 = vmatprep.subr.mxu0 0.0
      %3387 = vmatpush1.xpose.msra.mxu0 0.0
      %3388 = vmatprep.subr.mxu0 0.0
      %3389 = vmatpush1.xpose.msra.mxu0 0.0
      %3390 = vmatprep.subr.mxu0 0.0
      %3391 = vmatpush1.xpose.msra.mxu0 0.0
      %3392 = vmatprep.subr.mxu0 0.0
      %3393 = vmatpush1.xpose.msra.mxu0 0.0
      %3394 = vmatprep.subr.mxu0 0.0
      %3395 = vmatpush1.xpose.msra.mxu0 0.0
      %3396 = vmatprep.subr.mxu0 0.0
      %3397 = vmatpush1.xpose.msra.mxu0 0.0
      %3398 = vmatprep.subr.mxu0 0.0
      %3399 = vmatpush1.xpose.msra.mxu0 0.0
      %3400 = vmatprep.subr.mxu0 0.0
      %3401 = vmatpush1.xpose.msra.mxu0 0.0
      %3402 = vmatprep.subr.mxu0 0.0
      %3403 = vmatpush1.xpose.msra.mxu0 0.0
      %3404 = vmatprep.subr.mxu0 0.0
      %3405 = vmatpush1.xpose.msra.mxu0 0.0
      %3406 = vmatprep.subr.mxu0 0.0
      %3407 = vmatpush1.xpose.msra.mxu0 0.0
      %3408 = vmatprep.mubr.f32.mxu0 0.0
      %3409 = vmatmul.mubr.f32.gmra.mrb[0].mxu0 %v3318
      %v3410 = vpop.f32.mrb[0].mxu0
      %v3411 = vadd.f32 %v3315, %v3410
      %v3412 = vpop.f32.mrb[0].mxu0
      %3413 = vdwg.mxu0
      %v3414 = vmax.f32 %v3411, 0.0
      %v3415 = vld [vmem:[%s22] sm:$0xff]
      %v3416 = vld [vmem:[%s22 + $0x8] sm:$0xff]
      %v3417 = vld [vmem:[%s22 + $0x10] sm:$0xff]
      %v3418 = vld [vmem:[%s22 + $0x18] sm:$0xff]
      %vm3419 = vcmask 523264
      %v3421 = vsel %vm3419, %v3414, 0
      %v3424 = vsel %vm3419, %v3415, 0
      %v3427 = vsel %vm3419, %v3416, 0
      %v3430 = vsel %vm3419, %v3417, 0
      %v3433 = vsel %vm3419, %v3418, 0
      %3435 = vmatprep.subr.mxu0 0.0
      %3436 = vmatpush1.xpose.msra.mxu0 %v3424
      %3437 = vmatprep.subr.mxu0 0.0
      %3438 = vmatpush1.xpose.msra.mxu0 %v3427
      %3439 = vmatprep.subr.mxu0 0.0
      %3440 = vmatpush1.xpose.msra.mxu0 %v3430
      %3441 = vmatprep.subr.mxu0 0.0
      %3442 = vmatpush1.xpose.msra.mxu0 %v3433
      %3443 = vmatprep.subr.mxu0 0.0
      %3444 = vmatpush1.xpose.msra.mxu0 0.0
      %3445 = vmatprep.subr.mxu0 0.0
      %3446 = vmatpush1.xpose.msra.mxu0 0.0
      %3447 = vmatprep.subr.mxu0 0.0
      %3448 = vmatpush1.xpose.msra.mxu0 0.0
      %3449 = vmatprep.subr.mxu0 0.0
      %3450 = vmatpush1.xpose.msra.mxu0 0.0
      %3451 = vmatprep.subr.mxu0 0.0
      %3452 = vmatpush1.xpose.msra.mxu0 0.0
      %3453 = vmatprep.subr.mxu0 0.0
      %3454 = vmatpush1.xpose.msra.mxu0 0.0
      %3455 = vmatprep.subr.mxu0 0.0
      %3456 = vmatpush1.xpose.msra.mxu0 0.0
      %3457 = vmatprep.subr.mxu0 0.0
      %3458 = vmatpush1.xpose.msra.mxu0 0.0
      %3459 = vmatprep.subr.mxu0 0.0
      %3460 = vmatpush1.xpose.msra.mxu0 0.0
      %3461 = vmatprep.subr.mxu0 0.0
      %3462 = vmatpush1.xpose.msra.mxu0 0.0
      %3463 = vmatprep.subr.mxu0 0.0
      %3464 = vmatpush1.xpose.msra.mxu0 0.0
      %3465 = vmatprep.subr.mxu0 0.0
      %3466 = vmatpush1.xpose.msra.mxu0 0.0
      %3467 = vmatprep.subr.mxu0 0.0
      %3468 = vmatpush1.xpose.msra.mxu0 0.0
      %3469 = vmatprep.subr.mxu0 0.0
      %3470 = vmatpush1.xpose.msra.mxu0 0.0
      %3471 = vmatprep.subr.mxu0 0.0
      %3472 = vmatpush1.xpose.msra.mxu0 0.0
      %3473 = vmatprep.subr.mxu0 0.0
      %3474 = vmatpush1.xpose.msra.mxu0 0.0
      %3475 = vmatprep.subr.mxu0 0.0
      %3476 = vmatpush1.xpose.msra.mxu0 0.0
      %3477 = vmatprep.subr.mxu0 0.0
      %3478 = vmatpush1.xpose.msra.mxu0 0.0
      %3479 = vmatprep.subr.mxu0 0.0
      %3480 = vmatpush1.xpose.msra.mxu0 0.0
      %3481 = vmatprep.subr.mxu0 0.0
      %3482 = vmatpush1.xpose.msra.mxu0 0.0
      %3483 = vmatprep.subr.mxu0 0.0
      %3484 = vmatpush1.xpose.msra.mxu0 0.0
      %3485 = vmatprep.subr.mxu0 0.0
      %3486 = vmatpush1.xpose.msra.mxu0 0.0
      %3487 = vmatprep.subr.mxu0 0.0
      %3488 = vmatpush1.xpose.msra.mxu0 0.0
      %3489 = vmatprep.subr.mxu0 0.0
      %3490 = vmatpush1.xpose.msra.mxu0 0.0
      %3491 = vmatprep.subr.mxu0 0.0
      %3492 = vmatpush1.xpose.msra.mxu0 0.0
      %3493 = vmatprep.subr.mxu0 0.0
      %3494 = vmatpush1.xpose.msra.mxu0 0.0
      %3495 = vmatprep.subr.mxu0 0.0
      %3496 = vmatpush1.xpose.msra.mxu0 0.0
      %3497 = vmatprep.subr.mxu0 0.0
      %3498 = vmatpush1.xpose.msra.mxu0 0.0
      %3499 = vmatprep.mubr.f32.mxu0 0.0
      %3500 = vmatmul.mubr.f32.gmra.mrb[0].mxu0 %v3421
      %v3501 = vpop.f32.mrb[0].mxu0
      %v3502 = vadd.f32 0.0, %v3501
      %v3503 = vpop.f32.mrb[0].mxu0
      %3504 = vdwg.mxu0
      %v3505 = vadd.f32 %v3265, %v3502
      %v3506 = vld [vmem:[%s23] sm:$0x1]
      %v3508 = vlaneseq
      %v3509 = vshrl.u32 %v3508, 7
      %v3510 = vsub.s32 0, %v3509
      %v3511 = vrot.slane %v3506, %v3510
      %v3513 = vadd.f32 %v3505, %v3511
      %3514 = vst.msk [vmem:[%s783] sm:$0xff] %vm790, %v3513
      %p3515 = scmp.lt.s32.totalorder %s35, 1
      %s3516 = scalar_select %p3515, %s35, 1
      %s3517 = smul.addr %s3516, 8
      %s3518 = scalar_lea.vmem %s24, %s3517
      // Predicated region
      $region117: #{transformer_forward.9} parent=115 // pred_check
        %p3519 = pneg %p577
      $region118: #{transformer_forward.9} parent=115 // pred_check_branch
        %3521 = sbr.rel (%p3519) target = $region120
      $region119: #{transformer_forward.9} parent=115 // pred_region
        _
      $region120: #{transformer_forward.9} parent=115 // pred_fallthru
        _
    $region116: #{transformer_forward.9} parent=5 // pred_fallthru
      _
    %p3522 = scmp.le.s32.totalorder 2, %s30
    // Predicated region
    $region121: #{transformer_forward.9} parent=5 // pred_check
      %p3523 = pneg %p3522
    $region122: #{transformer_forward.9} parent=5 // pred_check_branch
      %3525 = sbr.rel (%p3523) target = $region124
    $region123: #{transformer_forward.9} parent=5 // pred_region
      %s3526 = ssub.s32 %s30, 2
      // Predicated region
      $region125: #{transformer_forward.9} parent=123 // pred_check
        %p3527 = pneg %p583
      $region126: #{transformer_forward.9} parent=123 // pred_check_branch
        %3529 = sbr.rel (%p3527) target = $region128
      $region127: #{transformer_forward.9} parent=123 // pred_region
        %p3530 = scmp.lt.s32.totalorder %s36, 1
        %s3531 = scalar_select %p3530, %s36, 1
        %s3532 = smul.addr %s3531, 8
        %s3533 = scalar_lea.vmem %s24, %s3532
      $region128: #{transformer_forward.9} parent=123 // pred_fallthru
        _
    $region124: #{transformer_forward.9} parent=5 // pred_fallthru
      _
  $region6: #{transformer_forward.9} parent=0 // loop_footer
    %s34 = sadd.s32 1, %s30
  $region7: #{transformer_forward.9} parent=0 // loop_footer_branch
    %29 = sbr.rel target = $region3
  $region8: #{transformer_forward.9} parent=0 // loop_exit
    _

// kernel: transformer_forward.6
$region0: #{transformer_forward.6}
  #allocation0 [shape = 'u32[]', space=smem, size = 0x4, offset = 0x4, fixed_abs, tag = 'smem constant byte address 0x4 - core index']
  #allocation1 [shape = 'u32[144,128]{1,0:T(1,128)}', space=vmem, size = 0x12000, scoped, tag = 'internal scratch']
  %s0 = inlined_call_operand.vmem [shape: f32[2,8,32], index: 0, kind: input, shape index: {}]
  %s1 = inlined_call_operand.vmem [shape: f32[2,8,8], index: 1, kind: input, shape index: {}]
  %s2 = inlined_call_operand.vmem [shape: f32[1,32], index: 2, kind: input, shape index: {}]
  %s3 = inlined_call_operand.vmem [shape: f32[1,32], index: 3, kind: input, shape index: {}]
  %s4 = inlined_call_operand.vmem [shape: f32[96,32], index: 4, kind: input, shape index: {}]
  %s5 = inlined_call_operand.vmem [shape: f32[1,96], index: 5, kind: input, shape index: {}]
  %s6 = inlined_call_operand.vmem [shape: f32[32,32], index: 6, kind: input, shape index: {}]
  %s7 = inlined_call_operand.vmem [shape: f32[1,32], index: 7, kind: input, shape index: {}]
  %s8 = inlined_call_operand.vmem [shape: f32[1,32], index: 8, kind: input, shape index: {}]
  %s9 = inlined_call_operand.vmem [shape: f32[1,32], index: 9, kind: input, shape index: {}]
  %s10 = inlined_call_operand.vmem [shape: f32[64,32], index: 10, kind: input, shape index: {}]
  %s11 = inlined_call_operand.vmem [shape: f32[1,64], index: 11, kind: input, shape index: {}]
  %s12 = inlined_call_operand.vmem [shape: f32[32,64], index: 12, kind: input, shape index: {}]
  %s13 = inlined_call_operand.vmem [shape: f32[1,32], index: 13, kind: input, shape index: {}]
  %s14 = inlined_call_operand.vmem [shape: f32[2,8,32], index: 14, kind: output, shape index: {}]
  %s15 = sld [smem:[#allocation0]]
  $region89: #{transformer_forward.6} parent=0
    _
  %s17 = ssub.s32 1, %s15
  %s18 = scalar_select 0, %s17, %s15
  loop: start=0, step=1, limit=4
  $region2: #{transformer_forward.6} parent=0 // loop_pre_header
    _
  $region3: #{transformer_forward.6} parent=0 // loop_header
    %s20 = sphi 0, %s24
    %p21 = scmp.ge.s32.totalorder %s20, 4
    %s30 = sphi 0, %s32
    %s33 = sphi 0, %s30
    %s34 = sphi 0, %s33
    %s50 = sphi 0, %s34
    %s56 = sphi 0, %s58
    %s59 = sphi 0, %s56
    %s60 = sphi 0, %s59
    %s76 = sphi 0, %s60
    %s80 = sphi 0, %s80
    %s82 = sphi 0, %s80
    %s83 = sphi 0, %s82
    %s97 = sphi 0, %s83
    %s101 = sphi 0, %s101
    %s103 = sphi 0, %s101
    %s104 = sphi 0, %s103
    %s118 = sphi 0, %s104
    %s122 = sphi 0, %s122
    %s124 = sphi 0, %s122
    %s125 = sphi 0, %s124
    %s139 = sphi 0, %s125
    %s143 = sphi 0, %s143
    %s145 = sphi 0, %s143
    %s146 = sphi 0, %s145
    %s160 = sphi 0, %s146
    %s164 = sphi 0, %s164
    %s166 = sphi 0, %s164
    %s167 = sphi 0, %s166
    %s181 = sphi 0, %s167
    %s185 = sphi 0, %s185
    %s187 = sphi 0, %s185
    %s188 = sphi 0, %s187
    %s202 = sphi 0, %s188
    %s206 = sphi 0, %s206
    %s208 = sphi 0, %s206
    %s209 = sphi 0, %s208
    %s223 = sphi 0, %s209
    %s227 = sphi 0, %s227
    %s229 = sphi 0, %s227
    %s230 = sphi 0, %s229
    %s244 = sphi 0, %s230
    %s248 = sphi 0, %s248
    %s250 = sphi 0, %s248
    %s251 = sphi 0, %s250
    %s265 = sphi 0, %s251
    %s269 = sphi 0, %s269
    %s271 = sphi 0, %s269
    %s272 = sphi 0, %s271
    %s286 = sphi 0, %s272
    %s290 = sphi 0, %s290
    %s292 = sphi 0, %s290
    %s293 = sphi 0, %s292
    %s307 = sphi 0, %s293
    %s311 = sphi 0, %s311
    %s313 = sphi 0, %s311
    %s314 = sphi 0, %s313
    %s328 = sphi 0, %s314
    %s334 = sphi 0, %s336
    %s337 = sphi 0, %s334
    %s338 = sphi 0, %s337
    %s354 = sphi 0, %s338
  $region4: #{transformer_forward.6} parent=0 // loop_header_branch
    %23 = sbr.rel (%p21) target = $region8
  $region5: #{transformer_forward.6} parent=0 // loop_body
    %s25 = ssub.s32 %s20, 1
    %s26 = ssub.s32 %s20, 2
    %s27 = sadd.s32 %s20, 1
    %s28 = ssub.s32 %s20, %s27
    %p29 = scmp.eq.s32.totalorder %s28, 0
    %s31 = sadd.s32 %s30, 1
    %s32 = scalar_select %p29, %s30, %s31
    %p35 = pneg %p29
    %p36 = scmp.eq.s32.totalorder %s20, 1
    %p37 = por %p35, %p36
    %p38 = scmp.ne.s32.totalorder %s30, %s33
    %p39 = scmp.eq.s32.totalorder %s20, 0
    %p40 = por %p38, %p39
    %p41 = scmp.ne.s32.totalorder %s30, %s33
    %p42 = scmp.eq.s32.totalorder %s25, 1
    %p43 = por %p41, %p42
    %p44 = scmp.ne.s32.totalorder %s33, %s34
    %p45 = scmp.eq.s32.totalorder %s25, 0
    %p46 = por %p44, %p45
    %p47 = scmp.ne.s32.totalorder %s33, %s34
    %p48 = scmp.eq.s32.totalorder %s26, 1
    %p49 = por %p47, %p48
    %p51 = scmp.ne.s32.totalorder %s34, %s50
    %p52 = scmp.eq.s32.totalorder %s26, 0
    %p53 = por %p51, %p52
    %s54 = ssub.s32 %s20, %s27
    %p55 = scmp.eq.s32.totalorder %s54, 0
    %s57 = sadd.s32 %s56, 1
    %s58 = scalar_select %p55, %s56, %s57
    %p61 = pneg %p55
    %p62 = scmp.eq.s32.totalorder %s20, 1
    %p63 = por %p61, %p62
    %p64 = scmp.ne.s32.totalorder %s56, %s59
    %p65 = scmp.eq.s32.totalorder %s20, 0
    %p66 = por %p64, %p65
    %p67 = scmp.ne.s32.totalorder %s56, %s59
    %p68 = scmp.eq.s32.totalorder %s25, 1
    %p69 = por %p67, %p68
    %p70 = scmp.ne.s32.totalorder %s59, %s60
    %p71 = scmp.eq.s32.totalorder %s25, 0
    %p72 = por %p70, %p71
    %p73 = scmp.ne.s32.totalorder %s59, %s60
    %p74 = scmp.eq.s32.totalorder %s26, 1
    %p75 = por %p73, %p74
    %p77 = scmp.ne.s32.totalorder %s60, %s76
    %p78 = scmp.eq.s32.totalorder %s26, 0
    %p79 = por %p77, %p78
    %s81 = sadd.s32 %s80, 1
    %p84 = scmp.eq.s32.totalorder %s20, 1
    %p85 = scmp.ne.s32.totalorder %s80, %s82
    %p86 = scmp.eq.s32.totalorder %s20, 0
    %p87 = por %p85, %p86
    %p88 = scmp.ne.s32.totalorder %s80, %s82
    %p89 = scmp.eq.s32.totalorder %s25, 1
    %p90 = por %p88, %p89
    %p91 = scmp.ne.s32.totalorder %s82, %s83
    %p92 = scmp.eq.s32.totalorder %s25, 0
    %p93 = por %p91, %p92
    %p94 = scmp.ne.s32.totalorder %s82, %s83
    %p95 = scmp.eq.s32.totalorder %s26, 1
    %p96 = por %p94, %p95
    %p98 = scmp.ne.s32.totalorder %s83, %s97
    %p99 = scmp.eq.s32.totalorder %s26, 0
    %p100 = por %p98, %p99
    %s102 = sadd.s32 %s101, 1
    %p105 = scmp.eq.s32.totalorder %s20, 1
    %p106 = scmp.ne.s32.totalorder %s101, %s103
    %p107 = scmp.eq.s32.totalorder %s20, 0
    %p108 = por %p106, %p107
    %p109 = scmp.ne.s32.totalorder %s101, %s103
    %p110 = scmp.eq.s32.totalorder %s25, 1
    %p111 = por %p109, %p110
    %p112 = scmp.ne.s32.totalorder %s103, %s104
    %p113 = scmp.eq.s32.totalorder %s25, 0
    %p114 = por %p112, %p113
    %p115 = scmp.ne.s32.totalorder %s103, %s104
    %p116 = scmp.eq.s32.totalorder %s26, 1
    %p117 = por %p115, %p116
    %p119 = scmp.ne.s32.totalorder %s104, %s118
    %p120 = scmp.eq.s32.totalorder %s26, 0
    %p121 = por %p119, %p120
    %s123 = sadd.s32 %s122, 1
    %p126 = scmp.eq.s32.totalorder %s20, 1
    %p127 = scmp.ne.s32.totalorder %s122, %s124
    %p128 = scmp.eq.s32.totalorder %s20, 0
    %p129 = por %p127, %p128
    %p130 = scmp.ne.s32.totalorder %s122, %s124
    %p131 = scmp.eq.s32.totalorder %s25, 1
    %p132 = por %p130, %p131
    %p133 = scmp.ne.s32.totalorder %s124, %s125
    %p134 = scmp.eq.s32.totalorder %s25, 0
    %p135 = por %p133, %p134
    %p136 = scmp.ne.s32.totalorder %s124, %s125
    %p137 = scmp.eq.s32.totalorder %s26, 1
    %p138 = por %p136, %p137
    %p140 = scmp.ne.s32.totalorder %s125, %s139
    %p141 = scmp.eq.s32.totalorder %s26, 0
    %p142 = por %p140, %p141
    %s144 = sadd.s32 %s143, 1
    %p147 = scmp.eq.s32.totalorder %s20, 1
    %p148 = scmp.ne.s32.totalorder %s143, %s145
    %p149 = scmp.eq.s32.totalorder %s20, 0
    %p150 = por %p148, %p149
    %p151 = scmp.ne.s32.totalorder %s143, %s145
    %p152 = scmp.eq.s32.totalorder %s25, 1
    %p153 = por %p151, %p152
    %p154 = scmp.ne.s32.totalorder %s145, %s146
    %p155 = scmp.eq.s32.totalorder %s25, 0
    %p156 = por %p154, %p155
    %p157 = scmp.ne.s32.totalorder %s145, %s146
    %p158 = scmp.eq.s32.totalorder %s26, 1
    %p159 = por %p157, %p158
    %p161 = scmp.ne.s32.totalorder %s146, %s160
    %p162 = scmp.eq.s32.totalorder %s26, 0
    %p163 = por %p161, %p162
    %s165 = sadd.s32 %s164, 1
    %p168 = scmp.eq.s32.totalorder %s20, 1
    %p169 = scmp.ne.s32.totalorder %s164, %s166
    %p170 = scmp.eq.s32.totalorder %s20, 0
    %p171 = por %p169, %p170
    %p172 = scmp.ne.s32.totalorder %s164, %s166
    %p173 = scmp.eq.s32.totalorder %s25, 1
    %p174 = por %p172, %p173
    %p175 = scmp.ne.s32.totalorder %s166, %s167
    %p176 = scmp.eq.s32.totalorder %s25, 0
    %p177 = por %p175, %p176
    %p178 = scmp.ne.s32.totalorder %s166, %s167
    %p179 = scmp.eq.s32.totalorder %s26, 1
    %p180 = por %p178, %p179
    %p182 = scmp.ne.s32.totalorder %s167, %s181
    %p183 = scmp.eq.s32.totalorder %s26, 0
    %p184 = por %p182, %p183
    %s186 = sadd.s32 %s185, 1
    %p189 = scmp.eq.s32.totalorder %s20, 1
    %p190 = scmp.ne.s32.totalorder %s185, %s187
    %p191 = scmp.eq.s32.totalorder %s20, 0
    %p192 = por %p190, %p191
    %p193 = scmp.ne.s32.totalorder %s185, %s187
    %p194 = scmp.eq.s32.totalorder %s25, 1
    %p195 = por %p193, %p194
    %p196 = scmp.ne.s32.totalorder %s187, %s188
    %p197 = scmp.eq.s32.totalorder %s25, 0
    %p198 = por %p196, %p197
    %p199 = scmp.ne.s32.totalorder %s187, %s188
    %p200 = scmp.eq.s32.totalorder %s26, 1
    %p201 = por %p199, %p200
    %p203 = scmp.ne.s32.totalorder %s188, %s202
    %p204 = scmp.eq.s32.totalorder %s26, 0
    %p205 = por %p203, %p204
    %s207 = sadd.s32 %s206, 1
    %p210 = scmp.eq.s32.totalorder %s20, 1
    %p211 = scmp.ne.s32.totalorder %s206, %s208
    %p212 = scmp.eq.s32.totalorder %s20, 0
    %p213 = por %p211, %p212
    %p214 = scmp.ne.s32.totalorder %s206, %s208
    %p215 = scmp.eq.s32.totalorder %s25, 1
    %p216 = por %p214, %p215
    %p217 = scmp.ne.s32.totalorder %s208, %s209
    %p218 = scmp.eq.s32.totalorder %s25, 0
    %p219 = por %p217, %p218
    %p220 = scmp.ne.s32.totalorder %s208, %s209
    %p221 = scmp.eq.s32.totalorder %s26, 1
    %p222 = por %p220, %p221
    %p224 = scmp.ne.s32.totalorder %s209, %s223
    %p225 = scmp.eq.s32.totalorder %s26, 0
    %p226 = por %p224, %p225
    %s228 = sadd.s32 %s227, 1
    %p231 = scmp.eq.s32.totalorder %s20, 1
    %p232 = scmp.ne.s32.totalorder %s227, %s229
    %p233 = scmp.eq.s32.totalorder %s20, 0
    %p234 = por %p232, %p233
    %p235 = scmp.ne.s32.totalorder %s227, %s229
    %p236 = scmp.eq.s32.totalorder %s25, 1
    %p237 = por %p235, %p236
    %p238 = scmp.ne.s32.totalorder %s229, %s230
    %p239 = scmp.eq.s32.totalorder %s25, 0
    %p240 = por %p238, %p239
    %p241 = scmp.ne.s32.totalorder %s229, %s230
    %p242 = scmp.eq.s32.totalorder %s26, 1
    %p243 = por %p241, %p242
    %p245 = scmp.ne.s32.totalorder %s230, %s244
    %p246 = scmp.eq.s32.totalorder %s26, 0
    %p247 = por %p245, %p246
    %s249 = sadd.s32 %s248, 1
    %p252 = scmp.eq.s32.totalorder %s20, 1
    %p253 = scmp.ne.s32.totalorder %s248, %s250
    %p254 = scmp.eq.s32.totalorder %s20, 0
    %p255 = por %p253, %p254
    %p256 = scmp.ne.s32.totalorder %s248, %s250
    %p257 = scmp.eq.s32.totalorder %s25, 1
    %p258 = por %p256, %p257
    %p259 = scmp.ne.s32.totalorder %s250, %s251
    %p260 = scmp.eq.s32.totalorder %s25, 0
    %p261 = por %p259, %p260
    %p262 = scmp.ne.s32.totalorder %s250, %s251
    %p263 = scmp.eq.s32.totalorder %s26, 1
    %p264 = por %p262, %p263
    %p266 = scmp.ne.s32.totalorder %s251, %s265
    %p267 = scmp.eq.s32.totalorder %s26, 0
    %p268 = por %p266, %p267
    %s270 = sadd.s32 %s269, 1
    %p273 = scmp.eq.s32.totalorder %s20, 1
    %p274 = scmp.ne.s32.totalorder %s269, %s271
    %p275 = scmp.eq.s32.totalorder %s20, 0
    %p276 = por %p274, %p275
    %p277 = scmp.ne.s32.totalorder %s269, %s271
    %p278 = scmp.eq.s32.totalorder %s25, 1
    %p279 = por %p277, %p278
    %p280 = scmp.ne.s32.totalorder %s271, %s272
    %p281 = scmp.eq.s32.totalorder %s25, 0
    %p282 = por %p280, %p281
    %p283 = scmp.ne.s32.totalorder %s271, %s272
    %p284 = scmp.eq.s32.totalorder %s26, 1
    %p285 = por %p283, %p284
    %p287 = scmp.ne.s32.totalorder %s272, %s286
    %p288 = scmp.eq.s32.totalorder %s26, 0
    %p289 = por %p287, %p288
    %s291 = sadd.s32 %s290, 1
    %p294 = scmp.eq.s32.totalorder %s20, 1
    %p295 = scmp.ne.s32.totalorder %s290, %s292
    %p296 = scmp.eq.s32.totalorder %s20, 0
    %p297 = por %p295, %p296
    %p298 = scmp.ne.s32.totalorder %s290, %s292
    %p299 = scmp.eq.s32.totalorder %s25, 1
    %p300 = por %p298, %p299
    %p301 = scmp.ne.s32.totalorder %s292, %s293
    %p302 = scmp.eq.s32.totalorder %s25, 0
    %p303 = por %p301, %p302
    %p304 = scmp.ne.s32.totalorder %s292, %s293
    %p305 = scmp.eq.s32.totalorder %s26, 1
    %p306 = por %p304, %p305
    %p308 = scmp.ne.s32.totalorder %s293, %s307
    %p309 = scmp.eq.s32.totalorder %s26, 0
    %p310 = por %p308, %p309
    %s312 = sadd.s32 %s311, 1
    %p315 = scmp.eq.s32.totalorder %s20, 1
    %p316 = scmp.ne.s32.totalorder %s311, %s313
    %p317 = scmp.eq.s32.totalorder %s20, 0
    %p318 = por %p316, %p317
    %p319 = scmp.ne.s32.totalorder %s311, %s313
    %p320 = scmp.eq.s32.totalorder %s25, 1
    %p321 = por %p319, %p320
    %p322 = scmp.ne.s32.totalorder %s313, %s314
    %p323 = scmp.eq.s32.totalorder %s25, 0
    %p324 = por %p322, %p323
    %p325 = scmp.ne.s32.totalorder %s313, %s314
    %p326 = scmp.eq.s32.totalorder %s26, 1
    %p327 = por %p325, %p326
    %p329 = scmp.ne.s32.totalorder %s314, %s328
    %p330 = scmp.eq.s32.totalorder %s26, 0
    %p331 = por %p329, %p330
    %s332 = ssub.s32 %s20, %s27
    %p333 = scmp.eq.s32.totalorder %s332, 0
    %s335 = sadd.s32 %s334, 1
    %s336 = scalar_select %p333, %s334, %s335
    %p339 = pneg %p333
    %p340 = scmp.eq.s32.totalorder %s20, 1
    %p341 = por %p339, %p340
    %p342 = scmp.ne.s32.totalorder %s334, %s337
    %p343 = scmp.eq.s32.totalorder %s20, 0
    %p344 = por %p342, %p343
    %p345 = scmp.ne.s32.totalorder %s334, %s337
    %p346 = scmp.eq.s32.totalorder %s25, 1
    %p347 = por %p345, %p346
    %p348 = scmp.ne.s32.totalorder %s337, %s338
    %p349 = scmp.eq.s32.totalorder %s25, 0
    %p350 = por %p348, %p349
    %p351 = scmp.ne.s32.totalorder %s337, %s338
    %p352 = scmp.eq.s32.totalorder %s26, 1
    %p353 = por %p351, %p352
    %p355 = scmp.ne.s32.totalorder %s338, %s354
    %p356 = scmp.eq.s32.totalorder %s26, 0
    %p357 = por %p355, %p356
    %p358 = scmp.le.s32.totalorder 1, %s20
    %p359 = scmp.lt.s32.totalorder %s20, 3
    %p360 = pnand %p358, %p359
    %p361 = pneg %p360
    // Predicated region
    $region9: #{transformer_forward.6} parent=5 // pred_check
      _
    $region10: #{transformer_forward.6} parent=5 // pred_check_branch
      %363 = sbr.rel (%p360) target = $region12
    $region11: #{transformer_forward.6} parent=5 // pred_region
      %s364 = ssub.s32 %s20, 1
      // Predicated region
      $region13: #{transformer_forward.6} parent=11 // pred_check
        %p365 = pneg %p93
      $region14: #{transformer_forward.6} parent=11 // pred_check_branch
        %367 = sbr.rel (%p365) target = $region16
      $region15: #{transformer_forward.6} parent=11 // pred_region
        _
      $region16: #{transformer_forward.6} parent=11 // pred_fallthru
        _
      // Predicated region
      $region17: #{transformer_forward.6} parent=11 // pred_check
        %p368 = pneg %p114
      $region18: #{transformer_forward.6} parent=11 // pred_check_branch
        %370 = sbr.rel (%p368) target = $region20
      $region19: #{transformer_forward.6} parent=11 // pred_region
        _
      $region20: #{transformer_forward.6} parent=11 // pred_fallthru
        _
      // Predicated region
      $region21: #{transformer_forward.6} parent=11 // pred_check
        %p371 = pneg %p135
      $region22: #{transformer_forward.6} parent=11 // pred_check_branch
        %373 = sbr.rel (%p371) target = $region24
      $region23: #{transformer_forward.6} parent=11 // pred_region
        _
      $region24: #{transformer_forward.6} parent=11 // pred_fallthru
        _
      // Predicated region
      $region25: #{transformer_forward.6} parent=11 // pred_check
        %p374 = pneg %p156
      $region26: #{transformer_forward.6} parent=11 // pred_check_branch
        %376 = sbr.rel (%p374) target = $region28
      $region27: #{transformer_forward.6} parent=11 // pred_region
        _
      $region28: #{transformer_forward.6} parent=11 // pred_fallthru
        _
      // Predicated region
      $region29: #{transformer_forward.6} parent=11 // pred_check
        %p377 = pneg %p177
      $region30: #{transformer_forward.6} parent=11 // pred_check_branch
        %379 = sbr.rel (%p377) target = $region32
      $region31: #{transformer_forward.6} parent=11 // pred_region
        _
      $region32: #{transformer_forward.6} parent=11 // pred_fallthru
        _
      // Predicated region
      $region33: #{transformer_forward.6} parent=11 // pred_check
        %p380 = pneg %p198
      $region34: #{transformer_forward.6} parent=11 // pred_check_branch
        %382 = sbr.rel (%p380) target = $region36
      $region35: #{transformer_forward.6} parent=11 // pred_region
        _
      $region36: #{transformer_forward.6} parent=11 // pred_fallthru
        _
      // Predicated region
      $region37: #{transformer_forward.6} parent=11 // pred_check
        %p383 = pneg %p219
      $region38: #{transformer_forward.6} parent=11 // pred_check_branch
        %385 = sbr.rel (%p383) target = $region40
      $region39: #{transformer_forward.6} parent=11 // pred_region
        _
      $region40: #{transformer_forward.6} parent=11 // pred_fallthru
        _
      // Predicated region
      $region41: #{transformer_forward.6} parent=11 // pred_check
        %p386 = pneg %p240
      $region42: #{transformer_forward.6} parent=11 // pred_check_branch
        %388 = sbr.rel (%p386) target = $region44
      $region43: #{transformer_forward.6} parent=11 // pred_region
        _
      $region44: #{transformer_forward.6} parent=11 // pred_fallthru
        _
      // Predicated region
      $region45: #{transformer_forward.6} parent=11 // pred_check
        %p389 = pneg %p261
      $region46: #{transformer_forward.6} parent=11 // pred_check_branch
        %391 = sbr.rel (%p389) target = $region48
      $region47: #{transformer_forward.6} parent=11 // pred_region
        _
      $region48: #{transformer_forward.6} parent=11 // pred_fallthru
        _
      // Predicated region
      $region49: #{transformer_forward.6} parent=11 // pred_check
        %p392 = pneg %p282
      $region50: #{transformer_forward.6} parent=11 // pred_check_branch
        %394 = sbr.rel (%p392) target = $region52
      $region51: #{transformer_forward.6} parent=11 // pred_region
        _
      $region52: #{transformer_forward.6} parent=11 // pred_fallthru
        _
      // Predicated region
      $region53: #{transformer_forward.6} parent=11 // pred_check
        %p395 = pneg %p303
      $region54: #{transformer_forward.6} parent=11 // pred_check_branch
        %397 = sbr.rel (%p395) target = $region56
      $region55: #{transformer_forward.6} parent=11 // pred_region
        _
      $region56: #{transformer_forward.6} parent=11 // pred_fallthru
        _
      // Predicated region
      $region57: #{transformer_forward.6} parent=11 // pred_check
        %p398 = pneg %p324
      $region58: #{transformer_forward.6} parent=11 // pred_check_branch
        %400 = sbr.rel (%p398) target = $region60
      $region59: #{transformer_forward.6} parent=11 // pred_region
        _
      $region60: #{transformer_forward.6} parent=11 // pred_fallthru
        _
    $region12: #{transformer_forward.6} parent=5 // pred_fallthru
      _
    %p401 = scmp.lt.s32.totalorder %s20, 2
    // Predicated region
    $region61: #{transformer_forward.6} parent=5 // pred_check
      %p402 = pneg %p401
    $region62: #{transformer_forward.6} parent=5 // pred_check_branch
      %404 = sbr.rel (%p402) target = $region64
    $region63: #{transformer_forward.6} parent=5 // pred_region
      // Predicated region
      $region65: #{transformer_forward.6} parent=63 // pred_check
        %p405 = pneg %p40
      $region66: #{transformer_forward.6} parent=63 // pred_check_branch
        %407 = sbr.rel (%p405) target = $region68
      $region67: #{transformer_forward.6} parent=63 // pred_region
        %p408 = scmp.lt.s32.totalorder %s20, 1
        %s409 = scalar_select %p408, %s20, 1
        %s410 = smul.addr %s409, 8
        %s411 = scalar_lea.vmem %s0, %s410
      $region68: #{transformer_forward.6} parent=63 // pred_fallthru
        _
      // Predicated region
      $region69: #{transformer_forward.6} parent=63 // pred_check
        %p412 = pneg %p66
      $region70: #{transformer_forward.6} parent=63 // pred_check_branch
        %414 = sbr.rel (%p412) target = $region72
      $region71: #{transformer_forward.6} parent=63 // pred_region
        %p415 = scmp.lt.s32.totalorder %s20, 1
        %s416 = scalar_select %p415, %s20, 1
        %s417 = smul.addr %s416, 8
        %s418 = scalar_lea.vmem %s1, %s417
      $region72: #{transformer_forward.6} parent=63 // pred_fallthru
        _
    $region64: #{transformer_forward.6} parent=5 // pred_fallthru
      _
    %p419 = scmp.le.s32.totalorder 1, %s20
    %p420 = scmp.lt.s32.totalorder %s20, 3
    %p421 = pnand %p419, %p420
    %p422 = pneg %p421
    // Predicated region
    $region73: #{transformer_forward.6} parent=5 // pred_check
      _
    $region74: #{transformer_forward.6} parent=5 // pred_check_branch
      %424 = sbr.rel (%p421) target = $region76
    $region75: #{transformer_forward.6} parent=5 // pred_region
      %s425 = ssub.s32 %s20, 1
      %p426 = scmp.lt.s32.totalorder %s25, 1
      %s427 = scalar_select %p426, %s25, 1
      %s428 = smul.addr %s427, 8
      %s429 = scalar_lea.vmem %s0, %s428
      %p430 = pneg %p46
      %p431 = pneg %p43
      %p432 = scmp.lt.s32.totalorder %s25, 1
      %s433 = scalar_select %p432, %s25, 1
      %s434 = smul.addr %s433, 8
      %s435 = scalar_lea.vmem %s1, %s434
      %p436 = pneg %p72
      %p437 = pneg %p69
      %p438 = pneg %p93
      %p439 = pneg %p90
      %p440 = pneg %p114
      %p441 = pneg %p111
      %p442 = pneg %p135
      %p443 = pneg %p132
      %p444 = pneg %p156
      %p445 = pneg %p153
      %p446 = pneg %p177
      %p447 = pneg %p174
      %p448 = pneg %p198
      %p449 = pneg %p195
      %p450 = pneg %p219
      %p451 = pneg %p216
      %p452 = pneg %p240
      %p453 = pneg %p237
      %p454 = pneg %p261
      %p455 = pneg %p258
      %p456 = pneg %p282
      %p457 = pneg %p279
      %p458 = pneg %p303
      %p459 = pneg %p300
      %p460 = pneg %p324
      %p461 = pneg %p321
      %p462 = pneg %p350
      %p463 = pneg %p347
      %p464 = scmp.lt.s32.totalorder %s25, 1
      %s465 = scalar_select %p464, %s25, 1
      %s466 = smul.addr %s465, 8
      %s467 = scalar_lea.vmem %s14, %s466
      %p468 = scmp.lt.s32.totalorder %s25, 1
      %s469 = scalar_select %p468, %s25, 1
      %s470 = smul.addr %s469, 8
      %s471 = scalar_lea.vmem %s0, %s470
      %p472 = scmp.lt.s32.totalorder %s25, 1
      %s473 = scalar_select %p472, %s25, 1
      %s474 = smul.addr %s473, 8
      %s475 = scalar_lea.vmem %s1, %s474
      %p476 = scmp.lt.s32.totalorder %s25, 1
      %s477 = scalar_select %p476, %s25, 1
      %s478 = smul.addr %s477, 8
      %s479 = scalar_lea.vmem %s14, %s478
      %v480 = vld [vmem:[%s471] sm:$0xff]
      %v481 = vld [vmem:[%s475] sm:$0xff]
      %v482 = vld [vmem:[%s2] sm:$0x1]
      %v483 = vld [vmem:[%s3] sm:$0x1]
      %vm484 = vcmask 261120
      %v485 = vsel %vm484, %v480, 0.0
      %486 = vadd.xlane.f32.xlu0 %v485
      %v487 = vpop.xlane.xlu0 %486
      %v488 = vrcp.pop 32.0
      %v489 = vmul.f32 %v487, %v488
      %v490 = vsub.f32 %v480, %v489
      %v491 = vmul.f32 %v490, %v490
      %v492 = vsel %vm484, %v491, 0.0
      %493 = vadd.xlane.f32.xlu0 %v492
      %v494 = vpop.xlane.xlu0 %493
      %v495 = vmul.f32 %v494, 0.032258064
      %v496 = vrsqrt.pop %v495
      %v497 = vmul.f32 %v495, %v496
      %vm498 = vcmp.eq.f32.partialorder %v495, inf
      %v499 = vsel %vm498, %v495, %v497
      %vm500 = vcmp.eq.f32.partialorder %v495, 0.0
      %v501 = vand.u32 %v495, 2147483648
      %v502 = vsel %vm500, %v501, %v499
      %v503 = vadd.f32 %v502, 1e-06
      %v504 = vrcp.pop %v503
      %v505 = vmul.f32 %v490, %v504
      %v507 = vlaneseq
      %v508 = vshrl.u32 %v507, 7
      %v509 = vsub.s32 0, %v508
      %v510 = vrot.slane %v482, %v509
      %v512 = vmul.f32 %v510, %v505
      %v514 = vlaneseq
      %v515 = vshrl.u32 %v514, 7
      %v516 = vsub.s32 0, %v515
      %v517 = vrot.slane %v483, %v516
      %v519 = vadd.f32 %v512, %v517
      %v520 = vld [vmem:[%s4] sm:$0xff]
      %v521 = vld [vmem:[%s4 + $0x8] sm:$0xff]
      %v522 = vld [vmem:[%s4 + $0x10] sm:$0xff]
      %v523 = vld [vmem:[%s4 + $0x18] sm:$0xff]
      %v524 = vld [vmem:[%s4 + $0x20] sm:$0xff]
      %v525 = vld [vmem:[%s4 + $0x28] sm:$0xff]
      %v526 = vld [vmem:[%s4 + $0x30] sm:$0xff]
      %v527 = vld [vmem:[%s4 + $0x38] sm:$0xff]
      %v528 = vld [vmem:[%s4 + $0x40] sm:$0xff]
      %v529 = vld [vmem:[%s4 + $0x48] sm:$0xff]
      %v530 = vld [vmem:[%s4 + $0x50] sm:$0xff]
      %v531 = vld [vmem:[%s4 + $0x58] sm:$0xff]
      %v532 = vld [vmem:[%s5] sm:$0x1]
      %v534 = vlaneseq
      %v535 = vshrl.u32 %v534, 7
      %v536 = vsub.s32 0, %v535
      %v537 = vrot.slane %v532, %v536
      %v540 = vsel %vm484, %v519, 0
      %v543 = vsel %vm484, %v520, 0
      %v546 = vsel %vm484, %v521, 0
      %v549 = vsel %vm484, %v522, 0
      %v552 = vsel %vm484, %v523, 0
      %v555 = vsel %vm484, %v524, 0
      %v558 = vsel %vm484, %v525, 0
      %v561 = vsel %vm484, %v526, 0
      %v564 = vsel %vm484, %v527, 0
      %v567 = vsel %vm484, %v528, 0
      %v570 = vsel %vm484, %v529, 0
      %v573 = vsel %vm484, %v530, 0
      %v576 = vsel %vm484, %v531, 0
      %578 = vmatprep.subr.mxu0 0.0
      %579 = vmatpush1.xpose.msra.mxu0 %v543
      %580 = vmatprep.subr.mxu0 0.0
      %581 = vmatpush1.xpose.msra.mxu0 %v546
      %582 = vmatprep.subr.mxu0 0.0
      %583 = vmatpush1.xpose.msra.mxu0 %v549
      %584 = vmatprep.subr.mxu0 0.0
      %585 = vmatpush1.xpose.msra.mxu0 %v552
      %586 = vmatprep.subr.mxu0 0.0
      %587 = vmatpush1.xpose.msra.mxu0 %v555
      %588 = vmatprep.subr.mxu0 0.0
      %589 = vmatpush1.xpose.msra.mxu0 %v558
      %590 = vmatprep.subr.mxu0 0.0
      %591 = vmatpush1.xpose.msra.mxu0 %v561
      %592 = vmatprep.subr.mxu0 0.0
      %593 = vmatpush1.xpose.msra.mxu0 %v564
      %594 = vmatprep.subr.mxu0 0.0
      %595 = vmatpush1.xpose.msra.mxu0 %v567
      %596 = vmatprep.subr.mxu0 0.0
      %597 = vmatpush1.xpose.msra.mxu0 %v570
      %598 = vmatprep.subr.mxu0 0.0
      %599 = vmatpush1.xpose.msra.mxu0 %v573
      %600 = vmatprep.subr.mxu0 0.0
      %601 = vmatpush1.xpose.msra.mxu0 %v576
      %602 = vmatprep.subr.mxu0 0.0
      %603 = vmatpush1.xpose.msra.mxu0 0.0
      %604 = vmatprep.subr.mxu0 0.0
      %605 = vmatpush1.xpose.msra.mxu0 0.0
      %606 = vmatprep.subr.mxu0 0.0
      %607 = vmatpush1.xpose.msra.mxu0 0.0
      %608 = vmatprep.subr.mxu0 0.0
      %609 = vmatpush1.xpose.msra.mxu0 0.0
      %610 = vmatprep.subr.mxu0 0.0
      %611 = vmatpush1.xpose.msra.mxu0 0.0
      %612 = vmatprep.subr.mxu0 0.0
      %613 = vmatpush1.xpose.msra.mxu0 0.0
      %614 = vmatprep.subr.mxu0 0.0
      %615 = vmatpush1.xpose.msra.mxu0 0.0
      %616 = vmatprep.subr.mxu0 0.0
      %617 = vmatpush1.xpose.msra.mxu0 0.0
      %618 = vmatprep.subr.mxu0 0.0
      %619 = vmatpush1.xpose.msra.mxu0 0.0
      %620 = vmatprep.subr.mxu0 0.0
      %621 = vmatpush1.xpose.msra.mxu0 0.0
      %622 = vmatprep.subr.mxu0 0.0
      %623 = vmatpush1.xpose.msra.mxu0 0.0
      %624 = vmatprep.subr.mxu0 0.0
      %625 = vmatpush1.xpose.msra.mxu0 0.0
      %626 = vmatprep.subr.mxu0 0.0
      %627 = vmatpush1.xpose.msra.mxu0 0.0
      %628 = vmatprep.subr.mxu0 0.0
      %629 = vmatpush1.xpose.msra.mxu0 0.0
      %630 = vmatprep.subr.mxu0 0.0
      %631 = vmatpush1.xpose.msra.mxu0 0.0
      %632 = vmatprep.subr.mxu0 0.0
      %633 = vmatpush1.xpose.msra.mxu0 0.0
      %634 = vmatprep.subr.mxu0 0.0
      %635 = vmatpush1.xpose.msra.mxu0 0.0
      %636 = vmatprep.subr.mxu0 0.0
      %637 = vmatpush1.xpose.msra.mxu0 0.0
      %638 = vmatprep.subr.mxu0 0.0
      %639 = vmatpush1.xpose.msra.mxu0 0.0
      %640 = vmatprep.subr.mxu0 0.0
      %641 = vmatpush1.xpose.msra.mxu0 0.0
      %642 = vmatprep.mubr.f32.mxu0 0.0
      %643 = vmatmul.mubr.f32.gmra.mrb[0].mxu0 %v540
      %v644 = vpop.f32.mrb[0].mxu0
      %v645 = vadd.f32 %v537, %v644
      %v646 = vpop.f32.mrb[0].mxu0
      %647 = vdwg.mxu0
      %v648 = vld [vmem:[%s6] sm:$0xff]
      %v649 = vld [vmem:[%s6 + $0x8] sm:$0xff]
      %v650 = vld [vmem:[%s6 + $0x10] sm:$0xff]
      %v651 = vld [vmem:[%s6 + $0x18] sm:$0xff]
      %v652 = vld [vmem:[%s7] sm:$0x1]
      %654 = vrot.lane.b32.xlu0 %v645, 96
      %v655 = vpop.permute.xlu0 %654
      %vm656 = vcmask 64512
      %v657 = vsel %vm656, %v645, 0
      %v659 = vsel %vm656, %v655, 0
      %661 = vmatprep.subr.mxu0 0.0
      %662 = vmatpush1.xpose.msra.mxu0 %v659
      %663 = vmatprep.subr.mxu0 0.0
      %664 = vmatpush1.xpose.msra.mxu0 0.0
      %665 = vmatprep.subr.mxu0 0.0
      %666 = vmatpush1.xpose.msra.mxu0 0.0
      %667 = vmatprep.subr.mxu0 0.0
      %668 = vmatpush1.xpose.msra.mxu0 0.0
      %669 = vmatprep.subr.mxu0 0.0
      %670 = vmatpush1.xpose.msra.mxu0 0.0
      %671 = vmatprep.subr.mxu0 0.0
      %672 = vmatpush1.xpose.msra.mxu0 0.0
      %673 = vmatprep.subr.mxu0 0.0
      %674 = vmatpush1.xpose.msra.mxu0 0.0
      %675 = vmatprep.subr.mxu0 0.0
      %676 = vmatpush1.xpose.msra.mxu0 0.0
      %677 = vmatprep.subr.mxu0 0.0
      %678 = vmatpush1.xpose.msra.mxu0 0.0
      %679 = vmatprep.subr.mxu0 0.0
      %680 = vmatpush1.xpose.msra.mxu0 0.0
      %681 = vmatprep.subr.mxu0 0.0
      %682 = vmatpush1.xpose.msra.mxu0 0.0
      %683 = vmatprep.subr.mxu0 0.0
      %684 = vmatpush1.xpose.msra.mxu0 0.0
      %685 = vmatprep.subr.mxu0 0.0
      %686 = vmatpush1.xpose.msra.mxu0 0.0
      %687 = vmatprep.subr.mxu0 0.0
      %688 = vmatpush1.xpose.msra.mxu0 0.0
      %689 = vmatprep.subr.mxu0 0.0
      %690 = vmatpush1.xpose.msra.mxu0 0.0
      %691 = vmatprep.subr.mxu0 0.0
      %692 = vmatpush1.xpose.msra.mxu0 0.0
      %693 = vmatprep.subr.mxu0 0.0
      %694 = vmatpush1.xpose.msra.mxu0 0.0
      %695 = vmatprep.subr.mxu0 0.0
      %696 = vmatpush1.xpose.msra.mxu0 0.0
      %697 = vmatprep.subr.mxu0 0.0
      %698 = vmatpush1.xpose.msra.mxu0 0.0
      %699 = vmatprep.subr.mxu0 0.0
      %700 = vmatpush1.xpose.msra.mxu0 0.0
      %701 = vmatprep.subr.mxu0 0.0
      %702 = vmatpush1.xpose.msra.mxu0 0.0
      %703 = vmatprep.subr.mxu0 0.0
      %704 = vmatpush1.xpose.msra.mxu0 0.0
      %705 = vmatprep.subr.mxu0 0.0
      %706 = vmatpush1.xpose.msra.mxu0 0.0
      %707 = vmatprep.subr.mxu0 0.0
      %708 = vmatpush1.xpose.msra.mxu0 0.0
      %709 = vmatprep.subr.mxu0 0.0
      %710 = vmatpush1.xpose.msra.mxu0 0.0
      %711 = vmatprep.subr.mxu0 0.0
      %712 = vmatpush1.xpose.msra.mxu0 0.0
      %713 = vmatprep.subr.mxu0 0.0
      %714 = vmatpush1.xpose.msra.mxu0 0.0
      %715 = vmatprep.subr.mxu0 0.0
      %716 = vmatpush1.xpose.msra.mxu0 0.0
      %717 = vmatprep.subr.mxu0 0.0
      %718 = vmatpush1.xpose.msra.mxu0 0.0
      %719 = vmatprep.subr.mxu0 0.0
      %720 = vmatpush1.xpose.msra.mxu0 0.0
      %721 = vmatprep.subr.mxu0 0.0
      %722 = vmatpush1.xpose.msra.mxu0 0.0
      %723 = vmatprep.subr.mxu0 0.0
      %724 = vmatpush1.xpose.msra.mxu0 0.0
      %725 = vmatprep.mubr.f32.mxu0 0.0
      %726 = vmatmul.mubr.f32.gmra.mrb[0].mxu0 %v657
      %v727 = vpop.f32.mrb[0].mxu0
      %v728 = vadd.f32 0.0, %v727
      %v729 = vpop.f32.mrb[0].mxu0
      %730 = vdwg.mxu0
      %v731 = vmul.f32 %v728, 0.35355338
      %v732 = vadd.f32 %v731, %v481
      %v733 = vsel %vm656, %v732, -inf
      %734 = vmax.xlane.f32.xlu0 %v733
      %v735 = vpop.xlane.xlu0 %734
      %v736 = vsub.f32 %v732, %v735
      %v737 = vmul.f32 %v736, 1.442695
      %v738 = vpow.pop %v737
      %v739 = vsel %vm656, %v738, 0.0
      %740 = vadd.xlane.f32.xlu0 %v739
      %v741 = vpop.xlane.xlu0 %740
      %v742 = vrcp.pop %v741
      %v743 = vmul.f32 %v738, %v742
      %744 = vrot.lane.b32.xlu0 %v645, 64
      %v745 = vpop.permute.xlu0 %744
      %v748 = vsel %vm656, %v743, 0
      %750 = vmatprep.subr.mxu0 0.0
      %751 = vmatpush1.msra.mxu0 %v745
      %752 = vmatprep.subr.mxu0 0.0
      %753 = vmatpush1.msra.mxu0 0.0
      %754 = vmatprep.subr.mxu0 0.0
      %755 = vmatpush1.msra.mxu0 0.0
      %756 = vmatprep.subr.mxu0 0.0
      %757 = vmatpush1.msra.mxu0 0.0
      %758 = vmatprep.subr.mxu0 0.0
      %759 = vmatpush1.msra.mxu0 0.0
      %760 = vmatprep.subr.mxu0 0.0
      %761 = vmatpush1.msra.mxu0 0.0
      %762 = vmatprep.subr.mxu0 0.0
      %763 = vmatpush1.msra.mxu0 0.0
      %764 = vmatprep.subr.mxu0 0.0
      %765 = vmatpush1.msra.mxu0 0.0
      %766 = vmatprep.subr.mxu0 0.0
      %767 = vmatpush1.msra.mxu0 0.0
      %768 = vmatprep.subr.mxu0 0.0
      %769 = vmatpush1.msra.mxu0 0.0
      %770 = vmatprep.subr.mxu0 0.0
      %771 = vmatpush1.msra.mxu0 0.0
      %772 = vmatprep.subr.mxu0 0.0
      %773 = vmatpush1.msra.mxu0 0.0
      %774 = vmatprep.subr.mxu0 0.0
      %775 = vmatpush1.msra.mxu0 0.0
      %776 = vmatprep.subr.mxu0 0.0
      %777 = vmatpush1.msra.mxu0 0.0
      %778 = vmatprep.subr.mxu0 0.0
      %779 = vmatpush1.msra.mxu0 0.0
      %780 = vmatprep.subr.mxu0 0.0
      %781 = vmatpush1.msra.mxu0 0.0
      %782 = vmatprep.subr.mxu0 0.0
      %783 = vmatpush1.msra.mxu0 0.0
      %784 = vmatprep.subr.mxu0 0.0
      %785 = vmatpush1.msra.mxu0 0.0
      %786 = vmatprep.subr.mxu0 0.0
      %787 = vmatpush1.msra.mxu0 0.0
      %788 = vmatprep.subr.mxu0 0.0
      %789 = vmatpush1.msra.mxu0 0.0
      %790 = vmatprep.subr.mxu0 0.0
      %791 = vmatpush1.msra.mxu0 0.0
      %792 = vmatprep.subr.mxu0 0.0
      %793 = vmatpush1.msra.mxu0 0.0
      %794 = vmatprep.subr.mxu0 0.0
      %795 = vmatpush1.msra.mxu0 0.0
      %796 = vmatprep.subr.mxu0 0.0
      %797 = vmatpush1.msra.mxu0 0.0
      %798 = vmatprep.subr.mxu0 0.0
      %799 = vmatpush1.msra.mxu0 0.0
      %800 = vmatprep.subr.mxu0 0.0
      %801 = vmatpush1.msra.mxu0 0.0
      %802 = vmatprep.subr.mxu0 0.0
      %803 = vmatpush1.msra.mxu0 0.0
      %804 = vmatprep.subr.mxu0 0.0
      %805 = vmatpush1.msra.mxu0 0.0
      %806 = vmatprep.subr.mxu0 0.0
      %807 = vmatpush1.msra.mxu0 0.0
      %808 = vmatprep.subr.mxu0 0.0
      %809 = vmatpush1.msra.mxu0 0.0
      %810 = vmatprep.subr.mxu0 0.0
      %811 = vmatpush1.msra.mxu0 0.0
      %812 = vmatprep.subr.mxu0 0.0
      %813 = vmatpush1.msra.mxu0 0.0
      %814 = vmatprep.mubr.f32.mxu0 0.0
      %815 = vmatmul.mubr.f32.gmra.mrb[0].mxu0 %v748
      %v816 = vpop.f32.mrb[0].mxu0
      %v817 = vadd.f32 0.0, %v816
      %v818 = vpop.f32.mrb[0].mxu0
      %819 = vdwg.mxu0
      %820 = vrot.lane.b32.xlu0 %v645, 120
      %v821 = vpop.permute.xlu0 %820
      %822 = vrot.lane.b32.xlu0 %v645, 88
      %v823 = vpop.permute.xlu0 %822
      %v824 = vsel %vm656, %v821, 0
      %v826 = vsel %vm656, %v823, 0
      %828 = vmatprep.subr.mxu0 0.0
      %829 = vmatpush1.xpose.msra.mxu0 %v826
      %830 = vmatprep.subr.mxu0 0.0
      %831 = vmatpush1.xpose.msra.mxu0 0.0
      %832 = vmatprep.subr.mxu0 0.0
      %833 = vmatpush1.xpose.msra.mxu0 0.0
      %834 = vmatprep.subr.mxu0 0.0
      %835 = vmatpush1.xpose.msra.mxu0 0.0
      %836 = vmatprep.subr.mxu0 0.0
      %837 = vmatpush1.xpose.msra.mxu0 0.0
      %838 = vmatprep.subr.mxu0 0.0
      %839 = vmatpush1.xpose.msra.mxu0 0.0
      %840 = vmatprep.subr.mxu0 0.0
      %841 = vmatpush1.xpose.msra.mxu0 0.0
      %842 = vmatprep.subr.mxu0 0.0
      %843 = vmatpush1.xpose.msra.mxu0 0.0
      %844 = vmatprep.subr.mxu0 0.0
      %845 = vmatpush1.xpose.msra.mxu0 0.0
      %846 = vmatprep.subr.mxu0 0.0
      %847 = vmatpush1.xpose.msra.mxu0 0.0
      %848 = vmatprep.subr.mxu0 0.0
      %849 = vmatpush1.xpose.msra.mxu0 0.0
      %850 = vmatprep.subr.mxu0 0.0
      %851 = vmatpush1.xpose.msra.mxu0 0.0
      %852 = vmatprep.subr.mxu0 0.0
      %853 = vmatpush1.xpose.msra.mxu0 0.0
      %854 = vmatprep.subr.mxu0 0.0
      %855 = vmatpush1.xpose.msra.mxu0 0.0
      %856 = vmatprep.subr.mxu0 0.0
      %857 = vmatpush1.xpose.msra.mxu0 0.0
      %858 = vmatprep.subr.mxu0 0.0
      %859 = vmatpush1.xpose.msra.mxu0 0.0
      %860 = vmatprep.subr.mxu0 0.0
      %861 = vmatpush1.xpose.msra.mxu0 0.0
      %862 = vmatprep.subr.mxu0 0.0
      %863 = vmatpush1.xpose.msra.mxu0 0.0
      %864 = vmatprep.subr.mxu0 0.0
      %865 = vmatpush1.xpose.msra.mxu0 0.0
      %866 = vmatprep.subr.mxu0 0.0
      %867 = vmatpush1.xpose.msra.mxu0 0.0
      %868 = vmatprep.subr.mxu0 0.0
      %869 = vmatpush1.xpose.msra.mxu0 0.0
      %870 = vmatprep.subr.mxu0 0.0
      %871 = vmatpush1.xpose.msra.mxu0 0.0
      %872 = vmatprep.subr.mxu0 0.0
      %873 = vmatpush1.xpose.msra.mxu0 0.0
      %874 = vmatprep.subr.mxu0 0.0
      %875 = vmatpush1.xpose.msra.mxu0 0.0
      %876 = vmatprep.subr.mxu0 0.0
      %877 = vmatpush1.xpose.msra.mxu0 0.0
      %878 = vmatprep.subr.mxu0 0.0
      %879 = vmatpush1.xpose.msra.mxu0 0.0
      %880 = vmatprep.subr.mxu0 0.0
      %881 = vmatpush1.xpose.msra.mxu0 0.0
      %882 = vmatprep.subr.mxu0 0.0
      %883 = vmatpush1.xpose.msra.mxu0 0.0
      %884 = vmatprep.subr.mxu0 0.0
      %885 = vmatpush1.xpose.msra.mxu0 0.0
      %886 = vmatprep.subr.mxu0 0.0
      %887 = vmatpush1.xpose.msra.mxu0 0.0
      %888 = vmatprep.subr.mxu0 0.0
      %889 = vmatpush1.xpose.msra.mxu0 0.0
      %890 = vmatprep.subr.mxu0 0.0
      %891 = vmatpush1.xpose.msra.mxu0 0.0
      %892 = vmatprep.mubr.f32.mxu0 0.0
      %893 = vmatmul.mubr.f32.gmra.mrb[0].mxu0 %v824
      %v894 = vpop.f32.mrb[0].mxu0
      %v895 = vadd.f32 0.0, %v894
      %v896 = vpop.f32.mrb[0].mxu0
      %897 = vdwg.mxu0
      %v898 = vmul.f32 %v895, 0.35355338
      %v899 = vadd.f32 %v898, %v481
      %v900 = vsel %vm656, %v899, -inf
      %901 = vmax.xlane.f32.xlu0 %v900
      %v902 = vpop.xlane.xlu0 %901
      %v903 = vsub.f32 %v899, %v902
      %v904 = vmul.f32 %v903, 1.442695
      %v905 = vpow.pop %v904
      %v906 = vsel %vm656, %v905, 0.0
      %907 = vadd.xlane.f32.xlu0 %v906
      %v908 = vpop.xlane.xlu0 %907
      %v909 = vrcp.pop %v908
      %v910 = vmul.f32 %v905, %v909
      %911 = vrot.lane.b32.xlu0 %v645, 56
      %v912 = vpop.permute.xlu0 %911
      %v915 = vsel %vm656, %v910, 0
      %917 = vmatprep.subr.mxu0 0.0
      %918 = vmatpush1.msra.mxu0 %v912
      %919 = vmatprep.subr.mxu0 0.0
      %920 = vmatpush1.msra.mxu0 0.0
      %921 = vmatprep.subr.mxu0 0.0
      %922 = vmatpush1.msra.mxu0 0.0
      %923 = vmatprep.subr.mxu0 0.0
      %924 = vmatpush1.msra.mxu0 0.0
      %925 = vmatprep.subr.mxu0 0.0
      %926 = vmatpush1.msra.mxu0 0.0
      %927 = vmatprep.subr.mxu0 0.0
      %928 = vmatpush1.msra.mxu0 0.0
      %929 = vmatprep.subr.mxu0 0.0
      %930 = vmatpush1.msra.mxu0 0.0
      %931 = vmatprep.subr.mxu0 0.0
      %932 = vmatpush1.msra.mxu0 0.0
      %933 = vmatprep.subr.mxu0 0.0
      %934 = vmatpush1.msra.mxu0 0.0
      %935 = vmatprep.subr.mxu0 0.0
      %936 = vmatpush1.msra.mxu0 0.0
      %937 = vmatprep.subr.mxu0 0.0
      %938 = vmatpush1.msra.mxu0 0.0
      %939 = vmatprep.subr.mxu0 0.0
      %940 = vmatpush1.msra.mxu0 0.0
      %941 = vmatprep.subr.mxu0 0.0
      %942 = vmatpush1.msra.mxu0 0.0
      %943 = vmatprep.subr.mxu0 0.0
      %944 = vmatpush1.msra.mxu0 0.0
      %945 = vmatprep.subr.mxu0 0.0
      %946 = vmatpush1.msra.mxu0 0.0
      %947 = vmatprep.subr.mxu0 0.0
      %948 = vmatpush1.msra.mxu0 0.0
      %949 = vmatprep.subr.mxu0 0.0
      %950 = vmatpush1.msra.mxu0 0.0
      %951 = vmatprep.subr.mxu0 0.0
      %952 = vmatpush1.msra.mxu0 0.0
      %953 = vmatprep.subr.mxu0 0.0
      %954 = vmatpush1.msra.mxu0 0.0
      %955 = vmatprep.subr.mxu0 0.0
      %956 = vmatpush1.msra.mxu0 0.0
      %957 = vmatprep.subr.mxu0 0.0
      %958 = vmatpush1.msra.mxu0 0.0
      %959 = vmatprep.subr.mxu0 0.0
      %960 = vmatpush1.msra.mxu0 0.0
      %961 = vmatprep.subr.mxu0 0.0
      %962 = vmatpush1.msra.mxu0 0.0
      %963 = vmatprep.subr.mxu0 0.0
      %964 = vmatpush1.msra.mxu0 0.0
      %965 = vmatprep.subr.mxu0 0.0
      %966 = vmatpush1.msra.mxu0 0.0
      %967 = vmatprep.subr.mxu0 0.0
      %968 = vmatpush1.msra.mxu0 0.0
      %969 = vmatprep.subr.mxu0 0.0
      %970 = vmatpush1.msra.mxu0 0.0
      %971 = vmatprep.subr.mxu0 0.0
      %972 = vmatpush1.msra.mxu0 0.0
      %973 = vmatprep.subr.mxu0 0.0
      %974 = vmatpush1.msra.mxu0 0.0
      %975 = vmatprep.subr.mxu0 0.0
      %976 = vmatpush1.msra.mxu0 0.0
      %977 = vmatprep.subr.mxu0 0.0
      %978 = vmatpush1.msra.mxu0 0.0
      %979 = vmatprep.subr.mxu0 0.0
      %980 = vmatpush1.msra.mxu0 0.0
      %981 = vmatprep.mubr.f32.mxu0 0.0
      %982 = vmatmul.mubr.f32.gmra.mrb[0].mxu0 %v915
      %v983 = vpop.f32.mrb[0].mxu0
      %v984 = vadd.f32 0.0, %v983
      %v985 = vpop.f32.mrb[0].mxu0
      %986 = vdwg.mxu0
      %991 = vrot.lane.b32.xlu0 %v648, 120
      %v992 = vpop.permute.xlu0 %991
      %993 = vrot.lane.b32.xlu0 %v649, 120
      %v994 = vpop.permute.xlu0 %993
      %995 = vrot.lane.b32.xlu0 %v650, 120
      %v996 = vpop.permute.xlu0 %995
      %997 = vrot.lane.b32.xlu0 %v651, 120
      %v998 = vpop.permute.xlu0 %997
      %v1000 = vsel %vm656, %v984, 0
      %v1002 = vsel %vm656, %v992, 0
      %v1004 = vsel %vm656, %v994, 0
      %v1006 = vsel %vm656, %v996, 0
      %v1008 = vsel %vm656, %v998, 0
      %1010 = vmatprep.subr.mxu0 0.0
      %1011 = vmatpush1.xpose.msra.mxu0 %v1002
      %1012 = vmatprep.subr.mxu0 0.0
      %1013 = vmatpush1.xpose.msra.mxu0 %v1004
      %1014 = vmatprep.subr.mxu0 0.0
      %1015 = vmatpush1.xpose.msra.mxu0 %v1006
      %1016 = vmatprep.subr.mxu0 0.0
      %1017 = vmatpush1.xpose.msra.mxu0 %v1008
      %1018 = vmatprep.subr.mxu0 0.0
      %1019 = vmatpush1.xpose.msra.mxu0 0.0
      %1020 = vmatprep.subr.mxu0 0.0
      %1021 = vmatpush1.xpose.msra.mxu0 0.0
      %1022 = vmatprep.subr.mxu0 0.0
      %1023 = vmatpush1.xpose.msra.mxu0 0.0
      %1024 = vmatprep.subr.mxu0 0.0
      %1025 = vmatpush1.xpose.msra.mxu0 0.0
      %1026 = vmatprep.subr.mxu0 0.0
      %1027 = vmatpush1.xpose.msra.mxu0 0.0
      %1028 = vmatprep.subr.mxu0 0.0
      %1029 = vmatpush1.xpose.msra.mxu0 0.0
      %1030 = vmatprep.subr.mxu0 0.0
      %1031 = vmatpush1.xpose.msra.mxu0 0.0
      %1032 = vmatprep.subr.mxu0 0.0
      %1033 = vmatpush1.xpose.msra.mxu0 0.0
      %1034 = vmatprep.subr.mxu0 0.0
      %1035 = vmatpush1.xpose.msra.mxu0 0.0
      %1036 = vmatprep.subr.mxu0 0.0
      %1037 = vmatpush1.xpose.msra.mxu0 0.0
      %1038 = vmatprep.subr.mxu0 0.0
      %1039 = vmatpush1.xpose.msra.mxu0 0.0
      %1040 = vmatprep.subr.mxu0 0.0
      %1041 = vmatpush1.xpose.msra.mxu0 0.0
      %1042 = vmatprep.subr.mxu0 0.0
      %1043 = vmatpush1.xpose.msra.mxu0 0.0
      %1044 = vmatprep.subr.mxu0 0.0
      %1045 = vmatpush1.xpose.msra.mxu0 0.0
      %1046 = vmatprep.subr.mxu0 0.0
      %1047 = vmatpush1.xpose.msra.mxu0 0.0
      %1048 = vmatprep.subr.mxu0 0.0
      %1049 = vmatpush1.xpose.msra.mxu0 0.0
      %1050 = vmatprep.subr.mxu0 0.0
      %1051 = vmatpush1.xpose.msra.mxu0 0.0
      %1052 = vmatprep.subr.mxu0 0.0
      %1053 = vmatpush1.xpose.msra.mxu0 0.0
      %1054 = vmatprep.subr.mxu0 0.0
      %1055 = vmatpush1.xpose.msra.mxu0 0.0
      %1056 = vmatprep.subr.mxu0 0.0
      %1057 = vmatpush1.xpose.msra.mxu0 0.0
      %1058 = vmatprep.subr.mxu0 0.0
      %1059 = vmatpush1.xpose.msra.mxu0 0.0
      %1060 = vmatprep.subr.mxu0 0.0
      %1061 = vmatpush1.xpose.msra.mxu0 0.0
      %1062 = vmatprep.subr.mxu0 0.0
      %1063 = vmatpush1.xpose.msra.mxu0 0.0
      %1064 = vmatprep.subr.mxu0 0.0
      %1065 = vmatpush1.xpose.msra.mxu0 0.0
      %1066 = vmatprep.subr.mxu0 0.0
      %1067 = vmatpush1.xpose.msra.mxu0 0.0
      %1068 = vmatprep.subr.mxu0 0.0
      %1069 = vmatpush1.xpose.msra.mxu0 0.0
      %1070 = vmatprep.subr.mxu0 0.0
      %1071 = vmatpush1.xpose.msra.mxu0 0.0
      %1072 = vmatprep.subr.mxu0 0.0
      %1073 = vmatpush1.xpose.msra.mxu0 0.0
      %1074 = vmatprep.mubr.f32.mxu0 0.0
      %1075 = vmatmul.mubr.f32.gmra.mrb[0].mxu0 %v1000
      %v1076 = vpop.f32.mrb[0].mxu0
      %v1077 = vadd.f32 0.0, %v1076
      %v1078 = vpop.f32.mrb[0].mxu0
      %1079 = vdwg.mxu0
      %v1081 = vsel %vm656, %v817, 0
      %v1083 = vsel %vm656, %v648, 0
      %v1085 = vsel %vm656, %v649, 0
      %v1087 = vsel %vm656, %v650, 0
      %v1089 = vsel %vm656, %v651, 0
      %1091 = vmatprep.subr.mxu0 0.0
      %1092 = vmatpush1.xpose.msra.mxu0 %v1083
      %1093 = vmatprep.subr.mxu0 0.0
      %1094 = vmatpush1.xpose.msra.mxu0 %v1085
      %1095 = vmatprep.subr.mxu0 0.0
      %1096 = vmatpush1.xpose.msra.mxu0 %v1087
      %1097 = vmatprep.subr.mxu0 0.0
      %1098 = vmatpush1.xpose.msra.mxu0 %v1089
      %1099 = vmatprep.subr.mxu0 0.0
      %1100 = vmatpush1.xpose.msra.mxu0 0.0
      %1101 = vmatprep.subr.mxu0 0.0
      %1102 = vmatpush1.xpose.msra.mxu0 0.0
      %1103 = vmatprep.subr.mxu0 0.0
      %1104 = vmatpush1.xpose.msra.mxu0 0.0
      %1105 = vmatprep.subr.mxu0 0.0
      %1106 = vmatpush1.xpose.msra.mxu0 0.0
      %1107 = vmatprep.subr.mxu0 0.0
      %1108 = vmatpush1.xpose.msra.mxu0 0.0
      %1109 = vmatprep.subr.mxu0 0.0
      %1110 = vmatpush1.xpose.msra.mxu0 0.0
      %1111 = vmatprep.subr.mxu0 0.0
      %1112 = vmatpush1.xpose.msra.mxu0 0.0
      %1113 = vmatprep.subr.mxu0 0.0
      %1114 = vmatpush1.xpose.msra.mxu0 0.0
      %1115 = vmatprep.subr.mxu0 0.0
      %1116 = vmatpush1.xpose.msra.mxu0 0.0
      %1117 = vmatprep.subr.mxu0 0.0
      %1118 = vmatpush1.xpose.msra.mxu0 0.0
      %1119 = vmatprep.subr.mxu0 0.0
      %1120 = vmatpush1.xpose.msra.mxu0 0.0
      %1121 = vmatprep.subr.mxu0 0.0
      %1122 = vmatpush1.xpose.msra.mxu0 0.0
      %1123 = vmatprep.subr.mxu0 0.0
      %1124 = vmatpush1.xpose.msra.mxu0 0.0
      %1125 = vmatprep.subr.mxu0 0.0
      %1126 = vmatpush1.xpose.msra.mxu0 0.0
      %1127 = vmatprep.subr.mxu0 0.0
      %1128 = vmatpush1.xpose.msra.mxu0 0.0
      %1129 = vmatprep.subr.mxu0 0.0
      %1130 = vmatpush1.xpose.msra.mxu0 0.0
      %1131 = vmatprep.subr.mxu0 0.0
      %1132 = vmatpush1.xpose.msra.mxu0 0.0
      %1133 = vmatprep.subr.mxu0 0.0
      %1134 = vmatpush1.xpose.msra.mxu0 0.0
      %1135 = vmatprep.subr.mxu0 0.0
      %1136 = vmatpush1.xpose.msra.mxu0 0.0
      %1137 = vmatprep.subr.mxu0 0.0
      %1138 = vmatpush1.xpose.msra.mxu0 0.0
      %1139 = vmatprep.subr.mxu0 0.0
      %1140 = vmatpush1.xpose.msra.mxu0 0.0
      %1141 = vmatprep.subr.mxu0 0.0
      %1142 = vmatpush1.xpose.msra.mxu0 0.0
      %1143 = vmatprep.subr.mxu0 0.0
      %1144 = vmatpush1.xpose.msra.mxu0 0.0
      %1145 = vmatprep.subr.mxu0 0.0
      %1146 = vmatpush1.xpose.msra.mxu0 0.0
      %1147 = vmatprep.subr.mxu0 0.0
      %1148 = vmatpush1.xpose.msra.mxu0 0.0
      %1149 = vmatprep.subr.mxu0 0.0
      %1150 = vmatpush1.xpose.msra.mxu0 0.0
      %1151 = vmatprep.subr.mxu0 0.0
      %1152 = vmatpush1.xpose.msra.mxu0 0.0
      %1153 = vmatprep.subr.mxu0 0.0
      %1154 = vmatpush1.xpose.msra.mxu0 0.0
      %1155 = vmatprep.mubr.f32.mxu0 0.0
      %1156 = vmatmul.mubr.f32.gmra.mrb[0].mxu0 %v1081
      %v1157 = vpop.f32.mrb[0].mxu0
      %v1158 = vadd.f32 %v1077, %v1157
      %v1159 = vpop.f32.mrb[0].mxu0
      %1160 = vdwg.mxu0
      %1161 = vrot.lane.b32.xlu0 %v645, 112
      %v1162 = vpop.permute.xlu0 %1161
      %1163 = vrot.lane.b32.xlu0 %v645, 80
      %v1164 = vpop.permute.xlu0 %1163
      %v1165 = vsel %vm656, %v1162, 0
      %v1167 = vsel %vm656, %v1164, 0
      %1169 = vmatprep.subr.mxu0 0.0
      %1170 = vmatpush1.xpose.msra.mxu0 %v1167
      %1171 = vmatprep.subr.mxu0 0.0
      %1172 = vmatpush1.xpose.msra.mxu0 0.0
      %1173 = vmatprep.subr.mxu0 0.0
      %1174 = vmatpush1.xpose.msra.mxu0 0.0
      %1175 = vmatprep.subr.mxu0 0.0
      %1176 = vmatpush1.xpose.msra.mxu0 0.0
      %1177 = vmatprep.subr.mxu0 0.0
      %1178 = vmatpush1.xpose.msra.mxu0 0.0
      %1179 = vmatprep.subr.mxu0 0.0
      %1180 = vmatpush1.xpose.msra.mxu0 0.0
      %1181 = vmatprep.subr.mxu0 0.0
      %1182 = vmatpush1.xpose.msra.mxu0 0.0
      %1183 = vmatprep.subr.mxu0 0.0
      %1184 = vmatpush1.xpose.msra.mxu0 0.0
      %1185 = vmatprep.subr.mxu0 0.0
      %1186 = vmatpush1.xpose.msra.mxu0 0.0
      %1187 = vmatprep.subr.mxu0 0.0
      %1188 = vmatpush1.xpose.msra.mxu0 0.0
      %1189 = vmatprep.subr.mxu0 0.0
      %1190 = vmatpush1.xpose.msra.mxu0 0.0
      %1191 = vmatprep.subr.mxu0 0.0
      %1192 = vmatpush1.xpose.msra.mxu0 0.0
      %1193 = vmatprep.subr.mxu0 0.0
      %1194 = vmatpush1.xpose.msra.mxu0 0.0
      %1195 = vmatprep.subr.mxu0 0.0
      %1196 = vmatpush1.xpose.msra.mxu0 0.0
      %1197 = vmatprep.subr.mxu0 0.0
      %1198 = vmatpush1.xpose.msra.mxu0 0.0
      %1199 = vmatprep.subr.mxu0 0.0
      %1200 = vmatpush1.xpose.msra.mxu0 0.0
      %1201 = vmatprep.subr.mxu0 0.0
      %1202 = vmatpush1.xpose.msra.mxu0 0.0
      %1203 = vmatprep.subr.mxu0 0.0
      %1204 = vmatpush1.xpose.msra.mxu0 0.0
      %1205 = vmatprep.subr.mxu0 0.0
      %1206 = vmatpush1.xpose.msra.mxu0 0.0
      %1207 = vmatprep.subr.mxu0 0.0
      %1208 = vmatpush1.xpose.msra.mxu0 0.0
      %1209 = vmatprep.subr.mxu0 0.0
      %1210 = vmatpush1.xpose.msra.mxu0 0.0
      %1211 = vmatprep.subr.mxu0 0.0
      %1212 = vmatpush1.xpose.msra.mxu0 0.0
      %1213 = vmatprep.subr.mxu0 0.0
      %1214 = vmatpush1.xpose.msra.mxu0 0.0
      %1215 = vmatprep.subr.mxu0 0.0
      %1216 = vmatpush1.xpose.msra.mxu0 0.0
      %1217 = vmatprep.subr.mxu0 0.0
      %1218 = vmatpush1.xpose.msra.mxu0 0.0
      %1219 = vmatprep.subr.mxu0 0.0
      %1220 = vmatpush1.xpose.msra.mxu0 0.0
      %1221 = vmatprep.subr.mxu0 0.0
      %1222 = vmatpush1.xpose.msra.mxu0 0.0
      %1223 = vmatprep.subr.mxu0 0.0
      %1224 = vmatpush1.xpose.msra.mxu0 0.0
      %1225 = vmatprep.subr.mxu0 0.0
      %1226 = vmatpush1.xpose.msra.mxu0 0.0
      %1227 = vmatprep.subr.mxu0 0.0
      %1228 = vmatpush1.xpose.msra.mxu0 0.0
      %1229 = vmatprep.subr.mxu0 0.0
      %1230 = vmatpush1.xpose.msra.mxu0 0.0
      %1231 = vmatprep.subr.mxu0 0.0
      %1232 = vmatpush1.xpose.msra.mxu0 0.0
      %1233 = vmatprep.mubr.f32.mxu0 0.0
      %1234 = vmatmul.mubr.f32.gmra.mrb[0].mxu0 %v1165
      %v1235 = vpop.f32.mrb[0].mxu0
      %v1236 = vadd.f32 0.0, %v1235
      %v1237 = vpop.f32.mrb[0].mxu0
      %1238 = vdwg.mxu0
      %v1239 = vmul.f32 %v1236, 0.35355338
      %v1240 = vadd.f32 %v1239, %v481
      %v1241 = vsel %vm656, %v1240, -inf
      %1242 = vmax.xlane.f32.xlu0 %v1241
      %v1243 = vpop.xlane.xlu0 %1242
      %v1244 = vsub.f32 %v1240, %v1243
      %v1245 = vmul.f32 %v1244, 1.442695
      %v1246 = vpow.pop %v1245
      %v1247 = vsel %vm656, %v1246, 0.0
      %1248 = vadd.xlane.f32.xlu0 %v1247
      %v1249 = vpop.xlane.xlu0 %1248
      %v1250 = vrcp.pop %v1249
      %v1251 = vmul.f32 %v1246, %v1250
      %1252 = vrot.lane.b32.xlu0 %v645, 48
      %v1253 = vpop.permute.xlu0 %1252
      %v1256 = vsel %vm656, %v1251, 0
      %1258 = vmatprep.subr.mxu0 0.0
      %1259 = vmatpush1.msra.mxu0 %v1253
      %1260 = vmatprep.subr.mxu0 0.0
      %1261 = vmatpush1.msra.mxu0 0.0
      %1262 = vmatprep.subr.mxu0 0.0
      %1263 = vmatpush1.msra.mxu0 0.0
      %1264 = vmatprep.subr.mxu0 0.0
      %1265 = vmatpush1.msra.mxu0 0.0
      %1266 = vmatprep.subr.mxu0 0.0
      %1267 = vmatpush1.msra.mxu0 0.0
      %1268 = vmatprep.subr.mxu0 0.0
      %1269 = vmatpush1.msra.mxu0 0.0
      %1270 = vmatprep.subr.mxu0 0.0
      %1271 = vmatpush1.msra.mxu0 0.0
      %1272 = vmatprep.subr.mxu0 0.0
      %1273 = vmatpush1.msra.mxu0 0.0
      %1274 = vmatprep.subr.mxu0 0.0
      %1275 = vmatpush1.msra.mxu0 0.0
      %1276 = vmatprep.subr.mxu0 0.0
      %1277 = vmatpush1.msra.mxu0 0.0
      %1278 = vmatprep.subr.mxu0 0.0
      %1279 = vmatpush1.msra.mxu0 0.0
      %1280 = vmatprep.subr.mxu0 0.0
      %1281 = vmatpush1.msra.mxu0 0.0
      %1282 = vmatprep.subr.mxu0 0.0
      %1283 = vmatpush1.msra.mxu0 0.0
      %1284 = vmatprep.subr.mxu0 0.0
      %1285 = vmatpush1.msra.mxu0 0.0
      %1286 = vmatprep.subr.mxu0 0.0
      %1287 = vmatpush1.msra.mxu0 0.0
      %1288 = vmatprep.subr.mxu0 0.0
      %1289 = vmatpush1.msra.mxu0 0.0
      %1290 = vmatprep.subr.mxu0 0.0
      %1291 = vmatpush1.msra.mxu0 0.0
      %1292 = vmatprep.subr.mxu0 0.0
      %1293 = vmatpush1.msra.mxu0 0.0
      %1294 = vmatprep.subr.mxu0 0.0
      %1295 = vmatpush1.msra.mxu0 0.0
      %1296 = vmatprep.subr.mxu0 0.0
      %1297 = vmatpush1.msra.mxu0 0.0
      %1298 = vmatprep.subr.mxu0 0.0
      %1299 = vmatpush1.msra.mxu0 0.0
      %1300 = vmatprep.subr.mxu0 0.0
      %1301 = vmatpush1.msra.mxu0 0.0
      %1302 = vmatprep.subr.mxu0 0.0
      %1303 = vmatpush1.msra.mxu0 0.0
      %1304 = vmatprep.subr.mxu0 0.0
      %1305 = vmatpush1.msra.mxu0 0.0
      %1306 = vmatprep.subr.mxu0 0.0
      %1307 = vmatpush1.msra.mxu0 0.0
      %1308 = vmatprep.subr.mxu0 0.0
      %1309 = vmatpush1.msra.mxu0 0.0
      %1310 = vmatprep.subr.mxu0 0.0
      %1311 = vmatpush1.msra.mxu0 0.0
      %1312 = vmatprep.subr.mxu0 0.0
      %1313 = vmatpush1.msra.mxu0 0.0
      %1314 = vmatprep.subr.mxu0 0.0
      %1315 = vmatpush1.msra.mxu0 0.0
      %1316 = vmatprep.subr.mxu0 0.0
      %1317 = vmatpush1.msra.mxu0 0.0
      %1318 = vmatprep.subr.mxu0 0.0
      %1319 = vmatpush1.msra.mxu0 0.0
      %1320 = vmatprep.subr.mxu0 0.0
      %1321 = vmatpush1.msra.mxu0 0.0
      %1322 = vmatprep.mubr.f32.mxu0 0.0
      %1323 = vmatmul.mubr.f32.gmra.mrb[0].mxu0 %v1256
      %v1324 = vpop.f32.mrb[0].mxu0
      %v1325 = vadd.f32 0.0, %v1324
      %v1326 = vpop.f32.mrb[0].mxu0
      %1327 = vdwg.mxu0
      %1328 = vrot.lane.b32.xlu0 %v648, 112
      %v1329 = vpop.permute.xlu0 %1328
      %1330 = vrot.lane.b32.xlu0 %v649, 112
      %v1331 = vpop.permute.xlu0 %1330
      %1332 = vrot.lane.b32.xlu0 %v650, 112
      %v1333 = vpop.permute.xlu0 %1332
      %1334 = vrot.lane.b32.xlu0 %v651, 112
      %v1335 = vpop.permute.xlu0 %1334
      %v1337 = vsel %vm656, %v1325, 0
      %v1339 = vsel %vm656, %v1329, 0
      %v1341 = vsel %vm656, %v1331, 0
      %v1343 = vsel %vm656, %v1333, 0
      %v1345 = vsel %vm656, %v1335, 0
      %1347 = vmatprep.subr.mxu0 0.0
      %1348 = vmatpush1.xpose.msra.mxu0 %v1339
      %1349 = vmatprep.subr.mxu0 0.0
      %1350 = vmatpush1.xpose.msra.mxu0 %v1341
      %1351 = vmatprep.subr.mxu0 0.0
      %1352 = vmatpush1.xpose.msra.mxu0 %v1343
      %1353 = vmatprep.subr.mxu0 0.0
      %1354 = vmatpush1.xpose.msra.mxu0 %v1345
      %1355 = vmatprep.subr.mxu0 0.0
      %1356 = vmatpush1.xpose.msra.mxu0 0.0
      %1357 = vmatprep.subr.mxu0 0.0
      %1358 = vmatpush1.xpose.msra.mxu0 0.0
      %1359 = vmatprep.subr.mxu0 0.0
      %1360 = vmatpush1.xpose.msra.mxu0 0.0
      %1361 = vmatprep.subr.mxu0 0.0
      %1362 = vmatpush1.xpose.msra.mxu0 0.0
      %1363 = vmatprep.subr.mxu0 0.0
      %1364 = vmatpush1.xpose.msra.mxu0 0.0
      %1365 = vmatprep.subr.mxu0 0.0
      %1366 = vmatpush1.xpose.msra.mxu0 0.0
      %1367 = vmatprep.subr.mxu0 0.0
      %1368 = vmatpush1.xpose.msra.mxu0 0.0
      %1369 = vmatprep.subr.mxu0 0.0
      %1370 = vmatpush1.xpose.msra.mxu0 0.0
      %1371 = vmatprep.subr.mxu0 0.0
      %1372 = vmatpush1.xpose.msra.mxu0 0.0
      %1373 = vmatprep.subr.mxu0 0.0
      %1374 = vmatpush1.xpose.msra.mxu0 0.0
      %1375 = vmatprep.subr.mxu0 0.0
      %1376 = vmatpush1.xpose.msra.mxu0 0.0
      %1377 = vmatprep.subr.mxu0 0.0
      %1378 = vmatpush1.xpose.msra.mxu0 0.0
      %1379 = vmatprep.subr.mxu0 0.0
      %1380 = vmatpush1.xpose.msra.mxu0 0.0
      %1381 = vmatprep.subr.mxu0 0.0
      %1382 = vmatpush1.xpose.msra.mxu0 0.0
      %1383 = vmatprep.subr.mxu0 0.0
      %1384 = vmatpush1.xpose.msra.mxu0 0.0
      %1385 = vmatprep.subr.mxu0 0.0
      %1386 = vmatpush1.xpose.msra.mxu0 0.0
      %1387 = vmatprep.subr.mxu0 0.0
      %1388 = vmatpush1.xpose.msra.mxu0 0.0
      %1389 = vmatprep.subr.mxu0 0.0
      %1390 = vmatpush1.xpose.msra.mxu0 0.0
      %1391 = vmatprep.subr.mxu0 0.0
      %1392 = vmatpush1.xpose.msra.mxu0 0.0
      %1393 = vmatprep.subr.mxu0 0.0
      %1394 = vmatpush1.xpose.msra.mxu0 0.0
      %1395 = vmatprep.subr.mxu0 0.0
      %1396 = vmatpush1.xpose.msra.mxu0 0.0
      %1397 = vmatprep.subr.mxu0 0.0
      %1398 = vmatpush1.xpose.msra.mxu0 0.0
      %1399 = vmatprep.subr.mxu0 0.0
      %1400 = vmatpush1.xpose.msra.mxu0 0.0
      %1401 = vmatprep.subr.mxu0 0.0
      %1402 = vmatpush1.xpose.msra.mxu0 0.0
      %1403 = vmatprep.subr.mxu0 0.0
      %1404 = vmatpush1.xpose.msra.mxu0 0.0
      %1405 = vmatprep.subr.mxu0 0.0
      %1406 = vmatpush1.xpose.msra.mxu0 0.0
      %1407 = vmatprep.subr.mxu0 0.0
      %1408 = vmatpush1.xpose.msra.mxu0 0.0
      %1409 = vmatprep.subr.mxu0 0.0
      %1410 = vmatpush1.xpose.msra.mxu0 0.0
      %1411 = vmatprep.mubr.f32.mxu0 0.0
      %1412 = vmatmul.mubr.f32.gmra.mrb[0].mxu0 %v1337
      %v1413 = vpop.f32.mrb[0].mxu0
      %v1414 = vadd.f32 0.0, %v1413
      %v1415 = vpop.f32.mrb[0].mxu0
      %1416 = vdwg.mxu0
      %v1417 = vadd.f32 %v1158, %v1414
      %1418 = vrot.lane.b32.xlu0 %v645, 104
      %v1419 = vpop.permute.xlu0 %1418
      %1420 = vrot.lane.b32.xlu0 %v645, 72
      %v1421 = vpop.permute.xlu0 %1420
      %v1422 = vsel %vm656, %v1419, 0
      %v1424 = vsel %vm656, %v1421, 0
      %1426 = vmatprep.subr.mxu0 0.0
      %1427 = vmatpush1.xpose.msra.mxu0 %v1424
      %1428 = vmatprep.subr.mxu0 0.0
      %1429 = vmatpush1.xpose.msra.mxu0 0.0
      %1430 = vmatprep.subr.mxu0 0.0
      %1431 = vmatpush1.xpose.msra.mxu0 0.0
      %1432 = vmatprep.subr.mxu0 0.0
      %1433 = vmatpush1.xpose.msra.mxu0 0.0
      %1434 = vmatprep.subr.mxu0 0.0
      %1435 = vmatpush1.xpose.msra.mxu0 0.0
      %1436 = vmatprep.subr.mxu0 0.0
      %1437 = vmatpush1.xpose.msra.mxu0 0.0
      %1438 = vmatprep.subr.mxu0 0.0
      %1439 = vmatpush1.xpose.msra.mxu0 0.0
      %1440 = vmatprep.subr.mxu0 0.0
      %1441 = vmatpush1.xpose.msra.mxu0 0.0
      %1442 = vmatprep.subr.mxu0 0.0
      %1443 = vmatpush1.xpose.msra.mxu0 0.0
      %1444 = vmatprep.subr.mxu0 0.0
      %1445 = vmatpush1.xpose.msra.mxu0 0.0
      %1446 = vmatprep.subr.mxu0 0.0
      %1447 = vmatpush1.xpose.msra.mxu0 0.0
      %1448 = vmatprep.subr.mxu0 0.0
      %1449 = vmatpush1.xpose.msra.mxu0 0.0
      %1450 = vmatprep.subr.mxu0 0.0
      %1451 = vmatpush1.xpose.msra.mxu0 0.0
      %1452 = vmatprep.subr.mxu0 0.0
      %1453 = vmatpush1.xpose.msra.mxu0 0.0
      %1454 = vmatprep.subr.mxu0 0.0
      %1455 = vmatpush1.xpose.msra.mxu0 0.0
      %1456 = vmatprep.subr.mxu0 0.0
      %1457 = vmatpush1.xpose.msra.mxu0 0.0
      %1458 = vmatprep.subr.mxu0 0.0
      %1459 = vmatpush1.xpose.msra.mxu0 0.0
      %1460 = vmatprep.subr.mxu0 0.0
      %1461 = vmatpush1.xpose.msra.mxu0 0.0
      %1462 = vmatprep.subr.mxu0 0.0
      %1463 = vmatpush1.xpose.msra.mxu0 0.0
      %1464 = vmatprep.subr.mxu0 0.0
      %1465 = vmatpush1.xpose.msra.mxu0 0.0
      %1466 = vmatprep.subr.mxu0 0.0
      %1467 = vmatpush1.xpose.msra.mxu0 0.0
      %1468 = vmatprep.subr.mxu0 0.0
      %1469 = vmatpush1.xpose.msra.mxu0 0.0
      %1470 = vmatprep.subr.mxu0 0.0
      %1471 = vmatpush1.xpose.msra.mxu0 0.0
      %1472 = vmatprep.subr.mxu0 0.0
      %1473 = vmatpush1.xpose.msra.mxu0 0.0
      %1474 = vmatprep.subr.mxu0 0.0
      %1475 = vmatpush1.xpose.msra.mxu0 0.0
      %1476 = vmatprep.subr.mxu0 0.0
      %1477 = vmatpush1.xpose.msra.mxu0 0.0
      %1478 = vmatprep.subr.mxu0 0.0
      %1479 = vmatpush1.xpose.msra.mxu0 0.0
      %1480 = vmatprep.subr.mxu0 0.0
      %1481 = vmatpush1.xpose.msra.mxu0 0.0
      %1482 = vmatprep.subr.mxu0 0.0
      %1483 = vmatpush1.xpose.msra.mxu0 0.0
      %1484 = vmatprep.subr.mxu0 0.0
      %1485 = vmatpush1.xpose.msra.mxu0 0.0
      %1486 = vmatprep.subr.mxu0 0.0
      %1487 = vmatpush1.xpose.msra.mxu0 0.0
      %1488 = vmatprep.subr.mxu0 0.0
      %1489 = vmatpush1.xpose.msra.mxu0 0.0
      %1490 = vmatprep.mubr.f32.mxu0 0.0
      %1491 = vmatmul.mubr.f32.gmra.mrb[0].mxu0 %v1422
      %v1492 = vpop.f32.mrb[0].mxu0
      %v1493 = vadd.f32 0.0, %v1492
      %v1494 = vpop.f32.mrb[0].mxu0
      %1495 = vdwg.mxu0
      %v1496 = vmul.f32 %v1493, 0.35355338
      %v1497 = vadd.f32 %v1496, %v481
      %v1498 = vsel %vm656, %v1497, -inf
      %1499 = vmax.xlane.f32.xlu0 %v1498
      %v1500 = vpop.xlane.xlu0 %1499
      %v1501 = vsub.f32 %v1497, %v1500
      %v1502 = vmul.f32 %v1501, 1.442695
      %v1503 = vpow.pop %v1502
      %v1504 = vsel %vm656, %v1503, 0.0
      %1505 = vadd.xlane.f32.xlu0 %v1504
      %v1506 = vpop.xlane.xlu0 %1505
      %v1507 = vrcp.pop %v1506
      %v1508 = vmul.f32 %v1503, %v1507
      %1509 = vrot.lane.b32.xlu0 %v645, 40
      %v1510 = vpop.permute.xlu0 %1509
      %v1513 = vsel %vm656, %v1508, 0
      %1515 = vmatprep.subr.mxu0 0.0
      %1516 = vmatpush1.msra.mxu0 %v1510
      %1517 = vmatprep.subr.mxu0 0.0
      %1518 = vmatpush1.msra.mxu0 0.0
      %1519 = vmatprep.subr.mxu0 0.0
      %1520 = vmatpush1.msra.mxu0 0.0
      %1521 = vmatprep.subr.mxu0 0.0
      %1522 = vmatpush1.msra.mxu0 0.0
      %1523 = vmatprep.subr.mxu0 0.0
      %1524 = vmatpush1.msra.mxu0 0.0
      %1525 = vmatprep.subr.mxu0 0.0
      %1526 = vmatpush1.msra.mxu0 0.0
      %1527 = vmatprep.subr.mxu0 0.0
      %1528 = vmatpush1.msra.mxu0 0.0
      %1529 = vmatprep.subr.mxu0 0.0
      %1530 = vmatpush1.msra.mxu0 0.0
      %1531 = vmatprep.subr.mxu0 0.0
      %1532 = vmatpush1.msra.mxu0 0.0
      %1533 = vmatprep.subr.mxu0 0.0
      %1534 = vmatpush1.msra.mxu0 0.0
      %1535 = vmatprep.subr.mxu0 0.0
      %1536 = vmatpush1.msra.mxu0 0.0
      %1537 = vmatprep.subr.mxu0 0.0
      %1538 = vmatpush1.msra.mxu0 0.0
      %1539 = vmatprep.subr.mxu0 0.0
      %1540 = vmatpush1.msra.mxu0 0.0
      %1541 = vmatprep.subr.mxu0 0.0
      %1542 = vmatpush1.msra.mxu0 0.0
      %1543 = vmatprep.subr.mxu0 0.0
      %1544 = vmatpush1.msra.mxu0 0.0
      %1545 = vmatprep.subr.mxu0 0.0
      %1546 = vmatpush1.msra.mxu0 0.0
      %1547 = vmatprep.subr.mxu0 0.0
      %1548 = vmatpush1.msra.mxu0 0.0
      %1549 = vmatprep.subr.mxu0 0.0
      %1550 = vmatpush1.msra.mxu0 0.0
      %1551 = vmatprep.subr.mxu0 0.0
      %1552 = vmatpush1.msra.mxu0 0.0
      %1553 = vmatprep.subr.mxu0 0.0
      %1554 = vmatpush1.msra.mxu0 0.0
      %1555 = vmatprep.subr.mxu0 0.0
      %1556 = vmatpush1.msra.mxu0 0.0
      %1557 = vmatprep.subr.mxu0 0.0
      %1558 = vmatpush1.msra.mxu0 0.0
      %1559 = vmatprep.subr.mxu0 0.0
      %1560 = vmatpush1.msra.mxu0 0.0
      %1561 = vmatprep.subr.mxu0 0.0
      %1562 = vmatpush1.msra.mxu0 0.0
      %1563 = vmatprep.subr.mxu0 0.0
      %1564 = vmatpush1.msra.mxu0 0.0
      %1565 = vmatprep.subr.mxu0 0.0
      %1566 = vmatpush1.msra.mxu0 0.0
      %1567 = vmatprep.subr.mxu0 0.0
      %1568 = vmatpush1.msra.mxu0 0.0
      %1569 = vmatprep.subr.mxu0 0.0
      %1570 = vmatpush1.msra.mxu0 0.0
      %1571 = vmatprep.subr.mxu0 0.0
      %1572 = vmatpush1.msra.mxu0 0.0
      %1573 = vmatprep.subr.mxu0 0.0
      %1574 = vmatpush1.msra.mxu0 0.0
      %1575 = vmatprep.subr.mxu0 0.0
      %1576 = vmatpush1.msra.mxu0 0.0
      %1577 = vmatprep.subr.mxu0 0.0
      %1578 = vmatpush1.msra.mxu0 0.0
      %1579 = vmatprep.mubr.f32.mxu0 0.0
      %1580 = vmatmul.mubr.f32.gmra.mrb[0].mxu0 %v1513
      %v1581 = vpop.f32.mrb[0].mxu0
      %v1582 = vadd.f32 0.0, %v1581
      %v1583 = vpop.f32.mrb[0].mxu0
      %1584 = vdwg.mxu0
      %1585 = vrot.lane.b32.xlu0 %v648, 104
      %v1586 = vpop.permute.xlu0 %1585
      %1587 = vrot.lane.b32.xlu0 %v649, 104
      %v1588 = vpop.permute.xlu0 %1587
      %1589 = vrot.lane.b32.xlu0 %v650, 104
      %v1590 = vpop.permute.xlu0 %1589
      %1591 = vrot.lane.b32.xlu0 %v651, 104
      %v1592 = vpop.permute.xlu0 %1591
      %v1594 = vsel %vm656, %v1582, 0
      %v1596 = vsel %vm656, %v1586, 0
      %v1598 = vsel %vm656, %v1588, 0
      %v1600 = vsel %vm656, %v1590, 0
      %v1602 = vsel %vm656, %v1592, 0
      %1604 = vmatprep.subr.mxu0 0.0
      %1605 = vmatpush1.xpose.msra.mxu0 %v1596
      %1606 = vmatprep.subr.mxu0 0.0
      %1607 = vmatpush1.xpose.msra.mxu0 %v1598
      %1608 = vmatprep.subr.mxu0 0.0
      %1609 = vmatpush1.xpose.msra.mxu0 %v1600
      %1610 = vmatprep.subr.mxu0 0.0
      %1611 = vmatpush1.xpose.msra.mxu0 %v1602
      %1612 = vmatprep.subr.mxu0 0.0
      %1613 = vmatpush1.xpose.msra.mxu0 0.0
      %1614 = vmatprep.subr.mxu0 0.0
      %1615 = vmatpush1.xpose.msra.mxu0 0.0
      %1616 = vmatprep.subr.mxu0 0.0
      %1617 = vmatpush1.xpose.msra.mxu0 0.0
      %1618 = vmatprep.subr.mxu0 0.0
      %1619 = vmatpush1.xpose.msra.mxu0 0.0
      %1620 = vmatprep.subr.mxu0 0.0
      %1621 = vmatpush1.xpose.msra.mxu0 0.0
      %1622 = vmatprep.subr.mxu0 0.0
      %1623 = vmatpush1.xpose.msra.mxu0 0.0
      %1624 = vmatprep.subr.mxu0 0.0
      %1625 = vmatpush1.xpose.msra.mxu0 0.0
      %1626 = vmatprep.subr.mxu0 0.0
      %1627 = vmatpush1.xpose.msra.mxu0 0.0
      %1628 = vmatprep.subr.mxu0 0.0
      %1629 = vmatpush1.xpose.msra.mxu0 0.0
      %1630 = vmatprep.subr.mxu0 0.0
      %1631 = vmatpush1.xpose.msra.mxu0 0.0
      %1632 = vmatprep.subr.mxu0 0.0
      %1633 = vmatpush1.xpose.msra.mxu0 0.0
      %1634 = vmatprep.subr.mxu0 0.0
      %1635 = vmatpush1.xpose.msra.mxu0 0.0
      %1636 = vmatprep.subr.mxu0 0.0
      %1637 = vmatpush1.xpose.msra.mxu0 0.0
      %1638 = vmatprep.subr.mxu0 0.0
      %1639 = vmatpush1.xpose.msra.mxu0 0.0
      %1640 = vmatprep.subr.mxu0 0.0
      %1641 = vmatpush1.xpose.msra.mxu0 0.0
      %1642 = vmatprep.subr.mxu0 0.0
      %1643 = vmatpush1.xpose.msra.mxu0 0.0
      %1644 = vmatprep.subr.mxu0 0.0
      %1645 = vmatpush1.xpose.msra.mxu0 0.0
      %1646 = vmatprep.subr.mxu0 0.0
      %1647 = vmatpush1.xpose.msra.mxu0 0.0
      %1648 = vmatprep.subr.mxu0 0.0
      %1649 = vmatpush1.xpose.msra.mxu0 0.0
      %1650 = vmatprep.subr.mxu0 0.0
      %1651 = vmatpush1.xpose.msra.mxu0 0.0
      %1652 = vmatprep.subr.mxu0 0.0
      %1653 = vmatpush1.xpose.msra.mxu0 0.0
      %1654 = vmatprep.subr.mxu0 0.0
      %1655 = vmatpush1.xpose.msra.mxu0 0.0
      %1656 = vmatprep.subr.mxu0 0.0
      %1657 = vmatpush1.xpose.msra.mxu0 0.0
      %1658 = vmatprep.subr.mxu0 0.0
      %1659 = vmatpush1.xpose.msra.mxu0 0.0
      %1660 = vmatprep.subr.mxu0 0.0
      %1661 = vmatpush1.xpose.msra.mxu0 0.0
      %1662 = vmatprep.subr.mxu0 0.0
      %1663 = vmatpush1.xpose.msra.mxu0 0.0
      %1664 = vmatprep.subr.mxu0 0.0
      %1665 = vmatpush1.xpose.msra.mxu0 0.0
      %1666 = vmatprep.subr.mxu0 0.0
      %1667 = vmatpush1.xpose.msra.mxu0 0.0
      %1668 = vmatprep.mubr.f32.mxu0 0.0
      %1669 = vmatmul.mubr.f32.gmra.mrb[0].mxu0 %v1594
      %v1670 = vpop.f32.mrb[0].mxu0
      %v1671 = vadd.f32 0.0, %v1670
      %v1672 = vpop.f32.mrb[0].mxu0
      %1673 = vdwg.mxu0
      %v1674 = vadd.f32 %v1417, %v1671
      %v1676 = vlaneseq
      %v1677 = vshrl.u32 %v1676, 7
      %v1678 = vsub.s32 0, %v1677
      %v1679 = vrot.slane %v652, %v1678
      %v1681 = vadd.f32 %v1674, %v1679
      %v1682 = vadd.f32 %v480, %v1681
      %v1683 = vld [vmem:[%s8] sm:$0x1]
      %v1684 = vld [vmem:[%s9] sm:$0x1]
      %v1685 = vsel %vm484, %v1682, 0.0
      %1686 = vadd.xlane.f32.xlu0 %v1685
      %v1687 = vpop.xlane.xlu0 %1686
      %v1688 = vmul.f32 %v1687, %v488
      %v1689 = vsub.f32 %v1682, %v1688
      %v1690 = vmul.f32 %v1689, %v1689
      %v1691 = vsel %vm484, %v1690, 0.0
      %1692 = vadd.xlane.f32.xlu0 %v1691
      %v1693 = vpop.xlane.xlu0 %1692
      %v1694 = vmul.f32 %v1693, 0.032258064
      %v1695 = vrsqrt.pop %v1694
      %v1696 = vmul.f32 %v1694, %v1695
      %vm1697 = vcmp.eq.f32.partialorder %v1694, inf
      %v1698 = vsel %vm1697, %v1694, %v1696
      %vm1699 = vcmp.eq.f32.partialorder %v1694, 0.0
      %v1700 = vand.u32 %v1694, 2147483648
      %v1701 = vsel %vm1699, %v1700, %v1698
      %v1702 = vadd.f32 %v1701, 1e-06
      %v1703 = vrcp.pop %v1702
      %v1704 = vmul.f32 %v1689, %v1703
      %v1706 = vlaneseq
      %v1707 = vshrl.u32 %v1706, 7
      %v1708 = vsub.s32 0, %v1707
      %v1709 = vrot.slane %v1683, %v1708
      %v1711 = vmul.f32 %v1709, %v1704
      %v1713 = vlaneseq
      %v1714 = vshrl.u32 %v1713, 7
      %v1715 = vsub.s32 0, %v1714
      %v1716 = vrot.slane %v1684, %v1715
      %v1718 = vadd.f32 %v1711, %v1716
      %v1719 = vld [vmem:[%s10] sm:$0xff]
      %v1720 = vld [vmem:[%s10 + $0x8] sm:$0xff]
      %v1721 = vld [vmem:[%s10 + $0x10] sm:$0xff]
      %v1722 = vld [vmem:[%s10 + $0x18] sm:$0xff]
      %v1723 = vld [vmem:[%s10 + $0x20] sm:$0xff]
      %v1724 = vld [vmem:[%s10 + $0x28] sm:$0xff]
      %v1725 = vld [vmem:[%s10 + $0x30] sm:$0xff]
      %v1726 = vld [vmem:[%s10 + $0x38] sm:$0xff]
      %v1727 = vld [vmem:[%s11] sm:$0x1]
      %v1729 = vlaneseq
      %v1730 = vshrl.u32 %v1729, 7
      %v1731 = vsub.s32 0, %v1730
      %v1732 = vrot.slane %v1727, %v1731
      %v1735 = vsel %vm484, %v1718, 0
      %v1738 = vsel %vm484, %v1719, 0
      %v1741 = vsel %vm484, %v1720, 0
      %v1744 = vsel %vm484, %v1721, 0
      %v1747 = vsel %vm484, %v1722, 0
      %v1750 = vsel %vm484, %v1723, 0
      %v1753 = vsel %vm484, %v1724, 0
      %v1756 = vsel %vm484, %v1725, 0
      %v1759 = vsel %vm484, %v1726, 0
      %1761 = vmatprep.subr.mxu0 0.0
      %1762 = vmatpush1.xpose.msra.mxu0 %v1738
      %1763 = vmatprep.subr.mxu0 0.0
      %1764 = vmatpush1.xpose.msra.mxu0 %v1741
      %1765 = vmatprep.subr.mxu0 0.0
      %1766 = vmatpush1.xpose.msra.mxu0 %v1744
      %1767 = vmatprep.subr.mxu0 0.0
      %1768 = vmatpush1.xpose.msra.mxu0 %v1747
      %1769 = vmatprep.subr.mxu0 0.0
      %1770 = vmatpush1.xpose.msra.mxu0 %v1750
      %1771 = vmatprep.subr.mxu0 0.0
      %1772 = vmatpush1.xpose.msra.mxu0 %v1753
      %1773 = vmatprep.subr.mxu0 0.0
      %1774 = vmatpush1.xpose.msra.mxu0 %v1756
      %1775 = vmatprep.subr.mxu0 0.0
      %1776 = vmatpush1.xpose.msra.mxu0 %v1759
      %1777 = vmatprep.subr.mxu0 0.0
      %1778 = vmatpush1.xpose.msra.mxu0 0.0
      %1779 = vmatprep.subr.mxu0 0.0
      %1780 = vmatpush1.xpose.msra.mxu0 0.0
      %1781 = vmatprep.subr.mxu0 0.0
      %1782 = vmatpush1.xpose.msra.mxu0 0.0
      %1783 = vmatprep.subr.mxu0 0.0
      %1784 = vmatpush1.xpose.msra.mxu0 0.0
      %1785 = vmatprep.subr.mxu0 0.0
      %1786 = vmatpush1.xpose.msra.mxu0 0.0
      %1787 = vmatprep.subr.mxu0 0.0
      %1788 = vmatpush1.xpose.msra.mxu0 0.0
      %1789 = vmatprep.subr.mxu0 0.0
      %1790 = vmatpush1.xpose.msra.mxu0 0.0
      %1791 = vmatprep.subr.mxu0 0.0
      %1792 = vmatpush1.xpose.msra.mxu0 0.0
      %1793 = vmatprep.subr.mxu0 0.0
      %1794 = vmatpush1.xpose.msra.mxu0 0.0
      %1795 = vmatprep.subr.mxu0 0.0
      %1796 = vmatpush1.xpose.msra.mxu0 0.0
      %1797 = vmatprep.subr.mxu0 0.0
      %1798 = vmatpush1.xpose.msra.mxu0 0.0
      %1799 = vmatprep.subr.mxu0 0.0
      %1800 = vmatpush1.xpose.msra.mxu0 0.0
      %1801 = vmatprep.subr.mxu0 0.0
      %1802 = vmatpush1.xpose.msra.mxu0 0.0
      %1803 = vmatprep.subr.mxu0 0.0
      %1804 = vmatpush1.xpose.msra.mxu0 0.0
      %1805 = vmatprep.subr.mxu0 0.0
      %1806 = vmatpush1.xpose.msra.mxu0 0.0
      %1807 = vmatprep.subr.mxu0 0.0
      %1808 = vmatpush1.xpose.msra.mxu0 0.0
      %1809 = vmatprep.subr.mxu0 0.0
      %1810 = vmatpush1.xpose.msra.mxu0 0.0
      %1811 = vmatprep.subr.mxu0 0.0
      %1812 = vmatpush1.xpose.msra.mxu0 0.0
      %1813 = vmatprep.subr.mxu0 0.0
      %1814 = vmatpush1.xpose.msra.mxu0 0.0
      %1815 = vmatprep.subr.mxu0 0.0
      %1816 = vmatpush1.xpose.msra.mxu0 0.0
      %1817 = vmatprep.subr.mxu0 0.0
      %1818 = vmatpush1.xpose.msra.mxu0 0.0
      %1819 = vmatprep.subr.mxu0 0.0
      %1820 = vmatpush1.xpose.msra.mxu0 0.0
      %1821 = vmatprep.subr.mxu0 0.0
      %1822 = vmatpush1.xpose.msra.mxu0 0.0
      %1823 = vmatprep.subr.mxu0 0.0
      %1824 = vmatpush1.xpose.msra.mxu0 0.0
      %1825 = vmatprep.mubr.f32.mxu0 0.0
      %1826 = vmatmul.mubr.f32.gmra.mrb[0].mxu0 %v1735
      %v1827 = vpop.f32.mrb[0].mxu0
      %v1828 = vadd.f32 %v1732, %v1827
      %v1829 = vpop.f32.mrb[0].mxu0
      %1830 = vdwg.mxu0
      %v1831 = vmax.f32 %v1828, 0.0
      %v1832 = vld [vmem:[%s12] sm:$0xff]
      %v1833 = vld [vmem:[%s12 + $0x8] sm:$0xff]
      %v1834 = vld [vmem:[%s12 + $0x10] sm:$0xff]
      %v1835 = vld [vmem:[%s12 + $0x18] sm:$0xff]
      %vm1836 = vcmask 523264
      %v1838 = vsel %vm1836, %v1831, 0
      %v1841 = vsel %vm1836, %v1832, 0
      %v1844 = vsel %vm1836, %v1833, 0
      %v1847 = vsel %vm1836, %v1834, 0
      %v1850 = vsel %vm1836, %v1835, 0
      %1852 = vmatprep.subr.mxu0 0.0
      %1853 = vmatpush1.xpose.msra.mxu0 %v1841
      %1854 = vmatprep.subr.mxu0 0.0
      %1855 = vmatpush1.xpose.msra.mxu0 %v1844
      %1856 = vmatprep.subr.mxu0 0.0
      %1857 = vmatpush1.xpose.msra.mxu0 %v1847
      %1858 = vmatprep.subr.mxu0 0.0
      %1859 = vmatpush1.xpose.msra.mxu0 %v1850
      %1860 = vmatprep.subr.mxu0 0.0
      %1861 = vmatpush1.xpose.msra.mxu0 0.0
      %1862 = vmatprep.subr.mxu0 0.0
      %1863 = vmatpush1.xpose.msra.mxu0 0.0
      %1864 = vmatprep.subr.mxu0 0.0
      %1865 = vmatpush1.xpose.msra.mxu0 0.0
      %1866 = vmatprep.subr.mxu0 0.0
      %1867 = vmatpush1.xpose.msra.mxu0 0.0
      %1868 = vmatprep.subr.mxu0 0.0
      %1869 = vmatpush1.xpose.msra.mxu0 0.0
      %1870 = vmatprep.subr.mxu0 0.0
      %1871 = vmatpush1.xpose.msra.mxu0 0.0
      %1872 = vmatprep.subr.mxu0 0.0
      %1873 = vmatpush1.xpose.msra.mxu0 0.0
      %1874 = vmatprep.subr.mxu0 0.0
      %1875 = vmatpush1.xpose.msra.mxu0 0.0
      %1876 = vmatprep.subr.mxu0 0.0
      %1877 = vmatpush1.xpose.msra.mxu0 0.0
      %1878 = vmatprep.subr.mxu0 0.0
      %1879 = vmatpush1.xpose.msra.mxu0 0.0
      %1880 = vmatprep.subr.mxu0 0.0
      %1881 = vmatpush1.xpose.msra.mxu0 0.0
      %1882 = vmatprep.subr.mxu0 0.0
      %1883 = vmatpush1.xpose.msra.mxu0 0.0
      %1884 = vmatprep.subr.mxu0 0.0
      %1885 = vmatpush1.xpose.msra.mxu0 0.0
      %1886 = vmatprep.subr.mxu0 0.0
      %1887 = vmatpush1.xpose.msra.mxu0 0.0
      %1888 = vmatprep.subr.mxu0 0.0
      %1889 = vmatpush1.xpose.msra.mxu0 0.0
      %1890 = vmatprep.subr.mxu0 0.0
      %1891 = vmatpush1.xpose.msra.mxu0 0.0
      %1892 = vmatprep.subr.mxu0 0.0
      %1893 = vmatpush1.xpose.msra.mxu0 0.0
      %1894 = vmatprep.subr.mxu0 0.0
      %1895 = vmatpush1.xpose.msra.mxu0 0.0
      %1896 = vmatprep.subr.mxu0 0.0
      %1897 = vmatpush1.xpose.msra.mxu0 0.0
      %1898 = vmatprep.subr.mxu0 0.0
      %1899 = vmatpush1.xpose.msra.mxu0 0.0
      %1900 = vmatprep.subr.mxu0 0.0
      %1901 = vmatpush1.xpose.msra.mxu0 0.0
      %1902 = vmatprep.subr.mxu0 0.0
      %1903 = vmatpush1.xpose.msra.mxu0 0.0
      %1904 = vmatprep.subr.mxu0 0.0
      %1905 = vmatpush1.xpose.msra.mxu0 0.0
      %1906 = vmatprep.subr.mxu0 0.0
      %1907 = vmatpush1.xpose.msra.mxu0 0.0
      %1908 = vmatprep.subr.mxu0 0.0
      %1909 = vmatpush1.xpose.msra.mxu0 0.0
      %1910 = vmatprep.subr.mxu0 0.0
      %1911 = vmatpush1.xpose.msra.mxu0 0.0
      %1912 = vmatprep.subr.mxu0 0.0
      %1913 = vmatpush1.xpose.msra.mxu0 0.0
      %1914 = vmatprep.subr.mxu0 0.0
      %1915 = vmatpush1.xpose.msra.mxu0 0.0
      %1916 = vmatprep.mubr.f32.mxu0 0.0
      %1917 = vmatmul.mubr.f32.gmra.mrb[0].mxu0 %v1838
      %v1918 = vpop.f32.mrb[0].mxu0
      %v1919 = vadd.f32 0.0, %v1918
      %v1920 = vpop.f32.mrb[0].mxu0
      %1921 = vdwg.mxu0
      %v1922 = vadd.f32 %v1682, %v1919
      %v1923 = vld [vmem:[%s13] sm:$0x1]
      %v1925 = vlaneseq
      %v1926 = vshrl.u32 %v1925, 7
      %v1927 = vsub.s32 0, %v1926
      %v1928 = vrot.slane %v1923, %v1927
      %v1930 = vadd.f32 %v1922, %v1928
      %1931 = vst.msk [vmem:[%s479] sm:$0xff] %vm484, %v1930
      %p1932 = scmp.lt.s32.totalorder %s25, 1
      %s1933 = scalar_select %p1932, %s25, 1
      %s1934 = smul.addr %s1933, 8
      %s1935 = scalar_lea.vmem %s14, %s1934
      // Predicated region
      $region77: #{transformer_forward.6} parent=75 // pred_check
        %p1936 = pneg %p347
      $region78: #{transformer_forward.6} parent=75 // pred_check_branch
        %1938 = sbr.rel (%p1936) target = $region80
      $region79: #{transformer_forward.6} parent=75 // pred_region
        _
      $region80: #{transformer_forward.6} parent=75 // pred_fallthru
        _
    $region76: #{transformer_forward.6} parent=5 // pred_fallthru
      _
    %p1939 = scmp.le.s32.totalorder 2, %s20
    // Predicated region
    $region81: #{transformer_forward.6} parent=5 // pred_check
      %p1940 = pneg %p1939
    $region82: #{transformer_forward.6} parent=5 // pred_check_branch
      %1942 = sbr.rel (%p1940) target = $region84
    $region83: #{transformer_forward.6} parent=5 // pred_region
      %s1943 = ssub.s32 %s20, 2
      // Predicated region
      $region85: #{transformer_forward.6} parent=83 // pred_check
        %p1944 = pneg %p353
      $region86: #{transformer_forward.6} parent=83 // pred_check_branch
        %1946 = sbr.rel (%p1944) target = $region88
      $region87: #{transformer_forward.6} parent=83 // pred_region
        %p1947 = scmp.lt.s32.totalorder %s26, 1
        %s1948 = scalar_select %p1947, %s26, 1
        %s1949 = smul.addr %s1948, 8
        %s1950 = scalar_lea.vmem %s14, %s1949
      $region88: #{transformer_forward.6} parent=83 // pred_fallthru
        _
    $region84: #{transformer_forward.6} parent=5 // pred_fallthru
      _
  $region6: #{transformer_forward.6} parent=0 // loop_footer
    %s24 = sadd.s32 1, %s20
  $region7: #{transformer_forward.6} parent=0 // loop_footer_branch
    %19 = sbr.rel target = $region3
  $region8: #{transformer_forward.6} parent=0 // loop_exit
    _

</llo_original>
